<compile_context>
chip_gen: v7x
topology: tpu7x:2x2x1
jax: 0.10.0
libtpu: 0.0.40
codegen_flags: <defaults>
</compile_context>

<pallas_src>
import jax
import jax.numpy as jnp
import numpy as np
from jax.experimental import pallas as pl
from jax.experimental.pallas import tpu as pltpu

# Make the pure-JAX reference use f32 matmuls too (kernel passes it explicitly).
jax.config.update("jax_default_matmul_precision", "highest")

HIGHEST = jax.lax.Precision.HIGHEST
O_PAD = 128   # lane-dense output width; real output size is sliced off outside


# ----------------------------------------------------------------------------
# Pallas kernel: fused bidirectional LSTM over the whole (small) sequence + linear
# ----------------------------------------------------------------------------
def lstm_tagger_kernel(x_ref,        # (T, E)    embedded tokens
                       wih_ref,      # (E, 8H)   [fwd i,f,g,o | bwd i,f,g,o]
                       b_ih_ref,     # (1, 8H)   folded b_ih + b_hh, both dirs
                       whh_f_ref,    # (H, 4H)
                       whh_b_ref,    # (H, 4H)
                       wlin_ref,     # (2H, O_PAD)  rows = [fwd-half ; bwd-half]
                       b_lin_ref,    # (1, O_PAD)
                       out_ref,      # (T, O_PAD)
                       gx_ref,       # scratch (T, 8H): hoisted input projection
                       h_all_ref):   # scratch (T, 2H): per-step [h_fwd | h_bwd]
    T = x_ref.shape[0]
    H = whh_f_ref.shape[0]
    G = 4 * H

    # ---- hoisted input projection + bias for both directions (one matmul) ---
    gx_ref[...] = (
        jnp.dot(x_ref[...], wih_ref[...],
                preferred_element_type=jnp.float32, precision=HIGHEST)
        + b_ih_ref[...])

    # ---- fused bidirectional recurrence, fully unrolled (T is static) -------
    # Row 0 of h2/c2 is the forward direction, row 1 the backward direction.
    h2 = jnp.zeros((2, H), jnp.float32)
    c2 = jnp.zeros((2, H), jnp.float32)
    for t in range(T):                      # trace-time unroll: constant indices
        tb = T - 1 - t
        # Two small independent recurrent matmuls (their latencies overlap).
        gf = jnp.dot(h2[0:1, :], whh_f_ref[...],
                     preferred_element_type=jnp.float32, precision=HIGHEST) \
             + gx_ref[t:t + 1, 0:G]
        gb = jnp.dot(h2[1:2, :], whh_b_ref[...],
                     preferred_element_type=jnp.float32, precision=HIGHEST) \
             + gx_ref[tb:tb + 1, G:2 * G]
        gates = jnp.concatenate([gf, gb], axis=0)        # (2, 4H) == (2, 128)
        # Whole-block activations: 2 EUP passes for both directions' gates.
        sig = jax.nn.sigmoid(gates)
        th = jnp.tanh(gates)
        i = sig[:, 0 * H:1 * H]                          # PyTorch gate order
        f = sig[:, 1 * H:2 * H]
        g = th[:, 2 * H:3 * H]
        o = sig[:, 3 * H:4 * H]
        c2 = f * c2 + i * g
        h2 = o * jnp.tanh(c2)
        h_all_ref[t:t + 1, 0:H] = h2[0:1, :]             # forward half of row t
        h_all_ref[tb:tb + 1, H:2 * H] = h2[1:2, :]       # backward half of row tb

    # ---- final linear: concat(h_f, h_b) @ W^T + b as ONE lane-dense matmul --
    out_ref[...] = (
        jnp.dot(h_all_ref[...], wlin_ref[...],
                preferred_element_type=jnp.float32, precision=HIGHEST)
        + b_lin_ref[...])


# ----------------------------------------------------------------------------
# Wrapper (glue: embedding gather, weight packing, pallas_call plumbing)
# ----------------------------------------------------------------------------
def lstm_tagger_forward(token_ids, embeddings, params):
    # Embedding lookup (data-dependent gather) stays in plain JAX glue.
    x = jnp.take(embeddings, token_ids, axis=0).astype(jnp.float32)   # (T, E)
    T, E = x.shape
    H = params["whh_f"].shape[0]
    O = params["b_lin"].shape[1]

    # Pack both directions' input projections into one weight / bias.
    wih = jnp.concatenate([params["wih_f"], params["wih_b"]], axis=1)     # (E, 8H)
    b_ih = jnp.concatenate([params["b_f"], params["b_b"]], axis=1)        # (1, 8H)
    # Final linear: stack [fwd-half ; bwd-half] rows, zero-pad lanes to 128.
    wlin = jnp.concatenate([params["wlin_f"], params["wlin_b"]], axis=0)  # (2H, O)
    wlin = jnp.pad(wlin, ((0, 0), (0, O_PAD - O)))                        # (2H, 128)
    b_lin = jnp.pad(params["b_lin"], ((0, 0), (0, O_PAD - O)))            # (1, 128)

    args = (x, wih, b_ih, params["whh_f"], params["whh_b"], wlin, b_lin)

    flops = (2 * T * E * 8 * H          # hoisted input projection
             + T * 2 * (2 * H * 4 * H)  # recurrent matmuls, both directions
             + 2 * T * 2 * H * O_PAD)   # final linear
    transcendentals = T * (2 * 2 * 4 * H + 2 * H)
    bytes_accessed = (sum(int(np.prod(a.shape)) for a in args)
                      + T * O_PAD) * 4

    out = pl.pallas_call(
        lstm_tagger_kernel,
        out_shape=jax.ShapeDtypeStruct((T, O_PAD), jnp.float32),
        # No grid / BlockSpecs: every operand is a single whole-array VMEM block,
        # avoiding per-step pipeline prologue/epilogue for this tiny kernel.
        scratch_shapes=[
            pltpu.VMEM((T, 8 * H), jnp.float32),   # hoisted gate pre-activations
            pltpu.VMEM((T, 2 * H), jnp.float32),   # per-step [h_fwd | h_bwd]
        ],
        cost_estimate=pl.CostEstimate(flops=flops,
                                      transcendentals=transcendentals,
                                      bytes_accessed=bytes_accessed),
    )(*args)
    return out[:, :O]
    # TODO(synk): batching multiple sequences (PyTorch module is batch=1) would be
    # needed to make the MXU compute-bound; kept batch=1 to match module semantics.


# ----------------------------------------------------------------------------
# Pure-JAX reference (mirrors torch.nn.LSTM bidirectional + nn.Linear)
# ----------------------------------------------------------------------------
def reference_forward(token_ids, embeddings, p):
    x = jnp.take(embeddings, token_ids, axis=0).astype(jnp.float32)
    T = x.shape[0]
    H = p["whh_f"].shape[0]

    def run(wih, whh, b, reverse):
        h = jnp.zeros((H,), jnp.float32)
        c = jnp.zeros((H,), jnp.float32)
        hs = [None] * T
        order = range(T - 1, -1, -1) if reverse else range(T)
        for t in order:
            gates = x[t] @ wih + h @ whh + b[0]
            i = jax.nn.sigmoid(gates[0 * H:1 * H])
            f = jax.nn.sigmoid(gates[1 * H:2 * H])
            g = jnp.tanh(gates[2 * H:3 * H])
            o = jax.nn.sigmoid(gates[3 * H:4 * H])
            c = f * c + i * g
            h = o * jnp.tanh(c)
            hs[t] = h
        return jnp.stack(hs)

    hf = run(p["wih_f"], p["whh_f"], p["b_f"], reverse=False)
    hb = run(p["wih_b"], p["whh_b"], p["b_b"], reverse=True)
    return hf @ p["wlin_f"] + hb @ p["wlin_b"] + p["b_lin"][0]


# ----------------------------------------------------------------------------
# Deterministic parameter construction (matches nn.LSTM / nn.Linear shapes)
# ----------------------------------------------------------------------------
def init_params(key, vocab, emb_dim, hidden_dim, output_size):
    keys = jax.random.split(key, 16)
    k = 1.0 / np.sqrt(hidden_dim)

    def u(kk, shape):
        return jax.random.uniform(kk, shape, jnp.float32, minval=-k, maxval=k)

    embeddings = jax.random.normal(keys[0], (vocab, emb_dim), jnp.float32)

    # PyTorch stores W_ih (4H, E), W_hh (4H, H), b_ih (4H,), b_hh (4H,).
    # We pre-transpose and fold the two biases together.
    params = {}
    for d, koff in (("f", 1), ("b", 6)):
        w_ih = u(keys[koff + 0], (4 * hidden_dim, emb_dim))
        w_hh = u(keys[koff + 1], (4 * hidden_dim, hidden_dim))
        b_ih = u(keys[koff + 2], (4 * hidden_dim,))
        b_hh = u(keys[koff + 3], (4 * hidden_dim,))
        params[f"wih_{d}"] = w_ih.T                       # (E, 4H)
        params[f"whh_{d}"] = w_hh.T                       # (H, 4H)
        params[f"b_{d}"] = (b_ih + b_hh)[None, :]         # (1, 4H)

    # nn.Linear(2H, O): weight (O, 2H), bias (O,)
    kl = 1.0 / np.sqrt(2 * hidden_dim)
    w_lin = jax.random.uniform(keys[11], (output_size, 2 * hidden_dim),
                               jnp.float32, minval=-kl, maxval=kl)
    b_lin = jax.random.uniform(keys[12], (output_size,),
                               jnp.float32, minval=-kl, maxval=kl)
    params["wlin_f"] = w_lin[:, :hidden_dim].T            # (H, O)
    params["wlin_b"] = w_lin[:, hidden_dim:].T            # (H, O)
    params["b_lin"] = b_lin[None, :]                      # (1, O)
    return embeddings, params


if __name__ == "__main__":
    VOCAB, EMB, HIDDEN, OUT, SEQ = 20, 32, 32, 8, 8

    key = jax.random.PRNGKey(0)
    k_emb, k_tok = jax.random.split(key)
    embeddings, params = init_params(k_emb, VOCAB, EMB, HIDDEN, OUT)
    token_ids = jax.random.randint(k_tok, (SEQ,), 0, VOCAB)

    out = lstm_tagger_forward(token_ids, embeddings, params)
    out = jax.block_until_ready(out)

    ref = jax.block_until_ready(reference_forward(token_ids, embeddings, params))
    np.testing.assert_allclose(np.asarray(out), np.asarray(ref),
                               rtol=1e-4, atol=1e-4)

    assert out.shape == (SEQ, OUT)
    print("KERNEL_OK")
</pallas_src>

<mosaic_0001>
module attributes {stable_mosaic.version = 11 : i64} {
  func.func @lstm_tagger_kernel(%arg0: memref<8x32xf32, #tpu.memory_space<vmem>>, %arg1: memref<32x256xf32, #tpu.memory_space<vmem>>, %arg2: memref<1x256xf32, #tpu.memory_space<vmem>>, %arg3: memref<32x128xf32, #tpu.memory_space<vmem>>, %arg4: memref<32x128xf32, #tpu.memory_space<vmem>>, %arg5: memref<64x128xf32, #tpu.memory_space<vmem>>, %arg6: memref<1x128xf32, #tpu.memory_space<vmem>>, %arg7: memref<8x128xf32, #tpu.memory_space<vmem>>, %arg8: memref<8x256xf32, #tpu.memory_space<vmem>>, %arg9: memref<8x64xf32, #tpu.memory_space<vmem>>) attributes {dimension_semantics = [], scalar_prefetch = 0 : i64, scratch_operands = 2 : i64, tpu.core_type = #tpu.core_type<tc>} {
    %c0 = arith.constant 0 : index
    %c0_0 = arith.constant 0 : index
    %0 = vector.load %arg0[%c0, %c0_0] : memref<8x32xf32, #tpu.memory_space<vmem>>, vector<8x32xf32>
    %c0_1 = arith.constant 0 : index
    %c0_2 = arith.constant 0 : index
    %1 = vector.load %arg1[%c0_1, %c0_2] : memref<32x256xf32, #tpu.memory_space<vmem>>, vector<32x256xf32>
    %cst = arith.constant dense<0.000000e+00> : vector<8x256xf32>
    %2 = tpu.matmul %0, %1, %cst {dimension_numbers = #tpu.dot_dimension_numbers<[1], [0], [0], [1], [0, 0, 1, 1], [], []>, precision = #tpu.contract_precision<fp32>} : vector<8x32xf32>, vector<32x256xf32>, vector<8x256xf32> -> vector<8x256xf32>
    %c0_3 = arith.constant 0 : index
    %c0_4 = arith.constant 0 : index
    %3 = vector.load %arg2[%c0_3, %c0_4] : memref<1x256xf32, #tpu.memory_space<vmem>>, vector<1x256xf32>
    %4 = vector.broadcast %3 : vector<1x256xf32> to vector<8x256xf32>
    %5 = arith.addf %2, %4 : vector<8x256xf32>
    %c0_5 = arith.constant 0 : index
    %c0_6 = arith.constant 0 : index
    %6 = vector.load %arg8[%c0_5, %c0_6] : memref<8x256xf32, #tpu.memory_space<vmem>>, vector<8x256xf32>
    tpu.vector_store %arg8[%c0_5, %c0_6], %5 {strides = array<i32>} : memref<8x256xf32, #tpu.memory_space<vmem>>, vector<8x256xf32>,
    %cst_7 = arith.constant 0.000000e+00 : f32
    %7 = vector.broadcast %cst_7 : f32 to vector<2x32xf32>
    %cst_8 = arith.constant 0.000000e+00 : f32
    %8 = vector.broadcast %cst_8 : f32 to vector<2x32xf32>
    %9 = vector.extract_strided_slice %7 {offsets = [0, 0], sizes = [1, 32], strides = [1, 1]} : vector<2x32xf32> to vector<1x32xf32>
    %c0_9 = arith.constant 0 : index
    %c0_10 = arith.constant 0 : index
    %10 = vector.load %arg3[%c0_9, %c0_10] : memref<32x128xf32, #tpu.memory_space<vmem>>, vector<32x128xf32>
    %cst_11 = arith.constant dense<0.000000e+00> : vector<1x128xf32>
    %11 = tpu.matmul %9, %10, %cst_11 {dimension_numbers = #tpu.dot_dimension_numbers<[1], [0], [0], [1], [0, 0, 1, 1], [], []>, precision = #tpu.contract_precision<fp32>} : vector<1x32xf32>, vector<32x128xf32>, vector<1x128xf32> -> vector<1x128xf32>
    %c0_12 = arith.constant 0 : index
    %c0_13 = arith.constant 0 : index
    %12 = vector.load %arg8[%c0_12, %c0_13] : memref<8x256xf32, #tpu.memory_space<vmem>>, vector<1x128xf32>
    %13 = arith.addf %11, %12 : vector<1x128xf32>
    %14 = vector.extract_strided_slice %7 {offsets = [1, 0], sizes = [1, 32], strides = [1, 1]} : vector<2x32xf32> to vector<1x32xf32>
    %c0_14 = arith.constant 0 : index
    %c0_15 = arith.constant 0 : index
    %15 = vector.load %arg4[%c0_14, %c0_15] : memref<32x128xf32, #tpu.memory_space<vmem>>, vector<32x128xf32>
    %cst_16 = arith.constant dense<0.000000e+00> : vector<1x128xf32>
    %16 = tpu.matmul %14, %15, %cst_16 {dimension_numbers = #tpu.dot_dimension_numbers<[1], [0], [0], [1], [0, 0, 1, 1], [], []>, precision = #tpu.contract_precision<fp32>} : vector<1x32xf32>, vector<32x128xf32>, vector<1x128xf32> -> vector<1x128xf32>
    %c7 = arith.constant 7 : index
    %c128 = arith.constant 128 : index
    %17 = vector.load %arg8[%c7, %c128] : memref<8x256xf32, #tpu.memory_space<vmem>>, vector<1x128xf32>
    %18 = arith.addf %16, %17 : vector<1x128xf32>
    %19 = tpu.concatenate %13, %18 in 0 : vector<1x128xf32>, vector<1x128xf32> -> vector<2x128xf32>
    %20 = arith.negf %19 : vector<2x128xf32>
    %21 = math.exp %20 : vector<2x128xf32>
    %cst_17 = arith.constant 1.000000e+00 : f32
    %22 = vector.broadcast %cst_17 : f32 to vector<2x128xf32>
    %23 = arith.addf %22, %21 : vector<2x128xf32>
    %24 = arith.divf %22, %23 : vector<2x128xf32>
    %25 = math.tanh %19 : vector<2x128xf32>
    %26 = vector.extract_strided_slice %24 {offsets = [0, 0], sizes = [2, 32], strides = [1, 1]} : vector<2x128xf32> to vector<2x32xf32>
    %27 = vector.extract_strided_slice %24 {offsets = [0, 32], sizes = [2, 32], strides = [1, 1]} : vector<2x128xf32> to vector<2x32xf32>
    %28 = vector.extract_strided_slice %25 {offsets = [0, 64], sizes = [2, 32], strides = [1, 1]} : vector<2x128xf32> to vector<2x32xf32>
    %29 = vector.extract_strided_slice %24 {offsets = [0, 96], sizes = [2, 32], strides = [1, 1]} : vector<2x128xf32> to vector<2x32xf32>
    %30 = arith.mulf %27, %8 : vector<2x32xf32>
    %31 = arith.mulf %26, %28 : vector<2x32xf32>
    %32 = arith.addf %30, %31 : vector<2x32xf32>
    %33 = math.tanh %32 : vector<2x32xf32>
    %34 = arith.mulf %29, %33 : vector<2x32xf32>
    %35 = vector.extract_strided_slice %34 {offsets = [0, 0], sizes = [1, 32], strides = [1, 1]} : vector<2x32xf32> to vector<1x32xf32>
    %c0_18 = arith.constant 0 : index
    %c0_19 = arith.constant 0 : index
    %36 = vector.load %arg9[%c0_18, %c0_19] : memref<8x64xf32, #tpu.memory_space<vmem>>, vector<1x32xf32>
    tpu.vector_store %arg9[%c0_18, %c0_19], %35 {strides = array<i32>} : memref<8x64xf32, #tpu.memory_space<vmem>>, vector<1x32xf32>,
    %37 = vector.extract_strided_slice %34 {offsets = [1, 0], sizes = [1, 32], strides = [1, 1]} : vector<2x32xf32> to vector<1x32xf32>
    %c7_20 = arith.constant 7 : index
    %c32 = arith.constant 32 : index
    %38 = vector.load %arg9[%c7_20, %c32] : memref<8x64xf32, #tpu.memory_space<vmem>>, vector<1x32xf32>
    tpu.vector_store %arg9[%c7_20, %c32], %37 {strides = array<i32>} : memref<8x64xf32, #tpu.memory_space<vmem>>, vector<1x32xf32>,
    %39 = vector.extract_strided_slice %34 {offsets = [0, 0], sizes = [1, 32], strides = [1, 1]} : vector<2x32xf32> to vector<1x32xf32>
    %c0_21 = arith.constant 0 : index
    %c0_22 = arith.constant 0 : index
    %40 = vector.load %arg3[%c0_21, %c0_22] : memref<32x128xf32, #tpu.memory_space<vmem>>, vector<32x128xf32>
    %cst_23 = arith.constant dense<0.000000e+00> : vector<1x128xf32>
    %41 = tpu.matmul %39, %40, %cst_23 {dimension_numbers = #tpu.dot_dimension_numbers<[1], [0], [0], [1], [0, 0, 1, 1], [], []>, precision = #tpu.contract_precision<fp32>} : vector<1x32xf32>, vector<32x128xf32>, vector<1x128xf32> -> vector<1x128xf32>
    %c1 = arith.constant 1 : index
    %c0_24 = arith.constant 0 : index
    %42 = vector.load %arg8[%c1, %c0_24] : memref<8x256xf32, #tpu.memory_space<vmem>>, vector<1x128xf32>
    %43 = arith.addf %41, %42 : vector<1x128xf32>
    %44 = vector.extract_strided_slice %34 {offsets = [1, 0], sizes = [1, 32], strides = [1, 1]} : vector<2x32xf32> to vector<1x32xf32>
    %c0_25 = arith.constant 0 : index
    %c0_26 = arith.constant 0 : index
    %45 = vector.load %arg4[%c0_25, %c0_26] : memref<32x128xf32, #tpu.memory_space<vmem>>, vector<32x128xf32>
    %cst_27 = arith.constant dense<0.000000e+00> : vector<1x128xf32>
    %46 = tpu.matmul %44, %45, %cst_27 {dimension_numbers = #tpu.dot_dimension_numbers<[1], [0], [0], [1], [0, 0, 1, 1], [], []>, precision = #tpu.contract_precision<fp32>} : vector<1x32xf32>, vector<32x128xf32>, vector<1x128xf32> -> vector<1x128xf32>
    %c6 = arith.constant 6 : index
    %c128_28 = arith.constant 128 : index
    %47 = vector.load %arg8[%c6, %c128_28] : memref<8x256xf32, #tpu.memory_space<vmem>>, vector<1x128xf32>
    %48 = arith.addf %46, %47 : vector<1x128xf32>
    %49 = tpu.concatenate %43, %48 in 0 : vector<1x128xf32>, vector<1x128xf32> -> vector<2x128xf32>
    %50 = arith.negf %49 : vector<2x128xf32>
    %51 = math.exp %50 : vector<2x128xf32>
    %cst_29 = arith.constant 1.000000e+00 : f32
    %52 = vector.broadcast %cst_29 : f32 to vector<2x128xf32>
    %53 = arith.addf %52, %51 : vector<2x128xf32>
    %54 = arith.divf %52, %53 : vector<2x128xf32>
    %55 = math.tanh %49 : vector<2x128xf32>
    %56 = vector.extract_strided_slice %54 {offsets = [0, 0], sizes = [2, 32], strides = [1, 1]} : vector<2x128xf32> to vector<2x32xf32>
    %57 = vector.extract_strided_slice %54 {offsets = [0, 32], sizes = [2, 32], strides = [1, 1]} : vector<2x128xf32> to vector<2x32xf32>
    %58 = vector.extract_strided_slice %55 {offsets = [0, 64], sizes = [2, 32], strides = [1, 1]} : vector<2x128xf32> to vector<2x32xf32>
    %59 = vector.extract_strided_slice %54 {offsets = [0, 96], sizes = [2, 32], strides = [1, 1]} : vector<2x128xf32> to vector<2x32xf32>
    %60 = arith.mulf %57, %32 : vector<2x32xf32>
    %61 = arith.mulf %56, %58 : vector<2x32xf32>
    %62 = arith.addf %60, %61 : vector<2x32xf32>
    %63 = math.tanh %62 : vector<2x32xf32>
    %64 = arith.mulf %59, %63 : vector<2x32xf32>
    %65 = vector.extract_strided_slice %64 {offsets = [0, 0], sizes = [1, 32], strides = [1, 1]} : vector<2x32xf32> to vector<1x32xf32>
    %c1_30 = arith.constant 1 : index
    %c0_31 = arith.constant 0 : index
    %66 = vector.load %arg9[%c1_30, %c0_31] : memref<8x64xf32, #tpu.memory_space<vmem>>, vector<1x32xf32>
    tpu.vector_store %arg9[%c1_30, %c0_31], %65 {strides = array<i32>} : memref<8x64xf32, #tpu.memory_space<vmem>>, vector<1x32xf32>,
    %67 = vector.extract_strided_slice %64 {offsets = [1, 0], sizes = [1, 32], strides = [1, 1]} : vector<2x32xf32> to vector<1x32xf32>
    %c6_32 = arith.constant 6 : index
    %c32_33 = arith.constant 32 : index
    %68 = vector.load %arg9[%c6_32, %c32_33] : memref<8x64xf32, #tpu.memory_space<vmem>>, vector<1x32xf32>
    tpu.vector_store %arg9[%c6_32, %c32_33], %67 {strides = array<i32>} : memref<8x64xf32, #tpu.memory_space<vmem>>, vector<1x32xf32>,
    %69 = vector.extract_strided_slice %64 {offsets = [0, 0], sizes = [1, 32], strides = [1, 1]} : vector<2x32xf32> to vector<1x32xf32>
    %c0_34 = arith.constant 0 : index
    %c0_35 = arith.constant 0 : index
    %70 = vector.load %arg3[%c0_34, %c0_35] : memref<32x128xf32, #tpu.memory_space<vmem>>, vector<32x128xf32>
    %cst_36 = arith.constant dense<0.000000e+00> : vector<1x128xf32>
    %71 = tpu.matmul %69, %70, %cst_36 {dimension_numbers = #tpu.dot_dimension_numbers<[1], [0], [0], [1], [0, 0, 1, 1], [], []>, precision = #tpu.contract_precision<fp32>} : vector<1x32xf32>, vector<32x128xf32>, vector<1x128xf32> -> vector<1x128xf32>
    %c2 = arith.constant 2 : index
    %c0_37 = arith.constant 0 : index
    %72 = vector.load %arg8[%c2, %c0_37] : memref<8x256xf32, #tpu.memory_space<vmem>>, vector<1x128xf32>
    %73 = arith.addf %71, %72 : vector<1x128xf32>
    %74 = vector.extract_strided_slice %64 {offsets = [1, 0], sizes = [1, 32], strides = [1, 1]} : vector<2x32xf32> to vector<1x32xf32>
    %c0_38 = arith.constant 0 : index
    %c0_39 = arith.constant 0 : index
    %75 = vector.load %arg4[%c0_38, %c0_39] : memref<32x128xf32, #tpu.memory_space<vmem>>, vector<32x128xf32>
    %cst_40 = arith.constant dense<0.000000e+00> : vector<1x128xf32>
    %76 = tpu.matmul %74, %75, %cst_40 {dimension_numbers = #tpu.dot_dimension_numbers<[1], [0], [0], [1], [0, 0, 1, 1], [], []>, precision = #tpu.contract_precision<fp32>} : vector<1x32xf32>, vector<32x128xf32>, vector<1x128xf32> -> vector<1x128xf32>
    %c5 = arith.constant 5 : index
    %c128_41 = arith.constant 128 : index
    %77 = vector.load %arg8[%c5, %c128_41] : memref<8x256xf32, #tpu.memory_space<vmem>>, vector<1x128xf32>
    %78 = arith.addf %76, %77 : vector<1x128xf32>
    %79 = tpu.concatenate %73, %78 in 0 : vector<1x128xf32>, vector<1x128xf32> -> vector<2x128xf32>
    %80 = arith.negf %79 : vector<2x128xf32>
    %81 = math.exp %80 : vector<2x128xf32>
    %cst_42 = arith.constant 1.000000e+00 : f32
    %82 = vector.broadcast %cst_42 : f32 to vector<2x128xf32>
    %83 = arith.addf %82, %81 : vector<2x128xf32>
    %84 = arith.divf %82, %83 : vector<2x128xf32>
    %85 = math.tanh %79 : vector<2x128xf32>
    %86 = vector.extract_strided_slice %84 {offsets = [0, 0], sizes = [2, 32], strides = [1, 1]} : vector<2x128xf32> to vector<2x32xf32>
    %87 = vector.extract_strided_slice %84 {offsets = [0, 32], sizes = [2, 32], strides = [1, 1]} : vector<2x128xf32> to vector<2x32xf32>
    %88 = vector.extract_strided_slice %85 {offsets = [0, 64], sizes = [2, 32], strides = [1, 1]} : vector<2x128xf32> to vector<2x32xf32>
    %89 = vector.extract_strided_slice %84 {offsets = [0, 96], sizes = [2, 32], strides = [1, 1]} : vector<2x128xf32> to vector<2x32xf32>
    %90 = arith.mulf %87, %62 : vector<2x32xf32>
    %91 = arith.mulf %86, %88 : vector<2x32xf32>
    %92 = arith.addf %90, %91 : vector<2x32xf32>
    %93 = math.tanh %92 : vector<2x32xf32>
    %94 = arith.mulf %89, %93 : vector<2x32xf32>
    %95 = vector.extract_strided_slice %94 {offsets = [0, 0], sizes = [1, 32], strides = [1, 1]} : vector<2x32xf32> to vector<1x32xf32>
    %c2_43 = arith.constant 2 : index
    %c0_44 = arith.constant 0 : index
    %96 = vector.load %arg9[%c2_43, %c0_44] : memref<8x64xf32, #tpu.memory_space<vmem>>, vector<1x32xf32>
    tpu.vector_store %arg9[%c2_43, %c0_44], %95 {strides = array<i32>} : memref<8x64xf32, #tpu.memory_space<vmem>>, vector<1x32xf32>,
    %97 = vector.extract_strided_slice %94 {offsets = [1, 0], sizes = [1, 32], strides = [1, 1]} : vector<2x32xf32> to vector<1x32xf32>
    %c5_45 = arith.constant 5 : index
    %c32_46 = arith.constant 32 : index
    %98 = vector.load %arg9[%c5_45, %c32_46] : memref<8x64xf32, #tpu.memory_space<vmem>>, vector<1x32xf32>
    tpu.vector_store %arg9[%c5_45, %c32_46], %97 {strides = array<i32>} : memref<8x64xf32, #tpu.memory_space<vmem>>, vector<1x32xf32>,
    %99 = vector.extract_strided_slice %94 {offsets = [0, 0], sizes = [1, 32], strides = [1, 1]} : vector<2x32xf32> to vector<1x32xf32>
    %c0_47 = arith.constant 0 : index
    %c0_48 = arith.constant 0 : index
    %100 = vector.load %arg3[%c0_47, %c0_48] : memref<32x128xf32, #tpu.memory_space<vmem>>, vector<32x128xf32>
    %cst_49 = arith.constant dense<0.000000e+00> : vector<1x128xf32>
    %101 = tpu.matmul %99, %100, %cst_49 {dimension_numbers = #tpu.dot_dimension_numbers<[1], [0], [0], [1], [0, 0, 1, 1], [], []>, precision = #tpu.contract_precision<fp32>} : vector<1x32xf32>, vector<32x128xf32>, vector<1x128xf32> -> vector<1x128xf32>
    %c3 = arith.constant 3 : index
    %c0_50 = arith.constant 0 : index
    %102 = vector.load %arg8[%c3, %c0_50] : memref<8x256xf32, #tpu.memory_space<vmem>>, vector<1x128xf32>
    %103 = arith.addf %101, %102 : vector<1x128xf32>
    %104 = vector.extract_strided_slice %94 {offsets = [1, 0], sizes = [1, 32], strides = [1, 1]} : vector<2x32xf32> to vector<1x32xf32>
    %c0_51 = arith.constant 0 : index
    %c0_52 = arith.constant 0 : index
    %105 = vector.load %arg4[%c0_51, %c0_52] : memref<32x128xf32, #tpu.memory_space<vmem>>, vector<32x128xf32>
    %cst_53 = arith.constant dense<0.000000e+00> : vector<1x128xf32>
    %106 = tpu.matmul %104, %105, %cst_53 {dimension_numbers = #tpu.dot_dimension_numbers<[1], [0], [0], [1], [0, 0, 1, 1], [], []>, precision = #tpu.contract_precision<fp32>} : vector<1x32xf32>, vector<32x128xf32>, vector<1x128xf32> -> vector<1x128xf32>
    %c4 = arith.constant 4 : index
    %c128_54 = arith.constant 128 : index
    %107 = vector.load %arg8[%c4, %c128_54] : memref<8x256xf32, #tpu.memory_space<vmem>>, vector<1x128xf32>
    %108 = arith.addf %106, %107 : vector<1x128xf32>
    %109 = tpu.concatenate %103, %108 in 0 : vector<1x128xf32>, vector<1x128xf32> -> vector<2x128xf32>
    %110 = arith.negf %109 : vector<2x128xf32>
    %111 = math.exp %110 : vector<2x128xf32>
    %cst_55 = arith.constant 1.000000e+00 : f32
    %112 = vector.broadcast %cst_55 : f32 to vector<2x128xf32>
    %113 = arith.addf %112, %111 : vector<2x128xf32>
    %114 = arith.divf %112, %113 : vector<2x128xf32>
    %115 = math.tanh %109 : vector<2x128xf32>
    %116 = vector.extract_strided_slice %114 {offsets = [0, 0], sizes = [2, 32], strides = [1, 1]} : vector<2x128xf32> to vector<2x32xf32>
    %117 = vector.extract_strided_slice %114 {offsets = [0, 32], sizes = [2, 32], strides = [1, 1]} : vector<2x128xf32> to vector<2x32xf32>
    %118 = vector.extract_strided_slice %115 {offsets = [0, 64], sizes = [2, 32], strides = [1, 1]} : vector<2x128xf32> to vector<2x32xf32>
    %119 = vector.extract_strided_slice %114 {offsets = [0, 96], sizes = [2, 32], strides = [1, 1]} : vector<2x128xf32> to vector<2x32xf32>
    %120 = arith.mulf %117, %92 : vector<2x32xf32>
    %121 = arith.mulf %116, %118 : vector<2x32xf32>
    %122 = arith.addf %120, %121 : vector<2x32xf32>
    %123 = math.tanh %122 : vector<2x32xf32>
    %124 = arith.mulf %119, %123 : vector<2x32xf32>
    %125 = vector.extract_strided_slice %124 {offsets = [0, 0], sizes = [1, 32], strides = [1, 1]} : vector<2x32xf32> to vector<1x32xf32>
    %c3_56 = arith.constant 3 : index
    %c0_57 = arith.constant 0 : index
    %126 = vector.load %arg9[%c3_56, %c0_57] : memref<8x64xf32, #tpu.memory_space<vmem>>, vector<1x32xf32>
    tpu.vector_store %arg9[%c3_56, %c0_57], %125 {strides = array<i32>} : memref<8x64xf32, #tpu.memory_space<vmem>>, vector<1x32xf32>,
    %127 = vector.extract_strided_slice %124 {offsets = [1, 0], sizes = [1, 32], strides = [1, 1]} : vector<2x32xf32> to vector<1x32xf32>
    %c4_58 = arith.constant 4 : index
    %c32_59 = arith.constant 32 : index
    %128 = vector.load %arg9[%c4_58, %c32_59] : memref<8x64xf32, #tpu.memory_space<vmem>>, vector<1x32xf32>
    tpu.vector_store %arg9[%c4_58, %c32_59], %127 {strides = array<i32>} : memref<8x64xf32, #tpu.memory_space<vmem>>, vector<1x32xf32>,
    %129 = vector.extract_strided_slice %124 {offsets = [0, 0], sizes = [1, 32], strides = [1, 1]} : vector<2x32xf32> to vector<1x32xf32>
    %c0_60 = arith.constant 0 : index
    %c0_61 = arith.constant 0 : index
    %130 = vector.load %arg3[%c0_60, %c0_61] : memref<32x128xf32, #tpu.memory_space<vmem>>, vector<32x128xf32>
    %cst_62 = arith.constant dense<0.000000e+00> : vector<1x128xf32>
    %131 = tpu.matmul %129, %130, %cst_62 {dimension_numbers = #tpu.dot_dimension_numbers<[1], [0], [0], [1], [0, 0, 1, 1], [], []>, precision = #tpu.contract_precision<fp32>} : vector<1x32xf32>, vector<32x128xf32>, vector<1x128xf32> -> vector<1x128xf32>
    %c4_63 = arith.constant 4 : index
    %c0_64 = arith.constant 0 : index
    %132 = vector.load %arg8[%c4_63, %c0_64] : memref<8x256xf32, #tpu.memory_space<vmem>>, vector<1x128xf32>
    %133 = arith.addf %131, %132 : vector<1x128xf32>
    %134 = vector.extract_strided_slice %124 {offsets = [1, 0], sizes = [1, 32], strides = [1, 1]} : vector<2x32xf32> to vector<1x32xf32>
    %c0_65 = arith.constant 0 : index
    %c0_66 = arith.constant 0 : index
    %135 = vector.load %arg4[%c0_65, %c0_66] : memref<32x128xf32, #tpu.memory_space<vmem>>, vector<32x128xf32>
    %cst_67 = arith.constant dense<0.000000e+00> : vector<1x128xf32>
    %136 = tpu.matmul %134, %135, %cst_67 {dimension_numbers = #tpu.dot_dimension_numbers<[1], [0], [0], [1], [0, 0, 1, 1], [], []>, precision = #tpu.contract_precision<fp32>} : vector<1x32xf32>, vector<32x128xf32>, vector<1x128xf32> -> vector<1x128xf32>
    %c3_68 = arith.constant 3 : index
    %c128_69 = arith.constant 128 : index
    %137 = vector.load %arg8[%c3_68, %c128_69] : memref<8x256xf32, #tpu.memory_space<vmem>>, vector<1x128xf32>
    %138 = arith.addf %136, %137 : vector<1x128xf32>
    %139 = tpu.concatenate %133, %138 in 0 : vector<1x128xf32>, vector<1x128xf32> -> vector<2x128xf32>
    %140 = arith.negf %139 : vector<2x128xf32>
    %141 = math.exp %140 : vector<2x128xf32>
    %cst_70 = arith.constant 1.000000e+00 : f32
    %142 = vector.broadcast %cst_70 : f32 to vector<2x128xf32>
    %143 = arith.addf %142, %141 : vector<2x128xf32>
    %144 = arith.divf %142, %143 : vector<2x128xf32>
    %145 = math.tanh %139 : vector<2x128xf32>
    %146 = vector.extract_strided_slice %144 {offsets = [0, 0], sizes = [2, 32], strides = [1, 1]} : vector<2x128xf32> to vector<2x32xf32>
    %147 = vector.extract_strided_slice %144 {offsets = [0, 32], sizes = [2, 32], strides = [1, 1]} : vector<2x128xf32> to vector<2x32xf32>
    %148 = vector.extract_strided_slice %145 {offsets = [0, 64], sizes = [2, 32], strides = [1, 1]} : vector<2x128xf32> to vector<2x32xf32>
    %149 = vector.extract_strided_slice %144 {offsets = [0, 96], sizes = [2, 32], strides = [1, 1]} : vector<2x128xf32> to vector<2x32xf32>
    %150 = arith.mulf %147, %122 : vector<2x32xf32>
    %151 = arith.mulf %146, %148 : vector<2x32xf32>
    %152 = arith.addf %150, %151 : vector<2x32xf32>
    %153 = math.tanh %152 : vector<2x32xf32>
    %154 = arith.mulf %149, %153 : vector<2x32xf32>
    %155 = vector.extract_strided_slice %154 {offsets = [0, 0], sizes = [1, 32], strides = [1, 1]} : vector<2x32xf32> to vector<1x32xf32>
    %c4_71 = arith.constant 4 : index
    %c0_72 = arith.constant 0 : index
    %156 = vector.load %arg9[%c4_71, %c0_72] : memref<8x64xf32, #tpu.memory_space<vmem>>, vector<1x32xf32>
    tpu.vector_store %arg9[%c4_71, %c0_72], %155 {strides = array<i32>} : memref<8x64xf32, #tpu.memory_space<vmem>>, vector<1x32xf32>,
    %157 = vector.extract_strided_slice %154 {offsets = [1, 0], sizes = [1, 32], strides = [1, 1]} : vector<2x32xf32> to vector<1x32xf32>
    %c3_73 = arith.constant 3 : index
    %c32_74 = arith.constant 32 : index
    %158 = vector.load %arg9[%c3_73, %c32_74] : memref<8x64xf32, #tpu.memory_space<vmem>>, vector<1x32xf32>
    tpu.vector_store %arg9[%c3_73, %c32_74], %157 {strides = array<i32>} : memref<8x64xf32, #tpu.memory_space<vmem>>, vector<1x32xf32>,
    %159 = vector.extract_strided_slice %154 {offsets = [0, 0], sizes = [1, 32], strides = [1, 1]} : vector<2x32xf32> to vector<1x32xf32>
    %c0_75 = arith.constant 0 : index
    %c0_76 = arith.constant 0 : index
    %160 = vector.load %arg3[%c0_75, %c0_76] : memref<32x128xf32, #tpu.memory_space<vmem>>, vector<32x128xf32>
    %cst_77 = arith.constant dense<0.000000e+00> : vector<1x128xf32>
    %161 = tpu.matmul %159, %160, %cst_77 {dimension_numbers = #tpu.dot_dimension_numbers<[1], [0], [0], [1], [0, 0, 1, 1], [], []>, precision = #tpu.contract_precision<fp32>} : vector<1x32xf32>, vector<32x128xf32>, vector<1x128xf32> -> vector<1x128xf32>
    %c5_78 = arith.constant 5 : index
    %c0_79 = arith.constant 0 : index
    %162 = vector.load %arg8[%c5_78, %c0_79] : memref<8x256xf32, #tpu.memory_space<vmem>>, vector<1x128xf32>
    %163 = arith.addf %161, %162 : vector<1x128xf32>
    %164 = vector.extract_strided_slice %154 {offsets = [1, 0], sizes = [1, 32], strides = [1, 1]} : vector<2x32xf32> to vector<1x32xf32>
    %c0_80 = arith.constant 0 : index
    %c0_81 = arith.constant 0 : index
    %165 = vector.load %arg4[%c0_80, %c0_81] : memref<32x128xf32, #tpu.memory_space<vmem>>, vector<32x128xf32>
    %cst_82 = arith.constant dense<0.000000e+00> : vector<1x128xf32>
    %166 = tpu.matmul %164, %165, %cst_82 {dimension_numbers = #tpu.dot_dimension_numbers<[1], [0], [0], [1], [0, 0, 1, 1], [], []>, precision = #tpu.contract_precision<fp32>} : vector<1x32xf32>, vector<32x128xf32>, vector<1x128xf32> -> vector<1x128xf32>
    %c2_83 = arith.constant 2 : index
    %c128_84 = arith.constant 128 : index
    %167 = vector.load %arg8[%c2_83, %c128_84] : memref<8x256xf32, #tpu.memory_space<vmem>>, vector<1x128xf32>
    %168 = arith.addf %166, %167 : vector<1x128xf32>
    %169 = tpu.concatenate %163, %168 in 0 : vector<1x128xf32>, vector<1x128xf32> -> vector<2x128xf32>
    %170 = arith.negf %169 : vector<2x128xf32>
    %171 = math.exp %170 : vector<2x128xf32>
    %cst_85 = arith.constant 1.000000e+00 : f32
    %172 = vector.broadcast %cst_85 : f32 to vector<2x128xf32>
    %173 = arith.addf %172, %171 : vector<2x128xf32>
    %174 = arith.divf %172, %173 : vector<2x128xf32>
    %175 = math.tanh %169 : vector<2x128xf32>
    %176 = vector.extract_strided_slice %174 {offsets = [0, 0], sizes = [2, 32], strides = [1, 1]} : vector<2x128xf32> to vector<2x32xf32>
    %177 = vector.extract_strided_slice %174 {offsets = [0, 32], sizes = [2, 32], strides = [1, 1]} : vector<2x128xf32> to vector<2x32xf32>
    %178 = vector.extract_strided_slice %175 {offsets = [0, 64], sizes = [2, 32], strides = [1, 1]} : vector<2x128xf32> to vector<2x32xf32>
    %179 = vector.extract_strided_slice %174 {offsets = [0, 96], sizes = [2, 32], strides = [1, 1]} : vector<2x128xf32> to vector<2x32xf32>
    %180 = arith.mulf %177, %152 : vector<2x32xf32>
    %181 = arith.mulf %176, %178 : vector<2x32xf32>
    %182 = arith.addf %180, %181 : vector<2x32xf32>
    %183 = math.tanh %182 : vector<2x32xf32>
    %184 = arith.mulf %179, %183 : vector<2x32xf32>
    %185 = vector.extract_strided_slice %184 {offsets = [0, 0], sizes = [1, 32], strides = [1, 1]} : vector<2x32xf32> to vector<1x32xf32>
    %c5_86 = arith.constant 5 : index
    %c0_87 = arith.constant 0 : index
    %186 = vector.load %arg9[%c5_86, %c0_87] : memref<8x64xf32, #tpu.memory_space<vmem>>, vector<1x32xf32>
    tpu.vector_store %arg9[%c5_86, %c0_87], %185 {strides = array<i32>} : memref<8x64xf32, #tpu.memory_space<vmem>>, vector<1x32xf32>,
    %187 = vector.extract_strided_slice %184 {offsets = [1, 0], sizes = [1, 32], strides = [1, 1]} : vector<2x32xf32> to vector<1x32xf32>
    %c2_88 = arith.constant 2 : index
    %c32_89 = arith.constant 32 : index
    %188 = vector.load %arg9[%c2_88, %c32_89] : memref<8x64xf32, #tpu.memory_space<vmem>>, vector<1x32xf32>
    tpu.vector_store %arg9[%c2_88, %c32_89], %187 {strides = array<i32>} : memref<8x64xf32, #tpu.memory_space<vmem>>, vector<1x32xf32>,
    %189 = vector.extract_strided_slice %184 {offsets = [0, 0], sizes = [1, 32], strides = [1, 1]} : vector<2x32xf32> to vector<1x32xf32>
    %c0_90 = arith.constant 0 : index
    %c0_91 = arith.constant 0 : index
    %190 = vector.load %arg3[%c0_90, %c0_91] : memref<32x128xf32, #tpu.memory_space<vmem>>, vector<32x128xf32>
    %cst_92 = arith.constant dense<0.000000e+00> : vector<1x128xf32>
    %191 = tpu.matmul %189, %190, %cst_92 {dimension_numbers = #tpu.dot_dimension_numbers<[1], [0], [0], [1], [0, 0, 1, 1], [], []>, precision = #tpu.contract_precision<fp32>} : vector<1x32xf32>, vector<32x128xf32>, vector<1x128xf32> -> vector<1x128xf32>
    %c6_93 = arith.constant 6 : index
    %c0_94 = arith.constant 0 : index
    %192 = vector.load %arg8[%c6_93, %c0_94] : memref<8x256xf32, #tpu.memory_space<vmem>>, vector<1x128xf32>
    %193 = arith.addf %191, %192 : vector<1x128xf32>
    %194 = vector.extract_strided_slice %184 {offsets = [1, 0], sizes = [1, 32], strides = [1, 1]} : vector<2x32xf32> to vector<1x32xf32>
    %c0_95 = arith.constant 0 : index
    %c0_96 = arith.constant 0 : index
    %195 = vector.load %arg4[%c0_95, %c0_96] : memref<32x128xf32, #tpu.memory_space<vmem>>, vector<32x128xf32>
    %cst_97 = arith.constant dense<0.000000e+00> : vector<1x128xf32>
    %196 = tpu.matmul %194, %195, %cst_97 {dimension_numbers = #tpu.dot_dimension_numbers<[1], [0], [0], [1], [0, 0, 1, 1], [], []>, precision = #tpu.contract_precision<fp32>} : vector<1x32xf32>, vector<32x128xf32>, vector<1x128xf32> -> vector<1x128xf32>
    %c1_98 = arith.constant 1 : index
    %c128_99 = arith.constant 128 : index
    %197 = vector.load %arg8[%c1_98, %c128_99] : memref<8x256xf32, #tpu.memory_space<vmem>>, vector<1x128xf32>
    %198 = arith.addf %196, %197 : vector<1x128xf32>
    %199 = tpu.concatenate %193, %198 in 0 : vector<1x128xf32>, vector<1x128xf32> -> vector<2x128xf32>
    %200 = arith.negf %199 : vector<2x128xf32>
    %201 = math.exp %200 : vector<2x128xf32>
    %cst_100 = arith.constant 1.000000e+00 : f32
    %202 = vector.broadcast %cst_100 : f32 to vector<2x128xf32>
    %203 = arith.addf %202, %201 : vector<2x128xf32>
    %204 = arith.divf %202, %203 : vector<2x128xf32>
    %205 = math.tanh %199 : vector<2x128xf32>
    %206 = vector.extract_strided_slice %204 {offsets = [0, 0], sizes = [2, 32], strides = [1, 1]} : vector<2x128xf32> to vector<2x32xf32>
    %207 = vector.extract_strided_slice %204 {offsets = [0, 32], sizes = [2, 32], strides = [1, 1]} : vector<2x128xf32> to vector<2x32xf32>
    %208 = vector.extract_strided_slice %205 {offsets = [0, 64], sizes = [2, 32], strides = [1, 1]} : vector<2x128xf32> to vector<2x32xf32>
    %209 = vector.extract_strided_slice %204 {offsets = [0, 96], sizes = [2, 32], strides = [1, 1]} : vector<2x128xf32> to vector<2x32xf32>
    %210 = arith.mulf %207, %182 : vector<2x32xf32>
    %211 = arith.mulf %206, %208 : vector<2x32xf32>
    %212 = arith.addf %210, %211 : vector<2x32xf32>
    %213 = math.tanh %212 : vector<2x32xf32>
    %214 = arith.mulf %209, %213 : vector<2x32xf32>
    %215 = vector.extract_strided_slice %214 {offsets = [0, 0], sizes = [1, 32], strides = [1, 1]} : vector<2x32xf32> to vector<1x32xf32>
    %c6_101 = arith.constant 6 : index
    %c0_102 = arith.constant 0 : index
    %216 = vector.load %arg9[%c6_101, %c0_102] : memref<8x64xf32, #tpu.memory_space<vmem>>, vector<1x32xf32>
    tpu.vector_store %arg9[%c6_101, %c0_102], %215 {strides = array<i32>} : memref<8x64xf32, #tpu.memory_space<vmem>>, vector<1x32xf32>,
    %217 = vector.extract_strided_slice %214 {offsets = [1, 0], sizes = [1, 32], strides = [1, 1]} : vector<2x32xf32> to vector<1x32xf32>
    %c1_103 = arith.constant 1 : index
    %c32_104 = arith.constant 32 : index
    %218 = vector.load %arg9[%c1_103, %c32_104] : memref<8x64xf32, #tpu.memory_space<vmem>>, vector<1x32xf32>
    tpu.vector_store %arg9[%c1_103, %c32_104], %217 {strides = array<i32>} : memref<8x64xf32, #tpu.memory_space<vmem>>, vector<1x32xf32>,
    %219 = vector.extract_strided_slice %214 {offsets = [0, 0], sizes = [1, 32], strides = [1, 1]} : vector<2x32xf32> to vector<1x32xf32>
    %c0_105 = arith.constant 0 : index
    %c0_106 = arith.constant 0 : index
    %220 = vector.load %arg3[%c0_105, %c0_106] : memref<32x128xf32, #tpu.memory_space<vmem>>, vector<32x128xf32>
    %cst_107 = arith.constant dense<0.000000e+00> : vector<1x128xf32>
    %221 = tpu.matmul %219, %220, %cst_107 {dimension_numbers = #tpu.dot_dimension_numbers<[1], [0], [0], [1], [0, 0, 1, 1], [], []>, precision = #tpu.contract_precision<fp32>} : vector<1x32xf32>, vector<32x128xf32>, vector<1x128xf32> -> vector<1x128xf32>
    %c7_108 = arith.constant 7 : index
    %c0_109 = arith.constant 0 : index
    %222 = vector.load %arg8[%c7_108, %c0_109] : memref<8x256xf32, #tpu.memory_space<vmem>>, vector<1x128xf32>
    %223 = arith.addf %221, %222 : vector<1x128xf32>
    %224 = vector.extract_strided_slice %214 {offsets = [1, 0], sizes = [1, 32], strides = [1, 1]} : vector<2x32xf32> to vector<1x32xf32>
    %c0_110 = arith.constant 0 : index
    %c0_111 = arith.constant 0 : index
    %225 = vector.load %arg4[%c0_110, %c0_111] : memref<32x128xf32, #tpu.memory_space<vmem>>, vector<32x128xf32>
    %cst_112 = arith.constant dense<0.000000e+00> : vector<1x128xf32>
    %226 = tpu.matmul %224, %225, %cst_112 {dimension_numbers = #tpu.dot_dimension_numbers<[1], [0], [0], [1], [0, 0, 1, 1], [], []>, precision = #tpu.contract_precision<fp32>} : vector<1x32xf32>, vector<32x128xf32>, vector<1x128xf32> -> vector<1x128xf32>
    %c0_113 = arith.constant 0 : index
    %c128_114 = arith.constant 128 : index
    %227 = vector.load %arg8[%c0_113, %c128_114] : memref<8x256xf32, #tpu.memory_space<vmem>>, vector<1x128xf32>
    %228 = arith.addf %226, %227 : vector<1x128xf32>
    %229 = tpu.concatenate %223, %228 in 0 : vector<1x128xf32>, vector<1x128xf32> -> vector<2x128xf32>
    %230 = arith.negf %229 : vector<2x128xf32>
    %231 = math.exp %230 : vector<2x128xf32>
    %cst_115 = arith.constant 1.000000e+00 : f32
    %232 = vector.broadcast %cst_115 : f32 to vector<2x128xf32>
    %233 = arith.addf %232, %231 : vector<2x128xf32>
    %234 = arith.divf %232, %233 : vector<2x128xf32>
    %235 = math.tanh %229 : vector<2x128xf32>
    %236 = vector.extract_strided_slice %234 {offsets = [0, 0], sizes = [2, 32], strides = [1, 1]} : vector<2x128xf32> to vector<2x32xf32>
    %237 = vector.extract_strided_slice %234 {offsets = [0, 32], sizes = [2, 32], strides = [1, 1]} : vector<2x128xf32> to vector<2x32xf32>
    %238 = vector.extract_strided_slice %235 {offsets = [0, 64], sizes = [2, 32], strides = [1, 1]} : vector<2x128xf32> to vector<2x32xf32>
    %239 = vector.extract_strided_slice %234 {offsets = [0, 96], sizes = [2, 32], strides = [1, 1]} : vector<2x128xf32> to vector<2x32xf32>
    %240 = arith.mulf %237, %212 : vector<2x32xf32>
    %241 = arith.mulf %236, %238 : vector<2x32xf32>
    %242 = arith.addf %240, %241 : vector<2x32xf32>
    %243 = math.tanh %242 : vector<2x32xf32>
    %244 = arith.mulf %239, %243 : vector<2x32xf32>
    %245 = vector.extract_strided_slice %244 {offsets = [0, 0], sizes = [1, 32], strides = [1, 1]} : vector<2x32xf32> to vector<1x32xf32>
    %c7_116 = arith.constant 7 : index
    %c0_117 = arith.constant 0 : index
    %246 = vector.load %arg9[%c7_116, %c0_117] : memref<8x64xf32, #tpu.memory_space<vmem>>, vector<1x32xf32>
    tpu.vector_store %arg9[%c7_116, %c0_117], %245 {strides = array<i32>} : memref<8x64xf32, #tpu.memory_space<vmem>>, vector<1x32xf32>,
    %247 = vector.extract_strided_slice %244 {offsets = [1, 0], sizes = [1, 32], strides = [1, 1]} : vector<2x32xf32> to vector<1x32xf32>
    %c0_118 = arith.constant 0 : index
    %c32_119 = arith.constant 32 : index
    %248 = vector.load %arg9[%c0_118, %c32_119] : memref<8x64xf32, #tpu.memory_space<vmem>>, vector<1x32xf32>
    tpu.vector_store %arg9[%c0_118, %c32_119], %247 {strides = array<i32>} : memref<8x64xf32, #tpu.memory_space<vmem>>, vector<1x32xf32>,
    %c0_120 = arith.constant 0 : index
    %c0_121 = arith.constant 0 : index
    %249 = vector.load %arg9[%c0_120, %c0_121] : memref<8x64xf32, #tpu.memory_space<vmem>>, vector<8x64xf32>
    %c0_122 = arith.constant 0 : index
    %c0_123 = arith.constant 0 : index
    %250 = vector.load %arg5[%c0_122, %c0_123] : memref<64x128xf32, #tpu.memory_space<vmem>>, vector<64x128xf32>
    %cst_124 = arith.constant dense<0.000000e+00> : vector<8x128xf32>
    %251 = tpu.matmul %249, %250, %cst_124 {dimension_numbers = #tpu.dot_dimension_numbers<[1], [0], [0], [1], [0, 0, 1, 1], [], []>, precision = #tpu.contract_precision<fp32>} : vector<8x64xf32>, vector<64x128xf32>, vector<8x128xf32> -> vector<8x128xf32>
    %c0_125 = arith.constant 0 : index
    %c0_126 = arith.constant 0 : index
    %252 = vector.load %arg6[%c0_125, %c0_126] : memref<1x128xf32, #tpu.memory_space<vmem>>, vector<1x128xf32>
    %253 = vector.broadcast %252 : vector<1x128xf32> to vector<8x128xf32>
    %254 = arith.addf %251, %253 : vector<8x128xf32>
    %c0_127 = arith.constant 0 : index
    %c0_128 = arith.constant 0 : index
    %255 = vector.load %arg7[%c0_127, %c0_128] : memref<8x128xf32, #tpu.memory_space<vmem>>, vector<8x128xf32>
    tpu.vector_store %arg7[%c0_127, %c0_128], %254 {strides = array<i32>} : memref<8x128xf32, #tpu.memory_space<vmem>>, vector<8x128xf32>,
    return
  }
}

</mosaic_0001>

<llo_original>
// kernel: tpu_custom_call.1
$region0: #{tpu_custom_call.1}
  #allocation0 [shape = 'u32[]', space=smem, size = 0x4, offset = 0x4, fixed_abs, tag = 'smem constant byte address 0x4 - core index']
  #allocation1 [shape = 'u32[144,128]{1,0:T(1,128)}', space=vmem, size = 0x12000, scoped, tag = 'internal scratch']
  #allocation2 [shape = 'f32[8,256]{1,0:T(8,128)}', space=vmem, size = 0x2000, scoped, tag = 'scratch operand']
  #allocation3 [shape = 'f32[8,64]{1,0:T(8,128)}', space=vmem, size = 0x1000, scoped, tag = 'scratch operand']
  %s0 = inlined_call_operand.hbm [shape: f32[8,32], index: 0, kind: input, shape index: {}]
  %s1 = inlined_call_operand.hbm [shape: f32[32,256], index: 1, kind: input, shape index: {}]
  %s2 = inlined_call_operand.vmem [shape: f32[1,256], index: 2, kind: input, shape index: {}]
  %s3 = inlined_call_operand.hbm [shape: f32[32,128], index: 3, kind: input, shape index: {}]
  %s4 = inlined_call_operand.hbm [shape: f32[32,128], index: 4, kind: input, shape index: {}]
  %s5 = inlined_call_operand.hbm [shape: f32[64,128], index: 5, kind: input, shape index: {}]
  %s6 = inlined_call_operand.vmem [shape: f32[1,128], index: 6, kind: input, shape index: {}]
  %s7 = inlined_call_operand.hbm [shape: f32[8,128], index: 7, kind: output, shape index: {}]
  %s8 = sld [smem:[#allocation0]]
  $region58: #{tpu_custom_call.1} parent=0
    _
  %s10 = ssub.s32 1, %s8
  %s11 = scalar_select 0, %s10, %s8
  $region1: #{tpu_custom_call.1} parent=0
    #allocation4 [shape = 'u8[4096]{0}', space=vmem, size = 0x1000, scoped, tag = 'input window, operand 0, single buffered']
    #allocation5 [shape = 's32[1]{0}', space=sflag, size = 0x4, scoped, tag = 'scoped memory for tpu_custom_call.1']
    #allocation6 [shape = 's32[1]{0}', space=sflag, size = 0x4, scoped, tag = 'scoped memory for tpu_custom_call.1']
    #allocation7 [shape = 'u8[32768]{0}', space=vmem, size = 0x8000, scoped, tag = 'input window, operand 1, single buffered']
    #allocation8 [shape = 's32[1]{0}', space=sflag, size = 0x4, scoped, tag = 'scoped memory for tpu_custom_call.1']
    #allocation9 [shape = 'u8[16384]{0}', space=vmem, size = 0x4000, scoped, tag = 'input window, operand 3, single buffered']
    #allocation10 [shape = 'u8[16384]{0}', space=vmem, size = 0x4000, scoped, tag = 'input window, operand 4, single buffered']
    #allocation11 [shape = 's32[1]{0}', space=sflag, size = 0x4, scoped, tag = 'scoped memory for tpu_custom_call.1']
    #allocation12 [shape = 'u8[32768]{0}', space=vmem, size = 0x8000, scoped, tag = 'input window, operand 5, single buffered']
    #allocation13 [shape = 'u8[4096]{0}', space=vmem, size = 0x1000, scoped, tag = 'output window, operand 0, single buffered']
    %12 = vsyncpa [#allocation5], 0
    %13 = vsyncpa [#allocation8], 0
    %14 = vsyncpa [#allocation11], 0
    %15 = vsyncpa [#allocation6], 0
    // Predicated region
    $region2: #{tpu_custom_call.1} parent=1 // pred_check
      _
    $region3: #{tpu_custom_call.1} parent=1 // pred_check_branch
      %17 = sbr.rel (0) target = $region5
    $region4: #{tpu_custom_call.1} parent=1 // pred_region
      %s19 = ssub.s32 128, 128
      %20 = vsyncadd [#allocation5], %s19
      %s22 = sshll.u32 [#allocation4], 4
      %s23 = int_to_ptr.vmem [resolvable:$true] %s22
      %25 = dma.hbm_to_vmem [thread:$0]  %s0, 128, %s23, [#allocation5]
    $region5: #{tpu_custom_call.1} parent=1 // pred_fallthru
      _
    // Predicated region
    $region6: #{tpu_custom_call.1} parent=1 // pred_check
      _
    $region7: #{tpu_custom_call.1} parent=1 // pred_check_branch
      %27 = sbr.rel (0) target = $region9
    $region8: #{tpu_custom_call.1} parent=1 // pred_region
      %s29 = ssub.s32 1024, 1024
      %30 = vsyncadd [#allocation8], %s29
      %s31 = sshll.u32 [#allocation7], 4
      %s32 = int_to_ptr.vmem [resolvable:$true] %s31
      %37 = dma.hbm_to_vmem [thread:$0]  %s1, 1024, %s32, [#allocation8], 256, 256, 16
    $region9: #{tpu_custom_call.1} parent=1 // pred_fallthru
      _
    // Predicated region
    $region10: #{tpu_custom_call.1} parent=1 // pred_check
      _
    $region11: #{tpu_custom_call.1} parent=1 // pred_check_branch
      %39 = sbr.rel (0) target = $region13
    $region12: #{tpu_custom_call.1} parent=1 // pred_region
      _
    $region13: #{tpu_custom_call.1} parent=1 // pred_fallthru
      _
    // Predicated region
    $region14: #{tpu_custom_call.1} parent=1 // pred_check
      _
    $region15: #{tpu_custom_call.1} parent=1 // pred_check_branch
      %41 = sbr.rel (0) target = $region17
    $region16: #{tpu_custom_call.1} parent=1 // pred_region
      %s43 = ssub.s32 512, 512
      %44 = vsyncadd [#allocation8], %s43
      %s45 = sshll.u32 [#allocation9], 4
      %s46 = int_to_ptr.vmem [resolvable:$true] %s45
      %51 = dma.hbm_to_vmem [thread:$0]  %s3, 512, %s46, [#allocation8], 128, 128, 8
    $region17: #{tpu_custom_call.1} parent=1 // pred_fallthru
      _
    // Predicated region
    $region18: #{tpu_custom_call.1} parent=1 // pred_check
      _
    $region19: #{tpu_custom_call.1} parent=1 // pred_check_branch
      %53 = sbr.rel (0) target = $region21
    $region20: #{tpu_custom_call.1} parent=1 // pred_region
      %s55 = ssub.s32 512, 512
      %56 = vsyncadd [#allocation11], %s55
      %s57 = sshll.u32 [#allocation10], 4
      %s58 = int_to_ptr.vmem [resolvable:$true] %s57
      %63 = dma.hbm_to_vmem [thread:$0]  %s4, 512, %s58, [#allocation11], 128, 128, 8
    $region21: #{tpu_custom_call.1} parent=1 // pred_fallthru
      _
    // Predicated region
    $region22: #{tpu_custom_call.1} parent=1 // pred_check
      _
    $region23: #{tpu_custom_call.1} parent=1 // pred_check_branch
      %65 = sbr.rel (0) target = $region25
    $region24: #{tpu_custom_call.1} parent=1 // pred_region
      %s67 = ssub.s32 1024, 1024
      %68 = vsyncadd [#allocation11], %s67
      %s69 = sshll.u32 [#allocation12], 4
      %s70 = int_to_ptr.vmem [resolvable:$true] %s69
      %75 = dma.hbm_to_vmem [thread:$0]  %s5, 1024, %s70, [#allocation11], 128, 128, 8
    $region25: #{tpu_custom_call.1} parent=1 // pred_fallthru
      _
    // Predicated region
    $region26: #{tpu_custom_call.1} parent=1 // pred_check
      _
    $region27: #{tpu_custom_call.1} parent=1 // pred_check_branch
      %77 = sbr.rel (0) target = $region29
    $region28: #{tpu_custom_call.1} parent=1 // pred_region
      _
    $region29: #{tpu_custom_call.1} parent=1 // pred_fallthru
      _
    // Predicated region
    $region30: #{tpu_custom_call.1} parent=1 // pred_check
      _
    $region31: #{tpu_custom_call.1} parent=1 // pred_check_branch
      %79 = sbr.rel (0) target = $region33
    $region32: #{tpu_custom_call.1} parent=1 // pred_region
      %80 = dma.done [#allocation5], 128
    $region33: #{tpu_custom_call.1} parent=1 // pred_fallthru
      _
    // Predicated region
    $region34: #{tpu_custom_call.1} parent=1 // pred_check
      _
    $region35: #{tpu_custom_call.1} parent=1 // pred_check_branch
      %82 = sbr.rel (0) target = $region37
    $region36: #{tpu_custom_call.1} parent=1 // pred_region
      %83 = dma.done [#allocation8], 1024
    $region37: #{tpu_custom_call.1} parent=1 // pred_fallthru
      _
    // Predicated region
    $region38: #{tpu_custom_call.1} parent=1 // pred_check
      _
    $region39: #{tpu_custom_call.1} parent=1 // pred_check_branch
      %85 = sbr.rel (0) target = $region41
    $region40: #{tpu_custom_call.1} parent=1 // pred_region
      %86 = dma.done [#allocation8], 512
    $region41: #{tpu_custom_call.1} parent=1 // pred_fallthru
      _
    // Predicated region
    $region42: #{tpu_custom_call.1} parent=1 // pred_check
      _
    $region43: #{tpu_custom_call.1} parent=1 // pred_check_branch
      %88 = sbr.rel (0) target = $region45
    $region44: #{tpu_custom_call.1} parent=1 // pred_region
      %89 = dma.done [#allocation11], 512
    $region45: #{tpu_custom_call.1} parent=1 // pred_fallthru
      _
    // Predicated region
    $region46: #{tpu_custom_call.1} parent=1 // pred_check
      _
    $region47: #{tpu_custom_call.1} parent=1 // pred_check_branch
      %91 = sbr.rel (0) target = $region49
    $region48: #{tpu_custom_call.1} parent=1 // pred_region
      %92 = dma.done [#allocation11], 1024
    $region49: #{tpu_custom_call.1} parent=1 // pred_fallthru
      _
    %v93 = vld [vmem:[#allocation4] sm:$0xff]
    %v94 = vld [vmem:[#allocation7] sm:$0xff]
    %v95 = vld [vmem:[#allocation7 + $0x8] sm:$0xff]
    %v96 = vld [vmem:[#allocation7 + $0x10] sm:$0xff]
    %v97 = vld [vmem:[#allocation7 + $0x18] sm:$0xff]
    %v98 = vld [vmem:[#allocation7 + $0x20] sm:$0xff]
    %v99 = vld [vmem:[#allocation7 + $0x28] sm:$0xff]
    %v100 = vld [vmem:[#allocation7 + $0x30] sm:$0xff]
    %v101 = vld [vmem:[#allocation7 + $0x38] sm:$0xff]
    %v102 = vld [vmem:[%s2] sm:$0x3]
    %v104 = vlaneseq
    %v105 = vshrl.u32 %v104, 7
    %v106 = vsub.s32 0, %v105
    %v107 = vrot.slane %v102, %v106
    %v108 = vlaneseq
    %v109 = vshrl.u32 %v108, 7
    %v110 = vsub.s32 1, %v109
    %v111 = vrot.slane %v102, %v110
    %vm114 = vcmask 261120
    %v116 = vsel %vm114, %v93, 0
    %v118 = vand.u32 %v95, 4294901760
    %119 = vmatprep.subr.mxu0 %v118
    %v120 = vand.u32 %v94, 4294901760
    %121 = vmatpush1.msra.mxu0 %v120
    %v122 = vand.u32 %v97, 4294901760
    %123 = vmatprep.subr.mxu0 %v122
    %v124 = vand.u32 %v96, 4294901760
    %125 = vmatpush1.msra.mxu0 %v124
    %v126 = vand.u32 %v99, 4294901760
    %127 = vmatprep.subr.mxu0 %v126
    %v128 = vand.u32 %v98, 4294901760
    %129 = vmatpush1.msra.mxu0 %v128
    %v130 = vand.u32 %v101, 4294901760
    %131 = vmatprep.subr.mxu0 %v130
    %v132 = vand.u32 %v100, 4294901760
    %133 = vmatpush1.msra.mxu0 %v132
    %134 = vmatprep.subr.mxu0 0.0
    %135 = vmatpush1.msra.mxu0 0.0
    %136 = vmatprep.subr.mxu0 0.0
    %137 = vmatpush1.msra.mxu0 0.0
    %138 = vmatprep.subr.mxu0 0.0
    %139 = vmatpush1.msra.mxu0 0.0
    %140 = vmatprep.subr.mxu0 0.0
    %141 = vmatpush1.msra.mxu0 0.0
    %142 = vmatprep.subr.mxu0 0.0
    %143 = vmatpush1.msra.mxu0 0.0
    %144 = vmatprep.subr.mxu0 0.0
    %145 = vmatpush1.msra.mxu0 0.0
    %146 = vmatprep.subr.mxu0 0.0
    %147 = vmatpush1.msra.mxu0 0.0
    %148 = vmatprep.subr.mxu0 0.0
    %149 = vmatpush1.msra.mxu0 0.0
    %150 = vmatprep.subr.mxu0 0.0
    %151 = vmatpush1.msra.mxu0 0.0
    %152 = vmatprep.subr.mxu0 0.0
    %153 = vmatpush1.msra.mxu0 0.0
    %154 = vmatprep.subr.mxu0 0.0
    %155 = vmatpush1.msra.mxu0 0.0
    %156 = vmatprep.subr.mxu0 0.0
    %157 = vmatpush1.msra.mxu0 0.0
    %158 = vmatprep.subr.mxu0 0.0
    %159 = vmatpush1.msra.mxu0 0.0
    %160 = vmatprep.subr.mxu0 0.0
    %161 = vmatpush1.msra.mxu0 0.0
    %162 = vmatprep.subr.mxu0 0.0
    %163 = vmatpush1.msra.mxu0 0.0
    %164 = vmatprep.subr.mxu0 0.0
    %165 = vmatpush1.msra.mxu0 0.0
    %166 = vmatprep.subr.mxu0 0.0
    %167 = vmatpush1.msra.mxu0 0.0
    %168 = vmatprep.subr.mxu0 0.0
    %169 = vmatpush1.msra.mxu0 0.0
    %170 = vmatprep.subr.mxu0 0.0
    %171 = vmatpush1.msra.mxu0 0.0
    %172 = vmatprep.subr.mxu0 0.0
    %173 = vmatpush1.msra.mxu0 0.0
    %174 = vmatprep.subr.mxu0 0.0
    %175 = vmatpush1.msra.mxu0 0.0
    %176 = vmatprep.subr.mxu0 0.0
    %177 = vmatpush1.msra.mxu0 0.0
    %178 = vmatprep.subr.mxu0 0.0
    %179 = vmatpush1.msra.mxu0 0.0
    %180 = vmatprep.subr.mxu0 0.0
    %181 = vmatpush1.msra.mxu0 0.0
    %182 = vmatprep.subr.mxu0 0.0
    %183 = vmatpush1.msra.mxu0 0.0
    %184 = vmatprep.subr.mxu0 0.0
    %185 = vmatpush1.msra.mxu0 0.0
    %186 = vmatprep.subr.mxu0 0.0
    %187 = vmatpush1.msra.mxu0 0.0
    %188 = vmatprep.subr.mxu0 0.0
    %189 = vmatpush1.msra.mxu0 0.0
    %190 = vmatprep.mubr.f32.mxu0 0.0
    %v191 = vand.u32 %v116, 4294901760
    %v192 = vsub.f32 %v116, %v191
    %v193 = vand.u32 %v192, 4294901760
    %v194 = vsub.f32 %v192, %v193
    %v195 = vand.u32 %v194, 4294901760
    %196 = vmatmul.mubr.f32.gmra.mrb[0].mxu0 %v195
    %v197 = vpop.f32.mrb[0].mxu0
    %v198 = vadd.f32 %v107, %v197
    %v199 = vpop.f32.mrb[0].mxu0
    %v200 = vadd.f32 %v111, %v199
    %201 = vdwg.mxu0
    %v202 = vand.u32 %v95, 4294901760
    %v203 = vsub.f32 %v95, %v202
    %v204 = vand.u32 %v203, 4294901760
    %v205 = vsub.f32 %v203, %v204
    %v206 = vand.u32 %v205, 4294901760
    %207 = vmatprep.subr.mxu0 %v206
    %v208 = vand.u32 %v94, 4294901760
    %v209 = vsub.f32 %v94, %v208
    %v210 = vand.u32 %v209, 4294901760
    %v211 = vsub.f32 %v209, %v210
    %v212 = vand.u32 %v211, 4294901760
    %213 = vmatpush1.msra.mxu0 %v212
    %v214 = vand.u32 %v97, 4294901760
    %v215 = vsub.f32 %v97, %v214
    %v216 = vand.u32 %v215, 4294901760
    %v217 = vsub.f32 %v215, %v216
    %v218 = vand.u32 %v217, 4294901760
    %219 = vmatprep.subr.mxu0 %v218
    %v220 = vand.u32 %v96, 4294901760
    %v221 = vsub.f32 %v96, %v220
    %v222 = vand.u32 %v221, 4294901760
    %v223 = vsub.f32 %v221, %v222
    %v224 = vand.u32 %v223, 4294901760
    %225 = vmatpush1.msra.mxu0 %v224
    %v226 = vand.u32 %v99, 4294901760
    %v227 = vsub.f32 %v99, %v226
    %v228 = vand.u32 %v227, 4294901760
    %v229 = vsub.f32 %v227, %v228
    %v230 = vand.u32 %v229, 4294901760
    %231 = vmatprep.subr.mxu0 %v230
    %v232 = vand.u32 %v98, 4294901760
    %v233 = vsub.f32 %v98, %v232
    %v234 = vand.u32 %v233, 4294901760
    %v235 = vsub.f32 %v233, %v234
    %v236 = vand.u32 %v235, 4294901760
    %237 = vmatpush1.msra.mxu0 %v236
    %v238 = vand.u32 %v101, 4294901760
    %v239 = vsub.f32 %v101, %v238
    %v240 = vand.u32 %v239, 4294901760
    %v241 = vsub.f32 %v239, %v240
    %v242 = vand.u32 %v241, 4294901760
    %243 = vmatprep.subr.mxu0 %v242
    %v244 = vand.u32 %v100, 4294901760
    %v245 = vsub.f32 %v100, %v244
    %v246 = vand.u32 %v245, 4294901760
    %v247 = vsub.f32 %v245, %v246
    %v248 = vand.u32 %v247, 4294901760
    %249 = vmatpush1.msra.mxu0 %v248
    %250 = vmatprep.subr.mxu0 0.0
    %251 = vmatpush1.msra.mxu0 0.0
    %252 = vmatprep.subr.mxu0 0.0
    %253 = vmatpush1.msra.mxu0 0.0
    %254 = vmatprep.subr.mxu0 0.0
    %255 = vmatpush1.msra.mxu0 0.0
    %256 = vmatprep.subr.mxu0 0.0
    %257 = vmatpush1.msra.mxu0 0.0
    %258 = vmatprep.subr.mxu0 0.0
    %259 = vmatpush1.msra.mxu0 0.0
    %260 = vmatprep.subr.mxu0 0.0
    %261 = vmatpush1.msra.mxu0 0.0
    %262 = vmatprep.subr.mxu0 0.0
    %263 = vmatpush1.msra.mxu0 0.0
    %264 = vmatprep.subr.mxu0 0.0
    %265 = vmatpush1.msra.mxu0 0.0
    %266 = vmatprep.subr.mxu0 0.0
    %267 = vmatpush1.msra.mxu0 0.0
    %268 = vmatprep.subr.mxu0 0.0
    %269 = vmatpush1.msra.mxu0 0.0
    %270 = vmatprep.subr.mxu0 0.0
    %271 = vmatpush1.msra.mxu0 0.0
    %272 = vmatprep.subr.mxu0 0.0
    %273 = vmatpush1.msra.mxu0 0.0
    %274 = vmatprep.subr.mxu0 0.0
    %275 = vmatpush1.msra.mxu0 0.0
    %276 = vmatprep.subr.mxu0 0.0
    %277 = vmatpush1.msra.mxu0 0.0
    %278 = vmatprep.subr.mxu0 0.0
    %279 = vmatpush1.msra.mxu0 0.0
    %280 = vmatprep.subr.mxu0 0.0
    %281 = vmatpush1.msra.mxu0 0.0
    %282 = vmatprep.subr.mxu0 0.0
    %283 = vmatpush1.msra.mxu0 0.0
    %284 = vmatprep.subr.mxu0 0.0
    %285 = vmatpush1.msra.mxu0 0.0
    %286 = vmatprep.subr.mxu0 0.0
    %287 = vmatpush1.msra.mxu0 0.0
    %288 = vmatprep.subr.mxu0 0.0
    %289 = vmatpush1.msra.mxu0 0.0
    %290 = vmatprep.subr.mxu0 0.0
    %291 = vmatpush1.msra.mxu0 0.0
    %292 = vmatprep.subr.mxu0 0.0
    %293 = vmatpush1.msra.mxu0 0.0
    %294 = vmatprep.subr.mxu0 0.0
    %295 = vmatpush1.msra.mxu0 0.0
    %296 = vmatprep.subr.mxu0 0.0
    %297 = vmatpush1.msra.mxu0 0.0
    %298 = vmatprep.subr.mxu0 0.0
    %299 = vmatpush1.msra.mxu0 0.0
    %300 = vmatprep.subr.mxu0 0.0
    %301 = vmatpush1.msra.mxu0 0.0
    %302 = vmatprep.subr.mxu0 0.0
    %303 = vmatpush1.msra.mxu0 0.0
    %304 = vmatprep.subr.mxu0 0.0
    %305 = vmatpush1.msra.mxu0 0.0
    %306 = vmatprep.mubr.f32.mxu0 0.0
    %v307 = vand.u32 %v116, 4294901760
    %308 = vmatmul.mubr.f32.gmra.mrb[0].mxu0 %v307
    %v309 = vpop.f32.mrb[0].mxu0
    %v310 = vadd.f32 %v198, %v309
    %v311 = vpop.f32.mrb[0].mxu0
    %v312 = vadd.f32 %v200, %v311
    %313 = vdwg.mxu0
    %v314 = vand.u32 %v95, 4294901760
    %v315 = vsub.f32 %v95, %v314
    %316 = vmatprep.subr.mxu0 %v315
    %v317 = vand.u32 %v94, 4294901760
    %v318 = vsub.f32 %v94, %v317
    %319 = vmatpush1.msra.mxu0 %v318
    %v320 = vand.u32 %v97, 4294901760
    %v321 = vsub.f32 %v97, %v320
    %322 = vmatprep.subr.mxu0 %v321
    %v323 = vand.u32 %v96, 4294901760
    %v324 = vsub.f32 %v96, %v323
    %325 = vmatpush1.msra.mxu0 %v324
    %v326 = vand.u32 %v99, 4294901760
    %v327 = vsub.f32 %v99, %v326
    %328 = vmatprep.subr.mxu0 %v327
    %v329 = vand.u32 %v98, 4294901760
    %v330 = vsub.f32 %v98, %v329
    %331 = vmatpush1.msra.mxu0 %v330
    %v332 = vand.u32 %v101, 4294901760
    %v333 = vsub.f32 %v101, %v332
    %334 = vmatprep.subr.mxu0 %v333
    %v335 = vand.u32 %v100, 4294901760
    %v336 = vsub.f32 %v100, %v335
    %337 = vmatpush1.msra.mxu0 %v336
    %338 = vmatprep.subr.mxu0 0.0
    %339 = vmatpush1.msra.mxu0 0.0
    %340 = vmatprep.subr.mxu0 0.0
    %341 = vmatpush1.msra.mxu0 0.0
    %342 = vmatprep.subr.mxu0 0.0
    %343 = vmatpush1.msra.mxu0 0.0
    %344 = vmatprep.subr.mxu0 0.0
    %345 = vmatpush1.msra.mxu0 0.0
    %346 = vmatprep.subr.mxu0 0.0
    %347 = vmatpush1.msra.mxu0 0.0
    %348 = vmatprep.subr.mxu0 0.0
    %349 = vmatpush1.msra.mxu0 0.0
    %350 = vmatprep.subr.mxu0 0.0
    %351 = vmatpush1.msra.mxu0 0.0
    %352 = vmatprep.subr.mxu0 0.0
    %353 = vmatpush1.msra.mxu0 0.0
    %354 = vmatprep.subr.mxu0 0.0
    %355 = vmatpush1.msra.mxu0 0.0
    %356 = vmatprep.subr.mxu0 0.0
    %357 = vmatpush1.msra.mxu0 0.0
    %358 = vmatprep.subr.mxu0 0.0
    %359 = vmatpush1.msra.mxu0 0.0
    %360 = vmatprep.subr.mxu0 0.0
    %361 = vmatpush1.msra.mxu0 0.0
    %362 = vmatprep.subr.mxu0 0.0
    %363 = vmatpush1.msra.mxu0 0.0
    %364 = vmatprep.subr.mxu0 0.0
    %365 = vmatpush1.msra.mxu0 0.0
    %366 = vmatprep.subr.mxu0 0.0
    %367 = vmatpush1.msra.mxu0 0.0
    %368 = vmatprep.subr.mxu0 0.0
    %369 = vmatpush1.msra.mxu0 0.0
    %370 = vmatprep.subr.mxu0 0.0
    %371 = vmatpush1.msra.mxu0 0.0
    %372 = vmatprep.subr.mxu0 0.0
    %373 = vmatpush1.msra.mxu0 0.0
    %374 = vmatprep.subr.mxu0 0.0
    %375 = vmatpush1.msra.mxu0 0.0
    %376 = vmatprep.subr.mxu0 0.0
    %377 = vmatpush1.msra.mxu0 0.0
    %378 = vmatprep.subr.mxu0 0.0
    %379 = vmatpush1.msra.mxu0 0.0
    %380 = vmatprep.subr.mxu0 0.0
    %381 = vmatpush1.msra.mxu0 0.0
    %382 = vmatprep.subr.mxu0 0.0
    %383 = vmatpush1.msra.mxu0 0.0
    %384 = vmatprep.subr.mxu0 0.0
    %385 = vmatpush1.msra.mxu0 0.0
    %386 = vmatprep.subr.mxu0 0.0
    %387 = vmatpush1.msra.mxu0 0.0
    %388 = vmatprep.subr.mxu0 0.0
    %389 = vmatpush1.msra.mxu0 0.0
    %390 = vmatprep.subr.mxu0 0.0
    %391 = vmatpush1.msra.mxu0 0.0
    %392 = vmatprep.subr.mxu0 0.0
    %393 = vmatpush1.msra.mxu0 0.0
    %394 = vmatprep.mubr.f32.mxu0 0.0
    %v395 = vand.u32 %v116, 4294901760
    %v396 = vsub.f32 %v116, %v395
    %397 = vmatmul.mubr.f32.gmra.mrb[0].mxu0 %v396
    %v398 = vpop.f32.mrb[0].mxu0
    %v399 = vadd.f32 %v310, %v398
    %v400 = vpop.f32.mrb[0].mxu0
    %v401 = vadd.f32 %v312, %v400
    %402 = vdwg.mxu0
    %v403 = vand.u32 %v95, 4294901760
    %404 = vmatprep.subr.mxu0 %v403
    %v405 = vand.u32 %v94, 4294901760
    %406 = vmatpush1.msra.mxu0 %v405
    %v407 = vand.u32 %v97, 4294901760
    %408 = vmatprep.subr.mxu0 %v407
    %v409 = vand.u32 %v96, 4294901760
    %410 = vmatpush1.msra.mxu0 %v409
    %v411 = vand.u32 %v99, 4294901760
    %412 = vmatprep.subr.mxu0 %v411
    %v413 = vand.u32 %v98, 4294901760
    %414 = vmatpush1.msra.mxu0 %v413
    %v415 = vand.u32 %v101, 4294901760
    %416 = vmatprep.subr.mxu0 %v415
    %v417 = vand.u32 %v100, 4294901760
    %418 = vmatpush1.msra.mxu0 %v417
    %419 = vmatprep.subr.mxu0 0.0
    %420 = vmatpush1.msra.mxu0 0.0
    %421 = vmatprep.subr.mxu0 0.0
    %422 = vmatpush1.msra.mxu0 0.0
    %423 = vmatprep.subr.mxu0 0.0
    %424 = vmatpush1.msra.mxu0 0.0
    %425 = vmatprep.subr.mxu0 0.0
    %426 = vmatpush1.msra.mxu0 0.0
    %427 = vmatprep.subr.mxu0 0.0
    %428 = vmatpush1.msra.mxu0 0.0
    %429 = vmatprep.subr.mxu0 0.0
    %430 = vmatpush1.msra.mxu0 0.0
    %431 = vmatprep.subr.mxu0 0.0
    %432 = vmatpush1.msra.mxu0 0.0
    %433 = vmatprep.subr.mxu0 0.0
    %434 = vmatpush1.msra.mxu0 0.0
    %435 = vmatprep.subr.mxu0 0.0
    %436 = vmatpush1.msra.mxu0 0.0
    %437 = vmatprep.subr.mxu0 0.0
    %438 = vmatpush1.msra.mxu0 0.0
    %439 = vmatprep.subr.mxu0 0.0
    %440 = vmatpush1.msra.mxu0 0.0
    %441 = vmatprep.subr.mxu0 0.0
    %442 = vmatpush1.msra.mxu0 0.0
    %443 = vmatprep.subr.mxu0 0.0
    %444 = vmatpush1.msra.mxu0 0.0
    %445 = vmatprep.subr.mxu0 0.0
    %446 = vmatpush1.msra.mxu0 0.0
    %447 = vmatprep.subr.mxu0 0.0
    %448 = vmatpush1.msra.mxu0 0.0
    %449 = vmatprep.subr.mxu0 0.0
    %450 = vmatpush1.msra.mxu0 0.0
    %451 = vmatprep.subr.mxu0 0.0
    %452 = vmatpush1.msra.mxu0 0.0
    %453 = vmatprep.subr.mxu0 0.0
    %454 = vmatpush1.msra.mxu0 0.0
    %455 = vmatprep.subr.mxu0 0.0
    %456 = vmatpush1.msra.mxu0 0.0
    %457 = vmatprep.subr.mxu0 0.0
    %458 = vmatpush1.msra.mxu0 0.0
    %459 = vmatprep.subr.mxu0 0.0
    %460 = vmatpush1.msra.mxu0 0.0
    %461 = vmatprep.subr.mxu0 0.0
    %462 = vmatpush1.msra.mxu0 0.0
    %463 = vmatprep.subr.mxu0 0.0
    %464 = vmatpush1.msra.mxu0 0.0
    %465 = vmatprep.subr.mxu0 0.0
    %466 = vmatpush1.msra.mxu0 0.0
    %467 = vmatprep.subr.mxu0 0.0
    %468 = vmatpush1.msra.mxu0 0.0
    %469 = vmatprep.subr.mxu0 0.0
    %470 = vmatpush1.msra.mxu0 0.0
    %471 = vmatprep.subr.mxu0 0.0
    %472 = vmatpush1.msra.mxu0 0.0
    %473 = vmatprep.subr.mxu0 0.0
    %474 = vmatpush1.msra.mxu0 0.0
    %475 = vmatprep.mubr.f32.mxu0 0.0
    %v476 = vand.u32 %v116, 4294901760
    %v477 = vsub.f32 %v116, %v476
    %v478 = vand.u32 %v477, 4294901760
    %479 = vmatmul.mubr.f32.gmra.mrb[0].mxu0 %v478
    %v480 = vpop.f32.mrb[0].mxu0
    %v481 = vadd.f32 %v399, %v480
    %v482 = vpop.f32.mrb[0].mxu0
    %v483 = vadd.f32 %v401, %v482
    %484 = vdwg.mxu0
    %v485 = vand.u32 %v95, 4294901760
    %v486 = vsub.f32 %v95, %v485
    %v487 = vand.u32 %v486, 4294901760
    %488 = vmatprep.subr.mxu0 %v487
    %v489 = vand.u32 %v94, 4294901760
    %v490 = vsub.f32 %v94, %v489
    %v491 = vand.u32 %v490, 4294901760
    %492 = vmatpush1.msra.mxu0 %v491
    %v493 = vand.u32 %v97, 4294901760
    %v494 = vsub.f32 %v97, %v493
    %v495 = vand.u32 %v494, 4294901760
    %496 = vmatprep.subr.mxu0 %v495
    %v497 = vand.u32 %v96, 4294901760
    %v498 = vsub.f32 %v96, %v497
    %v499 = vand.u32 %v498, 4294901760
    %500 = vmatpush1.msra.mxu0 %v499
    %v501 = vand.u32 %v99, 4294901760
    %v502 = vsub.f32 %v99, %v501
    %v503 = vand.u32 %v502, 4294901760
    %504 = vmatprep.subr.mxu0 %v503
    %v505 = vand.u32 %v98, 4294901760
    %v506 = vsub.f32 %v98, %v505
    %v507 = vand.u32 %v506, 4294901760
    %508 = vmatpush1.msra.mxu0 %v507
    %v509 = vand.u32 %v101, 4294901760
    %v510 = vsub.f32 %v101, %v509
    %v511 = vand.u32 %v510, 4294901760
    %512 = vmatprep.subr.mxu0 %v511
    %v513 = vand.u32 %v100, 4294901760
    %v514 = vsub.f32 %v100, %v513
    %v515 = vand.u32 %v514, 4294901760
    %516 = vmatpush1.msra.mxu0 %v515
    %517 = vmatprep.subr.mxu0 0.0
    %518 = vmatpush1.msra.mxu0 0.0
    %519 = vmatprep.subr.mxu0 0.0
    %520 = vmatpush1.msra.mxu0 0.0
    %521 = vmatprep.subr.mxu0 0.0
    %522 = vmatpush1.msra.mxu0 0.0
    %523 = vmatprep.subr.mxu0 0.0
    %524 = vmatpush1.msra.mxu0 0.0
    %525 = vmatprep.subr.mxu0 0.0
    %526 = vmatpush1.msra.mxu0 0.0
    %527 = vmatprep.subr.mxu0 0.0
    %528 = vmatpush1.msra.mxu0 0.0
    %529 = vmatprep.subr.mxu0 0.0
    %530 = vmatpush1.msra.mxu0 0.0
    %531 = vmatprep.subr.mxu0 0.0
    %532 = vmatpush1.msra.mxu0 0.0
    %533 = vmatprep.subr.mxu0 0.0
    %534 = vmatpush1.msra.mxu0 0.0
    %535 = vmatprep.subr.mxu0 0.0
    %536 = vmatpush1.msra.mxu0 0.0
    %537 = vmatprep.subr.mxu0 0.0
    %538 = vmatpush1.msra.mxu0 0.0
    %539 = vmatprep.subr.mxu0 0.0
    %540 = vmatpush1.msra.mxu0 0.0
    %541 = vmatprep.subr.mxu0 0.0
    %542 = vmatpush1.msra.mxu0 0.0
    %543 = vmatprep.subr.mxu0 0.0
    %544 = vmatpush1.msra.mxu0 0.0
    %545 = vmatprep.subr.mxu0 0.0
    %546 = vmatpush1.msra.mxu0 0.0
    %547 = vmatprep.subr.mxu0 0.0
    %548 = vmatpush1.msra.mxu0 0.0
    %549 = vmatprep.subr.mxu0 0.0
    %550 = vmatpush1.msra.mxu0 0.0
    %551 = vmatprep.subr.mxu0 0.0
    %552 = vmatpush1.msra.mxu0 0.0
    %553 = vmatprep.subr.mxu0 0.0
    %554 = vmatpush1.msra.mxu0 0.0
    %555 = vmatprep.subr.mxu0 0.0
    %556 = vmatpush1.msra.mxu0 0.0
    %557 = vmatprep.subr.mxu0 0.0
    %558 = vmatpush1.msra.mxu0 0.0
    %559 = vmatprep.subr.mxu0 0.0
    %560 = vmatpush1.msra.mxu0 0.0
    %561 = vmatprep.subr.mxu0 0.0
    %562 = vmatpush1.msra.mxu0 0.0
    %563 = vmatprep.subr.mxu0 0.0
    %564 = vmatpush1.msra.mxu0 0.0
    %565 = vmatprep.subr.mxu0 0.0
    %566 = vmatpush1.msra.mxu0 0.0
    %567 = vmatprep.subr.mxu0 0.0
    %568 = vmatpush1.msra.mxu0 0.0
    %569 = vmatprep.subr.mxu0 0.0
    %570 = vmatpush1.msra.mxu0 0.0
    %571 = vmatprep.subr.mxu0 0.0
    %572 = vmatpush1.msra.mxu0 0.0
    %573 = vmatprep.mubr.f32.mxu0 0.0
    %v574 = vand.u32 %v116, 4294901760
    %575 = vmatmul.mubr.f32.gmra.mrb[0].mxu0 %v574
    %v576 = vpop.f32.mrb[0].mxu0
    %v577 = vadd.f32 %v481, %v576
    %v578 = vpop.f32.mrb[0].mxu0
    %v579 = vadd.f32 %v483, %v578
    %580 = vdwg.mxu0
    %v581 = vand.u32 %v95, 4294901760
    %582 = vmatprep.subr.mxu0 %v581
    %v583 = vand.u32 %v94, 4294901760
    %584 = vmatpush1.msra.mxu0 %v583
    %v585 = vand.u32 %v97, 4294901760
    %586 = vmatprep.subr.mxu0 %v585
    %v587 = vand.u32 %v96, 4294901760
    %588 = vmatpush1.msra.mxu0 %v587
    %v589 = vand.u32 %v99, 4294901760
    %590 = vmatprep.subr.mxu0 %v589
    %v591 = vand.u32 %v98, 4294901760
    %592 = vmatpush1.msra.mxu0 %v591
    %v593 = vand.u32 %v101, 4294901760
    %594 = vmatprep.subr.mxu0 %v593
    %v595 = vand.u32 %v100, 4294901760
    %596 = vmatpush1.msra.mxu0 %v595
    %597 = vmatprep.subr.mxu0 0.0
    %598 = vmatpush1.msra.mxu0 0.0
    %599 = vmatprep.subr.mxu0 0.0
    %600 = vmatpush1.msra.mxu0 0.0
    %601 = vmatprep.subr.mxu0 0.0
    %602 = vmatpush1.msra.mxu0 0.0
    %603 = vmatprep.subr.mxu0 0.0
    %604 = vmatpush1.msra.mxu0 0.0
    %605 = vmatprep.subr.mxu0 0.0
    %606 = vmatpush1.msra.mxu0 0.0
    %607 = vmatprep.subr.mxu0 0.0
    %608 = vmatpush1.msra.mxu0 0.0
    %609 = vmatprep.subr.mxu0 0.0
    %610 = vmatpush1.msra.mxu0 0.0
    %611 = vmatprep.subr.mxu0 0.0
    %612 = vmatpush1.msra.mxu0 0.0
    %613 = vmatprep.subr.mxu0 0.0
    %614 = vmatpush1.msra.mxu0 0.0
    %615 = vmatprep.subr.mxu0 0.0
    %616 = vmatpush1.msra.mxu0 0.0
    %617 = vmatprep.subr.mxu0 0.0
    %618 = vmatpush1.msra.mxu0 0.0
    %619 = vmatprep.subr.mxu0 0.0
    %620 = vmatpush1.msra.mxu0 0.0
    %621 = vmatprep.subr.mxu0 0.0
    %622 = vmatpush1.msra.mxu0 0.0
    %623 = vmatprep.subr.mxu0 0.0
    %624 = vmatpush1.msra.mxu0 0.0
    %625 = vmatprep.subr.mxu0 0.0
    %626 = vmatpush1.msra.mxu0 0.0
    %627 = vmatprep.subr.mxu0 0.0
    %628 = vmatpush1.msra.mxu0 0.0
    %629 = vmatprep.subr.mxu0 0.0
    %630 = vmatpush1.msra.mxu0 0.0
    %631 = vmatprep.subr.mxu0 0.0
    %632 = vmatpush1.msra.mxu0 0.0
    %633 = vmatprep.subr.mxu0 0.0
    %634 = vmatpush1.msra.mxu0 0.0
    %635 = vmatprep.subr.mxu0 0.0
    %636 = vmatpush1.msra.mxu0 0.0
    %637 = vmatprep.subr.mxu0 0.0
    %638 = vmatpush1.msra.mxu0 0.0
    %639 = vmatprep.subr.mxu0 0.0
    %640 = vmatpush1.msra.mxu0 0.0
    %641 = vmatprep.subr.mxu0 0.0
    %642 = vmatpush1.msra.mxu0 0.0
    %643 = vmatprep.subr.mxu0 0.0
    %644 = vmatpush1.msra.mxu0 0.0
    %645 = vmatprep.subr.mxu0 0.0
    %646 = vmatpush1.msra.mxu0 0.0
    %647 = vmatprep.subr.mxu0 0.0
    %648 = vmatpush1.msra.mxu0 0.0
    %649 = vmatprep.subr.mxu0 0.0
    %650 = vmatpush1.msra.mxu0 0.0
    %651 = vmatprep.subr.mxu0 0.0
    %652 = vmatpush1.msra.mxu0 0.0
    %653 = vmatprep.mubr.f32.mxu0 0.0
    %v654 = vand.u32 %v116, 4294901760
    %655 = vmatmul.mubr.f32.gmra.mrb[0].mxu0 %v654
    %v656 = vpop.f32.mrb[0].mxu0
    %v657 = vadd.f32 %v577, %v656
    %v658 = vpop.f32.mrb[0].mxu0
    %v659 = vadd.f32 %v579, %v658
    %660 = vdwg.mxu0
    %661 = vst [vmem:[#allocation2] sm:$0xff] %v657
    %662 = vst [vmem:[#allocation2 + $0x8] sm:$0xff] %v659
    %v663 = vld [vmem:[#allocation9] sm:$0xff]
    %v664 = vld [vmem:[#allocation9 + $0x8] sm:$0xff]
    %v665 = vld [vmem:[#allocation9 + $0x10] sm:$0xff]
    %v666 = vld [vmem:[#allocation9 + $0x18] sm:$0xff]
    %v667 = vld [vmem:[#allocation2] ss:$0 sm:$0xff]
    %v669 = vsel %vm114, 0.0, 0
    %671 = vmatprep.subr.mxu0 0.0
    %v672 = vand.u32 %v663, 4294901760
    %673 = vmatpush1.msra.mxu0 %v672
    %674 = vmatprep.subr.mxu0 0.0
    %v675 = vand.u32 %v664, 4294901760
    %676 = vmatpush1.msra.mxu0 %v675
    %677 = vmatprep.subr.mxu0 0.0
    %v678 = vand.u32 %v665, 4294901760
    %679 = vmatpush1.msra.mxu0 %v678
    %680 = vmatprep.subr.mxu0 0.0
    %v681 = vand.u32 %v666, 4294901760
    %682 = vmatpush1.msra.mxu0 %v681
    %683 = vmatprep.subr.mxu0 0.0
    %684 = vmatpush1.msra.mxu0 0.0
    %685 = vmatprep.subr.mxu0 0.0
    %686 = vmatpush1.msra.mxu0 0.0
    %687 = vmatprep.subr.mxu0 0.0
    %688 = vmatpush1.msra.mxu0 0.0
    %689 = vmatprep.subr.mxu0 0.0
    %690 = vmatpush1.msra.mxu0 0.0
    %691 = vmatprep.subr.mxu0 0.0
    %692 = vmatpush1.msra.mxu0 0.0
    %693 = vmatprep.subr.mxu0 0.0
    %694 = vmatpush1.msra.mxu0 0.0
    %695 = vmatprep.subr.mxu0 0.0
    %696 = vmatpush1.msra.mxu0 0.0
    %697 = vmatprep.subr.mxu0 0.0
    %698 = vmatpush1.msra.mxu0 0.0
    %699 = vmatprep.subr.mxu0 0.0
    %700 = vmatpush1.msra.mxu0 0.0
    %701 = vmatprep.subr.mxu0 0.0
    %702 = vmatpush1.msra.mxu0 0.0
    %703 = vmatprep.subr.mxu0 0.0
    %704 = vmatpush1.msra.mxu0 0.0
    %705 = vmatprep.subr.mxu0 0.0
    %706 = vmatpush1.msra.mxu0 0.0
    %707 = vmatprep.subr.mxu0 0.0
    %708 = vmatpush1.msra.mxu0 0.0
    %709 = vmatprep.subr.mxu0 0.0
    %710 = vmatpush1.msra.mxu0 0.0
    %711 = vmatprep.subr.mxu0 0.0
    %712 = vmatpush1.msra.mxu0 0.0
    %713 = vmatprep.subr.mxu0 0.0
    %714 = vmatpush1.msra.mxu0 0.0
    %715 = vmatprep.subr.mxu0 0.0
    %716 = vmatpush1.msra.mxu0 0.0
    %717 = vmatprep.subr.mxu0 0.0
    %718 = vmatpush1.msra.mxu0 0.0
    %719 = vmatprep.subr.mxu0 0.0
    %720 = vmatpush1.msra.mxu0 0.0
    %721 = vmatprep.subr.mxu0 0.0
    %722 = vmatpush1.msra.mxu0 0.0
    %723 = vmatprep.subr.mxu0 0.0
    %724 = vmatpush1.msra.mxu0 0.0
    %725 = vmatprep.subr.mxu0 0.0
    %726 = vmatpush1.msra.mxu0 0.0
    %727 = vmatprep.subr.mxu0 0.0
    %728 = vmatpush1.msra.mxu0 0.0
    %729 = vmatprep.subr.mxu0 0.0
    %730 = vmatpush1.msra.mxu0 0.0
    %731 = vmatprep.subr.mxu0 0.0
    %732 = vmatpush1.msra.mxu0 0.0
    %733 = vmatprep.subr.mxu0 0.0
    %734 = vmatpush1.msra.mxu0 0.0
    %735 = vmatprep.subr.mxu0 0.0
    %736 = vmatpush1.msra.mxu0 0.0
    %737 = vmatprep.subr.mxu0 0.0
    %738 = vmatpush1.msra.mxu0 0.0
    %739 = vmatprep.mubr.f32.mxu0 0.0
    %v740 = vand.u32 %v669, 4294901760
    %v741 = vsub.f32 %v669, %v740
    %v742 = vand.u32 %v741, 4294901760
    %v743 = vsub.f32 %v741, %v742
    %v744 = vand.u32 %v743, 4294901760
    %745 = vmatmul.mubr.f32.gmra.mrb[0].mxu0 %v744
    %v746 = vpop.f32.mrb[0].mxu0
    %v747 = vadd.f32 %v667, %v746
    %v748 = vpop.f32.mrb[0].mxu0
    %749 = vdwg.mxu0
    %750 = vmatprep.subr.mxu0 0.0
    %v751 = vand.u32 %v663, 4294901760
    %v752 = vsub.f32 %v663, %v751
    %v753 = vand.u32 %v752, 4294901760
    %v754 = vsub.f32 %v752, %v753
    %v755 = vand.u32 %v754, 4294901760
    %756 = vmatpush1.msra.mxu0 %v755
    %757 = vmatprep.subr.mxu0 0.0
    %v758 = vand.u32 %v664, 4294901760
    %v759 = vsub.f32 %v664, %v758
    %v760 = vand.u32 %v759, 4294901760
    %v761 = vsub.f32 %v759, %v760
    %v762 = vand.u32 %v761, 4294901760
    %763 = vmatpush1.msra.mxu0 %v762
    %764 = vmatprep.subr.mxu0 0.0
    %v765 = vand.u32 %v665, 4294901760
    %v766 = vsub.f32 %v665, %v765
    %v767 = vand.u32 %v766, 4294901760
    %v768 = vsub.f32 %v766, %v767
    %v769 = vand.u32 %v768, 4294901760
    %770 = vmatpush1.msra.mxu0 %v769
    %771 = vmatprep.subr.mxu0 0.0
    %v772 = vand.u32 %v666, 4294901760
    %v773 = vsub.f32 %v666, %v772
    %v774 = vand.u32 %v773, 4294901760
    %v775 = vsub.f32 %v773, %v774
    %v776 = vand.u32 %v775, 4294901760
    %777 = vmatpush1.msra.mxu0 %v776
    %778 = vmatprep.subr.mxu0 0.0
    %779 = vmatpush1.msra.mxu0 0.0
    %780 = vmatprep.subr.mxu0 0.0
    %781 = vmatpush1.msra.mxu0 0.0
    %782 = vmatprep.subr.mxu0 0.0
    %783 = vmatpush1.msra.mxu0 0.0
    %784 = vmatprep.subr.mxu0 0.0
    %785 = vmatpush1.msra.mxu0 0.0
    %786 = vmatprep.subr.mxu0 0.0
    %787 = vmatpush1.msra.mxu0 0.0
    %788 = vmatprep.subr.mxu0 0.0
    %789 = vmatpush1.msra.mxu0 0.0
    %790 = vmatprep.subr.mxu0 0.0
    %791 = vmatpush1.msra.mxu0 0.0
    %792 = vmatprep.subr.mxu0 0.0
    %793 = vmatpush1.msra.mxu0 0.0
    %794 = vmatprep.subr.mxu0 0.0
    %795 = vmatpush1.msra.mxu0 0.0
    %796 = vmatprep.subr.mxu0 0.0
    %797 = vmatpush1.msra.mxu0 0.0
    %798 = vmatprep.subr.mxu0 0.0
    %799 = vmatpush1.msra.mxu0 0.0
    %800 = vmatprep.subr.mxu0 0.0
    %801 = vmatpush1.msra.mxu0 0.0
    %802 = vmatprep.subr.mxu0 0.0
    %803 = vmatpush1.msra.mxu0 0.0
    %804 = vmatprep.subr.mxu0 0.0
    %805 = vmatpush1.msra.mxu0 0.0
    %806 = vmatprep.subr.mxu0 0.0
    %807 = vmatpush1.msra.mxu0 0.0
    %808 = vmatprep.subr.mxu0 0.0
    %809 = vmatpush1.msra.mxu0 0.0
    %810 = vmatprep.subr.mxu0 0.0
    %811 = vmatpush1.msra.mxu0 0.0
    %812 = vmatprep.subr.mxu0 0.0
    %813 = vmatpush1.msra.mxu0 0.0
    %814 = vmatprep.subr.mxu0 0.0
    %815 = vmatpush1.msra.mxu0 0.0
    %816 = vmatprep.subr.mxu0 0.0
    %817 = vmatpush1.msra.mxu0 0.0
    %818 = vmatprep.subr.mxu0 0.0
    %819 = vmatpush1.msra.mxu0 0.0
    %820 = vmatprep.subr.mxu0 0.0
    %821 = vmatpush1.msra.mxu0 0.0
    %822 = vmatprep.subr.mxu0 0.0
    %823 = vmatpush1.msra.mxu0 0.0
    %824 = vmatprep.subr.mxu0 0.0
    %825 = vmatpush1.msra.mxu0 0.0
    %826 = vmatprep.subr.mxu0 0.0
    %827 = vmatpush1.msra.mxu0 0.0
    %828 = vmatprep.subr.mxu0 0.0
    %829 = vmatpush1.msra.mxu0 0.0
    %830 = vmatprep.subr.mxu0 0.0
    %831 = vmatpush1.msra.mxu0 0.0
    %832 = vmatprep.subr.mxu0 0.0
    %833 = vmatpush1.msra.mxu0 0.0
    %834 = vmatprep.mubr.f32.mxu0 0.0
    %v835 = vand.u32 %v669, 4294901760
    %836 = vmatmul.mubr.f32.gmra.mrb[0].mxu0 %v835
    %v837 = vpop.f32.mrb[0].mxu0
    %v838 = vadd.f32 %v747, %v837
    %v839 = vpop.f32.mrb[0].mxu0
    %840 = vdwg.mxu0
    %841 = vmatprep.subr.mxu0 0.0
    %v842 = vand.u32 %v663, 4294901760
    %v843 = vsub.f32 %v663, %v842
    %844 = vmatpush1.msra.mxu0 %v843
    %845 = vmatprep.subr.mxu0 0.0
    %v846 = vand.u32 %v664, 4294901760
    %v847 = vsub.f32 %v664, %v846
    %848 = vmatpush1.msra.mxu0 %v847
    %849 = vmatprep.subr.mxu0 0.0
    %v850 = vand.u32 %v665, 4294901760
    %v851 = vsub.f32 %v665, %v850
    %852 = vmatpush1.msra.mxu0 %v851
    %853 = vmatprep.subr.mxu0 0.0
    %v854 = vand.u32 %v666, 4294901760
    %v855 = vsub.f32 %v666, %v854
    %856 = vmatpush1.msra.mxu0 %v855
    %857 = vmatprep.subr.mxu0 0.0
    %858 = vmatpush1.msra.mxu0 0.0
    %859 = vmatprep.subr.mxu0 0.0
    %860 = vmatpush1.msra.mxu0 0.0
    %861 = vmatprep.subr.mxu0 0.0
    %862 = vmatpush1.msra.mxu0 0.0
    %863 = vmatprep.subr.mxu0 0.0
    %864 = vmatpush1.msra.mxu0 0.0
    %865 = vmatprep.subr.mxu0 0.0
    %866 = vmatpush1.msra.mxu0 0.0
    %867 = vmatprep.subr.mxu0 0.0
    %868 = vmatpush1.msra.mxu0 0.0
    %869 = vmatprep.subr.mxu0 0.0
    %870 = vmatpush1.msra.mxu0 0.0
    %871 = vmatprep.subr.mxu0 0.0
    %872 = vmatpush1.msra.mxu0 0.0
    %873 = vmatprep.subr.mxu0 0.0
    %874 = vmatpush1.msra.mxu0 0.0
    %875 = vmatprep.subr.mxu0 0.0
    %876 = vmatpush1.msra.mxu0 0.0
    %877 = vmatprep.subr.mxu0 0.0
    %878 = vmatpush1.msra.mxu0 0.0
    %879 = vmatprep.subr.mxu0 0.0
    %880 = vmatpush1.msra.mxu0 0.0
    %881 = vmatprep.subr.mxu0 0.0
    %882 = vmatpush1.msra.mxu0 0.0
    %883 = vmatprep.subr.mxu0 0.0
    %884 = vmatpush1.msra.mxu0 0.0
    %885 = vmatprep.subr.mxu0 0.0
    %886 = vmatpush1.msra.mxu0 0.0
    %887 = vmatprep.subr.mxu0 0.0
    %888 = vmatpush1.msra.mxu0 0.0
    %889 = vmatprep.subr.mxu0 0.0
    %890 = vmatpush1.msra.mxu0 0.0
    %891 = vmatprep.subr.mxu0 0.0
    %892 = vmatpush1.msra.mxu0 0.0
    %893 = vmatprep.subr.mxu0 0.0
    %894 = vmatpush1.msra.mxu0 0.0
    %895 = vmatprep.subr.mxu0 0.0
    %896 = vmatpush1.msra.mxu0 0.0
    %897 = vmatprep.subr.mxu0 0.0
    %898 = vmatpush1.msra.mxu0 0.0
    %899 = vmatprep.subr.mxu0 0.0
    %900 = vmatpush1.msra.mxu0 0.0
    %901 = vmatprep.subr.mxu0 0.0
    %902 = vmatpush1.msra.mxu0 0.0
    %903 = vmatprep.subr.mxu0 0.0
    %904 = vmatpush1.msra.mxu0 0.0
    %905 = vmatprep.subr.mxu0 0.0
    %906 = vmatpush1.msra.mxu0 0.0
    %907 = vmatprep.subr.mxu0 0.0
    %908 = vmatpush1.msra.mxu0 0.0
    %909 = vmatprep.subr.mxu0 0.0
    %910 = vmatpush1.msra.mxu0 0.0
    %911 = vmatprep.subr.mxu0 0.0
    %912 = vmatpush1.msra.mxu0 0.0
    %913 = vmatprep.mubr.f32.mxu0 0.0
    %v914 = vand.u32 %v669, 4294901760
    %v915 = vsub.f32 %v669, %v914
    %916 = vmatmul.mubr.f32.gmra.mrb[0].mxu0 %v915
    %v917 = vpop.f32.mrb[0].mxu0
    %v918 = vadd.f32 %v838, %v917
    %v919 = vpop.f32.mrb[0].mxu0
    %920 = vdwg.mxu0
    %921 = vmatprep.subr.mxu0 0.0
    %v922 = vand.u32 %v663, 4294901760
    %923 = vmatpush1.msra.mxu0 %v922
    %924 = vmatprep.subr.mxu0 0.0
    %v925 = vand.u32 %v664, 4294901760
    %926 = vmatpush1.msra.mxu0 %v925
    %927 = vmatprep.subr.mxu0 0.0
    %v928 = vand.u32 %v665, 4294901760
    %929 = vmatpush1.msra.mxu0 %v928
    %930 = vmatprep.subr.mxu0 0.0
    %v931 = vand.u32 %v666, 4294901760
    %932 = vmatpush1.msra.mxu0 %v931
    %933 = vmatprep.subr.mxu0 0.0
    %934 = vmatpush1.msra.mxu0 0.0
    %935 = vmatprep.subr.mxu0 0.0
    %936 = vmatpush1.msra.mxu0 0.0
    %937 = vmatprep.subr.mxu0 0.0
    %938 = vmatpush1.msra.mxu0 0.0
    %939 = vmatprep.subr.mxu0 0.0
    %940 = vmatpush1.msra.mxu0 0.0
    %941 = vmatprep.subr.mxu0 0.0
    %942 = vmatpush1.msra.mxu0 0.0
    %943 = vmatprep.subr.mxu0 0.0
    %944 = vmatpush1.msra.mxu0 0.0
    %945 = vmatprep.subr.mxu0 0.0
    %946 = vmatpush1.msra.mxu0 0.0
    %947 = vmatprep.subr.mxu0 0.0
    %948 = vmatpush1.msra.mxu0 0.0
    %949 = vmatprep.subr.mxu0 0.0
    %950 = vmatpush1.msra.mxu0 0.0
    %951 = vmatprep.subr.mxu0 0.0
    %952 = vmatpush1.msra.mxu0 0.0
    %953 = vmatprep.subr.mxu0 0.0
    %954 = vmatpush1.msra.mxu0 0.0
    %955 = vmatprep.subr.mxu0 0.0
    %956 = vmatpush1.msra.mxu0 0.0
    %957 = vmatprep.subr.mxu0 0.0
    %958 = vmatpush1.msra.mxu0 0.0
    %959 = vmatprep.subr.mxu0 0.0
    %960 = vmatpush1.msra.mxu0 0.0
    %961 = vmatprep.subr.mxu0 0.0
    %962 = vmatpush1.msra.mxu0 0.0
    %963 = vmatprep.subr.mxu0 0.0
    %964 = vmatpush1.msra.mxu0 0.0
    %965 = vmatprep.subr.mxu0 0.0
    %966 = vmatpush1.msra.mxu0 0.0
    %967 = vmatprep.subr.mxu0 0.0
    %968 = vmatpush1.msra.mxu0 0.0
    %969 = vmatprep.subr.mxu0 0.0
    %970 = vmatpush1.msra.mxu0 0.0
    %971 = vmatprep.subr.mxu0 0.0
    %972 = vmatpush1.msra.mxu0 0.0
    %973 = vmatprep.subr.mxu0 0.0
    %974 = vmatpush1.msra.mxu0 0.0
    %975 = vmatprep.subr.mxu0 0.0
    %976 = vmatpush1.msra.mxu0 0.0
    %977 = vmatprep.subr.mxu0 0.0
    %978 = vmatpush1.msra.mxu0 0.0
    %979 = vmatprep.subr.mxu0 0.0
    %980 = vmatpush1.msra.mxu0 0.0
    %981 = vmatprep.subr.mxu0 0.0
    %982 = vmatpush1.msra.mxu0 0.0
    %983 = vmatprep.subr.mxu0 0.0
    %984 = vmatpush1.msra.mxu0 0.0
    %985 = vmatprep.subr.mxu0 0.0
    %986 = vmatpush1.msra.mxu0 0.0
    %987 = vmatprep.subr.mxu0 0.0
    %988 = vmatpush1.msra.mxu0 0.0
    %989 = vmatprep.mubr.f32.mxu0 0.0
    %v990 = vand.u32 %v669, 4294901760
    %v991 = vsub.f32 %v669, %v990
    %v992 = vand.u32 %v991, 4294901760
    %993 = vmatmul.mubr.f32.gmra.mrb[0].mxu0 %v992
    %v994 = vpop.f32.mrb[0].mxu0
    %v995 = vadd.f32 %v918, %v994
    %v996 = vpop.f32.mrb[0].mxu0
    %997 = vdwg.mxu0
    %998 = vmatprep.subr.mxu0 0.0
    %v999 = vand.u32 %v663, 4294901760
    %v1000 = vsub.f32 %v663, %v999
    %v1001 = vand.u32 %v1000, 4294901760
    %1002 = vmatpush1.msra.mxu0 %v1001
    %1003 = vmatprep.subr.mxu0 0.0
    %v1004 = vand.u32 %v664, 4294901760
    %v1005 = vsub.f32 %v664, %v1004
    %v1006 = vand.u32 %v1005, 4294901760
    %1007 = vmatpush1.msra.mxu0 %v1006
    %1008 = vmatprep.subr.mxu0 0.0
    %v1009 = vand.u32 %v665, 4294901760
    %v1010 = vsub.f32 %v665, %v1009
    %v1011 = vand.u32 %v1010, 4294901760
    %1012 = vmatpush1.msra.mxu0 %v1011
    %1013 = vmatprep.subr.mxu0 0.0
    %v1014 = vand.u32 %v666, 4294901760
    %v1015 = vsub.f32 %v666, %v1014
    %v1016 = vand.u32 %v1015, 4294901760
    %1017 = vmatpush1.msra.mxu0 %v1016
    %1018 = vmatprep.subr.mxu0 0.0
    %1019 = vmatpush1.msra.mxu0 0.0
    %1020 = vmatprep.subr.mxu0 0.0
    %1021 = vmatpush1.msra.mxu0 0.0
    %1022 = vmatprep.subr.mxu0 0.0
    %1023 = vmatpush1.msra.mxu0 0.0
    %1024 = vmatprep.subr.mxu0 0.0
    %1025 = vmatpush1.msra.mxu0 0.0
    %1026 = vmatprep.subr.mxu0 0.0
    %1027 = vmatpush1.msra.mxu0 0.0
    %1028 = vmatprep.subr.mxu0 0.0
    %1029 = vmatpush1.msra.mxu0 0.0
    %1030 = vmatprep.subr.mxu0 0.0
    %1031 = vmatpush1.msra.mxu0 0.0
    %1032 = vmatprep.subr.mxu0 0.0
    %1033 = vmatpush1.msra.mxu0 0.0
    %1034 = vmatprep.subr.mxu0 0.0
    %1035 = vmatpush1.msra.mxu0 0.0
    %1036 = vmatprep.subr.mxu0 0.0
    %1037 = vmatpush1.msra.mxu0 0.0
    %1038 = vmatprep.subr.mxu0 0.0
    %1039 = vmatpush1.msra.mxu0 0.0
    %1040 = vmatprep.subr.mxu0 0.0
    %1041 = vmatpush1.msra.mxu0 0.0
    %1042 = vmatprep.subr.mxu0 0.0
    %1043 = vmatpush1.msra.mxu0 0.0
    %1044 = vmatprep.subr.mxu0 0.0
    %1045 = vmatpush1.msra.mxu0 0.0
    %1046 = vmatprep.subr.mxu0 0.0
    %1047 = vmatpush1.msra.mxu0 0.0
    %1048 = vmatprep.subr.mxu0 0.0
    %1049 = vmatpush1.msra.mxu0 0.0
    %1050 = vmatprep.subr.mxu0 0.0
    %1051 = vmatpush1.msra.mxu0 0.0
    %1052 = vmatprep.subr.mxu0 0.0
    %1053 = vmatpush1.msra.mxu0 0.0
    %1054 = vmatprep.subr.mxu0 0.0
    %1055 = vmatpush1.msra.mxu0 0.0
    %1056 = vmatprep.subr.mxu0 0.0
    %1057 = vmatpush1.msra.mxu0 0.0
    %1058 = vmatprep.subr.mxu0 0.0
    %1059 = vmatpush1.msra.mxu0 0.0
    %1060 = vmatprep.subr.mxu0 0.0
    %1061 = vmatpush1.msra.mxu0 0.0
    %1062 = vmatprep.subr.mxu0 0.0
    %1063 = vmatpush1.msra.mxu0 0.0
    %1064 = vmatprep.subr.mxu0 0.0
    %1065 = vmatpush1.msra.mxu0 0.0
    %1066 = vmatprep.subr.mxu0 0.0
    %1067 = vmatpush1.msra.mxu0 0.0
    %1068 = vmatprep.subr.mxu0 0.0
    %1069 = vmatpush1.msra.mxu0 0.0
    %1070 = vmatprep.subr.mxu0 0.0
    %1071 = vmatpush1.msra.mxu0 0.0
    %1072 = vmatprep.subr.mxu0 0.0
    %1073 = vmatpush1.msra.mxu0 0.0
    %1074 = vmatprep.mubr.f32.mxu0 0.0
    %v1075 = vand.u32 %v669, 4294901760
    %1076 = vmatmul.mubr.f32.gmra.mrb[0].mxu0 %v1075
    %v1077 = vpop.f32.mrb[0].mxu0
    %v1078 = vadd.f32 %v995, %v1077
    %v1079 = vpop.f32.mrb[0].mxu0
    %1080 = vdwg.mxu0
    %1081 = vmatprep.subr.mxu0 0.0
    %v1082 = vand.u32 %v663, 4294901760
    %1083 = vmatpush1.msra.mxu0 %v1082
    %1084 = vmatprep.subr.mxu0 0.0
    %v1085 = vand.u32 %v664, 4294901760
    %1086 = vmatpush1.msra.mxu0 %v1085
    %1087 = vmatprep.subr.mxu0 0.0
    %v1088 = vand.u32 %v665, 4294901760
    %1089 = vmatpush1.msra.mxu0 %v1088
    %1090 = vmatprep.subr.mxu0 0.0
    %v1091 = vand.u32 %v666, 4294901760
    %1092 = vmatpush1.msra.mxu0 %v1091
    %1093 = vmatprep.subr.mxu0 0.0
    %1094 = vmatpush1.msra.mxu0 0.0
    %1095 = vmatprep.subr.mxu0 0.0
    %1096 = vmatpush1.msra.mxu0 0.0
    %1097 = vmatprep.subr.mxu0 0.0
    %1098 = vmatpush1.msra.mxu0 0.0
    %1099 = vmatprep.subr.mxu0 0.0
    %1100 = vmatpush1.msra.mxu0 0.0
    %1101 = vmatprep.subr.mxu0 0.0
    %1102 = vmatpush1.msra.mxu0 0.0
    %1103 = vmatprep.subr.mxu0 0.0
    %1104 = vmatpush1.msra.mxu0 0.0
    %1105 = vmatprep.subr.mxu0 0.0
    %1106 = vmatpush1.msra.mxu0 0.0
    %1107 = vmatprep.subr.mxu0 0.0
    %1108 = vmatpush1.msra.mxu0 0.0
    %1109 = vmatprep.subr.mxu0 0.0
    %1110 = vmatpush1.msra.mxu0 0.0
    %1111 = vmatprep.subr.mxu0 0.0
    %1112 = vmatpush1.msra.mxu0 0.0
    %1113 = vmatprep.subr.mxu0 0.0
    %1114 = vmatpush1.msra.mxu0 0.0
    %1115 = vmatprep.subr.mxu0 0.0
    %1116 = vmatpush1.msra.mxu0 0.0
    %1117 = vmatprep.subr.mxu0 0.0
    %1118 = vmatpush1.msra.mxu0 0.0
    %1119 = vmatprep.subr.mxu0 0.0
    %1120 = vmatpush1.msra.mxu0 0.0
    %1121 = vmatprep.subr.mxu0 0.0
    %1122 = vmatpush1.msra.mxu0 0.0
    %1123 = vmatprep.subr.mxu0 0.0
    %1124 = vmatpush1.msra.mxu0 0.0
    %1125 = vmatprep.subr.mxu0 0.0
    %1126 = vmatpush1.msra.mxu0 0.0
    %1127 = vmatprep.subr.mxu0 0.0
    %1128 = vmatpush1.msra.mxu0 0.0
    %1129 = vmatprep.subr.mxu0 0.0
    %1130 = vmatpush1.msra.mxu0 0.0
    %1131 = vmatprep.subr.mxu0 0.0
    %1132 = vmatpush1.msra.mxu0 0.0
    %1133 = vmatprep.subr.mxu0 0.0
    %1134 = vmatpush1.msra.mxu0 0.0
    %1135 = vmatprep.subr.mxu0 0.0
    %1136 = vmatpush1.msra.mxu0 0.0
    %1137 = vmatprep.subr.mxu0 0.0
    %1138 = vmatpush1.msra.mxu0 0.0
    %1139 = vmatprep.subr.mxu0 0.0
    %1140 = vmatpush1.msra.mxu0 0.0
    %1141 = vmatprep.subr.mxu0 0.0
    %1142 = vmatpush1.msra.mxu0 0.0
    %1143 = vmatprep.subr.mxu0 0.0
    %1144 = vmatpush1.msra.mxu0 0.0
    %1145 = vmatprep.subr.mxu0 0.0
    %1146 = vmatpush1.msra.mxu0 0.0
    %1147 = vmatprep.subr.mxu0 0.0
    %1148 = vmatpush1.msra.mxu0 0.0
    %1149 = vmatprep.mubr.f32.mxu0 0.0
    %v1150 = vand.u32 %v669, 4294901760
    %1151 = vmatmul.mubr.f32.gmra.mrb[0].mxu0 %v1150
    %v1152 = vpop.f32.mrb[0].mxu0
    %v1153 = vadd.f32 %v1078, %v1152
    %v1154 = vpop.f32.mrb[0].mxu0
    %1155 = vdwg.mxu0
    %v1156 = vld [vmem:[#allocation10] sm:$0xff]
    %v1157 = vld [vmem:[#allocation10 + $0x8] sm:$0xff]
    %v1158 = vld [vmem:[#allocation10 + $0x10] sm:$0xff]
    %v1159 = vld [vmem:[#allocation10 + $0x18] sm:$0xff]
    %v1160 = vld [vmem:[#allocation2 + $0xf] ss:$0 sm:$0xff]
    %1161 = vmatprep.subr.mxu0 0.0
    %v1162 = vand.u32 %v1156, 4294901760
    %1163 = vmatpush1.msra.mxu0 %v1162
    %1164 = vmatprep.subr.mxu0 0.0
    %v1165 = vand.u32 %v1157, 4294901760
    %1166 = vmatpush1.msra.mxu0 %v1165
    %1167 = vmatprep.subr.mxu0 0.0
    %v1168 = vand.u32 %v1158, 4294901760
    %1169 = vmatpush1.msra.mxu0 %v1168
    %1170 = vmatprep.subr.mxu0 0.0
    %v1171 = vand.u32 %v1159, 4294901760
    %1172 = vmatpush1.msra.mxu0 %v1171
    %1173 = vmatprep.subr.mxu0 0.0
    %1174 = vmatpush1.msra.mxu0 0.0
    %1175 = vmatprep.subr.mxu0 0.0
    %1176 = vmatpush1.msra.mxu0 0.0
    %1177 = vmatprep.subr.mxu0 0.0
    %1178 = vmatpush1.msra.mxu0 0.0
    %1179 = vmatprep.subr.mxu0 0.0
    %1180 = vmatpush1.msra.mxu0 0.0
    %1181 = vmatprep.subr.mxu0 0.0
    %1182 = vmatpush1.msra.mxu0 0.0
    %1183 = vmatprep.subr.mxu0 0.0
    %1184 = vmatpush1.msra.mxu0 0.0
    %1185 = vmatprep.subr.mxu0 0.0
    %1186 = vmatpush1.msra.mxu0 0.0
    %1187 = vmatprep.subr.mxu0 0.0
    %1188 = vmatpush1.msra.mxu0 0.0
    %1189 = vmatprep.subr.mxu0 0.0
    %1190 = vmatpush1.msra.mxu0 0.0
    %1191 = vmatprep.subr.mxu0 0.0
    %1192 = vmatpush1.msra.mxu0 0.0
    %1193 = vmatprep.subr.mxu0 0.0
    %1194 = vmatpush1.msra.mxu0 0.0
    %1195 = vmatprep.subr.mxu0 0.0
    %1196 = vmatpush1.msra.mxu0 0.0
    %1197 = vmatprep.subr.mxu0 0.0
    %1198 = vmatpush1.msra.mxu0 0.0
    %1199 = vmatprep.subr.mxu0 0.0
    %1200 = vmatpush1.msra.mxu0 0.0
    %1201 = vmatprep.subr.mxu0 0.0
    %1202 = vmatpush1.msra.mxu0 0.0
    %1203 = vmatprep.subr.mxu0 0.0
    %1204 = vmatpush1.msra.mxu0 0.0
    %1205 = vmatprep.subr.mxu0 0.0
    %1206 = vmatpush1.msra.mxu0 0.0
    %1207 = vmatprep.subr.mxu0 0.0
    %1208 = vmatpush1.msra.mxu0 0.0
    %1209 = vmatprep.subr.mxu0 0.0
    %1210 = vmatpush1.msra.mxu0 0.0
    %1211 = vmatprep.subr.mxu0 0.0
    %1212 = vmatpush1.msra.mxu0 0.0
    %1213 = vmatprep.subr.mxu0 0.0
    %1214 = vmatpush1.msra.mxu0 0.0
    %1215 = vmatprep.subr.mxu0 0.0
    %1216 = vmatpush1.msra.mxu0 0.0
    %1217 = vmatprep.subr.mxu0 0.0
    %1218 = vmatpush1.msra.mxu0 0.0
    %1219 = vmatprep.subr.mxu0 0.0
    %1220 = vmatpush1.msra.mxu0 0.0
    %1221 = vmatprep.subr.mxu0 0.0
    %1222 = vmatpush1.msra.mxu0 0.0
    %1223 = vmatprep.subr.mxu0 0.0
    %1224 = vmatpush1.msra.mxu0 0.0
    %1225 = vmatprep.subr.mxu0 0.0
    %1226 = vmatpush1.msra.mxu0 0.0
    %1227 = vmatprep.subr.mxu0 0.0
    %1228 = vmatpush1.msra.mxu0 0.0
    %1229 = vmatprep.mubr.f32.mxu0 0.0
    %v1230 = vand.u32 %v669, 4294901760
    %v1231 = vsub.f32 %v669, %v1230
    %v1232 = vand.u32 %v1231, 4294901760
    %v1233 = vsub.f32 %v1231, %v1232
    %v1234 = vand.u32 %v1233, 4294901760
    %1235 = vmatmul.mubr.f32.gmra.mrb[0].mxu0 %v1234
    %v1236 = vpop.f32.mrb[0].mxu0
    %v1237 = vadd.f32 %v1160, %v1236
    %v1238 = vpop.f32.mrb[0].mxu0
    %1239 = vdwg.mxu0
    %1240 = vmatprep.subr.mxu0 0.0
    %v1241 = vand.u32 %v1156, 4294901760
    %v1242 = vsub.f32 %v1156, %v1241
    %v1243 = vand.u32 %v1242, 4294901760
    %v1244 = vsub.f32 %v1242, %v1243
    %v1245 = vand.u32 %v1244, 4294901760
    %1246 = vmatpush1.msra.mxu0 %v1245
    %1247 = vmatprep.subr.mxu0 0.0
    %v1248 = vand.u32 %v1157, 4294901760
    %v1249 = vsub.f32 %v1157, %v1248
    %v1250 = vand.u32 %v1249, 4294901760
    %v1251 = vsub.f32 %v1249, %v1250
    %v1252 = vand.u32 %v1251, 4294901760
    %1253 = vmatpush1.msra.mxu0 %v1252
    %1254 = vmatprep.subr.mxu0 0.0
    %v1255 = vand.u32 %v1158, 4294901760
    %v1256 = vsub.f32 %v1158, %v1255
    %v1257 = vand.u32 %v1256, 4294901760
    %v1258 = vsub.f32 %v1256, %v1257
    %v1259 = vand.u32 %v1258, 4294901760
    %1260 = vmatpush1.msra.mxu0 %v1259
    %1261 = vmatprep.subr.mxu0 0.0
    %v1262 = vand.u32 %v1159, 4294901760
    %v1263 = vsub.f32 %v1159, %v1262
    %v1264 = vand.u32 %v1263, 4294901760
    %v1265 = vsub.f32 %v1263, %v1264
    %v1266 = vand.u32 %v1265, 4294901760
    %1267 = vmatpush1.msra.mxu0 %v1266
    %1268 = vmatprep.subr.mxu0 0.0
    %1269 = vmatpush1.msra.mxu0 0.0
    %1270 = vmatprep.subr.mxu0 0.0
    %1271 = vmatpush1.msra.mxu0 0.0
    %1272 = vmatprep.subr.mxu0 0.0
    %1273 = vmatpush1.msra.mxu0 0.0
    %1274 = vmatprep.subr.mxu0 0.0
    %1275 = vmatpush1.msra.mxu0 0.0
    %1276 = vmatprep.subr.mxu0 0.0
    %1277 = vmatpush1.msra.mxu0 0.0
    %1278 = vmatprep.subr.mxu0 0.0
    %1279 = vmatpush1.msra.mxu0 0.0
    %1280 = vmatprep.subr.mxu0 0.0
    %1281 = vmatpush1.msra.mxu0 0.0
    %1282 = vmatprep.subr.mxu0 0.0
    %1283 = vmatpush1.msra.mxu0 0.0
    %1284 = vmatprep.subr.mxu0 0.0
    %1285 = vmatpush1.msra.mxu0 0.0
    %1286 = vmatprep.subr.mxu0 0.0
    %1287 = vmatpush1.msra.mxu0 0.0
    %1288 = vmatprep.subr.mxu0 0.0
    %1289 = vmatpush1.msra.mxu0 0.0
    %1290 = vmatprep.subr.mxu0 0.0
    %1291 = vmatpush1.msra.mxu0 0.0
    %1292 = vmatprep.subr.mxu0 0.0
    %1293 = vmatpush1.msra.mxu0 0.0
    %1294 = vmatprep.subr.mxu0 0.0
    %1295 = vmatpush1.msra.mxu0 0.0
    %1296 = vmatprep.subr.mxu0 0.0
    %1297 = vmatpush1.msra.mxu0 0.0
    %1298 = vmatprep.subr.mxu0 0.0
    %1299 = vmatpush1.msra.mxu0 0.0
    %1300 = vmatprep.subr.mxu0 0.0
    %1301 = vmatpush1.msra.mxu0 0.0
    %1302 = vmatprep.subr.mxu0 0.0
    %1303 = vmatpush1.msra.mxu0 0.0
    %1304 = vmatprep.subr.mxu0 0.0
    %1305 = vmatpush1.msra.mxu0 0.0
    %1306 = vmatprep.subr.mxu0 0.0
    %1307 = vmatpush1.msra.mxu0 0.0
    %1308 = vmatprep.subr.mxu0 0.0
    %1309 = vmatpush1.msra.mxu0 0.0
    %1310 = vmatprep.subr.mxu0 0.0
    %1311 = vmatpush1.msra.mxu0 0.0
    %1312 = vmatprep.subr.mxu0 0.0
    %1313 = vmatpush1.msra.mxu0 0.0
    %1314 = vmatprep.subr.mxu0 0.0
    %1315 = vmatpush1.msra.mxu0 0.0
    %1316 = vmatprep.subr.mxu0 0.0
    %1317 = vmatpush1.msra.mxu0 0.0
    %1318 = vmatprep.subr.mxu0 0.0
    %1319 = vmatpush1.msra.mxu0 0.0
    %1320 = vmatprep.subr.mxu0 0.0
    %1321 = vmatpush1.msra.mxu0 0.0
    %1322 = vmatprep.subr.mxu0 0.0
    %1323 = vmatpush1.msra.mxu0 0.0
    %1324 = vmatprep.mubr.f32.mxu0 0.0
    %v1325 = vand.u32 %v669, 4294901760
    %1326 = vmatmul.mubr.f32.gmra.mrb[0].mxu0 %v1325
    %v1327 = vpop.f32.mrb[0].mxu0
    %v1328 = vadd.f32 %v1237, %v1327
    %v1329 = vpop.f32.mrb[0].mxu0
    %1330 = vdwg.mxu0
    %1331 = vmatprep.subr.mxu0 0.0
    %v1332 = vand.u32 %v1156, 4294901760
    %v1333 = vsub.f32 %v1156, %v1332
    %1334 = vmatpush1.msra.mxu0 %v1333
    %1335 = vmatprep.subr.mxu0 0.0
    %v1336 = vand.u32 %v1157, 4294901760
    %v1337 = vsub.f32 %v1157, %v1336
    %1338 = vmatpush1.msra.mxu0 %v1337
    %1339 = vmatprep.subr.mxu0 0.0
    %v1340 = vand.u32 %v1158, 4294901760
    %v1341 = vsub.f32 %v1158, %v1340
    %1342 = vmatpush1.msra.mxu0 %v1341
    %1343 = vmatprep.subr.mxu0 0.0
    %v1344 = vand.u32 %v1159, 4294901760
    %v1345 = vsub.f32 %v1159, %v1344
    %1346 = vmatpush1.msra.mxu0 %v1345
    %1347 = vmatprep.subr.mxu0 0.0
    %1348 = vmatpush1.msra.mxu0 0.0
    %1349 = vmatprep.subr.mxu0 0.0
    %1350 = vmatpush1.msra.mxu0 0.0
    %1351 = vmatprep.subr.mxu0 0.0
    %1352 = vmatpush1.msra.mxu0 0.0
    %1353 = vmatprep.subr.mxu0 0.0
    %1354 = vmatpush1.msra.mxu0 0.0
    %1355 = vmatprep.subr.mxu0 0.0
    %1356 = vmatpush1.msra.mxu0 0.0
    %1357 = vmatprep.subr.mxu0 0.0
    %1358 = vmatpush1.msra.mxu0 0.0
    %1359 = vmatprep.subr.mxu0 0.0
    %1360 = vmatpush1.msra.mxu0 0.0
    %1361 = vmatprep.subr.mxu0 0.0
    %1362 = vmatpush1.msra.mxu0 0.0
    %1363 = vmatprep.subr.mxu0 0.0
    %1364 = vmatpush1.msra.mxu0 0.0
    %1365 = vmatprep.subr.mxu0 0.0
    %1366 = vmatpush1.msra.mxu0 0.0
    %1367 = vmatprep.subr.mxu0 0.0
    %1368 = vmatpush1.msra.mxu0 0.0
    %1369 = vmatprep.subr.mxu0 0.0
    %1370 = vmatpush1.msra.mxu0 0.0
    %1371 = vmatprep.subr.mxu0 0.0
    %1372 = vmatpush1.msra.mxu0 0.0
    %1373 = vmatprep.subr.mxu0 0.0
    %1374 = vmatpush1.msra.mxu0 0.0
    %1375 = vmatprep.subr.mxu0 0.0
    %1376 = vmatpush1.msra.mxu0 0.0
    %1377 = vmatprep.subr.mxu0 0.0
    %1378 = vmatpush1.msra.mxu0 0.0
    %1379 = vmatprep.subr.mxu0 0.0
    %1380 = vmatpush1.msra.mxu0 0.0
    %1381 = vmatprep.subr.mxu0 0.0
    %1382 = vmatpush1.msra.mxu0 0.0
    %1383 = vmatprep.subr.mxu0 0.0
    %1384 = vmatpush1.msra.mxu0 0.0
    %1385 = vmatprep.subr.mxu0 0.0
    %1386 = vmatpush1.msra.mxu0 0.0
    %1387 = vmatprep.subr.mxu0 0.0
    %1388 = vmatpush1.msra.mxu0 0.0
    %1389 = vmatprep.subr.mxu0 0.0
    %1390 = vmatpush1.msra.mxu0 0.0
    %1391 = vmatprep.subr.mxu0 0.0
    %1392 = vmatpush1.msra.mxu0 0.0
    %1393 = vmatprep.subr.mxu0 0.0
    %1394 = vmatpush1.msra.mxu0 0.0
    %1395 = vmatprep.subr.mxu0 0.0
    %1396 = vmatpush1.msra.mxu0 0.0
    %1397 = vmatprep.subr.mxu0 0.0
    %1398 = vmatpush1.msra.mxu0 0.0
    %1399 = vmatprep.subr.mxu0 0.0
    %1400 = vmatpush1.msra.mxu0 0.0
    %1401 = vmatprep.subr.mxu0 0.0
    %1402 = vmatpush1.msra.mxu0 0.0
    %1403 = vmatprep.mubr.f32.mxu0 0.0
    %v1404 = vand.u32 %v669, 4294901760
    %v1405 = vsub.f32 %v669, %v1404
    %1406 = vmatmul.mubr.f32.gmra.mrb[0].mxu0 %v1405
    %v1407 = vpop.f32.mrb[0].mxu0
    %v1408 = vadd.f32 %v1328, %v1407
    %v1409 = vpop.f32.mrb[0].mxu0
    %1410 = vdwg.mxu0
    %1411 = vmatprep.subr.mxu0 0.0
    %v1412 = vand.u32 %v1156, 4294901760
    %1413 = vmatpush1.msra.mxu0 %v1412
    %1414 = vmatprep.subr.mxu0 0.0
    %v1415 = vand.u32 %v1157, 4294901760
    %1416 = vmatpush1.msra.mxu0 %v1415
    %1417 = vmatprep.subr.mxu0 0.0
    %v1418 = vand.u32 %v1158, 4294901760
    %1419 = vmatpush1.msra.mxu0 %v1418
    %1420 = vmatprep.subr.mxu0 0.0
    %v1421 = vand.u32 %v1159, 4294901760
    %1422 = vmatpush1.msra.mxu0 %v1421
    %1423 = vmatprep.subr.mxu0 0.0
    %1424 = vmatpush1.msra.mxu0 0.0
    %1425 = vmatprep.subr.mxu0 0.0
    %1426 = vmatpush1.msra.mxu0 0.0
    %1427 = vmatprep.subr.mxu0 0.0
    %1428 = vmatpush1.msra.mxu0 0.0
    %1429 = vmatprep.subr.mxu0 0.0
    %1430 = vmatpush1.msra.mxu0 0.0
    %1431 = vmatprep.subr.mxu0 0.0
    %1432 = vmatpush1.msra.mxu0 0.0
    %1433 = vmatprep.subr.mxu0 0.0
    %1434 = vmatpush1.msra.mxu0 0.0
    %1435 = vmatprep.subr.mxu0 0.0
    %1436 = vmatpush1.msra.mxu0 0.0
    %1437 = vmatprep.subr.mxu0 0.0
    %1438 = vmatpush1.msra.mxu0 0.0
    %1439 = vmatprep.subr.mxu0 0.0
    %1440 = vmatpush1.msra.mxu0 0.0
    %1441 = vmatprep.subr.mxu0 0.0
    %1442 = vmatpush1.msra.mxu0 0.0
    %1443 = vmatprep.subr.mxu0 0.0
    %1444 = vmatpush1.msra.mxu0 0.0
    %1445 = vmatprep.subr.mxu0 0.0
    %1446 = vmatpush1.msra.mxu0 0.0
    %1447 = vmatprep.subr.mxu0 0.0
    %1448 = vmatpush1.msra.mxu0 0.0
    %1449 = vmatprep.subr.mxu0 0.0
    %1450 = vmatpush1.msra.mxu0 0.0
    %1451 = vmatprep.subr.mxu0 0.0
    %1452 = vmatpush1.msra.mxu0 0.0
    %1453 = vmatprep.subr.mxu0 0.0
    %1454 = vmatpush1.msra.mxu0 0.0
    %1455 = vmatprep.subr.mxu0 0.0
    %1456 = vmatpush1.msra.mxu0 0.0
    %1457 = vmatprep.subr.mxu0 0.0
    %1458 = vmatpush1.msra.mxu0 0.0
    %1459 = vmatprep.subr.mxu0 0.0
    %1460 = vmatpush1.msra.mxu0 0.0
    %1461 = vmatprep.subr.mxu0 0.0
    %1462 = vmatpush1.msra.mxu0 0.0
    %1463 = vmatprep.subr.mxu0 0.0
    %1464 = vmatpush1.msra.mxu0 0.0
    %1465 = vmatprep.subr.mxu0 0.0
    %1466 = vmatpush1.msra.mxu0 0.0
    %1467 = vmatprep.subr.mxu0 0.0
    %1468 = vmatpush1.msra.mxu0 0.0
    %1469 = vmatprep.subr.mxu0 0.0
    %1470 = vmatpush1.msra.mxu0 0.0
    %1471 = vmatprep.subr.mxu0 0.0
    %1472 = vmatpush1.msra.mxu0 0.0
    %1473 = vmatprep.subr.mxu0 0.0
    %1474 = vmatpush1.msra.mxu0 0.0
    %1475 = vmatprep.subr.mxu0 0.0
    %1476 = vmatpush1.msra.mxu0 0.0
    %1477 = vmatprep.subr.mxu0 0.0
    %1478 = vmatpush1.msra.mxu0 0.0
    %1479 = vmatprep.mubr.f32.mxu0 0.0
    %v1480 = vand.u32 %v669, 4294901760
    %v1481 = vsub.f32 %v669, %v1480
    %v1482 = vand.u32 %v1481, 4294901760
    %1483 = vmatmul.mubr.f32.gmra.mrb[0].mxu0 %v1482
    %v1484 = vpop.f32.mrb[0].mxu0
    %v1485 = vadd.f32 %v1408, %v1484
    %v1486 = vpop.f32.mrb[0].mxu0
    %1487 = vdwg.mxu0
    %1488 = vmatprep.subr.mxu0 0.0
    %v1489 = vand.u32 %v1156, 4294901760
    %v1490 = vsub.f32 %v1156, %v1489
    %v1491 = vand.u32 %v1490, 4294901760
    %1492 = vmatpush1.msra.mxu0 %v1491
    %1493 = vmatprep.subr.mxu0 0.0
    %v1494 = vand.u32 %v1157, 4294901760
    %v1495 = vsub.f32 %v1157, %v1494
    %v1496 = vand.u32 %v1495, 4294901760
    %1497 = vmatpush1.msra.mxu0 %v1496
    %1498 = vmatprep.subr.mxu0 0.0
    %v1499 = vand.u32 %v1158, 4294901760
    %v1500 = vsub.f32 %v1158, %v1499
    %v1501 = vand.u32 %v1500, 4294901760
    %1502 = vmatpush1.msra.mxu0 %v1501
    %1503 = vmatprep.subr.mxu0 0.0
    %v1504 = vand.u32 %v1159, 4294901760
    %v1505 = vsub.f32 %v1159, %v1504
    %v1506 = vand.u32 %v1505, 4294901760
    %1507 = vmatpush1.msra.mxu0 %v1506
    %1508 = vmatprep.subr.mxu0 0.0
    %1509 = vmatpush1.msra.mxu0 0.0
    %1510 = vmatprep.subr.mxu0 0.0
    %1511 = vmatpush1.msra.mxu0 0.0
    %1512 = vmatprep.subr.mxu0 0.0
    %1513 = vmatpush1.msra.mxu0 0.0
    %1514 = vmatprep.subr.mxu0 0.0
    %1515 = vmatpush1.msra.mxu0 0.0
    %1516 = vmatprep.subr.mxu0 0.0
    %1517 = vmatpush1.msra.mxu0 0.0
    %1518 = vmatprep.subr.mxu0 0.0
    %1519 = vmatpush1.msra.mxu0 0.0
    %1520 = vmatprep.subr.mxu0 0.0
    %1521 = vmatpush1.msra.mxu0 0.0
    %1522 = vmatprep.subr.mxu0 0.0
    %1523 = vmatpush1.msra.mxu0 0.0
    %1524 = vmatprep.subr.mxu0 0.0
    %1525 = vmatpush1.msra.mxu0 0.0
    %1526 = vmatprep.subr.mxu0 0.0
    %1527 = vmatpush1.msra.mxu0 0.0
    %1528 = vmatprep.subr.mxu0 0.0
    %1529 = vmatpush1.msra.mxu0 0.0
    %1530 = vmatprep.subr.mxu0 0.0
    %1531 = vmatpush1.msra.mxu0 0.0
    %1532 = vmatprep.subr.mxu0 0.0
    %1533 = vmatpush1.msra.mxu0 0.0
    %1534 = vmatprep.subr.mxu0 0.0
    %1535 = vmatpush1.msra.mxu0 0.0
    %1536 = vmatprep.subr.mxu0 0.0
    %1537 = vmatpush1.msra.mxu0 0.0
    %1538 = vmatprep.subr.mxu0 0.0
    %1539 = vmatpush1.msra.mxu0 0.0
    %1540 = vmatprep.subr.mxu0 0.0
    %1541 = vmatpush1.msra.mxu0 0.0
    %1542 = vmatprep.subr.mxu0 0.0
    %1543 = vmatpush1.msra.mxu0 0.0
    %1544 = vmatprep.subr.mxu0 0.0
    %1545 = vmatpush1.msra.mxu0 0.0
    %1546 = vmatprep.subr.mxu0 0.0
    %1547 = vmatpush1.msra.mxu0 0.0
    %1548 = vmatprep.subr.mxu0 0.0
    %1549 = vmatpush1.msra.mxu0 0.0
    %1550 = vmatprep.subr.mxu0 0.0
    %1551 = vmatpush1.msra.mxu0 0.0
    %1552 = vmatprep.subr.mxu0 0.0
    %1553 = vmatpush1.msra.mxu0 0.0
    %1554 = vmatprep.subr.mxu0 0.0
    %1555 = vmatpush1.msra.mxu0 0.0
    %1556 = vmatprep.subr.mxu0 0.0
    %1557 = vmatpush1.msra.mxu0 0.0
    %1558 = vmatprep.subr.mxu0 0.0
    %1559 = vmatpush1.msra.mxu0 0.0
    %1560 = vmatprep.subr.mxu0 0.0
    %1561 = vmatpush1.msra.mxu0 0.0
    %1562 = vmatprep.subr.mxu0 0.0
    %1563 = vmatpush1.msra.mxu0 0.0
    %1564 = vmatprep.mubr.f32.mxu0 0.0
    %v1565 = vand.u32 %v669, 4294901760
    %1566 = vmatmul.mubr.f32.gmra.mrb[0].mxu0 %v1565
    %v1567 = vpop.f32.mrb[0].mxu0
    %v1568 = vadd.f32 %v1485, %v1567
    %v1569 = vpop.f32.mrb[0].mxu0
    %1570 = vdwg.mxu0
    %1571 = vmatprep.subr.mxu0 0.0
    %v1572 = vand.u32 %v1156, 4294901760
    %1573 = vmatpush1.msra.mxu0 %v1572
    %1574 = vmatprep.subr.mxu0 0.0
    %v1575 = vand.u32 %v1157, 4294901760
    %1576 = vmatpush1.msra.mxu0 %v1575
    %1577 = vmatprep.subr.mxu0 0.0
    %v1578 = vand.u32 %v1158, 4294901760
    %1579 = vmatpush1.msra.mxu0 %v1578
    %1580 = vmatprep.subr.mxu0 0.0
    %v1581 = vand.u32 %v1159, 4294901760
    %1582 = vmatpush1.msra.mxu0 %v1581
    %1583 = vmatprep.subr.mxu0 0.0
    %1584 = vmatpush1.msra.mxu0 0.0
    %1585 = vmatprep.subr.mxu0 0.0
    %1586 = vmatpush1.msra.mxu0 0.0
    %1587 = vmatprep.subr.mxu0 0.0
    %1588 = vmatpush1.msra.mxu0 0.0
    %1589 = vmatprep.subr.mxu0 0.0
    %1590 = vmatpush1.msra.mxu0 0.0
    %1591 = vmatprep.subr.mxu0 0.0
    %1592 = vmatpush1.msra.mxu0 0.0
    %1593 = vmatprep.subr.mxu0 0.0
    %1594 = vmatpush1.msra.mxu0 0.0
    %1595 = vmatprep.subr.mxu0 0.0
    %1596 = vmatpush1.msra.mxu0 0.0
    %1597 = vmatprep.subr.mxu0 0.0
    %1598 = vmatpush1.msra.mxu0 0.0
    %1599 = vmatprep.subr.mxu0 0.0
    %1600 = vmatpush1.msra.mxu0 0.0
    %1601 = vmatprep.subr.mxu0 0.0
    %1602 = vmatpush1.msra.mxu0 0.0
    %1603 = vmatprep.subr.mxu0 0.0
    %1604 = vmatpush1.msra.mxu0 0.0
    %1605 = vmatprep.subr.mxu0 0.0
    %1606 = vmatpush1.msra.mxu0 0.0
    %1607 = vmatprep.subr.mxu0 0.0
    %1608 = vmatpush1.msra.mxu0 0.0
    %1609 = vmatprep.subr.mxu0 0.0
    %1610 = vmatpush1.msra.mxu0 0.0
    %1611 = vmatprep.subr.mxu0 0.0
    %1612 = vmatpush1.msra.mxu0 0.0
    %1613 = vmatprep.subr.mxu0 0.0
    %1614 = vmatpush1.msra.mxu0 0.0
    %1615 = vmatprep.subr.mxu0 0.0
    %1616 = vmatpush1.msra.mxu0 0.0
    %1617 = vmatprep.subr.mxu0 0.0
    %1618 = vmatpush1.msra.mxu0 0.0
    %1619 = vmatprep.subr.mxu0 0.0
    %1620 = vmatpush1.msra.mxu0 0.0
    %1621 = vmatprep.subr.mxu0 0.0
    %1622 = vmatpush1.msra.mxu0 0.0
    %1623 = vmatprep.subr.mxu0 0.0
    %1624 = vmatpush1.msra.mxu0 0.0
    %1625 = vmatprep.subr.mxu0 0.0
    %1626 = vmatpush1.msra.mxu0 0.0
    %1627 = vmatprep.subr.mxu0 0.0
    %1628 = vmatpush1.msra.mxu0 0.0
    %1629 = vmatprep.subr.mxu0 0.0
    %1630 = vmatpush1.msra.mxu0 0.0
    %1631 = vmatprep.subr.mxu0 0.0
    %1632 = vmatpush1.msra.mxu0 0.0
    %1633 = vmatprep.subr.mxu0 0.0
    %1634 = vmatpush1.msra.mxu0 0.0
    %1635 = vmatprep.subr.mxu0 0.0
    %1636 = vmatpush1.msra.mxu0 0.0
    %1637 = vmatprep.subr.mxu0 0.0
    %1638 = vmatpush1.msra.mxu0 0.0
    %1639 = vmatprep.mubr.f32.mxu0 0.0
    %v1640 = vand.u32 %v669, 4294901760
    %1641 = vmatmul.mubr.f32.gmra.mrb[0].mxu0 %v1640
    %v1642 = vpop.f32.mrb[0].mxu0
    %v1643 = vadd.f32 %v1568, %v1642
    %v1644 = vpop.f32.mrb[0].mxu0
    %1645 = vdwg.mxu0
    %v1647 = vrot.slane %v1643, 7
    %vm1649 = vcmask 1040384
    %v1650 = vsel %vm1649, %v1153, %v1647
    %v1651 = vxor.u32 %v1650, 2147483648
    %v1652 = vmul.f32 %v1651, 1.442695
    %v1653 = vpow.pop %v1652
    %v1654 = vadd.f32 %v1653, 1.0
    %v1655 = vrcp.pop %v1654
    %v1656 = vmul.f32 1.0, %v1655
    %v1657 = vtanh.pop %v1650
    %v1658 = vmul.f32 %v1656, 0.0
    %1660 = vrot.lane.b32.xlu0 %v1657, 64
    %v1661 = vpop.permute.xlu0 %1660
    %v1663 = vmul.f32 %v1656, %v1661
    %1665 = vrot.lane.b32.xlu0 %v1663, 32
    %v1666 = vpop.permute.xlu0 %1665
    %v1668 = vadd.f32 %v1658, %v1666
    %v1669 = vtanh.pop %v1668
    %1671 = vrot.lane.b32.xlu0 %v1669, 64
    %v1672 = vpop.permute.xlu0 %1671
    %v1674 = vmul.f32 %v1656, %v1672
    %1676 = vrot.lane.b32.xlu0 %v1674, 32
    %v1677 = vpop.permute.xlu0 %1676
    %vm1679 = vcmask 253952
    %1680 = vst.msk [vmem:[#allocation3] sm:$0x1] %vm1679, %v1677
    %1681 = vrot.lane.b32.xlu0 %v1674, 64
    %v1682 = vpop.permute.xlu0 %1681
    %vm1684 = vcmask 517377
    %1685 = vst.msk [vmem:[#allocation3 + $0x6] sm:$0x2] %vm1684, %v1682
    %v1686 = vld [vmem:[#allocation9] sm:$0xff]
    %v1687 = vld [vmem:[#allocation9 + $0x8] sm:$0xff]
    %v1688 = vld [vmem:[#allocation9 + $0x10] sm:$0xff]
    %v1689 = vld [vmem:[#allocation9 + $0x18] sm:$0xff]
    %v1690 = vld [vmem:[#allocation2 + $0x1] ss:$0 sm:$0xff]
    %v1691 = vsel %vm114, %v1677, 0
    %1693 = vmatprep.subr.mxu0 0.0
    %v1694 = vand.u32 %v1686, 4294901760
    %1695 = vmatpush1.msra.mxu0 %v1694
    %1696 = vmatprep.subr.mxu0 0.0
    %v1697 = vand.u32 %v1687, 4294901760
    %1698 = vmatpush1.msra.mxu0 %v1697
    %1699 = vmatprep.subr.mxu0 0.0
    %v1700 = vand.u32 %v1688, 4294901760
    %1701 = vmatpush1.msra.mxu0 %v1700
    %1702 = vmatprep.subr.mxu0 0.0
    %v1703 = vand.u32 %v1689, 4294901760
    %1704 = vmatpush1.msra.mxu0 %v1703
    %1705 = vmatprep.subr.mxu0 0.0
    %1706 = vmatpush1.msra.mxu0 0.0
    %1707 = vmatprep.subr.mxu0 0.0
    %1708 = vmatpush1.msra.mxu0 0.0
    %1709 = vmatprep.subr.mxu0 0.0
    %1710 = vmatpush1.msra.mxu0 0.0
    %1711 = vmatprep.subr.mxu0 0.0
    %1712 = vmatpush1.msra.mxu0 0.0
    %1713 = vmatprep.subr.mxu0 0.0
    %1714 = vmatpush1.msra.mxu0 0.0
    %1715 = vmatprep.subr.mxu0 0.0
    %1716 = vmatpush1.msra.mxu0 0.0
    %1717 = vmatprep.subr.mxu0 0.0
    %1718 = vmatpush1.msra.mxu0 0.0
    %1719 = vmatprep.subr.mxu0 0.0
    %1720 = vmatpush1.msra.mxu0 0.0
    %1721 = vmatprep.subr.mxu0 0.0
    %1722 = vmatpush1.msra.mxu0 0.0
    %1723 = vmatprep.subr.mxu0 0.0
    %1724 = vmatpush1.msra.mxu0 0.0
    %1725 = vmatprep.subr.mxu0 0.0
    %1726 = vmatpush1.msra.mxu0 0.0
    %1727 = vmatprep.subr.mxu0 0.0
    %1728 = vmatpush1.msra.mxu0 0.0
    %1729 = vmatprep.subr.mxu0 0.0
    %1730 = vmatpush1.msra.mxu0 0.0
    %1731 = vmatprep.subr.mxu0 0.0
    %1732 = vmatpush1.msra.mxu0 0.0
    %1733 = vmatprep.subr.mxu0 0.0
    %1734 = vmatpush1.msra.mxu0 0.0
    %1735 = vmatprep.subr.mxu0 0.0
    %1736 = vmatpush1.msra.mxu0 0.0
    %1737 = vmatprep.subr.mxu0 0.0
    %1738 = vmatpush1.msra.mxu0 0.0
    %1739 = vmatprep.subr.mxu0 0.0
    %1740 = vmatpush1.msra.mxu0 0.0
    %1741 = vmatprep.subr.mxu0 0.0
    %1742 = vmatpush1.msra.mxu0 0.0
    %1743 = vmatprep.subr.mxu0 0.0
    %1744 = vmatpush1.msra.mxu0 0.0
    %1745 = vmatprep.subr.mxu0 0.0
    %1746 = vmatpush1.msra.mxu0 0.0
    %1747 = vmatprep.subr.mxu0 0.0
    %1748 = vmatpush1.msra.mxu0 0.0
    %1749 = vmatprep.subr.mxu0 0.0
    %1750 = vmatpush1.msra.mxu0 0.0
    %1751 = vmatprep.subr.mxu0 0.0
    %1752 = vmatpush1.msra.mxu0 0.0
    %1753 = vmatprep.subr.mxu0 0.0
    %1754 = vmatpush1.msra.mxu0 0.0
    %1755 = vmatprep.subr.mxu0 0.0
    %1756 = vmatpush1.msra.mxu0 0.0
    %1757 = vmatprep.subr.mxu0 0.0
    %1758 = vmatpush1.msra.mxu0 0.0
    %1759 = vmatprep.subr.mxu0 0.0
    %1760 = vmatpush1.msra.mxu0 0.0
    %1761 = vmatprep.mubr.f32.mxu0 0.0
    %v1762 = vand.u32 %v1691, 4294901760
    %v1763 = vsub.f32 %v1691, %v1762
    %v1764 = vand.u32 %v1763, 4294901760
    %v1765 = vsub.f32 %v1763, %v1764
    %v1766 = vand.u32 %v1765, 4294901760
    %1767 = vmatmul.mubr.f32.gmra.mrb[0].mxu0 %v1766
    %v1768 = vpop.f32.mrb[0].mxu0
    %v1769 = vadd.f32 %v1690, %v1768
    %v1770 = vpop.f32.mrb[0].mxu0
    %1771 = vdwg.mxu0
    %1772 = vmatprep.subr.mxu0 0.0
    %v1773 = vand.u32 %v1686, 4294901760
    %v1774 = vsub.f32 %v1686, %v1773
    %v1775 = vand.u32 %v1774, 4294901760
    %v1776 = vsub.f32 %v1774, %v1775
    %v1777 = vand.u32 %v1776, 4294901760
    %1778 = vmatpush1.msra.mxu0 %v1777
    %1779 = vmatprep.subr.mxu0 0.0
    %v1780 = vand.u32 %v1687, 4294901760
    %v1781 = vsub.f32 %v1687, %v1780
    %v1782 = vand.u32 %v1781, 4294901760
    %v1783 = vsub.f32 %v1781, %v1782
    %v1784 = vand.u32 %v1783, 4294901760
    %1785 = vmatpush1.msra.mxu0 %v1784
    %1786 = vmatprep.subr.mxu0 0.0
    %v1787 = vand.u32 %v1688, 4294901760
    %v1788 = vsub.f32 %v1688, %v1787
    %v1789 = vand.u32 %v1788, 4294901760
    %v1790 = vsub.f32 %v1788, %v1789
    %v1791 = vand.u32 %v1790, 4294901760
    %1792 = vmatpush1.msra.mxu0 %v1791
    %1793 = vmatprep.subr.mxu0 0.0
    %v1794 = vand.u32 %v1689, 4294901760
    %v1795 = vsub.f32 %v1689, %v1794
    %v1796 = vand.u32 %v1795, 4294901760
    %v1797 = vsub.f32 %v1795, %v1796
    %v1798 = vand.u32 %v1797, 4294901760
    %1799 = vmatpush1.msra.mxu0 %v1798
    %1800 = vmatprep.subr.mxu0 0.0
    %1801 = vmatpush1.msra.mxu0 0.0
    %1802 = vmatprep.subr.mxu0 0.0
    %1803 = vmatpush1.msra.mxu0 0.0
    %1804 = vmatprep.subr.mxu0 0.0
    %1805 = vmatpush1.msra.mxu0 0.0
    %1806 = vmatprep.subr.mxu0 0.0
    %1807 = vmatpush1.msra.mxu0 0.0
    %1808 = vmatprep.subr.mxu0 0.0
    %1809 = vmatpush1.msra.mxu0 0.0
    %1810 = vmatprep.subr.mxu0 0.0
    %1811 = vmatpush1.msra.mxu0 0.0
    %1812 = vmatprep.subr.mxu0 0.0
    %1813 = vmatpush1.msra.mxu0 0.0
    %1814 = vmatprep.subr.mxu0 0.0
    %1815 = vmatpush1.msra.mxu0 0.0
    %1816 = vmatprep.subr.mxu0 0.0
    %1817 = vmatpush1.msra.mxu0 0.0
    %1818 = vmatprep.subr.mxu0 0.0
    %1819 = vmatpush1.msra.mxu0 0.0
    %1820 = vmatprep.subr.mxu0 0.0
    %1821 = vmatpush1.msra.mxu0 0.0
    %1822 = vmatprep.subr.mxu0 0.0
    %1823 = vmatpush1.msra.mxu0 0.0
    %1824 = vmatprep.subr.mxu0 0.0
    %1825 = vmatpush1.msra.mxu0 0.0
    %1826 = vmatprep.subr.mxu0 0.0
    %1827 = vmatpush1.msra.mxu0 0.0
    %1828 = vmatprep.subr.mxu0 0.0
    %1829 = vmatpush1.msra.mxu0 0.0
    %1830 = vmatprep.subr.mxu0 0.0
    %1831 = vmatpush1.msra.mxu0 0.0
    %1832 = vmatprep.subr.mxu0 0.0
    %1833 = vmatpush1.msra.mxu0 0.0
    %1834 = vmatprep.subr.mxu0 0.0
    %1835 = vmatpush1.msra.mxu0 0.0
    %1836 = vmatprep.subr.mxu0 0.0
    %1837 = vmatpush1.msra.mxu0 0.0
    %1838 = vmatprep.subr.mxu0 0.0
    %1839 = vmatpush1.msra.mxu0 0.0
    %1840 = vmatprep.subr.mxu0 0.0
    %1841 = vmatpush1.msra.mxu0 0.0
    %1842 = vmatprep.subr.mxu0 0.0
    %1843 = vmatpush1.msra.mxu0 0.0
    %1844 = vmatprep.subr.mxu0 0.0
    %1845 = vmatpush1.msra.mxu0 0.0
    %1846 = vmatprep.subr.mxu0 0.0
    %1847 = vmatpush1.msra.mxu0 0.0
    %1848 = vmatprep.subr.mxu0 0.0
    %1849 = vmatpush1.msra.mxu0 0.0
    %1850 = vmatprep.subr.mxu0 0.0
    %1851 = vmatpush1.msra.mxu0 0.0
    %1852 = vmatprep.subr.mxu0 0.0
    %1853 = vmatpush1.msra.mxu0 0.0
    %1854 = vmatprep.subr.mxu0 0.0
    %1855 = vmatpush1.msra.mxu0 0.0
    %1856 = vmatprep.mubr.f32.mxu0 0.0
    %v1857 = vand.u32 %v1691, 4294901760
    %1858 = vmatmul.mubr.f32.gmra.mrb[0].mxu0 %v1857
    %v1859 = vpop.f32.mrb[0].mxu0
    %v1860 = vadd.f32 %v1769, %v1859
    %v1861 = vpop.f32.mrb[0].mxu0
    %1862 = vdwg.mxu0
    %1863 = vmatprep.subr.mxu0 0.0
    %v1864 = vand.u32 %v1686, 4294901760
    %v1865 = vsub.f32 %v1686, %v1864
    %1866 = vmatpush1.msra.mxu0 %v1865
    %1867 = vmatprep.subr.mxu0 0.0
    %v1868 = vand.u32 %v1687, 4294901760
    %v1869 = vsub.f32 %v1687, %v1868
    %1870 = vmatpush1.msra.mxu0 %v1869
    %1871 = vmatprep.subr.mxu0 0.0
    %v1872 = vand.u32 %v1688, 4294901760
    %v1873 = vsub.f32 %v1688, %v1872
    %1874 = vmatpush1.msra.mxu0 %v1873
    %1875 = vmatprep.subr.mxu0 0.0
    %v1876 = vand.u32 %v1689, 4294901760
    %v1877 = vsub.f32 %v1689, %v1876
    %1878 = vmatpush1.msra.mxu0 %v1877
    %1879 = vmatprep.subr.mxu0 0.0
    %1880 = vmatpush1.msra.mxu0 0.0
    %1881 = vmatprep.subr.mxu0 0.0
    %1882 = vmatpush1.msra.mxu0 0.0
    %1883 = vmatprep.subr.mxu0 0.0
    %1884 = vmatpush1.msra.mxu0 0.0
    %1885 = vmatprep.subr.mxu0 0.0
    %1886 = vmatpush1.msra.mxu0 0.0
    %1887 = vmatprep.subr.mxu0 0.0
    %1888 = vmatpush1.msra.mxu0 0.0
    %1889 = vmatprep.subr.mxu0 0.0
    %1890 = vmatpush1.msra.mxu0 0.0
    %1891 = vmatprep.subr.mxu0 0.0
    %1892 = vmatpush1.msra.mxu0 0.0
    %1893 = vmatprep.subr.mxu0 0.0
    %1894 = vmatpush1.msra.mxu0 0.0
    %1895 = vmatprep.subr.mxu0 0.0
    %1896 = vmatpush1.msra.mxu0 0.0
    %1897 = vmatprep.subr.mxu0 0.0
    %1898 = vmatpush1.msra.mxu0 0.0
    %1899 = vmatprep.subr.mxu0 0.0
    %1900 = vmatpush1.msra.mxu0 0.0
    %1901 = vmatprep.subr.mxu0 0.0
    %1902 = vmatpush1.msra.mxu0 0.0
    %1903 = vmatprep.subr.mxu0 0.0
    %1904 = vmatpush1.msra.mxu0 0.0
    %1905 = vmatprep.subr.mxu0 0.0
    %1906 = vmatpush1.msra.mxu0 0.0
    %1907 = vmatprep.subr.mxu0 0.0
    %1908 = vmatpush1.msra.mxu0 0.0
    %1909 = vmatprep.subr.mxu0 0.0
    %1910 = vmatpush1.msra.mxu0 0.0
    %1911 = vmatprep.subr.mxu0 0.0
    %1912 = vmatpush1.msra.mxu0 0.0
    %1913 = vmatprep.subr.mxu0 0.0
    %1914 = vmatpush1.msra.mxu0 0.0
    %1915 = vmatprep.subr.mxu0 0.0
    %1916 = vmatpush1.msra.mxu0 0.0
    %1917 = vmatprep.subr.mxu0 0.0
    %1918 = vmatpush1.msra.mxu0 0.0
    %1919 = vmatprep.subr.mxu0 0.0
    %1920 = vmatpush1.msra.mxu0 0.0
    %1921 = vmatprep.subr.mxu0 0.0
    %1922 = vmatpush1.msra.mxu0 0.0
    %1923 = vmatprep.subr.mxu0 0.0
    %1924 = vmatpush1.msra.mxu0 0.0
    %1925 = vmatprep.subr.mxu0 0.0
    %1926 = vmatpush1.msra.mxu0 0.0
    %1927 = vmatprep.subr.mxu0 0.0
    %1928 = vmatpush1.msra.mxu0 0.0
    %1929 = vmatprep.subr.mxu0 0.0
    %1930 = vmatpush1.msra.mxu0 0.0
    %1931 = vmatprep.subr.mxu0 0.0
    %1932 = vmatpush1.msra.mxu0 0.0
    %1933 = vmatprep.subr.mxu0 0.0
    %1934 = vmatpush1.msra.mxu0 0.0
    %1935 = vmatprep.mubr.f32.mxu0 0.0
    %v1936 = vand.u32 %v1691, 4294901760
    %v1937 = vsub.f32 %v1691, %v1936
    %1938 = vmatmul.mubr.f32.gmra.mrb[0].mxu0 %v1937
    %v1939 = vpop.f32.mrb[0].mxu0
    %v1940 = vadd.f32 %v1860, %v1939
    %v1941 = vpop.f32.mrb[0].mxu0
    %1942 = vdwg.mxu0
    %1943 = vmatprep.subr.mxu0 0.0
    %v1944 = vand.u32 %v1686, 4294901760
    %1945 = vmatpush1.msra.mxu0 %v1944
    %1946 = vmatprep.subr.mxu0 0.0
    %v1947 = vand.u32 %v1687, 4294901760
    %1948 = vmatpush1.msra.mxu0 %v1947
    %1949 = vmatprep.subr.mxu0 0.0
    %v1950 = vand.u32 %v1688, 4294901760
    %1951 = vmatpush1.msra.mxu0 %v1950
    %1952 = vmatprep.subr.mxu0 0.0
    %v1953 = vand.u32 %v1689, 4294901760
    %1954 = vmatpush1.msra.mxu0 %v1953
    %1955 = vmatprep.subr.mxu0 0.0
    %1956 = vmatpush1.msra.mxu0 0.0
    %1957 = vmatprep.subr.mxu0 0.0
    %1958 = vmatpush1.msra.mxu0 0.0
    %1959 = vmatprep.subr.mxu0 0.0
    %1960 = vmatpush1.msra.mxu0 0.0
    %1961 = vmatprep.subr.mxu0 0.0
    %1962 = vmatpush1.msra.mxu0 0.0
    %1963 = vmatprep.subr.mxu0 0.0
    %1964 = vmatpush1.msra.mxu0 0.0
    %1965 = vmatprep.subr.mxu0 0.0
    %1966 = vmatpush1.msra.mxu0 0.0
    %1967 = vmatprep.subr.mxu0 0.0
    %1968 = vmatpush1.msra.mxu0 0.0
    %1969 = vmatprep.subr.mxu0 0.0
    %1970 = vmatpush1.msra.mxu0 0.0
    %1971 = vmatprep.subr.mxu0 0.0
    %1972 = vmatpush1.msra.mxu0 0.0
    %1973 = vmatprep.subr.mxu0 0.0
    %1974 = vmatpush1.msra.mxu0 0.0
    %1975 = vmatprep.subr.mxu0 0.0
    %1976 = vmatpush1.msra.mxu0 0.0
    %1977 = vmatprep.subr.mxu0 0.0
    %1978 = vmatpush1.msra.mxu0 0.0
    %1979 = vmatprep.subr.mxu0 0.0
    %1980 = vmatpush1.msra.mxu0 0.0
    %1981 = vmatprep.subr.mxu0 0.0
    %1982 = vmatpush1.msra.mxu0 0.0
    %1983 = vmatprep.subr.mxu0 0.0
    %1984 = vmatpush1.msra.mxu0 0.0
    %1985 = vmatprep.subr.mxu0 0.0
    %1986 = vmatpush1.msra.mxu0 0.0
    %1987 = vmatprep.subr.mxu0 0.0
    %1988 = vmatpush1.msra.mxu0 0.0
    %1989 = vmatprep.subr.mxu0 0.0
    %1990 = vmatpush1.msra.mxu0 0.0
    %1991 = vmatprep.subr.mxu0 0.0
    %1992 = vmatpush1.msra.mxu0 0.0
    %1993 = vmatprep.subr.mxu0 0.0
    %1994 = vmatpush1.msra.mxu0 0.0
    %1995 = vmatprep.subr.mxu0 0.0
    %1996 = vmatpush1.msra.mxu0 0.0
    %1997 = vmatprep.subr.mxu0 0.0
    %1998 = vmatpush1.msra.mxu0 0.0
    %1999 = vmatprep.subr.mxu0 0.0
    %2000 = vmatpush1.msra.mxu0 0.0
    %2001 = vmatprep.subr.mxu0 0.0
    %2002 = vmatpush1.msra.mxu0 0.0
    %2003 = vmatprep.subr.mxu0 0.0
    %2004 = vmatpush1.msra.mxu0 0.0
    %2005 = vmatprep.subr.mxu0 0.0
    %2006 = vmatpush1.msra.mxu0 0.0
    %2007 = vmatprep.subr.mxu0 0.0
    %2008 = vmatpush1.msra.mxu0 0.0
    %2009 = vmatprep.subr.mxu0 0.0
    %2010 = vmatpush1.msra.mxu0 0.0
    %2011 = vmatprep.mubr.f32.mxu0 0.0
    %v2012 = vand.u32 %v1691, 4294901760
    %v2013 = vsub.f32 %v1691, %v2012
    %v2014 = vand.u32 %v2013, 4294901760
    %2015 = vmatmul.mubr.f32.gmra.mrb[0].mxu0 %v2014
    %v2016 = vpop.f32.mrb[0].mxu0
    %v2017 = vadd.f32 %v1940, %v2016
    %v2018 = vpop.f32.mrb[0].mxu0
    %2019 = vdwg.mxu0
    %2020 = vmatprep.subr.mxu0 0.0
    %v2021 = vand.u32 %v1686, 4294901760
    %v2022 = vsub.f32 %v1686, %v2021
    %v2023 = vand.u32 %v2022, 4294901760
    %2024 = vmatpush1.msra.mxu0 %v2023
    %2025 = vmatprep.subr.mxu0 0.0
    %v2026 = vand.u32 %v1687, 4294901760
    %v2027 = vsub.f32 %v1687, %v2026
    %v2028 = vand.u32 %v2027, 4294901760
    %2029 = vmatpush1.msra.mxu0 %v2028
    %2030 = vmatprep.subr.mxu0 0.0
    %v2031 = vand.u32 %v1688, 4294901760
    %v2032 = vsub.f32 %v1688, %v2031
    %v2033 = vand.u32 %v2032, 4294901760
    %2034 = vmatpush1.msra.mxu0 %v2033
    %2035 = vmatprep.subr.mxu0 0.0
    %v2036 = vand.u32 %v1689, 4294901760
    %v2037 = vsub.f32 %v1689, %v2036
    %v2038 = vand.u32 %v2037, 4294901760
    %2039 = vmatpush1.msra.mxu0 %v2038
    %2040 = vmatprep.subr.mxu0 0.0
    %2041 = vmatpush1.msra.mxu0 0.0
    %2042 = vmatprep.subr.mxu0 0.0
    %2043 = vmatpush1.msra.mxu0 0.0
    %2044 = vmatprep.subr.mxu0 0.0
    %2045 = vmatpush1.msra.mxu0 0.0
    %2046 = vmatprep.subr.mxu0 0.0
    %2047 = vmatpush1.msra.mxu0 0.0
    %2048 = vmatprep.subr.mxu0 0.0
    %2049 = vmatpush1.msra.mxu0 0.0
    %2050 = vmatprep.subr.mxu0 0.0
    %2051 = vmatpush1.msra.mxu0 0.0
    %2052 = vmatprep.subr.mxu0 0.0
    %2053 = vmatpush1.msra.mxu0 0.0
    %2054 = vmatprep.subr.mxu0 0.0
    %2055 = vmatpush1.msra.mxu0 0.0
    %2056 = vmatprep.subr.mxu0 0.0
    %2057 = vmatpush1.msra.mxu0 0.0
    %2058 = vmatprep.subr.mxu0 0.0
    %2059 = vmatpush1.msra.mxu0 0.0
    %2060 = vmatprep.subr.mxu0 0.0
    %2061 = vmatpush1.msra.mxu0 0.0
    %2062 = vmatprep.subr.mxu0 0.0
    %2063 = vmatpush1.msra.mxu0 0.0
    %2064 = vmatprep.subr.mxu0 0.0
    %2065 = vmatpush1.msra.mxu0 0.0
    %2066 = vmatprep.subr.mxu0 0.0
    %2067 = vmatpush1.msra.mxu0 0.0
    %2068 = vmatprep.subr.mxu0 0.0
    %2069 = vmatpush1.msra.mxu0 0.0
    %2070 = vmatprep.subr.mxu0 0.0
    %2071 = vmatpush1.msra.mxu0 0.0
    %2072 = vmatprep.subr.mxu0 0.0
    %2073 = vmatpush1.msra.mxu0 0.0
    %2074 = vmatprep.subr.mxu0 0.0
    %2075 = vmatpush1.msra.mxu0 0.0
    %2076 = vmatprep.subr.mxu0 0.0
    %2077 = vmatpush1.msra.mxu0 0.0
    %2078 = vmatprep.subr.mxu0 0.0
    %2079 = vmatpush1.msra.mxu0 0.0
    %2080 = vmatprep.subr.mxu0 0.0
    %2081 = vmatpush1.msra.mxu0 0.0
    %2082 = vmatprep.subr.mxu0 0.0
    %2083 = vmatpush1.msra.mxu0 0.0
    %2084 = vmatprep.subr.mxu0 0.0
    %2085 = vmatpush1.msra.mxu0 0.0
    %2086 = vmatprep.subr.mxu0 0.0
    %2087 = vmatpush1.msra.mxu0 0.0
    %2088 = vmatprep.subr.mxu0 0.0
    %2089 = vmatpush1.msra.mxu0 0.0
    %2090 = vmatprep.subr.mxu0 0.0
    %2091 = vmatpush1.msra.mxu0 0.0
    %2092 = vmatprep.subr.mxu0 0.0
    %2093 = vmatpush1.msra.mxu0 0.0
    %2094 = vmatprep.subr.mxu0 0.0
    %2095 = vmatpush1.msra.mxu0 0.0
    %2096 = vmatprep.mubr.f32.mxu0 0.0
    %v2097 = vand.u32 %v1691, 4294901760
    %2098 = vmatmul.mubr.f32.gmra.mrb[0].mxu0 %v2097
    %v2099 = vpop.f32.mrb[0].mxu0
    %v2100 = vadd.f32 %v2017, %v2099
    %v2101 = vpop.f32.mrb[0].mxu0
    %2102 = vdwg.mxu0
    %2103 = vmatprep.subr.mxu0 0.0
    %v2104 = vand.u32 %v1686, 4294901760
    %2105 = vmatpush1.msra.mxu0 %v2104
    %2106 = vmatprep.subr.mxu0 0.0
    %v2107 = vand.u32 %v1687, 4294901760
    %2108 = vmatpush1.msra.mxu0 %v2107
    %2109 = vmatprep.subr.mxu0 0.0
    %v2110 = vand.u32 %v1688, 4294901760
    %2111 = vmatpush1.msra.mxu0 %v2110
    %2112 = vmatprep.subr.mxu0 0.0
    %v2113 = vand.u32 %v1689, 4294901760
    %2114 = vmatpush1.msra.mxu0 %v2113
    %2115 = vmatprep.subr.mxu0 0.0
    %2116 = vmatpush1.msra.mxu0 0.0
    %2117 = vmatprep.subr.mxu0 0.0
    %2118 = vmatpush1.msra.mxu0 0.0
    %2119 = vmatprep.subr.mxu0 0.0
    %2120 = vmatpush1.msra.mxu0 0.0
    %2121 = vmatprep.subr.mxu0 0.0
    %2122 = vmatpush1.msra.mxu0 0.0
    %2123 = vmatprep.subr.mxu0 0.0
    %2124 = vmatpush1.msra.mxu0 0.0
    %2125 = vmatprep.subr.mxu0 0.0
    %2126 = vmatpush1.msra.mxu0 0.0
    %2127 = vmatprep.subr.mxu0 0.0
    %2128 = vmatpush1.msra.mxu0 0.0
    %2129 = vmatprep.subr.mxu0 0.0
    %2130 = vmatpush1.msra.mxu0 0.0
    %2131 = vmatprep.subr.mxu0 0.0
    %2132 = vmatpush1.msra.mxu0 0.0
    %2133 = vmatprep.subr.mxu0 0.0
    %2134 = vmatpush1.msra.mxu0 0.0
    %2135 = vmatprep.subr.mxu0 0.0
    %2136 = vmatpush1.msra.mxu0 0.0
    %2137 = vmatprep.subr.mxu0 0.0
    %2138 = vmatpush1.msra.mxu0 0.0
    %2139 = vmatprep.subr.mxu0 0.0
    %2140 = vmatpush1.msra.mxu0 0.0
    %2141 = vmatprep.subr.mxu0 0.0
    %2142 = vmatpush1.msra.mxu0 0.0
    %2143 = vmatprep.subr.mxu0 0.0
    %2144 = vmatpush1.msra.mxu0 0.0
    %2145 = vmatprep.subr.mxu0 0.0
    %2146 = vmatpush1.msra.mxu0 0.0
    %2147 = vmatprep.subr.mxu0 0.0
    %2148 = vmatpush1.msra.mxu0 0.0
    %2149 = vmatprep.subr.mxu0 0.0
    %2150 = vmatpush1.msra.mxu0 0.0
    %2151 = vmatprep.subr.mxu0 0.0
    %2152 = vmatpush1.msra.mxu0 0.0
    %2153 = vmatprep.subr.mxu0 0.0
    %2154 = vmatpush1.msra.mxu0 0.0
    %2155 = vmatprep.subr.mxu0 0.0
    %2156 = vmatpush1.msra.mxu0 0.0
    %2157 = vmatprep.subr.mxu0 0.0
    %2158 = vmatpush1.msra.mxu0 0.0
    %2159 = vmatprep.subr.mxu0 0.0
    %2160 = vmatpush1.msra.mxu0 0.0
    %2161 = vmatprep.subr.mxu0 0.0
    %2162 = vmatpush1.msra.mxu0 0.0
    %2163 = vmatprep.subr.mxu0 0.0
    %2164 = vmatpush1.msra.mxu0 0.0
    %2165 = vmatprep.subr.mxu0 0.0
    %2166 = vmatpush1.msra.mxu0 0.0
    %2167 = vmatprep.subr.mxu0 0.0
    %2168 = vmatpush1.msra.mxu0 0.0
    %2169 = vmatprep.subr.mxu0 0.0
    %2170 = vmatpush1.msra.mxu0 0.0
    %2171 = vmatprep.mubr.f32.mxu0 0.0
    %v2172 = vand.u32 %v1691, 4294901760
    %2173 = vmatmul.mubr.f32.gmra.mrb[0].mxu0 %v2172
    %v2174 = vpop.f32.mrb[0].mxu0
    %v2175 = vadd.f32 %v2100, %v2174
    %v2176 = vpop.f32.mrb[0].mxu0
    %2177 = vdwg.mxu0
    %v2178 = vld [vmem:[#allocation10] sm:$0xff]
    %v2179 = vld [vmem:[#allocation10 + $0x8] sm:$0xff]
    %v2180 = vld [vmem:[#allocation10 + $0x10] sm:$0xff]
    %v2181 = vld [vmem:[#allocation10 + $0x18] sm:$0xff]
    %v2182 = vld [vmem:[#allocation2 + $0xe] ss:$0 sm:$0xff]
    %v2183 = vrot.slane %v1674, 1
    %2184 = vrot.lane.b32.xlu0 %v2183, 32
    %v2185 = vpop.permute.xlu0 %2184
    %v2186 = vsel %vm114, %v2185, 0
    %2188 = vmatprep.subr.mxu0 0.0
    %v2189 = vand.u32 %v2178, 4294901760
    %2190 = vmatpush1.msra.mxu0 %v2189
    %2191 = vmatprep.subr.mxu0 0.0
    %v2192 = vand.u32 %v2179, 4294901760
    %2193 = vmatpush1.msra.mxu0 %v2192
    %2194 = vmatprep.subr.mxu0 0.0
    %v2195 = vand.u32 %v2180, 4294901760
    %2196 = vmatpush1.msra.mxu0 %v2195
    %2197 = vmatprep.subr.mxu0 0.0
    %v2198 = vand.u32 %v2181, 4294901760
    %2199 = vmatpush1.msra.mxu0 %v2198
    %2200 = vmatprep.subr.mxu0 0.0
    %2201 = vmatpush1.msra.mxu0 0.0
    %2202 = vmatprep.subr.mxu0 0.0
    %2203 = vmatpush1.msra.mxu0 0.0
    %2204 = vmatprep.subr.mxu0 0.0
    %2205 = vmatpush1.msra.mxu0 0.0
    %2206 = vmatprep.subr.mxu0 0.0
    %2207 = vmatpush1.msra.mxu0 0.0
    %2208 = vmatprep.subr.mxu0 0.0
    %2209 = vmatpush1.msra.mxu0 0.0
    %2210 = vmatprep.subr.mxu0 0.0
    %2211 = vmatpush1.msra.mxu0 0.0
    %2212 = vmatprep.subr.mxu0 0.0
    %2213 = vmatpush1.msra.mxu0 0.0
    %2214 = vmatprep.subr.mxu0 0.0
    %2215 = vmatpush1.msra.mxu0 0.0
    %2216 = vmatprep.subr.mxu0 0.0
    %2217 = vmatpush1.msra.mxu0 0.0
    %2218 = vmatprep.subr.mxu0 0.0
    %2219 = vmatpush1.msra.mxu0 0.0
    %2220 = vmatprep.subr.mxu0 0.0
    %2221 = vmatpush1.msra.mxu0 0.0
    %2222 = vmatprep.subr.mxu0 0.0
    %2223 = vmatpush1.msra.mxu0 0.0
    %2224 = vmatprep.subr.mxu0 0.0
    %2225 = vmatpush1.msra.mxu0 0.0
    %2226 = vmatprep.subr.mxu0 0.0
    %2227 = vmatpush1.msra.mxu0 0.0
    %2228 = vmatprep.subr.mxu0 0.0
    %2229 = vmatpush1.msra.mxu0 0.0
    %2230 = vmatprep.subr.mxu0 0.0
    %2231 = vmatpush1.msra.mxu0 0.0
    %2232 = vmatprep.subr.mxu0 0.0
    %2233 = vmatpush1.msra.mxu0 0.0
    %2234 = vmatprep.subr.mxu0 0.0
    %2235 = vmatpush1.msra.mxu0 0.0
    %2236 = vmatprep.subr.mxu0 0.0
    %2237 = vmatpush1.msra.mxu0 0.0
    %2238 = vmatprep.subr.mxu0 0.0
    %2239 = vmatpush1.msra.mxu0 0.0
    %2240 = vmatprep.subr.mxu0 0.0
    %2241 = vmatpush1.msra.mxu0 0.0
    %2242 = vmatprep.subr.mxu0 0.0
    %2243 = vmatpush1.msra.mxu0 0.0
    %2244 = vmatprep.subr.mxu0 0.0
    %2245 = vmatpush1.msra.mxu0 0.0
    %2246 = vmatprep.subr.mxu0 0.0
    %2247 = vmatpush1.msra.mxu0 0.0
    %2248 = vmatprep.subr.mxu0 0.0
    %2249 = vmatpush1.msra.mxu0 0.0
    %2250 = vmatprep.subr.mxu0 0.0
    %2251 = vmatpush1.msra.mxu0 0.0
    %2252 = vmatprep.subr.mxu0 0.0
    %2253 = vmatpush1.msra.mxu0 0.0
    %2254 = vmatprep.subr.mxu0 0.0
    %2255 = vmatpush1.msra.mxu0 0.0
    %2256 = vmatprep.mubr.f32.mxu0 0.0
    %v2257 = vand.u32 %v2186, 4294901760
    %v2258 = vsub.f32 %v2186, %v2257
    %v2259 = vand.u32 %v2258, 4294901760
    %v2260 = vsub.f32 %v2258, %v2259
    %v2261 = vand.u32 %v2260, 4294901760
    %2262 = vmatmul.mubr.f32.gmra.mrb[0].mxu0 %v2261
    %v2263 = vpop.f32.mrb[0].mxu0
    %v2264 = vadd.f32 %v2182, %v2263
    %v2265 = vpop.f32.mrb[0].mxu0
    %2266 = vdwg.mxu0
    %2267 = vmatprep.subr.mxu0 0.0
    %v2268 = vand.u32 %v2178, 4294901760
    %v2269 = vsub.f32 %v2178, %v2268
    %v2270 = vand.u32 %v2269, 4294901760
    %v2271 = vsub.f32 %v2269, %v2270
    %v2272 = vand.u32 %v2271, 4294901760
    %2273 = vmatpush1.msra.mxu0 %v2272
    %2274 = vmatprep.subr.mxu0 0.0
    %v2275 = vand.u32 %v2179, 4294901760
    %v2276 = vsub.f32 %v2179, %v2275
    %v2277 = vand.u32 %v2276, 4294901760
    %v2278 = vsub.f32 %v2276, %v2277
    %v2279 = vand.u32 %v2278, 4294901760
    %2280 = vmatpush1.msra.mxu0 %v2279
    %2281 = vmatprep.subr.mxu0 0.0
    %v2282 = vand.u32 %v2180, 4294901760
    %v2283 = vsub.f32 %v2180, %v2282
    %v2284 = vand.u32 %v2283, 4294901760
    %v2285 = vsub.f32 %v2283, %v2284
    %v2286 = vand.u32 %v2285, 4294901760
    %2287 = vmatpush1.msra.mxu0 %v2286
    %2288 = vmatprep.subr.mxu0 0.0
    %v2289 = vand.u32 %v2181, 4294901760
    %v2290 = vsub.f32 %v2181, %v2289
    %v2291 = vand.u32 %v2290, 4294901760
    %v2292 = vsub.f32 %v2290, %v2291
    %v2293 = vand.u32 %v2292, 4294901760
    %2294 = vmatpush1.msra.mxu0 %v2293
    %2295 = vmatprep.subr.mxu0 0.0
    %2296 = vmatpush1.msra.mxu0 0.0
    %2297 = vmatprep.subr.mxu0 0.0
    %2298 = vmatpush1.msra.mxu0 0.0
    %2299 = vmatprep.subr.mxu0 0.0
    %2300 = vmatpush1.msra.mxu0 0.0
    %2301 = vmatprep.subr.mxu0 0.0
    %2302 = vmatpush1.msra.mxu0 0.0
    %2303 = vmatprep.subr.mxu0 0.0
    %2304 = vmatpush1.msra.mxu0 0.0
    %2305 = vmatprep.subr.mxu0 0.0
    %2306 = vmatpush1.msra.mxu0 0.0
    %2307 = vmatprep.subr.mxu0 0.0
    %2308 = vmatpush1.msra.mxu0 0.0
    %2309 = vmatprep.subr.mxu0 0.0
    %2310 = vmatpush1.msra.mxu0 0.0
    %2311 = vmatprep.subr.mxu0 0.0
    %2312 = vmatpush1.msra.mxu0 0.0
    %2313 = vmatprep.subr.mxu0 0.0
    %2314 = vmatpush1.msra.mxu0 0.0
    %2315 = vmatprep.subr.mxu0 0.0
    %2316 = vmatpush1.msra.mxu0 0.0
    %2317 = vmatprep.subr.mxu0 0.0
    %2318 = vmatpush1.msra.mxu0 0.0
    %2319 = vmatprep.subr.mxu0 0.0
    %2320 = vmatpush1.msra.mxu0 0.0
    %2321 = vmatprep.subr.mxu0 0.0
    %2322 = vmatpush1.msra.mxu0 0.0
    %2323 = vmatprep.subr.mxu0 0.0
    %2324 = vmatpush1.msra.mxu0 0.0
    %2325 = vmatprep.subr.mxu0 0.0
    %2326 = vmatpush1.msra.mxu0 0.0
    %2327 = vmatprep.subr.mxu0 0.0
    %2328 = vmatpush1.msra.mxu0 0.0
    %2329 = vmatprep.subr.mxu0 0.0
    %2330 = vmatpush1.msra.mxu0 0.0
    %2331 = vmatprep.subr.mxu0 0.0
    %2332 = vmatpush1.msra.mxu0 0.0
    %2333 = vmatprep.subr.mxu0 0.0
    %2334 = vmatpush1.msra.mxu0 0.0
    %2335 = vmatprep.subr.mxu0 0.0
    %2336 = vmatpush1.msra.mxu0 0.0
    %2337 = vmatprep.subr.mxu0 0.0
    %2338 = vmatpush1.msra.mxu0 0.0
    %2339 = vmatprep.subr.mxu0 0.0
    %2340 = vmatpush1.msra.mxu0 0.0
    %2341 = vmatprep.subr.mxu0 0.0
    %2342 = vmatpush1.msra.mxu0 0.0
    %2343 = vmatprep.subr.mxu0 0.0
    %2344 = vmatpush1.msra.mxu0 0.0
    %2345 = vmatprep.subr.mxu0 0.0
    %2346 = vmatpush1.msra.mxu0 0.0
    %2347 = vmatprep.subr.mxu0 0.0
    %2348 = vmatpush1.msra.mxu0 0.0
    %2349 = vmatprep.subr.mxu0 0.0
    %2350 = vmatpush1.msra.mxu0 0.0
    %2351 = vmatprep.mubr.f32.mxu0 0.0
    %v2352 = vand.u32 %v2186, 4294901760
    %2353 = vmatmul.mubr.f32.gmra.mrb[0].mxu0 %v2352
    %v2354 = vpop.f32.mrb[0].mxu0
    %v2355 = vadd.f32 %v2264, %v2354
    %v2356 = vpop.f32.mrb[0].mxu0
    %2357 = vdwg.mxu0
    %2358 = vmatprep.subr.mxu0 0.0
    %v2359 = vand.u32 %v2178, 4294901760
    %v2360 = vsub.f32 %v2178, %v2359
    %2361 = vmatpush1.msra.mxu0 %v2360
    %2362 = vmatprep.subr.mxu0 0.0
    %v2363 = vand.u32 %v2179, 4294901760
    %v2364 = vsub.f32 %v2179, %v2363
    %2365 = vmatpush1.msra.mxu0 %v2364
    %2366 = vmatprep.subr.mxu0 0.0
    %v2367 = vand.u32 %v2180, 4294901760
    %v2368 = vsub.f32 %v2180, %v2367
    %2369 = vmatpush1.msra.mxu0 %v2368
    %2370 = vmatprep.subr.mxu0 0.0
    %v2371 = vand.u32 %v2181, 4294901760
    %v2372 = vsub.f32 %v2181, %v2371
    %2373 = vmatpush1.msra.mxu0 %v2372
    %2374 = vmatprep.subr.mxu0 0.0
    %2375 = vmatpush1.msra.mxu0 0.0
    %2376 = vmatprep.subr.mxu0 0.0
    %2377 = vmatpush1.msra.mxu0 0.0
    %2378 = vmatprep.subr.mxu0 0.0
    %2379 = vmatpush1.msra.mxu0 0.0
    %2380 = vmatprep.subr.mxu0 0.0
    %2381 = vmatpush1.msra.mxu0 0.0
    %2382 = vmatprep.subr.mxu0 0.0
    %2383 = vmatpush1.msra.mxu0 0.0
    %2384 = vmatprep.subr.mxu0 0.0
    %2385 = vmatpush1.msra.mxu0 0.0
    %2386 = vmatprep.subr.mxu0 0.0
    %2387 = vmatpush1.msra.mxu0 0.0
    %2388 = vmatprep.subr.mxu0 0.0
    %2389 = vmatpush1.msra.mxu0 0.0
    %2390 = vmatprep.subr.mxu0 0.0
    %2391 = vmatpush1.msra.mxu0 0.0
    %2392 = vmatprep.subr.mxu0 0.0
    %2393 = vmatpush1.msra.mxu0 0.0
    %2394 = vmatprep.subr.mxu0 0.0
    %2395 = vmatpush1.msra.mxu0 0.0
    %2396 = vmatprep.subr.mxu0 0.0
    %2397 = vmatpush1.msra.mxu0 0.0
    %2398 = vmatprep.subr.mxu0 0.0
    %2399 = vmatpush1.msra.mxu0 0.0
    %2400 = vmatprep.subr.mxu0 0.0
    %2401 = vmatpush1.msra.mxu0 0.0
    %2402 = vmatprep.subr.mxu0 0.0
    %2403 = vmatpush1.msra.mxu0 0.0
    %2404 = vmatprep.subr.mxu0 0.0
    %2405 = vmatpush1.msra.mxu0 0.0
    %2406 = vmatprep.subr.mxu0 0.0
    %2407 = vmatpush1.msra.mxu0 0.0
    %2408 = vmatprep.subr.mxu0 0.0
    %2409 = vmatpush1.msra.mxu0 0.0
    %2410 = vmatprep.subr.mxu0 0.0
    %2411 = vmatpush1.msra.mxu0 0.0
    %2412 = vmatprep.subr.mxu0 0.0
    %2413 = vmatpush1.msra.mxu0 0.0
    %2414 = vmatprep.subr.mxu0 0.0
    %2415 = vmatpush1.msra.mxu0 0.0
    %2416 = vmatprep.subr.mxu0 0.0
    %2417 = vmatpush1.msra.mxu0 0.0
    %2418 = vmatprep.subr.mxu0 0.0
    %2419 = vmatpush1.msra.mxu0 0.0
    %2420 = vmatprep.subr.mxu0 0.0
    %2421 = vmatpush1.msra.mxu0 0.0
    %2422 = vmatprep.subr.mxu0 0.0
    %2423 = vmatpush1.msra.mxu0 0.0
    %2424 = vmatprep.subr.mxu0 0.0
    %2425 = vmatpush1.msra.mxu0 0.0
    %2426 = vmatprep.subr.mxu0 0.0
    %2427 = vmatpush1.msra.mxu0 0.0
    %2428 = vmatprep.subr.mxu0 0.0
    %2429 = vmatpush1.msra.mxu0 0.0
    %2430 = vmatprep.mubr.f32.mxu0 0.0
    %v2431 = vand.u32 %v2186, 4294901760
    %v2432 = vsub.f32 %v2186, %v2431
    %2433 = vmatmul.mubr.f32.gmra.mrb[0].mxu0 %v2432
    %v2434 = vpop.f32.mrb[0].mxu0
    %v2435 = vadd.f32 %v2355, %v2434
    %v2436 = vpop.f32.mrb[0].mxu0
    %2437 = vdwg.mxu0
    %2438 = vmatprep.subr.mxu0 0.0
    %v2439 = vand.u32 %v2178, 4294901760
    %2440 = vmatpush1.msra.mxu0 %v2439
    %2441 = vmatprep.subr.mxu0 0.0
    %v2442 = vand.u32 %v2179, 4294901760
    %2443 = vmatpush1.msra.mxu0 %v2442
    %2444 = vmatprep.subr.mxu0 0.0
    %v2445 = vand.u32 %v2180, 4294901760
    %2446 = vmatpush1.msra.mxu0 %v2445
    %2447 = vmatprep.subr.mxu0 0.0
    %v2448 = vand.u32 %v2181, 4294901760
    %2449 = vmatpush1.msra.mxu0 %v2448
    %2450 = vmatprep.subr.mxu0 0.0
    %2451 = vmatpush1.msra.mxu0 0.0
    %2452 = vmatprep.subr.mxu0 0.0
    %2453 = vmatpush1.msra.mxu0 0.0
    %2454 = vmatprep.subr.mxu0 0.0
    %2455 = vmatpush1.msra.mxu0 0.0
    %2456 = vmatprep.subr.mxu0 0.0
    %2457 = vmatpush1.msra.mxu0 0.0
    %2458 = vmatprep.subr.mxu0 0.0
    %2459 = vmatpush1.msra.mxu0 0.0
    %2460 = vmatprep.subr.mxu0 0.0
    %2461 = vmatpush1.msra.mxu0 0.0
    %2462 = vmatprep.subr.mxu0 0.0
    %2463 = vmatpush1.msra.mxu0 0.0
    %2464 = vmatprep.subr.mxu0 0.0
    %2465 = vmatpush1.msra.mxu0 0.0
    %2466 = vmatprep.subr.mxu0 0.0
    %2467 = vmatpush1.msra.mxu0 0.0
    %2468 = vmatprep.subr.mxu0 0.0
    %2469 = vmatpush1.msra.mxu0 0.0
    %2470 = vmatprep.subr.mxu0 0.0
    %2471 = vmatpush1.msra.mxu0 0.0
    %2472 = vmatprep.subr.mxu0 0.0
    %2473 = vmatpush1.msra.mxu0 0.0
    %2474 = vmatprep.subr.mxu0 0.0
    %2475 = vmatpush1.msra.mxu0 0.0
    %2476 = vmatprep.subr.mxu0 0.0
    %2477 = vmatpush1.msra.mxu0 0.0
    %2478 = vmatprep.subr.mxu0 0.0
    %2479 = vmatpush1.msra.mxu0 0.0
    %2480 = vmatprep.subr.mxu0 0.0
    %2481 = vmatpush1.msra.mxu0 0.0
    %2482 = vmatprep.subr.mxu0 0.0
    %2483 = vmatpush1.msra.mxu0 0.0
    %2484 = vmatprep.subr.mxu0 0.0
    %2485 = vmatpush1.msra.mxu0 0.0
    %2486 = vmatprep.subr.mxu0 0.0
    %2487 = vmatpush1.msra.mxu0 0.0
    %2488 = vmatprep.subr.mxu0 0.0
    %2489 = vmatpush1.msra.mxu0 0.0
    %2490 = vmatprep.subr.mxu0 0.0
    %2491 = vmatpush1.msra.mxu0 0.0
    %2492 = vmatprep.subr.mxu0 0.0
    %2493 = vmatpush1.msra.mxu0 0.0
    %2494 = vmatprep.subr.mxu0 0.0
    %2495 = vmatpush1.msra.mxu0 0.0
    %2496 = vmatprep.subr.mxu0 0.0
    %2497 = vmatpush1.msra.mxu0 0.0
    %2498 = vmatprep.subr.mxu0 0.0
    %2499 = vmatpush1.msra.mxu0 0.0
    %2500 = vmatprep.subr.mxu0 0.0
    %2501 = vmatpush1.msra.mxu0 0.0
    %2502 = vmatprep.subr.mxu0 0.0
    %2503 = vmatpush1.msra.mxu0 0.0
    %2504 = vmatprep.subr.mxu0 0.0
    %2505 = vmatpush1.msra.mxu0 0.0
    %2506 = vmatprep.mubr.f32.mxu0 0.0
    %v2507 = vand.u32 %v2186, 4294901760
    %v2508 = vsub.f32 %v2186, %v2507
    %v2509 = vand.u32 %v2508, 4294901760
    %2510 = vmatmul.mubr.f32.gmra.mrb[0].mxu0 %v2509
    %v2511 = vpop.f32.mrb[0].mxu0
    %v2512 = vadd.f32 %v2435, %v2511
    %v2513 = vpop.f32.mrb[0].mxu0
    %2514 = vdwg.mxu0
    %2515 = vmatprep.subr.mxu0 0.0
    %v2516 = vand.u32 %v2178, 4294901760
    %v2517 = vsub.f32 %v2178, %v2516
    %v2518 = vand.u32 %v2517, 4294901760
    %2519 = vmatpush1.msra.mxu0 %v2518
    %2520 = vmatprep.subr.mxu0 0.0
    %v2521 = vand.u32 %v2179, 4294901760
    %v2522 = vsub.f32 %v2179, %v2521
    %v2523 = vand.u32 %v2522, 4294901760
    %2524 = vmatpush1.msra.mxu0 %v2523
    %2525 = vmatprep.subr.mxu0 0.0
    %v2526 = vand.u32 %v2180, 4294901760
    %v2527 = vsub.f32 %v2180, %v2526
    %v2528 = vand.u32 %v2527, 4294901760
    %2529 = vmatpush1.msra.mxu0 %v2528
    %2530 = vmatprep.subr.mxu0 0.0
    %v2531 = vand.u32 %v2181, 4294901760
    %v2532 = vsub.f32 %v2181, %v2531
    %v2533 = vand.u32 %v2532, 4294901760
    %2534 = vmatpush1.msra.mxu0 %v2533
    %2535 = vmatprep.subr.mxu0 0.0
    %2536 = vmatpush1.msra.mxu0 0.0
    %2537 = vmatprep.subr.mxu0 0.0
    %2538 = vmatpush1.msra.mxu0 0.0
    %2539 = vmatprep.subr.mxu0 0.0
    %2540 = vmatpush1.msra.mxu0 0.0
    %2541 = vmatprep.subr.mxu0 0.0
    %2542 = vmatpush1.msra.mxu0 0.0
    %2543 = vmatprep.subr.mxu0 0.0
    %2544 = vmatpush1.msra.mxu0 0.0
    %2545 = vmatprep.subr.mxu0 0.0
    %2546 = vmatpush1.msra.mxu0 0.0
    %2547 = vmatprep.subr.mxu0 0.0
    %2548 = vmatpush1.msra.mxu0 0.0
    %2549 = vmatprep.subr.mxu0 0.0
    %2550 = vmatpush1.msra.mxu0 0.0
    %2551 = vmatprep.subr.mxu0 0.0
    %2552 = vmatpush1.msra.mxu0 0.0
    %2553 = vmatprep.subr.mxu0 0.0
    %2554 = vmatpush1.msra.mxu0 0.0
    %2555 = vmatprep.subr.mxu0 0.0
    %2556 = vmatpush1.msra.mxu0 0.0
    %2557 = vmatprep.subr.mxu0 0.0
    %2558 = vmatpush1.msra.mxu0 0.0
    %2559 = vmatprep.subr.mxu0 0.0
    %2560 = vmatpush1.msra.mxu0 0.0
    %2561 = vmatprep.subr.mxu0 0.0
    %2562 = vmatpush1.msra.mxu0 0.0
    %2563 = vmatprep.subr.mxu0 0.0
    %2564 = vmatpush1.msra.mxu0 0.0
    %2565 = vmatprep.subr.mxu0 0.0
    %2566 = vmatpush1.msra.mxu0 0.0
    %2567 = vmatprep.subr.mxu0 0.0
    %2568 = vmatpush1.msra.mxu0 0.0
    %2569 = vmatprep.subr.mxu0 0.0
    %2570 = vmatpush1.msra.mxu0 0.0
    %2571 = vmatprep.subr.mxu0 0.0
    %2572 = vmatpush1.msra.mxu0 0.0
    %2573 = vmatprep.subr.mxu0 0.0
    %2574 = vmatpush1.msra.mxu0 0.0
    %2575 = vmatprep.subr.mxu0 0.0
    %2576 = vmatpush1.msra.mxu0 0.0
    %2577 = vmatprep.subr.mxu0 0.0
    %2578 = vmatpush1.msra.mxu0 0.0
    %2579 = vmatprep.subr.mxu0 0.0
    %2580 = vmatpush1.msra.mxu0 0.0
    %2581 = vmatprep.subr.mxu0 0.0
    %2582 = vmatpush1.msra.mxu0 0.0
    %2583 = vmatprep.subr.mxu0 0.0
    %2584 = vmatpush1.msra.mxu0 0.0
    %2585 = vmatprep.subr.mxu0 0.0
    %2586 = vmatpush1.msra.mxu0 0.0
    %2587 = vmatprep.subr.mxu0 0.0
    %2588 = vmatpush1.msra.mxu0 0.0
    %2589 = vmatprep.subr.mxu0 0.0
    %2590 = vmatpush1.msra.mxu0 0.0
    %2591 = vmatprep.mubr.f32.mxu0 0.0
    %v2592 = vand.u32 %v2186, 4294901760
    %2593 = vmatmul.mubr.f32.gmra.mrb[0].mxu0 %v2592
    %v2594 = vpop.f32.mrb[0].mxu0
    %v2595 = vadd.f32 %v2512, %v2594
    %v2596 = vpop.f32.mrb[0].mxu0
    %2597 = vdwg.mxu0
    %2598 = vmatprep.subr.mxu0 0.0
    %v2599 = vand.u32 %v2178, 4294901760
    %2600 = vmatpush1.msra.mxu0 %v2599
    %2601 = vmatprep.subr.mxu0 0.0
    %v2602 = vand.u32 %v2179, 4294901760
    %2603 = vmatpush1.msra.mxu0 %v2602
    %2604 = vmatprep.subr.mxu0 0.0
    %v2605 = vand.u32 %v2180, 4294901760
    %2606 = vmatpush1.msra.mxu0 %v2605
    %2607 = vmatprep.subr.mxu0 0.0
    %v2608 = vand.u32 %v2181, 4294901760
    %2609 = vmatpush1.msra.mxu0 %v2608
    %2610 = vmatprep.subr.mxu0 0.0
    %2611 = vmatpush1.msra.mxu0 0.0
    %2612 = vmatprep.subr.mxu0 0.0
    %2613 = vmatpush1.msra.mxu0 0.0
    %2614 = vmatprep.subr.mxu0 0.0
    %2615 = vmatpush1.msra.mxu0 0.0
    %2616 = vmatprep.subr.mxu0 0.0
    %2617 = vmatpush1.msra.mxu0 0.0
    %2618 = vmatprep.subr.mxu0 0.0
    %2619 = vmatpush1.msra.mxu0 0.0
    %2620 = vmatprep.subr.mxu0 0.0
    %2621 = vmatpush1.msra.mxu0 0.0
    %2622 = vmatprep.subr.mxu0 0.0
    %2623 = vmatpush1.msra.mxu0 0.0
    %2624 = vmatprep.subr.mxu0 0.0
    %2625 = vmatpush1.msra.mxu0 0.0
    %2626 = vmatprep.subr.mxu0 0.0
    %2627 = vmatpush1.msra.mxu0 0.0
    %2628 = vmatprep.subr.mxu0 0.0
    %2629 = vmatpush1.msra.mxu0 0.0
    %2630 = vmatprep.subr.mxu0 0.0
    %2631 = vmatpush1.msra.mxu0 0.0
    %2632 = vmatprep.subr.mxu0 0.0
    %2633 = vmatpush1.msra.mxu0 0.0
    %2634 = vmatprep.subr.mxu0 0.0
    %2635 = vmatpush1.msra.mxu0 0.0
    %2636 = vmatprep.subr.mxu0 0.0
    %2637 = vmatpush1.msra.mxu0 0.0
    %2638 = vmatprep.subr.mxu0 0.0
    %2639 = vmatpush1.msra.mxu0 0.0
    %2640 = vmatprep.subr.mxu0 0.0
    %2641 = vmatpush1.msra.mxu0 0.0
    %2642 = vmatprep.subr.mxu0 0.0
    %2643 = vmatpush1.msra.mxu0 0.0
    %2644 = vmatprep.subr.mxu0 0.0
    %2645 = vmatpush1.msra.mxu0 0.0
    %2646 = vmatprep.subr.mxu0 0.0
    %2647 = vmatpush1.msra.mxu0 0.0
    %2648 = vmatprep.subr.mxu0 0.0
    %2649 = vmatpush1.msra.mxu0 0.0
    %2650 = vmatprep.subr.mxu0 0.0
    %2651 = vmatpush1.msra.mxu0 0.0
    %2652 = vmatprep.subr.mxu0 0.0
    %2653 = vmatpush1.msra.mxu0 0.0
    %2654 = vmatprep.subr.mxu0 0.0
    %2655 = vmatpush1.msra.mxu0 0.0
    %2656 = vmatprep.subr.mxu0 0.0
    %2657 = vmatpush1.msra.mxu0 0.0
    %2658 = vmatprep.subr.mxu0 0.0
    %2659 = vmatpush1.msra.mxu0 0.0
    %2660 = vmatprep.subr.mxu0 0.0
    %2661 = vmatpush1.msra.mxu0 0.0
    %2662 = vmatprep.subr.mxu0 0.0
    %2663 = vmatpush1.msra.mxu0 0.0
    %2664 = vmatprep.subr.mxu0 0.0
    %2665 = vmatpush1.msra.mxu0 0.0
    %2666 = vmatprep.mubr.f32.mxu0 0.0
    %v2667 = vand.u32 %v2186, 4294901760
    %2668 = vmatmul.mubr.f32.gmra.mrb[0].mxu0 %v2667
    %v2669 = vpop.f32.mrb[0].mxu0
    %v2670 = vadd.f32 %v2595, %v2669
    %v2671 = vpop.f32.mrb[0].mxu0
    %2672 = vdwg.mxu0
    %v2674 = vrot.slane %v2670, 7
    %v2676 = vsel %vm1649, %v2175, %v2674
    %v2677 = vxor.u32 %v2676, 2147483648
    %v2678 = vmul.f32 %v2677, 1.442695
    %v2679 = vpow.pop %v2678
    %v2680 = vadd.f32 %v2679, 1.0
    %v2681 = vrcp.pop %v2680
    %v2682 = vmul.f32 1.0, %v2681
    %v2683 = vtanh.pop %v2676
    %v2684 = vmul.f32 %v2682, %v1668
    %2686 = vrot.lane.b32.xlu0 %v2683, 64
    %v2687 = vpop.permute.xlu0 %2686
    %v2689 = vmul.f32 %v2682, %v2687
    %2691 = vrot.lane.b32.xlu0 %v2689, 32
    %v2692 = vpop.permute.xlu0 %2691
    %v2694 = vadd.f32 %v2684, %v2692
    %v2695 = vtanh.pop %v2694
    %2697 = vrot.lane.b32.xlu0 %v2695, 64
    %v2698 = vpop.permute.xlu0 %2697
    %v2700 = vmul.f32 %v2682, %v2698
    %2702 = vrot.lane.b32.xlu0 %v2700, 32
    %v2703 = vpop.permute.xlu0 %2702
    %2705 = vst.msk [vmem:[#allocation3 + $0x1] sm:$0x1] %vm1679, %v2703
    %2706 = vrot.lane.b32.xlu0 %v2700, 64
    %v2707 = vpop.permute.xlu0 %2706
    %2709 = vst.msk [vmem:[#allocation3 + $0x5] sm:$0x2] %vm1684, %v2707
    %v2710 = vld [vmem:[#allocation9] sm:$0xff]
    %v2711 = vld [vmem:[#allocation9 + $0x8] sm:$0xff]
    %v2712 = vld [vmem:[#allocation9 + $0x10] sm:$0xff]
    %v2713 = vld [vmem:[#allocation9 + $0x18] sm:$0xff]
    %v2714 = vld [vmem:[#allocation2 + $0x2] ss:$0 sm:$0xff]
    %v2715 = vsel %vm114, %v2703, 0
    %2717 = vmatprep.subr.mxu0 0.0
    %v2718 = vand.u32 %v2710, 4294901760
    %2719 = vmatpush1.msra.mxu0 %v2718
    %2720 = vmatprep.subr.mxu0 0.0
    %v2721 = vand.u32 %v2711, 4294901760
    %2722 = vmatpush1.msra.mxu0 %v2721
    %2723 = vmatprep.subr.mxu0 0.0
    %v2724 = vand.u32 %v2712, 4294901760
    %2725 = vmatpush1.msra.mxu0 %v2724
    %2726 = vmatprep.subr.mxu0 0.0
    %v2727 = vand.u32 %v2713, 4294901760
    %2728 = vmatpush1.msra.mxu0 %v2727
    %2729 = vmatprep.subr.mxu0 0.0
    %2730 = vmatpush1.msra.mxu0 0.0
    %2731 = vmatprep.subr.mxu0 0.0
    %2732 = vmatpush1.msra.mxu0 0.0
    %2733 = vmatprep.subr.mxu0 0.0
    %2734 = vmatpush1.msra.mxu0 0.0
    %2735 = vmatprep.subr.mxu0 0.0
    %2736 = vmatpush1.msra.mxu0 0.0
    %2737 = vmatprep.subr.mxu0 0.0
    %2738 = vmatpush1.msra.mxu0 0.0
    %2739 = vmatprep.subr.mxu0 0.0
    %2740 = vmatpush1.msra.mxu0 0.0
    %2741 = vmatprep.subr.mxu0 0.0
    %2742 = vmatpush1.msra.mxu0 0.0
    %2743 = vmatprep.subr.mxu0 0.0
    %2744 = vmatpush1.msra.mxu0 0.0
    %2745 = vmatprep.subr.mxu0 0.0
    %2746 = vmatpush1.msra.mxu0 0.0
    %2747 = vmatprep.subr.mxu0 0.0
    %2748 = vmatpush1.msra.mxu0 0.0
    %2749 = vmatprep.subr.mxu0 0.0
    %2750 = vmatpush1.msra.mxu0 0.0
    %2751 = vmatprep.subr.mxu0 0.0
    %2752 = vmatpush1.msra.mxu0 0.0
    %2753 = vmatprep.subr.mxu0 0.0
    %2754 = vmatpush1.msra.mxu0 0.0
    %2755 = vmatprep.subr.mxu0 0.0
    %2756 = vmatpush1.msra.mxu0 0.0
    %2757 = vmatprep.subr.mxu0 0.0
    %2758 = vmatpush1.msra.mxu0 0.0
    %2759 = vmatprep.subr.mxu0 0.0
    %2760 = vmatpush1.msra.mxu0 0.0
    %2761 = vmatprep.subr.mxu0 0.0
    %2762 = vmatpush1.msra.mxu0 0.0
    %2763 = vmatprep.subr.mxu0 0.0
    %2764 = vmatpush1.msra.mxu0 0.0
    %2765 = vmatprep.subr.mxu0 0.0
    %2766 = vmatpush1.msra.mxu0 0.0
    %2767 = vmatprep.subr.mxu0 0.0
    %2768 = vmatpush1.msra.mxu0 0.0
    %2769 = vmatprep.subr.mxu0 0.0
    %2770 = vmatpush1.msra.mxu0 0.0
    %2771 = vmatprep.subr.mxu0 0.0
    %2772 = vmatpush1.msra.mxu0 0.0
    %2773 = vmatprep.subr.mxu0 0.0
    %2774 = vmatpush1.msra.mxu0 0.0
    %2775 = vmatprep.subr.mxu0 0.0
    %2776 = vmatpush1.msra.mxu0 0.0
    %2777 = vmatprep.subr.mxu0 0.0
    %2778 = vmatpush1.msra.mxu0 0.0
    %2779 = vmatprep.subr.mxu0 0.0
    %2780 = vmatpush1.msra.mxu0 0.0
    %2781 = vmatprep.subr.mxu0 0.0
    %2782 = vmatpush1.msra.mxu0 0.0
    %2783 = vmatprep.subr.mxu0 0.0
    %2784 = vmatpush1.msra.mxu0 0.0
    %2785 = vmatprep.mubr.f32.mxu0 0.0
    %v2786 = vand.u32 %v2715, 4294901760
    %v2787 = vsub.f32 %v2715, %v2786
    %v2788 = vand.u32 %v2787, 4294901760
    %v2789 = vsub.f32 %v2787, %v2788
    %v2790 = vand.u32 %v2789, 4294901760
    %2791 = vmatmul.mubr.f32.gmra.mrb[0].mxu0 %v2790
    %v2792 = vpop.f32.mrb[0].mxu0
    %v2793 = vadd.f32 %v2714, %v2792
    %v2794 = vpop.f32.mrb[0].mxu0
    %2795 = vdwg.mxu0
    %2796 = vmatprep.subr.mxu0 0.0
    %v2797 = vand.u32 %v2710, 4294901760
    %v2798 = vsub.f32 %v2710, %v2797
    %v2799 = vand.u32 %v2798, 4294901760
    %v2800 = vsub.f32 %v2798, %v2799
    %v2801 = vand.u32 %v2800, 4294901760
    %2802 = vmatpush1.msra.mxu0 %v2801
    %2803 = vmatprep.subr.mxu0 0.0
    %v2804 = vand.u32 %v2711, 4294901760
    %v2805 = vsub.f32 %v2711, %v2804
    %v2806 = vand.u32 %v2805, 4294901760
    %v2807 = vsub.f32 %v2805, %v2806
    %v2808 = vand.u32 %v2807, 4294901760
    %2809 = vmatpush1.msra.mxu0 %v2808
    %2810 = vmatprep.subr.mxu0 0.0
    %v2811 = vand.u32 %v2712, 4294901760
    %v2812 = vsub.f32 %v2712, %v2811
    %v2813 = vand.u32 %v2812, 4294901760
    %v2814 = vsub.f32 %v2812, %v2813
    %v2815 = vand.u32 %v2814, 4294901760
    %2816 = vmatpush1.msra.mxu0 %v2815
    %2817 = vmatprep.subr.mxu0 0.0
    %v2818 = vand.u32 %v2713, 4294901760
    %v2819 = vsub.f32 %v2713, %v2818
    %v2820 = vand.u32 %v2819, 4294901760
    %v2821 = vsub.f32 %v2819, %v2820
    %v2822 = vand.u32 %v2821, 4294901760
    %2823 = vmatpush1.msra.mxu0 %v2822
    %2824 = vmatprep.subr.mxu0 0.0
    %2825 = vmatpush1.msra.mxu0 0.0
    %2826 = vmatprep.subr.mxu0 0.0
    %2827 = vmatpush1.msra.mxu0 0.0
    %2828 = vmatprep.subr.mxu0 0.0
    %2829 = vmatpush1.msra.mxu0 0.0
    %2830 = vmatprep.subr.mxu0 0.0
    %2831 = vmatpush1.msra.mxu0 0.0
    %2832 = vmatprep.subr.mxu0 0.0
    %2833 = vmatpush1.msra.mxu0 0.0
    %2834 = vmatprep.subr.mxu0 0.0
    %2835 = vmatpush1.msra.mxu0 0.0
    %2836 = vmatprep.subr.mxu0 0.0
    %2837 = vmatpush1.msra.mxu0 0.0
    %2838 = vmatprep.subr.mxu0 0.0
    %2839 = vmatpush1.msra.mxu0 0.0
    %2840 = vmatprep.subr.mxu0 0.0
    %2841 = vmatpush1.msra.mxu0 0.0
    %2842 = vmatprep.subr.mxu0 0.0
    %2843 = vmatpush1.msra.mxu0 0.0
    %2844 = vmatprep.subr.mxu0 0.0
    %2845 = vmatpush1.msra.mxu0 0.0
    %2846 = vmatprep.subr.mxu0 0.0
    %2847 = vmatpush1.msra.mxu0 0.0
    %2848 = vmatprep.subr.mxu0 0.0
    %2849 = vmatpush1.msra.mxu0 0.0
    %2850 = vmatprep.subr.mxu0 0.0
    %2851 = vmatpush1.msra.mxu0 0.0
    %2852 = vmatprep.subr.mxu0 0.0
    %2853 = vmatpush1.msra.mxu0 0.0
    %2854 = vmatprep.subr.mxu0 0.0
    %2855 = vmatpush1.msra.mxu0 0.0
    %2856 = vmatprep.subr.mxu0 0.0
    %2857 = vmatpush1.msra.mxu0 0.0
    %2858 = vmatprep.subr.mxu0 0.0
    %2859 = vmatpush1.msra.mxu0 0.0
    %2860 = vmatprep.subr.mxu0 0.0
    %2861 = vmatpush1.msra.mxu0 0.0
    %2862 = vmatprep.subr.mxu0 0.0
    %2863 = vmatpush1.msra.mxu0 0.0
    %2864 = vmatprep.subr.mxu0 0.0
    %2865 = vmatpush1.msra.mxu0 0.0
    %2866 = vmatprep.subr.mxu0 0.0
    %2867 = vmatpush1.msra.mxu0 0.0
    %2868 = vmatprep.subr.mxu0 0.0
    %2869 = vmatpush1.msra.mxu0 0.0
    %2870 = vmatprep.subr.mxu0 0.0
    %2871 = vmatpush1.msra.mxu0 0.0
    %2872 = vmatprep.subr.mxu0 0.0
    %2873 = vmatpush1.msra.mxu0 0.0
    %2874 = vmatprep.subr.mxu0 0.0
    %2875 = vmatpush1.msra.mxu0 0.0
    %2876 = vmatprep.subr.mxu0 0.0
    %2877 = vmatpush1.msra.mxu0 0.0
    %2878 = vmatprep.subr.mxu0 0.0
    %2879 = vmatpush1.msra.mxu0 0.0
    %2880 = vmatprep.mubr.f32.mxu0 0.0
    %v2881 = vand.u32 %v2715, 4294901760
    %2882 = vmatmul.mubr.f32.gmra.mrb[0].mxu0 %v2881
    %v2883 = vpop.f32.mrb[0].mxu0
    %v2884 = vadd.f32 %v2793, %v2883
    %v2885 = vpop.f32.mrb[0].mxu0
    %2886 = vdwg.mxu0
    %2887 = vmatprep.subr.mxu0 0.0
    %v2888 = vand.u32 %v2710, 4294901760
    %v2889 = vsub.f32 %v2710, %v2888
    %2890 = vmatpush1.msra.mxu0 %v2889
    %2891 = vmatprep.subr.mxu0 0.0
    %v2892 = vand.u32 %v2711, 4294901760
    %v2893 = vsub.f32 %v2711, %v2892
    %2894 = vmatpush1.msra.mxu0 %v2893
    %2895 = vmatprep.subr.mxu0 0.0
    %v2896 = vand.u32 %v2712, 4294901760
    %v2897 = vsub.f32 %v2712, %v2896
    %2898 = vmatpush1.msra.mxu0 %v2897
    %2899 = vmatprep.subr.mxu0 0.0
    %v2900 = vand.u32 %v2713, 4294901760
    %v2901 = vsub.f32 %v2713, %v2900
    %2902 = vmatpush1.msra.mxu0 %v2901
    %2903 = vmatprep.subr.mxu0 0.0
    %2904 = vmatpush1.msra.mxu0 0.0
    %2905 = vmatprep.subr.mxu0 0.0
    %2906 = vmatpush1.msra.mxu0 0.0
    %2907 = vmatprep.subr.mxu0 0.0
    %2908 = vmatpush1.msra.mxu0 0.0
    %2909 = vmatprep.subr.mxu0 0.0
    %2910 = vmatpush1.msra.mxu0 0.0
    %2911 = vmatprep.subr.mxu0 0.0
    %2912 = vmatpush1.msra.mxu0 0.0
    %2913 = vmatprep.subr.mxu0 0.0
    %2914 = vmatpush1.msra.mxu0 0.0
    %2915 = vmatprep.subr.mxu0 0.0
    %2916 = vmatpush1.msra.mxu0 0.0
    %2917 = vmatprep.subr.mxu0 0.0
    %2918 = vmatpush1.msra.mxu0 0.0
    %2919 = vmatprep.subr.mxu0 0.0
    %2920 = vmatpush1.msra.mxu0 0.0
    %2921 = vmatprep.subr.mxu0 0.0
    %2922 = vmatpush1.msra.mxu0 0.0
    %2923 = vmatprep.subr.mxu0 0.0
    %2924 = vmatpush1.msra.mxu0 0.0
    %2925 = vmatprep.subr.mxu0 0.0
    %2926 = vmatpush1.msra.mxu0 0.0
    %2927 = vmatprep.subr.mxu0 0.0
    %2928 = vmatpush1.msra.mxu0 0.0
    %2929 = vmatprep.subr.mxu0 0.0
    %2930 = vmatpush1.msra.mxu0 0.0
    %2931 = vmatprep.subr.mxu0 0.0
    %2932 = vmatpush1.msra.mxu0 0.0
    %2933 = vmatprep.subr.mxu0 0.0
    %2934 = vmatpush1.msra.mxu0 0.0
    %2935 = vmatprep.subr.mxu0 0.0
    %2936 = vmatpush1.msra.mxu0 0.0
    %2937 = vmatprep.subr.mxu0 0.0
    %2938 = vmatpush1.msra.mxu0 0.0
    %2939 = vmatprep.subr.mxu0 0.0
    %2940 = vmatpush1.msra.mxu0 0.0
    %2941 = vmatprep.subr.mxu0 0.0
    %2942 = vmatpush1.msra.mxu0 0.0
    %2943 = vmatprep.subr.mxu0 0.0
    %2944 = vmatpush1.msra.mxu0 0.0
    %2945 = vmatprep.subr.mxu0 0.0
    %2946 = vmatpush1.msra.mxu0 0.0
    %2947 = vmatprep.subr.mxu0 0.0
    %2948 = vmatpush1.msra.mxu0 0.0
    %2949 = vmatprep.subr.mxu0 0.0
    %2950 = vmatpush1.msra.mxu0 0.0
    %2951 = vmatprep.subr.mxu0 0.0
    %2952 = vmatpush1.msra.mxu0 0.0
    %2953 = vmatprep.subr.mxu0 0.0
    %2954 = vmatpush1.msra.mxu0 0.0
    %2955 = vmatprep.subr.mxu0 0.0
    %2956 = vmatpush1.msra.mxu0 0.0
    %2957 = vmatprep.subr.mxu0 0.0
    %2958 = vmatpush1.msra.mxu0 0.0
    %2959 = vmatprep.mubr.f32.mxu0 0.0
    %v2960 = vand.u32 %v2715, 4294901760
    %v2961 = vsub.f32 %v2715, %v2960
    %2962 = vmatmul.mubr.f32.gmra.mrb[0].mxu0 %v2961
    %v2963 = vpop.f32.mrb[0].mxu0
    %v2964 = vadd.f32 %v2884, %v2963
    %v2965 = vpop.f32.mrb[0].mxu0
    %2966 = vdwg.mxu0
    %2967 = vmatprep.subr.mxu0 0.0
    %v2968 = vand.u32 %v2710, 4294901760
    %2969 = vmatpush1.msra.mxu0 %v2968
    %2970 = vmatprep.subr.mxu0 0.0
    %v2971 = vand.u32 %v2711, 4294901760
    %2972 = vmatpush1.msra.mxu0 %v2971
    %2973 = vmatprep.subr.mxu0 0.0
    %v2974 = vand.u32 %v2712, 4294901760
    %2975 = vmatpush1.msra.mxu0 %v2974
    %2976 = vmatprep.subr.mxu0 0.0
    %v2977 = vand.u32 %v2713, 4294901760
    %2978 = vmatpush1.msra.mxu0 %v2977
    %2979 = vmatprep.subr.mxu0 0.0
    %2980 = vmatpush1.msra.mxu0 0.0
    %2981 = vmatprep.subr.mxu0 0.0
    %2982 = vmatpush1.msra.mxu0 0.0
    %2983 = vmatprep.subr.mxu0 0.0
    %2984 = vmatpush1.msra.mxu0 0.0
    %2985 = vmatprep.subr.mxu0 0.0
    %2986 = vmatpush1.msra.mxu0 0.0
    %2987 = vmatprep.subr.mxu0 0.0
    %2988 = vmatpush1.msra.mxu0 0.0
    %2989 = vmatprep.subr.mxu0 0.0
    %2990 = vmatpush1.msra.mxu0 0.0
    %2991 = vmatprep.subr.mxu0 0.0
    %2992 = vmatpush1.msra.mxu0 0.0
    %2993 = vmatprep.subr.mxu0 0.0
    %2994 = vmatpush1.msra.mxu0 0.0
    %2995 = vmatprep.subr.mxu0 0.0
    %2996 = vmatpush1.msra.mxu0 0.0
    %2997 = vmatprep.subr.mxu0 0.0
    %2998 = vmatpush1.msra.mxu0 0.0
    %2999 = vmatprep.subr.mxu0 0.0
    %3000 = vmatpush1.msra.mxu0 0.0
    %3001 = vmatprep.subr.mxu0 0.0
    %3002 = vmatpush1.msra.mxu0 0.0
    %3003 = vmatprep.subr.mxu0 0.0
    %3004 = vmatpush1.msra.mxu0 0.0
    %3005 = vmatprep.subr.mxu0 0.0
    %3006 = vmatpush1.msra.mxu0 0.0
    %3007 = vmatprep.subr.mxu0 0.0
    %3008 = vmatpush1.msra.mxu0 0.0
    %3009 = vmatprep.subr.mxu0 0.0
    %3010 = vmatpush1.msra.mxu0 0.0
    %3011 = vmatprep.subr.mxu0 0.0
    %3012 = vmatpush1.msra.mxu0 0.0
    %3013 = vmatprep.subr.mxu0 0.0
    %3014 = vmatpush1.msra.mxu0 0.0
    %3015 = vmatprep.subr.mxu0 0.0
    %3016 = vmatpush1.msra.mxu0 0.0
    %3017 = vmatprep.subr.mxu0 0.0
    %3018 = vmatpush1.msra.mxu0 0.0
    %3019 = vmatprep.subr.mxu0 0.0
    %3020 = vmatpush1.msra.mxu0 0.0
    %3021 = vmatprep.subr.mxu0 0.0
    %3022 = vmatpush1.msra.mxu0 0.0
    %3023 = vmatprep.subr.mxu0 0.0
    %3024 = vmatpush1.msra.mxu0 0.0
    %3025 = vmatprep.subr.mxu0 0.0
    %3026 = vmatpush1.msra.mxu0 0.0
    %3027 = vmatprep.subr.mxu0 0.0
    %3028 = vmatpush1.msra.mxu0 0.0
    %3029 = vmatprep.subr.mxu0 0.0
    %3030 = vmatpush1.msra.mxu0 0.0
    %3031 = vmatprep.subr.mxu0 0.0
    %3032 = vmatpush1.msra.mxu0 0.0
    %3033 = vmatprep.subr.mxu0 0.0
    %3034 = vmatpush1.msra.mxu0 0.0
    %3035 = vmatprep.mubr.f32.mxu0 0.0
    %v3036 = vand.u32 %v2715, 4294901760
    %v3037 = vsub.f32 %v2715, %v3036
    %v3038 = vand.u32 %v3037, 4294901760
    %3039 = vmatmul.mubr.f32.gmra.mrb[0].mxu0 %v3038
    %v3040 = vpop.f32.mrb[0].mxu0
    %v3041 = vadd.f32 %v2964, %v3040
    %v3042 = vpop.f32.mrb[0].mxu0
    %3043 = vdwg.mxu0
    %3044 = vmatprep.subr.mxu0 0.0
    %v3045 = vand.u32 %v2710, 4294901760
    %v3046 = vsub.f32 %v2710, %v3045
    %v3047 = vand.u32 %v3046, 4294901760
    %3048 = vmatpush1.msra.mxu0 %v3047
    %3049 = vmatprep.subr.mxu0 0.0
    %v3050 = vand.u32 %v2711, 4294901760
    %v3051 = vsub.f32 %v2711, %v3050
    %v3052 = vand.u32 %v3051, 4294901760
    %3053 = vmatpush1.msra.mxu0 %v3052
    %3054 = vmatprep.subr.mxu0 0.0
    %v3055 = vand.u32 %v2712, 4294901760
    %v3056 = vsub.f32 %v2712, %v3055
    %v3057 = vand.u32 %v3056, 4294901760
    %3058 = vmatpush1.msra.mxu0 %v3057
    %3059 = vmatprep.subr.mxu0 0.0
    %v3060 = vand.u32 %v2713, 4294901760
    %v3061 = vsub.f32 %v2713, %v3060
    %v3062 = vand.u32 %v3061, 4294901760
    %3063 = vmatpush1.msra.mxu0 %v3062
    %3064 = vmatprep.subr.mxu0 0.0
    %3065 = vmatpush1.msra.mxu0 0.0
    %3066 = vmatprep.subr.mxu0 0.0
    %3067 = vmatpush1.msra.mxu0 0.0
    %3068 = vmatprep.subr.mxu0 0.0
    %3069 = vmatpush1.msra.mxu0 0.0
    %3070 = vmatprep.subr.mxu0 0.0
    %3071 = vmatpush1.msra.mxu0 0.0
    %3072 = vmatprep.subr.mxu0 0.0
    %3073 = vmatpush1.msra.mxu0 0.0
    %3074 = vmatprep.subr.mxu0 0.0
    %3075 = vmatpush1.msra.mxu0 0.0
    %3076 = vmatprep.subr.mxu0 0.0
    %3077 = vmatpush1.msra.mxu0 0.0
    %3078 = vmatprep.subr.mxu0 0.0
    %3079 = vmatpush1.msra.mxu0 0.0
    %3080 = vmatprep.subr.mxu0 0.0
    %3081 = vmatpush1.msra.mxu0 0.0
    %3082 = vmatprep.subr.mxu0 0.0
    %3083 = vmatpush1.msra.mxu0 0.0
    %3084 = vmatprep.subr.mxu0 0.0
    %3085 = vmatpush1.msra.mxu0 0.0
    %3086 = vmatprep.subr.mxu0 0.0
    %3087 = vmatpush1.msra.mxu0 0.0
    %3088 = vmatprep.subr.mxu0 0.0
    %3089 = vmatpush1.msra.mxu0 0.0
    %3090 = vmatprep.subr.mxu0 0.0
    %3091 = vmatpush1.msra.mxu0 0.0
    %3092 = vmatprep.subr.mxu0 0.0
    %3093 = vmatpush1.msra.mxu0 0.0
    %3094 = vmatprep.subr.mxu0 0.0
    %3095 = vmatpush1.msra.mxu0 0.0
    %3096 = vmatprep.subr.mxu0 0.0
    %3097 = vmatpush1.msra.mxu0 0.0
    %3098 = vmatprep.subr.mxu0 0.0
    %3099 = vmatpush1.msra.mxu0 0.0
    %3100 = vmatprep.subr.mxu0 0.0
    %3101 = vmatpush1.msra.mxu0 0.0
    %3102 = vmatprep.subr.mxu0 0.0
    %3103 = vmatpush1.msra.mxu0 0.0
    %3104 = vmatprep.subr.mxu0 0.0
    %3105 = vmatpush1.msra.mxu0 0.0
    %3106 = vmatprep.subr.mxu0 0.0
    %3107 = vmatpush1.msra.mxu0 0.0
    %3108 = vmatprep.subr.mxu0 0.0
    %3109 = vmatpush1.msra.mxu0 0.0
    %3110 = vmatprep.subr.mxu0 0.0
    %3111 = vmatpush1.msra.mxu0 0.0
    %3112 = vmatprep.subr.mxu0 0.0
    %3113 = vmatpush1.msra.mxu0 0.0
    %3114 = vmatprep.subr.mxu0 0.0
    %3115 = vmatpush1.msra.mxu0 0.0
    %3116 = vmatprep.subr.mxu0 0.0
    %3117 = vmatpush1.msra.mxu0 0.0
    %3118 = vmatprep.subr.mxu0 0.0
    %3119 = vmatpush1.msra.mxu0 0.0
    %3120 = vmatprep.mubr.f32.mxu0 0.0
    %v3121 = vand.u32 %v2715, 4294901760
    %3122 = vmatmul.mubr.f32.gmra.mrb[0].mxu0 %v3121
    %v3123 = vpop.f32.mrb[0].mxu0
    %v3124 = vadd.f32 %v3041, %v3123
    %v3125 = vpop.f32.mrb[0].mxu0
    %3126 = vdwg.mxu0
    %3127 = vmatprep.subr.mxu0 0.0
    %v3128 = vand.u32 %v2710, 4294901760
    %3129 = vmatpush1.msra.mxu0 %v3128
    %3130 = vmatprep.subr.mxu0 0.0
    %v3131 = vand.u32 %v2711, 4294901760
    %3132 = vmatpush1.msra.mxu0 %v3131
    %3133 = vmatprep.subr.mxu0 0.0
    %v3134 = vand.u32 %v2712, 4294901760
    %3135 = vmatpush1.msra.mxu0 %v3134
    %3136 = vmatprep.subr.mxu0 0.0
    %v3137 = vand.u32 %v2713, 4294901760
    %3138 = vmatpush1.msra.mxu0 %v3137
    %3139 = vmatprep.subr.mxu0 0.0
    %3140 = vmatpush1.msra.mxu0 0.0
    %3141 = vmatprep.subr.mxu0 0.0
    %3142 = vmatpush1.msra.mxu0 0.0
    %3143 = vmatprep.subr.mxu0 0.0
    %3144 = vmatpush1.msra.mxu0 0.0
    %3145 = vmatprep.subr.mxu0 0.0
    %3146 = vmatpush1.msra.mxu0 0.0
    %3147 = vmatprep.subr.mxu0 0.0
    %3148 = vmatpush1.msra.mxu0 0.0
    %3149 = vmatprep.subr.mxu0 0.0
    %3150 = vmatpush1.msra.mxu0 0.0
    %3151 = vmatprep.subr.mxu0 0.0
    %3152 = vmatpush1.msra.mxu0 0.0
    %3153 = vmatprep.subr.mxu0 0.0
    %3154 = vmatpush1.msra.mxu0 0.0
    %3155 = vmatprep.subr.mxu0 0.0
    %3156 = vmatpush1.msra.mxu0 0.0
    %3157 = vmatprep.subr.mxu0 0.0
    %3158 = vmatpush1.msra.mxu0 0.0
    %3159 = vmatprep.subr.mxu0 0.0
    %3160 = vmatpush1.msra.mxu0 0.0
    %3161 = vmatprep.subr.mxu0 0.0
    %3162 = vmatpush1.msra.mxu0 0.0
    %3163 = vmatprep.subr.mxu0 0.0
    %3164 = vmatpush1.msra.mxu0 0.0
    %3165 = vmatprep.subr.mxu0 0.0
    %3166 = vmatpush1.msra.mxu0 0.0
    %3167 = vmatprep.subr.mxu0 0.0
    %3168 = vmatpush1.msra.mxu0 0.0
    %3169 = vmatprep.subr.mxu0 0.0
    %3170 = vmatpush1.msra.mxu0 0.0
    %3171 = vmatprep.subr.mxu0 0.0
    %3172 = vmatpush1.msra.mxu0 0.0
    %3173 = vmatprep.subr.mxu0 0.0
    %3174 = vmatpush1.msra.mxu0 0.0
    %3175 = vmatprep.subr.mxu0 0.0
    %3176 = vmatpush1.msra.mxu0 0.0
    %3177 = vmatprep.subr.mxu0 0.0
    %3178 = vmatpush1.msra.mxu0 0.0
    %3179 = vmatprep.subr.mxu0 0.0
    %3180 = vmatpush1.msra.mxu0 0.0
    %3181 = vmatprep.subr.mxu0 0.0
    %3182 = vmatpush1.msra.mxu0 0.0
    %3183 = vmatprep.subr.mxu0 0.0
    %3184 = vmatpush1.msra.mxu0 0.0
    %3185 = vmatprep.subr.mxu0 0.0
    %3186 = vmatpush1.msra.mxu0 0.0
    %3187 = vmatprep.subr.mxu0 0.0
    %3188 = vmatpush1.msra.mxu0 0.0
    %3189 = vmatprep.subr.mxu0 0.0
    %3190 = vmatpush1.msra.mxu0 0.0
    %3191 = vmatprep.subr.mxu0 0.0
    %3192 = vmatpush1.msra.mxu0 0.0
    %3193 = vmatprep.subr.mxu0 0.0
    %3194 = vmatpush1.msra.mxu0 0.0
    %3195 = vmatprep.mubr.f32.mxu0 0.0
    %v3196 = vand.u32 %v2715, 4294901760
    %3197 = vmatmul.mubr.f32.gmra.mrb[0].mxu0 %v3196
    %v3198 = vpop.f32.mrb[0].mxu0
    %v3199 = vadd.f32 %v3124, %v3198
    %v3200 = vpop.f32.mrb[0].mxu0
    %3201 = vdwg.mxu0
    %v3202 = vld [vmem:[#allocation10] sm:$0xff]
    %v3203 = vld [vmem:[#allocation10 + $0x8] sm:$0xff]
    %v3204 = vld [vmem:[#allocation10 + $0x10] sm:$0xff]
    %v3205 = vld [vmem:[#allocation10 + $0x18] sm:$0xff]
    %v3206 = vld [vmem:[#allocation2 + $0xd] ss:$0 sm:$0xff]
    %v3207 = vrot.slane %v2700, 1
    %3208 = vrot.lane.b32.xlu0 %v3207, 32
    %v3209 = vpop.permute.xlu0 %3208
    %v3210 = vsel %vm114, %v3209, 0
    %3212 = vmatprep.subr.mxu0 0.0
    %v3213 = vand.u32 %v3202, 4294901760
    %3214 = vmatpush1.msra.mxu0 %v3213
    %3215 = vmatprep.subr.mxu0 0.0
    %v3216 = vand.u32 %v3203, 4294901760
    %3217 = vmatpush1.msra.mxu0 %v3216
    %3218 = vmatprep.subr.mxu0 0.0
    %v3219 = vand.u32 %v3204, 4294901760
    %3220 = vmatpush1.msra.mxu0 %v3219
    %3221 = vmatprep.subr.mxu0 0.0
    %v3222 = vand.u32 %v3205, 4294901760
    %3223 = vmatpush1.msra.mxu0 %v3222
    %3224 = vmatprep.subr.mxu0 0.0
    %3225 = vmatpush1.msra.mxu0 0.0
    %3226 = vmatprep.subr.mxu0 0.0
    %3227 = vmatpush1.msra.mxu0 0.0
    %3228 = vmatprep.subr.mxu0 0.0
    %3229 = vmatpush1.msra.mxu0 0.0
    %3230 = vmatprep.subr.mxu0 0.0
    %3231 = vmatpush1.msra.mxu0 0.0
    %3232 = vmatprep.subr.mxu0 0.0
    %3233 = vmatpush1.msra.mxu0 0.0
    %3234 = vmatprep.subr.mxu0 0.0
    %3235 = vmatpush1.msra.mxu0 0.0
    %3236 = vmatprep.subr.mxu0 0.0
    %3237 = vmatpush1.msra.mxu0 0.0
    %3238 = vmatprep.subr.mxu0 0.0
    %3239 = vmatpush1.msra.mxu0 0.0
    %3240 = vmatprep.subr.mxu0 0.0
    %3241 = vmatpush1.msra.mxu0 0.0
    %3242 = vmatprep.subr.mxu0 0.0
    %3243 = vmatpush1.msra.mxu0 0.0
    %3244 = vmatprep.subr.mxu0 0.0
    %3245 = vmatpush1.msra.mxu0 0.0
    %3246 = vmatprep.subr.mxu0 0.0
    %3247 = vmatpush1.msra.mxu0 0.0
    %3248 = vmatprep.subr.mxu0 0.0
    %3249 = vmatpush1.msra.mxu0 0.0
    %3250 = vmatprep.subr.mxu0 0.0
    %3251 = vmatpush1.msra.mxu0 0.0
    %3252 = vmatprep.subr.mxu0 0.0
    %3253 = vmatpush1.msra.mxu0 0.0
    %3254 = vmatprep.subr.mxu0 0.0
    %3255 = vmatpush1.msra.mxu0 0.0
    %3256 = vmatprep.subr.mxu0 0.0
    %3257 = vmatpush1.msra.mxu0 0.0
    %3258 = vmatprep.subr.mxu0 0.0
    %3259 = vmatpush1.msra.mxu0 0.0
    %3260 = vmatprep.subr.mxu0 0.0
    %3261 = vmatpush1.msra.mxu0 0.0
    %3262 = vmatprep.subr.mxu0 0.0
    %3263 = vmatpush1.msra.mxu0 0.0
    %3264 = vmatprep.subr.mxu0 0.0
    %3265 = vmatpush1.msra.mxu0 0.0
    %3266 = vmatprep.subr.mxu0 0.0
    %3267 = vmatpush1.msra.mxu0 0.0
    %3268 = vmatprep.subr.mxu0 0.0
    %3269 = vmatpush1.msra.mxu0 0.0
    %3270 = vmatprep.subr.mxu0 0.0
    %3271 = vmatpush1.msra.mxu0 0.0
    %3272 = vmatprep.subr.mxu0 0.0
    %3273 = vmatpush1.msra.mxu0 0.0
    %3274 = vmatprep.subr.mxu0 0.0
    %3275 = vmatpush1.msra.mxu0 0.0
    %3276 = vmatprep.subr.mxu0 0.0
    %3277 = vmatpush1.msra.mxu0 0.0
    %3278 = vmatprep.subr.mxu0 0.0
    %3279 = vmatpush1.msra.mxu0 0.0
    %3280 = vmatprep.mubr.f32.mxu0 0.0
    %v3281 = vand.u32 %v3210, 4294901760
    %v3282 = vsub.f32 %v3210, %v3281
    %v3283 = vand.u32 %v3282, 4294901760
    %v3284 = vsub.f32 %v3282, %v3283
    %v3285 = vand.u32 %v3284, 4294901760
    %3286 = vmatmul.mubr.f32.gmra.mrb[0].mxu0 %v3285
    %v3287 = vpop.f32.mrb[0].mxu0
    %v3288 = vadd.f32 %v3206, %v3287
    %v3289 = vpop.f32.mrb[0].mxu0
    %3290 = vdwg.mxu0
    %3291 = vmatprep.subr.mxu0 0.0
    %v3292 = vand.u32 %v3202, 4294901760
    %v3293 = vsub.f32 %v3202, %v3292
    %v3294 = vand.u32 %v3293, 4294901760
    %v3295 = vsub.f32 %v3293, %v3294
    %v3296 = vand.u32 %v3295, 4294901760
    %3297 = vmatpush1.msra.mxu0 %v3296
    %3298 = vmatprep.subr.mxu0 0.0
    %v3299 = vand.u32 %v3203, 4294901760
    %v3300 = vsub.f32 %v3203, %v3299
    %v3301 = vand.u32 %v3300, 4294901760
    %v3302 = vsub.f32 %v3300, %v3301
    %v3303 = vand.u32 %v3302, 4294901760
    %3304 = vmatpush1.msra.mxu0 %v3303
    %3305 = vmatprep.subr.mxu0 0.0
    %v3306 = vand.u32 %v3204, 4294901760
    %v3307 = vsub.f32 %v3204, %v3306
    %v3308 = vand.u32 %v3307, 4294901760
    %v3309 = vsub.f32 %v3307, %v3308
    %v3310 = vand.u32 %v3309, 4294901760
    %3311 = vmatpush1.msra.mxu0 %v3310
    %3312 = vmatprep.subr.mxu0 0.0
    %v3313 = vand.u32 %v3205, 4294901760
    %v3314 = vsub.f32 %v3205, %v3313
    %v3315 = vand.u32 %v3314, 4294901760
    %v3316 = vsub.f32 %v3314, %v3315
    %v3317 = vand.u32 %v3316, 4294901760
    %3318 = vmatpush1.msra.mxu0 %v3317
    %3319 = vmatprep.subr.mxu0 0.0
    %3320 = vmatpush1.msra.mxu0 0.0
    %3321 = vmatprep.subr.mxu0 0.0
    %3322 = vmatpush1.msra.mxu0 0.0
    %3323 = vmatprep.subr.mxu0 0.0
    %3324 = vmatpush1.msra.mxu0 0.0
    %3325 = vmatprep.subr.mxu0 0.0
    %3326 = vmatpush1.msra.mxu0 0.0
    %3327 = vmatprep.subr.mxu0 0.0
    %3328 = vmatpush1.msra.mxu0 0.0
    %3329 = vmatprep.subr.mxu0 0.0
    %3330 = vmatpush1.msra.mxu0 0.0
    %3331 = vmatprep.subr.mxu0 0.0
    %3332 = vmatpush1.msra.mxu0 0.0
    %3333 = vmatprep.subr.mxu0 0.0
    %3334 = vmatpush1.msra.mxu0 0.0
    %3335 = vmatprep.subr.mxu0 0.0
    %3336 = vmatpush1.msra.mxu0 0.0
    %3337 = vmatprep.subr.mxu0 0.0
    %3338 = vmatpush1.msra.mxu0 0.0
    %3339 = vmatprep.subr.mxu0 0.0
    %3340 = vmatpush1.msra.mxu0 0.0
    %3341 = vmatprep.subr.mxu0 0.0
    %3342 = vmatpush1.msra.mxu0 0.0
    %3343 = vmatprep.subr.mxu0 0.0
    %3344 = vmatpush1.msra.mxu0 0.0
    %3345 = vmatprep.subr.mxu0 0.0
    %3346 = vmatpush1.msra.mxu0 0.0
    %3347 = vmatprep.subr.mxu0 0.0
    %3348 = vmatpush1.msra.mxu0 0.0
    %3349 = vmatprep.subr.mxu0 0.0
    %3350 = vmatpush1.msra.mxu0 0.0
    %3351 = vmatprep.subr.mxu0 0.0
    %3352 = vmatpush1.msra.mxu0 0.0
    %3353 = vmatprep.subr.mxu0 0.0
    %3354 = vmatpush1.msra.mxu0 0.0
    %3355 = vmatprep.subr.mxu0 0.0
    %3356 = vmatpush1.msra.mxu0 0.0
    %3357 = vmatprep.subr.mxu0 0.0
    %3358 = vmatpush1.msra.mxu0 0.0
    %3359 = vmatprep.subr.mxu0 0.0
    %3360 = vmatpush1.msra.mxu0 0.0
    %3361 = vmatprep.subr.mxu0 0.0
    %3362 = vmatpush1.msra.mxu0 0.0
    %3363 = vmatprep.subr.mxu0 0.0
    %3364 = vmatpush1.msra.mxu0 0.0
    %3365 = vmatprep.subr.mxu0 0.0
    %3366 = vmatpush1.msra.mxu0 0.0
    %3367 = vmatprep.subr.mxu0 0.0
    %3368 = vmatpush1.msra.mxu0 0.0
    %3369 = vmatprep.subr.mxu0 0.0
    %3370 = vmatpush1.msra.mxu0 0.0
    %3371 = vmatprep.subr.mxu0 0.0
    %3372 = vmatpush1.msra.mxu0 0.0
    %3373 = vmatprep.subr.mxu0 0.0
    %3374 = vmatpush1.msra.mxu0 0.0
    %3375 = vmatprep.mubr.f32.mxu0 0.0
    %v3376 = vand.u32 %v3210, 4294901760
    %3377 = vmatmul.mubr.f32.gmra.mrb[0].mxu0 %v3376
    %v3378 = vpop.f32.mrb[0].mxu0
    %v3379 = vadd.f32 %v3288, %v3378
    %v3380 = vpop.f32.mrb[0].mxu0
    %3381 = vdwg.mxu0
    %3382 = vmatprep.subr.mxu0 0.0
    %v3383 = vand.u32 %v3202, 4294901760
    %v3384 = vsub.f32 %v3202, %v3383
    %3385 = vmatpush1.msra.mxu0 %v3384
    %3386 = vmatprep.subr.mxu0 0.0
    %v3387 = vand.u32 %v3203, 4294901760
    %v3388 = vsub.f32 %v3203, %v3387
    %3389 = vmatpush1.msra.mxu0 %v3388
    %3390 = vmatprep.subr.mxu0 0.0
    %v3391 = vand.u32 %v3204, 4294901760
    %v3392 = vsub.f32 %v3204, %v3391
    %3393 = vmatpush1.msra.mxu0 %v3392
    %3394 = vmatprep.subr.mxu0 0.0
    %v3395 = vand.u32 %v3205, 4294901760
    %v3396 = vsub.f32 %v3205, %v3395
    %3397 = vmatpush1.msra.mxu0 %v3396
    %3398 = vmatprep.subr.mxu0 0.0
    %3399 = vmatpush1.msra.mxu0 0.0
    %3400 = vmatprep.subr.mxu0 0.0
    %3401 = vmatpush1.msra.mxu0 0.0
    %3402 = vmatprep.subr.mxu0 0.0
    %3403 = vmatpush1.msra.mxu0 0.0
    %3404 = vmatprep.subr.mxu0 0.0
    %3405 = vmatpush1.msra.mxu0 0.0
    %3406 = vmatprep.subr.mxu0 0.0
    %3407 = vmatpush1.msra.mxu0 0.0
    %3408 = vmatprep.subr.mxu0 0.0
    %3409 = vmatpush1.msra.mxu0 0.0
    %3410 = vmatprep.subr.mxu0 0.0
    %3411 = vmatpush1.msra.mxu0 0.0
    %3412 = vmatprep.subr.mxu0 0.0
    %3413 = vmatpush1.msra.mxu0 0.0
    %3414 = vmatprep.subr.mxu0 0.0
    %3415 = vmatpush1.msra.mxu0 0.0
    %3416 = vmatprep.subr.mxu0 0.0
    %3417 = vmatpush1.msra.mxu0 0.0
    %3418 = vmatprep.subr.mxu0 0.0
    %3419 = vmatpush1.msra.mxu0 0.0
    %3420 = vmatprep.subr.mxu0 0.0
    %3421 = vmatpush1.msra.mxu0 0.0
    %3422 = vmatprep.subr.mxu0 0.0
    %3423 = vmatpush1.msra.mxu0 0.0
    %3424 = vmatprep.subr.mxu0 0.0
    %3425 = vmatpush1.msra.mxu0 0.0
    %3426 = vmatprep.subr.mxu0 0.0
    %3427 = vmatpush1.msra.mxu0 0.0
    %3428 = vmatprep.subr.mxu0 0.0
    %3429 = vmatpush1.msra.mxu0 0.0
    %3430 = vmatprep.subr.mxu0 0.0
    %3431 = vmatpush1.msra.mxu0 0.0
    %3432 = vmatprep.subr.mxu0 0.0
    %3433 = vmatpush1.msra.mxu0 0.0
    %3434 = vmatprep.subr.mxu0 0.0
    %3435 = vmatpush1.msra.mxu0 0.0
    %3436 = vmatprep.subr.mxu0 0.0
    %3437 = vmatpush1.msra.mxu0 0.0
    %3438 = vmatprep.subr.mxu0 0.0
    %3439 = vmatpush1.msra.mxu0 0.0
    %3440 = vmatprep.subr.mxu0 0.0
    %3441 = vmatpush1.msra.mxu0 0.0
    %3442 = vmatprep.subr.mxu0 0.0
    %3443 = vmatpush1.msra.mxu0 0.0
    %3444 = vmatprep.subr.mxu0 0.0
    %3445 = vmatpush1.msra.mxu0 0.0
    %3446 = vmatprep.subr.mxu0 0.0
    %3447 = vmatpush1.msra.mxu0 0.0
    %3448 = vmatprep.subr.mxu0 0.0
    %3449 = vmatpush1.msra.mxu0 0.0
    %3450 = vmatprep.subr.mxu0 0.0
    %3451 = vmatpush1.msra.mxu0 0.0
    %3452 = vmatprep.subr.mxu0 0.0
    %3453 = vmatpush1.msra.mxu0 0.0
    %3454 = vmatprep.mubr.f32.mxu0 0.0
    %v3455 = vand.u32 %v3210, 4294901760
    %v3456 = vsub.f32 %v3210, %v3455
    %3457 = vmatmul.mubr.f32.gmra.mrb[0].mxu0 %v3456
    %v3458 = vpop.f32.mrb[0].mxu0
    %v3459 = vadd.f32 %v3379, %v3458
    %v3460 = vpop.f32.mrb[0].mxu0
    %3461 = vdwg.mxu0
    %3462 = vmatprep.subr.mxu0 0.0
    %v3463 = vand.u32 %v3202, 4294901760
    %3464 = vmatpush1.msra.mxu0 %v3463
    %3465 = vmatprep.subr.mxu0 0.0
    %v3466 = vand.u32 %v3203, 4294901760
    %3467 = vmatpush1.msra.mxu0 %v3466
    %3468 = vmatprep.subr.mxu0 0.0
    %v3469 = vand.u32 %v3204, 4294901760
    %3470 = vmatpush1.msra.mxu0 %v3469
    %3471 = vmatprep.subr.mxu0 0.0
    %v3472 = vand.u32 %v3205, 4294901760
    %3473 = vmatpush1.msra.mxu0 %v3472
    %3474 = vmatprep.subr.mxu0 0.0
    %3475 = vmatpush1.msra.mxu0 0.0
    %3476 = vmatprep.subr.mxu0 0.0
    %3477 = vmatpush1.msra.mxu0 0.0
    %3478 = vmatprep.subr.mxu0 0.0
    %3479 = vmatpush1.msra.mxu0 0.0
    %3480 = vmatprep.subr.mxu0 0.0
    %3481 = vmatpush1.msra.mxu0 0.0
    %3482 = vmatprep.subr.mxu0 0.0
    %3483 = vmatpush1.msra.mxu0 0.0
    %3484 = vmatprep.subr.mxu0 0.0
    %3485 = vmatpush1.msra.mxu0 0.0
    %3486 = vmatprep.subr.mxu0 0.0
    %3487 = vmatpush1.msra.mxu0 0.0
    %3488 = vmatprep.subr.mxu0 0.0
    %3489 = vmatpush1.msra.mxu0 0.0
    %3490 = vmatprep.subr.mxu0 0.0
    %3491 = vmatpush1.msra.mxu0 0.0
    %3492 = vmatprep.subr.mxu0 0.0
    %3493 = vmatpush1.msra.mxu0 0.0
    %3494 = vmatprep.subr.mxu0 0.0
    %3495 = vmatpush1.msra.mxu0 0.0
    %3496 = vmatprep.subr.mxu0 0.0
    %3497 = vmatpush1.msra.mxu0 0.0
    %3498 = vmatprep.subr.mxu0 0.0
    %3499 = vmatpush1.msra.mxu0 0.0
    %3500 = vmatprep.subr.mxu0 0.0
    %3501 = vmatpush1.msra.mxu0 0.0
    %3502 = vmatprep.subr.mxu0 0.0
    %3503 = vmatpush1.msra.mxu0 0.0
    %3504 = vmatprep.subr.mxu0 0.0
    %3505 = vmatpush1.msra.mxu0 0.0
    %3506 = vmatprep.subr.mxu0 0.0
    %3507 = vmatpush1.msra.mxu0 0.0
    %3508 = vmatprep.subr.mxu0 0.0
    %3509 = vmatpush1.msra.mxu0 0.0
    %3510 = vmatprep.subr.mxu0 0.0
    %3511 = vmatpush1.msra.mxu0 0.0
    %3512 = vmatprep.subr.mxu0 0.0
    %3513 = vmatpush1.msra.mxu0 0.0
    %3514 = vmatprep.subr.mxu0 0.0
    %3515 = vmatpush1.msra.mxu0 0.0
    %3516 = vmatprep.subr.mxu0 0.0
    %3517 = vmatpush1.msra.mxu0 0.0
    %3518 = vmatprep.subr.mxu0 0.0
    %3519 = vmatpush1.msra.mxu0 0.0
    %3520 = vmatprep.subr.mxu0 0.0
    %3521 = vmatpush1.msra.mxu0 0.0
    %3522 = vmatprep.subr.mxu0 0.0
    %3523 = vmatpush1.msra.mxu0 0.0
    %3524 = vmatprep.subr.mxu0 0.0
    %3525 = vmatpush1.msra.mxu0 0.0
    %3526 = vmatprep.subr.mxu0 0.0
    %3527 = vmatpush1.msra.mxu0 0.0
    %3528 = vmatprep.subr.mxu0 0.0
    %3529 = vmatpush1.msra.mxu0 0.0
    %3530 = vmatprep.mubr.f32.mxu0 0.0
    %v3531 = vand.u32 %v3210, 4294901760
    %v3532 = vsub.f32 %v3210, %v3531
    %v3533 = vand.u32 %v3532, 4294901760
    %3534 = vmatmul.mubr.f32.gmra.mrb[0].mxu0 %v3533
    %v3535 = vpop.f32.mrb[0].mxu0
    %v3536 = vadd.f32 %v3459, %v3535
    %v3537 = vpop.f32.mrb[0].mxu0
    %3538 = vdwg.mxu0
    %3539 = vmatprep.subr.mxu0 0.0
    %v3540 = vand.u32 %v3202, 4294901760
    %v3541 = vsub.f32 %v3202, %v3540
    %v3542 = vand.u32 %v3541, 4294901760
    %3543 = vmatpush1.msra.mxu0 %v3542
    %3544 = vmatprep.subr.mxu0 0.0
    %v3545 = vand.u32 %v3203, 4294901760
    %v3546 = vsub.f32 %v3203, %v3545
    %v3547 = vand.u32 %v3546, 4294901760
    %3548 = vmatpush1.msra.mxu0 %v3547
    %3549 = vmatprep.subr.mxu0 0.0
    %v3550 = vand.u32 %v3204, 4294901760
    %v3551 = vsub.f32 %v3204, %v3550
    %v3552 = vand.u32 %v3551, 4294901760
    %3553 = vmatpush1.msra.mxu0 %v3552
    %3554 = vmatprep.subr.mxu0 0.0
    %v3555 = vand.u32 %v3205, 4294901760
    %v3556 = vsub.f32 %v3205, %v3555
    %v3557 = vand.u32 %v3556, 4294901760
    %3558 = vmatpush1.msra.mxu0 %v3557
    %3559 = vmatprep.subr.mxu0 0.0
    %3560 = vmatpush1.msra.mxu0 0.0
    %3561 = vmatprep.subr.mxu0 0.0
    %3562 = vmatpush1.msra.mxu0 0.0
    %3563 = vmatprep.subr.mxu0 0.0
    %3564 = vmatpush1.msra.mxu0 0.0
    %3565 = vmatprep.subr.mxu0 0.0
    %3566 = vmatpush1.msra.mxu0 0.0
    %3567 = vmatprep.subr.mxu0 0.0
    %3568 = vmatpush1.msra.mxu0 0.0
    %3569 = vmatprep.subr.mxu0 0.0
    %3570 = vmatpush1.msra.mxu0 0.0
    %3571 = vmatprep.subr.mxu0 0.0
    %3572 = vmatpush1.msra.mxu0 0.0
    %3573 = vmatprep.subr.mxu0 0.0
    %3574 = vmatpush1.msra.mxu0 0.0
    %3575 = vmatprep.subr.mxu0 0.0
    %3576 = vmatpush1.msra.mxu0 0.0
    %3577 = vmatprep.subr.mxu0 0.0
    %3578 = vmatpush1.msra.mxu0 0.0
    %3579 = vmatprep.subr.mxu0 0.0
    %3580 = vmatpush1.msra.mxu0 0.0
    %3581 = vmatprep.subr.mxu0 0.0
    %3582 = vmatpush1.msra.mxu0 0.0
    %3583 = vmatprep.subr.mxu0 0.0
    %3584 = vmatpush1.msra.mxu0 0.0
    %3585 = vmatprep.subr.mxu0 0.0
    %3586 = vmatpush1.msra.mxu0 0.0
    %3587 = vmatprep.subr.mxu0 0.0
    %3588 = vmatpush1.msra.mxu0 0.0
    %3589 = vmatprep.subr.mxu0 0.0
    %3590 = vmatpush1.msra.mxu0 0.0
    %3591 = vmatprep.subr.mxu0 0.0
    %3592 = vmatpush1.msra.mxu0 0.0
    %3593 = vmatprep.subr.mxu0 0.0
    %3594 = vmatpush1.msra.mxu0 0.0
    %3595 = vmatprep.subr.mxu0 0.0
    %3596 = vmatpush1.msra.mxu0 0.0
    %3597 = vmatprep.subr.mxu0 0.0
    %3598 = vmatpush1.msra.mxu0 0.0
    %3599 = vmatprep.subr.mxu0 0.0
    %3600 = vmatpush1.msra.mxu0 0.0
    %3601 = vmatprep.subr.mxu0 0.0
    %3602 = vmatpush1.msra.mxu0 0.0
    %3603 = vmatprep.subr.mxu0 0.0
    %3604 = vmatpush1.msra.mxu0 0.0
    %3605 = vmatprep.subr.mxu0 0.0
    %3606 = vmatpush1.msra.mxu0 0.0
    %3607 = vmatprep.subr.mxu0 0.0
    %3608 = vmatpush1.msra.mxu0 0.0
    %3609 = vmatprep.subr.mxu0 0.0
    %3610 = vmatpush1.msra.mxu0 0.0
    %3611 = vmatprep.subr.mxu0 0.0
    %3612 = vmatpush1.msra.mxu0 0.0
    %3613 = vmatprep.subr.mxu0 0.0
    %3614 = vmatpush1.msra.mxu0 0.0
    %3615 = vmatprep.mubr.f32.mxu0 0.0
    %v3616 = vand.u32 %v3210, 4294901760
    %3617 = vmatmul.mubr.f32.gmra.mrb[0].mxu0 %v3616
    %v3618 = vpop.f32.mrb[0].mxu0
    %v3619 = vadd.f32 %v3536, %v3618
    %v3620 = vpop.f32.mrb[0].mxu0
    %3621 = vdwg.mxu0
    %3622 = vmatprep.subr.mxu0 0.0
    %v3623 = vand.u32 %v3202, 4294901760
    %3624 = vmatpush1.msra.mxu0 %v3623
    %3625 = vmatprep.subr.mxu0 0.0
    %v3626 = vand.u32 %v3203, 4294901760
    %3627 = vmatpush1.msra.mxu0 %v3626
    %3628 = vmatprep.subr.mxu0 0.0
    %v3629 = vand.u32 %v3204, 4294901760
    %3630 = vmatpush1.msra.mxu0 %v3629
    %3631 = vmatprep.subr.mxu0 0.0
    %v3632 = vand.u32 %v3205, 4294901760
    %3633 = vmatpush1.msra.mxu0 %v3632
    %3634 = vmatprep.subr.mxu0 0.0
    %3635 = vmatpush1.msra.mxu0 0.0
    %3636 = vmatprep.subr.mxu0 0.0
    %3637 = vmatpush1.msra.mxu0 0.0
    %3638 = vmatprep.subr.mxu0 0.0
    %3639 = vmatpush1.msra.mxu0 0.0
    %3640 = vmatprep.subr.mxu0 0.0
    %3641 = vmatpush1.msra.mxu0 0.0
    %3642 = vmatprep.subr.mxu0 0.0
    %3643 = vmatpush1.msra.mxu0 0.0
    %3644 = vmatprep.subr.mxu0 0.0
    %3645 = vmatpush1.msra.mxu0 0.0
    %3646 = vmatprep.subr.mxu0 0.0
    %3647 = vmatpush1.msra.mxu0 0.0
    %3648 = vmatprep.subr.mxu0 0.0
    %3649 = vmatpush1.msra.mxu0 0.0
    %3650 = vmatprep.subr.mxu0 0.0
    %3651 = vmatpush1.msra.mxu0 0.0
    %3652 = vmatprep.subr.mxu0 0.0
    %3653 = vmatpush1.msra.mxu0 0.0
    %3654 = vmatprep.subr.mxu0 0.0
    %3655 = vmatpush1.msra.mxu0 0.0
    %3656 = vmatprep.subr.mxu0 0.0
    %3657 = vmatpush1.msra.mxu0 0.0
    %3658 = vmatprep.subr.mxu0 0.0
    %3659 = vmatpush1.msra.mxu0 0.0
    %3660 = vmatprep.subr.mxu0 0.0
    %3661 = vmatpush1.msra.mxu0 0.0
    %3662 = vmatprep.subr.mxu0 0.0
    %3663 = vmatpush1.msra.mxu0 0.0
    %3664 = vmatprep.subr.mxu0 0.0
    %3665 = vmatpush1.msra.mxu0 0.0
    %3666 = vmatprep.subr.mxu0 0.0
    %3667 = vmatpush1.msra.mxu0 0.0
    %3668 = vmatprep.subr.mxu0 0.0
    %3669 = vmatpush1.msra.mxu0 0.0
    %3670 = vmatprep.subr.mxu0 0.0
    %3671 = vmatpush1.msra.mxu0 0.0
    %3672 = vmatprep.subr.mxu0 0.0
    %3673 = vmatpush1.msra.mxu0 0.0
    %3674 = vmatprep.subr.mxu0 0.0
    %3675 = vmatpush1.msra.mxu0 0.0
    %3676 = vmatprep.subr.mxu0 0.0
    %3677 = vmatpush1.msra.mxu0 0.0
    %3678 = vmatprep.subr.mxu0 0.0
    %3679 = vmatpush1.msra.mxu0 0.0
    %3680 = vmatprep.subr.mxu0 0.0
    %3681 = vmatpush1.msra.mxu0 0.0
    %3682 = vmatprep.subr.mxu0 0.0
    %3683 = vmatpush1.msra.mxu0 0.0
    %3684 = vmatprep.subr.mxu0 0.0
    %3685 = vmatpush1.msra.mxu0 0.0
    %3686 = vmatprep.subr.mxu0 0.0
    %3687 = vmatpush1.msra.mxu0 0.0
    %3688 = vmatprep.subr.mxu0 0.0
    %3689 = vmatpush1.msra.mxu0 0.0
    %3690 = vmatprep.mubr.f32.mxu0 0.0
    %v3691 = vand.u32 %v3210, 4294901760
    %3692 = vmatmul.mubr.f32.gmra.mrb[0].mxu0 %v3691
    %v3693 = vpop.f32.mrb[0].mxu0
    %v3694 = vadd.f32 %v3619, %v3693
    %v3695 = vpop.f32.mrb[0].mxu0
    %3696 = vdwg.mxu0
    %v3698 = vrot.slane %v3694, 7
    %v3700 = vsel %vm1649, %v3199, %v3698
    %v3701 = vxor.u32 %v3700, 2147483648
    %v3702 = vmul.f32 %v3701, 1.442695
    %v3703 = vpow.pop %v3702
    %v3704 = vadd.f32 %v3703, 1.0
    %v3705 = vrcp.pop %v3704
    %v3706 = vmul.f32 1.0, %v3705
    %v3707 = vtanh.pop %v3700
    %v3708 = vmul.f32 %v3706, %v2694
    %3710 = vrot.lane.b32.xlu0 %v3707, 64
    %v3711 = vpop.permute.xlu0 %3710
    %v3713 = vmul.f32 %v3706, %v3711
    %3715 = vrot.lane.b32.xlu0 %v3713, 32
    %v3716 = vpop.permute.xlu0 %3715
    %v3718 = vadd.f32 %v3708, %v3716
    %v3719 = vtanh.pop %v3718
    %3721 = vrot.lane.b32.xlu0 %v3719, 64
    %v3722 = vpop.permute.xlu0 %3721
    %v3724 = vmul.f32 %v3706, %v3722
    %3726 = vrot.lane.b32.xlu0 %v3724, 32
    %v3727 = vpop.permute.xlu0 %3726
    %3729 = vst.msk [vmem:[#allocation3 + $0x2] sm:$0x1] %vm1679, %v3727
    %3730 = vrot.lane.b32.xlu0 %v3724, 64
    %v3731 = vpop.permute.xlu0 %3730
    %3733 = vst.msk [vmem:[#allocation3 + $0x4] sm:$0x2] %vm1684, %v3731
    %v3734 = vld [vmem:[#allocation9] sm:$0xff]
    %v3735 = vld [vmem:[#allocation9 + $0x8] sm:$0xff]
    %v3736 = vld [vmem:[#allocation9 + $0x10] sm:$0xff]
    %v3737 = vld [vmem:[#allocation9 + $0x18] sm:$0xff]
    %v3738 = vld [vmem:[#allocation2 + $0x3] ss:$0 sm:$0xff]
    %v3739 = vsel %vm114, %v3727, 0
    %3741 = vmatprep.subr.mxu0 0.0
    %v3742 = vand.u32 %v3734, 4294901760
    %3743 = vmatpush1.msra.mxu0 %v3742
    %3744 = vmatprep.subr.mxu0 0.0
    %v3745 = vand.u32 %v3735, 4294901760
    %3746 = vmatpush1.msra.mxu0 %v3745
    %3747 = vmatprep.subr.mxu0 0.0
    %v3748 = vand.u32 %v3736, 4294901760
    %3749 = vmatpush1.msra.mxu0 %v3748
    %3750 = vmatprep.subr.mxu0 0.0
    %v3751 = vand.u32 %v3737, 4294901760
    %3752 = vmatpush1.msra.mxu0 %v3751
    %3753 = vmatprep.subr.mxu0 0.0
    %3754 = vmatpush1.msra.mxu0 0.0
    %3755 = vmatprep.subr.mxu0 0.0
    %3756 = vmatpush1.msra.mxu0 0.0
    %3757 = vmatprep.subr.mxu0 0.0
    %3758 = vmatpush1.msra.mxu0 0.0
    %3759 = vmatprep.subr.mxu0 0.0
    %3760 = vmatpush1.msra.mxu0 0.0
    %3761 = vmatprep.subr.mxu0 0.0
    %3762 = vmatpush1.msra.mxu0 0.0
    %3763 = vmatprep.subr.mxu0 0.0
    %3764 = vmatpush1.msra.mxu0 0.0
    %3765 = vmatprep.subr.mxu0 0.0
    %3766 = vmatpush1.msra.mxu0 0.0
    %3767 = vmatprep.subr.mxu0 0.0
    %3768 = vmatpush1.msra.mxu0 0.0
    %3769 = vmatprep.subr.mxu0 0.0
    %3770 = vmatpush1.msra.mxu0 0.0
    %3771 = vmatprep.subr.mxu0 0.0
    %3772 = vmatpush1.msra.mxu0 0.0
    %3773 = vmatprep.subr.mxu0 0.0
    %3774 = vmatpush1.msra.mxu0 0.0
    %3775 = vmatprep.subr.mxu0 0.0
    %3776 = vmatpush1.msra.mxu0 0.0
    %3777 = vmatprep.subr.mxu0 0.0
    %3778 = vmatpush1.msra.mxu0 0.0
    %3779 = vmatprep.subr.mxu0 0.0
    %3780 = vmatpush1.msra.mxu0 0.0
    %3781 = vmatprep.subr.mxu0 0.0
    %3782 = vmatpush1.msra.mxu0 0.0
    %3783 = vmatprep.subr.mxu0 0.0
    %3784 = vmatpush1.msra.mxu0 0.0
    %3785 = vmatprep.subr.mxu0 0.0
    %3786 = vmatpush1.msra.mxu0 0.0
    %3787 = vmatprep.subr.mxu0 0.0
    %3788 = vmatpush1.msra.mxu0 0.0
    %3789 = vmatprep.subr.mxu0 0.0
    %3790 = vmatpush1.msra.mxu0 0.0
    %3791 = vmatprep.subr.mxu0 0.0
    %3792 = vmatpush1.msra.mxu0 0.0
    %3793 = vmatprep.subr.mxu0 0.0
    %3794 = vmatpush1.msra.mxu0 0.0
    %3795 = vmatprep.subr.mxu0 0.0
    %3796 = vmatpush1.msra.mxu0 0.0
    %3797 = vmatprep.subr.mxu0 0.0
    %3798 = vmatpush1.msra.mxu0 0.0
    %3799 = vmatprep.subr.mxu0 0.0
    %3800 = vmatpush1.msra.mxu0 0.0
    %3801 = vmatprep.subr.mxu0 0.0
    %3802 = vmatpush1.msra.mxu0 0.0
    %3803 = vmatprep.subr.mxu0 0.0
    %3804 = vmatpush1.msra.mxu0 0.0
    %3805 = vmatprep.subr.mxu0 0.0
    %3806 = vmatpush1.msra.mxu0 0.0
    %3807 = vmatprep.subr.mxu0 0.0
    %3808 = vmatpush1.msra.mxu0 0.0
    %3809 = vmatprep.mubr.f32.mxu0 0.0
    %v3810 = vand.u32 %v3739, 4294901760
    %v3811 = vsub.f32 %v3739, %v3810
    %v3812 = vand.u32 %v3811, 4294901760
    %v3813 = vsub.f32 %v3811, %v3812
    %v3814 = vand.u32 %v3813, 4294901760
    %3815 = vmatmul.mubr.f32.gmra.mrb[0].mxu0 %v3814
    %v3816 = vpop.f32.mrb[0].mxu0
    %v3817 = vadd.f32 %v3738, %v3816
    %v3818 = vpop.f32.mrb[0].mxu0
    %3819 = vdwg.mxu0
    %3820 = vmatprep.subr.mxu0 0.0
    %v3821 = vand.u32 %v3734, 4294901760
    %v3822 = vsub.f32 %v3734, %v3821
    %v3823 = vand.u32 %v3822, 4294901760
    %v3824 = vsub.f32 %v3822, %v3823
    %v3825 = vand.u32 %v3824, 4294901760
    %3826 = vmatpush1.msra.mxu0 %v3825
    %3827 = vmatprep.subr.mxu0 0.0
    %v3828 = vand.u32 %v3735, 4294901760
    %v3829 = vsub.f32 %v3735, %v3828
    %v3830 = vand.u32 %v3829, 4294901760
    %v3831 = vsub.f32 %v3829, %v3830
    %v3832 = vand.u32 %v3831, 4294901760
    %3833 = vmatpush1.msra.mxu0 %v3832
    %3834 = vmatprep.subr.mxu0 0.0
    %v3835 = vand.u32 %v3736, 4294901760
    %v3836 = vsub.f32 %v3736, %v3835
    %v3837 = vand.u32 %v3836, 4294901760
    %v3838 = vsub.f32 %v3836, %v3837
    %v3839 = vand.u32 %v3838, 4294901760
    %3840 = vmatpush1.msra.mxu0 %v3839
    %3841 = vmatprep.subr.mxu0 0.0
    %v3842 = vand.u32 %v3737, 4294901760
    %v3843 = vsub.f32 %v3737, %v3842
    %v3844 = vand.u32 %v3843, 4294901760
    %v3845 = vsub.f32 %v3843, %v3844
    %v3846 = vand.u32 %v3845, 4294901760
    %3847 = vmatpush1.msra.mxu0 %v3846
    %3848 = vmatprep.subr.mxu0 0.0
    %3849 = vmatpush1.msra.mxu0 0.0
    %3850 = vmatprep.subr.mxu0 0.0
    %3851 = vmatpush1.msra.mxu0 0.0
    %3852 = vmatprep.subr.mxu0 0.0
    %3853 = vmatpush1.msra.mxu0 0.0
    %3854 = vmatprep.subr.mxu0 0.0
    %3855 = vmatpush1.msra.mxu0 0.0
    %3856 = vmatprep.subr.mxu0 0.0
    %3857 = vmatpush1.msra.mxu0 0.0
    %3858 = vmatprep.subr.mxu0 0.0
    %3859 = vmatpush1.msra.mxu0 0.0
    %3860 = vmatprep.subr.mxu0 0.0
    %3861 = vmatpush1.msra.mxu0 0.0
    %3862 = vmatprep.subr.mxu0 0.0
    %3863 = vmatpush1.msra.mxu0 0.0
    %3864 = vmatprep.subr.mxu0 0.0
    %3865 = vmatpush1.msra.mxu0 0.0
    %3866 = vmatprep.subr.mxu0 0.0
    %3867 = vmatpush1.msra.mxu0 0.0
    %3868 = vmatprep.subr.mxu0 0.0
    %3869 = vmatpush1.msra.mxu0 0.0
    %3870 = vmatprep.subr.mxu0 0.0
    %3871 = vmatpush1.msra.mxu0 0.0
    %3872 = vmatprep.subr.mxu0 0.0
    %3873 = vmatpush1.msra.mxu0 0.0
    %3874 = vmatprep.subr.mxu0 0.0
    %3875 = vmatpush1.msra.mxu0 0.0
    %3876 = vmatprep.subr.mxu0 0.0
    %3877 = vmatpush1.msra.mxu0 0.0
    %3878 = vmatprep.subr.mxu0 0.0
    %3879 = vmatpush1.msra.mxu0 0.0
    %3880 = vmatprep.subr.mxu0 0.0
    %3881 = vmatpush1.msra.mxu0 0.0
    %3882 = vmatprep.subr.mxu0 0.0
    %3883 = vmatpush1.msra.mxu0 0.0
    %3884 = vmatprep.subr.mxu0 0.0
    %3885 = vmatpush1.msra.mxu0 0.0
    %3886 = vmatprep.subr.mxu0 0.0
    %3887 = vmatpush1.msra.mxu0 0.0
    %3888 = vmatprep.subr.mxu0 0.0
    %3889 = vmatpush1.msra.mxu0 0.0
    %3890 = vmatprep.subr.mxu0 0.0
    %3891 = vmatpush1.msra.mxu0 0.0
    %3892 = vmatprep.subr.mxu0 0.0
    %3893 = vmatpush1.msra.mxu0 0.0
    %3894 = vmatprep.subr.mxu0 0.0
    %3895 = vmatpush1.msra.mxu0 0.0
    %3896 = vmatprep.subr.mxu0 0.0
    %3897 = vmatpush1.msra.mxu0 0.0
    %3898 = vmatprep.subr.mxu0 0.0
    %3899 = vmatpush1.msra.mxu0 0.0
    %3900 = vmatprep.subr.mxu0 0.0
    %3901 = vmatpush1.msra.mxu0 0.0
    %3902 = vmatprep.subr.mxu0 0.0
    %3903 = vmatpush1.msra.mxu0 0.0
    %3904 = vmatprep.mubr.f32.mxu0 0.0
    %v3905 = vand.u32 %v3739, 4294901760
    %3906 = vmatmul.mubr.f32.gmra.mrb[0].mxu0 %v3905
    %v3907 = vpop.f32.mrb[0].mxu0
    %v3908 = vadd.f32 %v3817, %v3907
    %v3909 = vpop.f32.mrb[0].mxu0
    %3910 = vdwg.mxu0
    %3911 = vmatprep.subr.mxu0 0.0
    %v3912 = vand.u32 %v3734, 4294901760
    %v3913 = vsub.f32 %v3734, %v3912
    %3914 = vmatpush1.msra.mxu0 %v3913
    %3915 = vmatprep.subr.mxu0 0.0
    %v3916 = vand.u32 %v3735, 4294901760
    %v3917 = vsub.f32 %v3735, %v3916
    %3918 = vmatpush1.msra.mxu0 %v3917
    %3919 = vmatprep.subr.mxu0 0.0
    %v3920 = vand.u32 %v3736, 4294901760
    %v3921 = vsub.f32 %v3736, %v3920
    %3922 = vmatpush1.msra.mxu0 %v3921
    %3923 = vmatprep.subr.mxu0 0.0
    %v3924 = vand.u32 %v3737, 4294901760
    %v3925 = vsub.f32 %v3737, %v3924
    %3926 = vmatpush1.msra.mxu0 %v3925
    %3927 = vmatprep.subr.mxu0 0.0
    %3928 = vmatpush1.msra.mxu0 0.0
    %3929 = vmatprep.subr.mxu0 0.0
    %3930 = vmatpush1.msra.mxu0 0.0
    %3931 = vmatprep.subr.mxu0 0.0
    %3932 = vmatpush1.msra.mxu0 0.0
    %3933 = vmatprep.subr.mxu0 0.0
    %3934 = vmatpush1.msra.mxu0 0.0
    %3935 = vmatprep.subr.mxu0 0.0
    %3936 = vmatpush1.msra.mxu0 0.0
    %3937 = vmatprep.subr.mxu0 0.0
    %3938 = vmatpush1.msra.mxu0 0.0
    %3939 = vmatprep.subr.mxu0 0.0
    %3940 = vmatpush1.msra.mxu0 0.0
    %3941 = vmatprep.subr.mxu0 0.0
    %3942 = vmatpush1.msra.mxu0 0.0
    %3943 = vmatprep.subr.mxu0 0.0
    %3944 = vmatpush1.msra.mxu0 0.0
    %3945 = vmatprep.subr.mxu0 0.0
    %3946 = vmatpush1.msra.mxu0 0.0
    %3947 = vmatprep.subr.mxu0 0.0
    %3948 = vmatpush1.msra.mxu0 0.0
    %3949 = vmatprep.subr.mxu0 0.0
    %3950 = vmatpush1.msra.mxu0 0.0
    %3951 = vmatprep.subr.mxu0 0.0
    %3952 = vmatpush1.msra.mxu0 0.0
    %3953 = vmatprep.subr.mxu0 0.0
    %3954 = vmatpush1.msra.mxu0 0.0
    %3955 = vmatprep.subr.mxu0 0.0
    %3956 = vmatpush1.msra.mxu0 0.0
    %3957 = vmatprep.subr.mxu0 0.0
    %3958 = vmatpush1.msra.mxu0 0.0
    %3959 = vmatprep.subr.mxu0 0.0
    %3960 = vmatpush1.msra.mxu0 0.0
    %3961 = vmatprep.subr.mxu0 0.0
    %3962 = vmatpush1.msra.mxu0 0.0
    %3963 = vmatprep.subr.mxu0 0.0
    %3964 = vmatpush1.msra.mxu0 0.0
    %3965 = vmatprep.subr.mxu0 0.0
    %3966 = vmatpush1.msra.mxu0 0.0
    %3967 = vmatprep.subr.mxu0 0.0
    %3968 = vmatpush1.msra.mxu0 0.0
    %3969 = vmatprep.subr.mxu0 0.0
    %3970 = vmatpush1.msra.mxu0 0.0
    %3971 = vmatprep.subr.mxu0 0.0
    %3972 = vmatpush1.msra.mxu0 0.0
    %3973 = vmatprep.subr.mxu0 0.0
    %3974 = vmatpush1.msra.mxu0 0.0
    %3975 = vmatprep.subr.mxu0 0.0
    %3976 = vmatpush1.msra.mxu0 0.0
    %3977 = vmatprep.subr.mxu0 0.0
    %3978 = vmatpush1.msra.mxu0 0.0
    %3979 = vmatprep.subr.mxu0 0.0
    %3980 = vmatpush1.msra.mxu0 0.0
    %3981 = vmatprep.subr.mxu0 0.0
    %3982 = vmatpush1.msra.mxu0 0.0
    %3983 = vmatprep.mubr.f32.mxu0 0.0
    %v3984 = vand.u32 %v3739, 4294901760
    %v3985 = vsub.f32 %v3739, %v3984
    %3986 = vmatmul.mubr.f32.gmra.mrb[0].mxu0 %v3985
    %v3987 = vpop.f32.mrb[0].mxu0
    %v3988 = vadd.f32 %v3908, %v3987
    %v3989 = vpop.f32.mrb[0].mxu0
    %3990 = vdwg.mxu0
    %3991 = vmatprep.subr.mxu0 0.0
    %v3992 = vand.u32 %v3734, 4294901760
    %3993 = vmatpush1.msra.mxu0 %v3992
    %3994 = vmatprep.subr.mxu0 0.0
    %v3995 = vand.u32 %v3735, 4294901760
    %3996 = vmatpush1.msra.mxu0 %v3995
    %3997 = vmatprep.subr.mxu0 0.0
    %v3998 = vand.u32 %v3736, 4294901760
    %3999 = vmatpush1.msra.mxu0 %v3998
    %4000 = vmatprep.subr.mxu0 0.0
    %v4001 = vand.u32 %v3737, 4294901760
    %4002 = vmatpush1.msra.mxu0 %v4001
    %4003 = vmatprep.subr.mxu0 0.0
    %4004 = vmatpush1.msra.mxu0 0.0
    %4005 = vmatprep.subr.mxu0 0.0
    %4006 = vmatpush1.msra.mxu0 0.0
    %4007 = vmatprep.subr.mxu0 0.0
    %4008 = vmatpush1.msra.mxu0 0.0
    %4009 = vmatprep.subr.mxu0 0.0
    %4010 = vmatpush1.msra.mxu0 0.0
    %4011 = vmatprep.subr.mxu0 0.0
    %4012 = vmatpush1.msra.mxu0 0.0
    %4013 = vmatprep.subr.mxu0 0.0
    %4014 = vmatpush1.msra.mxu0 0.0
    %4015 = vmatprep.subr.mxu0 0.0
    %4016 = vmatpush1.msra.mxu0 0.0
    %4017 = vmatprep.subr.mxu0 0.0
    %4018 = vmatpush1.msra.mxu0 0.0
    %4019 = vmatprep.subr.mxu0 0.0
    %4020 = vmatpush1.msra.mxu0 0.0
    %4021 = vmatprep.subr.mxu0 0.0
    %4022 = vmatpush1.msra.mxu0 0.0
    %4023 = vmatprep.subr.mxu0 0.0
    %4024 = vmatpush1.msra.mxu0 0.0
    %4025 = vmatprep.subr.mxu0 0.0
    %4026 = vmatpush1.msra.mxu0 0.0
    %4027 = vmatprep.subr.mxu0 0.0
    %4028 = vmatpush1.msra.mxu0 0.0
    %4029 = vmatprep.subr.mxu0 0.0
    %4030 = vmatpush1.msra.mxu0 0.0
    %4031 = vmatprep.subr.mxu0 0.0
    %4032 = vmatpush1.msra.mxu0 0.0
    %4033 = vmatprep.subr.mxu0 0.0
    %4034 = vmatpush1.msra.mxu0 0.0
    %4035 = vmatprep.subr.mxu0 0.0
    %4036 = vmatpush1.msra.mxu0 0.0
    %4037 = vmatprep.subr.mxu0 0.0
    %4038 = vmatpush1.msra.mxu0 0.0
    %4039 = vmatprep.subr.mxu0 0.0
    %4040 = vmatpush1.msra.mxu0 0.0
    %4041 = vmatprep.subr.mxu0 0.0
    %4042 = vmatpush1.msra.mxu0 0.0
    %4043 = vmatprep.subr.mxu0 0.0
    %4044 = vmatpush1.msra.mxu0 0.0
    %4045 = vmatprep.subr.mxu0 0.0
    %4046 = vmatpush1.msra.mxu0 0.0
    %4047 = vmatprep.subr.mxu0 0.0
    %4048 = vmatpush1.msra.mxu0 0.0
    %4049 = vmatprep.subr.mxu0 0.0
    %4050 = vmatpush1.msra.mxu0 0.0
    %4051 = vmatprep.subr.mxu0 0.0
    %4052 = vmatpush1.msra.mxu0 0.0
    %4053 = vmatprep.subr.mxu0 0.0
    %4054 = vmatpush1.msra.mxu0 0.0
    %4055 = vmatprep.subr.mxu0 0.0
    %4056 = vmatpush1.msra.mxu0 0.0
    %4057 = vmatprep.subr.mxu0 0.0
    %4058 = vmatpush1.msra.mxu0 0.0
    %4059 = vmatprep.mubr.f32.mxu0 0.0
    %v4060 = vand.u32 %v3739, 4294901760
    %v4061 = vsub.f32 %v3739, %v4060
    %v4062 = vand.u32 %v4061, 4294901760
    %4063 = vmatmul.mubr.f32.gmra.mrb[0].mxu0 %v4062
    %v4064 = vpop.f32.mrb[0].mxu0
    %v4065 = vadd.f32 %v3988, %v4064
    %v4066 = vpop.f32.mrb[0].mxu0
    %4067 = vdwg.mxu0
    %4068 = vmatprep.subr.mxu0 0.0
    %v4069 = vand.u32 %v3734, 4294901760
    %v4070 = vsub.f32 %v3734, %v4069
    %v4071 = vand.u32 %v4070, 4294901760
    %4072 = vmatpush1.msra.mxu0 %v4071
    %4073 = vmatprep.subr.mxu0 0.0
    %v4074 = vand.u32 %v3735, 4294901760
    %v4075 = vsub.f32 %v3735, %v4074
    %v4076 = vand.u32 %v4075, 4294901760
    %4077 = vmatpush1.msra.mxu0 %v4076
    %4078 = vmatprep.subr.mxu0 0.0
    %v4079 = vand.u32 %v3736, 4294901760
    %v4080 = vsub.f32 %v3736, %v4079
    %v4081 = vand.u32 %v4080, 4294901760
    %4082 = vmatpush1.msra.mxu0 %v4081
    %4083 = vmatprep.subr.mxu0 0.0
    %v4084 = vand.u32 %v3737, 4294901760
    %v4085 = vsub.f32 %v3737, %v4084
    %v4086 = vand.u32 %v4085, 4294901760
    %4087 = vmatpush1.msra.mxu0 %v4086
    %4088 = vmatprep.subr.mxu0 0.0
    %4089 = vmatpush1.msra.mxu0 0.0
    %4090 = vmatprep.subr.mxu0 0.0
    %4091 = vmatpush1.msra.mxu0 0.0
    %4092 = vmatprep.subr.mxu0 0.0
    %4093 = vmatpush1.msra.mxu0 0.0
    %4094 = vmatprep.subr.mxu0 0.0
    %4095 = vmatpush1.msra.mxu0 0.0
    %4096 = vmatprep.subr.mxu0 0.0
    %4097 = vmatpush1.msra.mxu0 0.0
    %4098 = vmatprep.subr.mxu0 0.0
    %4099 = vmatpush1.msra.mxu0 0.0
    %4100 = vmatprep.subr.mxu0 0.0
    %4101 = vmatpush1.msra.mxu0 0.0
    %4102 = vmatprep.subr.mxu0 0.0
    %4103 = vmatpush1.msra.mxu0 0.0
    %4104 = vmatprep.subr.mxu0 0.0
    %4105 = vmatpush1.msra.mxu0 0.0
    %4106 = vmatprep.subr.mxu0 0.0
    %4107 = vmatpush1.msra.mxu0 0.0
    %4108 = vmatprep.subr.mxu0 0.0
    %4109 = vmatpush1.msra.mxu0 0.0
    %4110 = vmatprep.subr.mxu0 0.0
    %4111 = vmatpush1.msra.mxu0 0.0
    %4112 = vmatprep.subr.mxu0 0.0
    %4113 = vmatpush1.msra.mxu0 0.0
    %4114 = vmatprep.subr.mxu0 0.0
    %4115 = vmatpush1.msra.mxu0 0.0
    %4116 = vmatprep.subr.mxu0 0.0
    %4117 = vmatpush1.msra.mxu0 0.0
    %4118 = vmatprep.subr.mxu0 0.0
    %4119 = vmatpush1.msra.mxu0 0.0
    %4120 = vmatprep.subr.mxu0 0.0
    %4121 = vmatpush1.msra.mxu0 0.0
    %4122 = vmatprep.subr.mxu0 0.0
    %4123 = vmatpush1.msra.mxu0 0.0
    %4124 = vmatprep.subr.mxu0 0.0
    %4125 = vmatpush1.msra.mxu0 0.0
    %4126 = vmatprep.subr.mxu0 0.0
    %4127 = vmatpush1.msra.mxu0 0.0
    %4128 = vmatprep.subr.mxu0 0.0
    %4129 = vmatpush1.msra.mxu0 0.0
    %4130 = vmatprep.subr.mxu0 0.0
    %4131 = vmatpush1.msra.mxu0 0.0
    %4132 = vmatprep.subr.mxu0 0.0
    %4133 = vmatpush1.msra.mxu0 0.0
    %4134 = vmatprep.subr.mxu0 0.0
    %4135 = vmatpush1.msra.mxu0 0.0
    %4136 = vmatprep.subr.mxu0 0.0
    %4137 = vmatpush1.msra.mxu0 0.0
    %4138 = vmatprep.subr.mxu0 0.0
    %4139 = vmatpush1.msra.mxu0 0.0
    %4140 = vmatprep.subr.mxu0 0.0
    %4141 = vmatpush1.msra.mxu0 0.0
    %4142 = vmatprep.subr.mxu0 0.0
    %4143 = vmatpush1.msra.mxu0 0.0
    %4144 = vmatprep.mubr.f32.mxu0 0.0
    %v4145 = vand.u32 %v3739, 4294901760
    %4146 = vmatmul.mubr.f32.gmra.mrb[0].mxu0 %v4145
    %v4147 = vpop.f32.mrb[0].mxu0
    %v4148 = vadd.f32 %v4065, %v4147
    %v4149 = vpop.f32.mrb[0].mxu0
    %4150 = vdwg.mxu0
    %4151 = vmatprep.subr.mxu0 0.0
    %v4152 = vand.u32 %v3734, 4294901760
    %4153 = vmatpush1.msra.mxu0 %v4152
    %4154 = vmatprep.subr.mxu0 0.0
    %v4155 = vand.u32 %v3735, 4294901760
    %4156 = vmatpush1.msra.mxu0 %v4155
    %4157 = vmatprep.subr.mxu0 0.0
    %v4158 = vand.u32 %v3736, 4294901760
    %4159 = vmatpush1.msra.mxu0 %v4158
    %4160 = vmatprep.subr.mxu0 0.0
    %v4161 = vand.u32 %v3737, 4294901760
    %4162 = vmatpush1.msra.mxu0 %v4161
    %4163 = vmatprep.subr.mxu0 0.0
    %4164 = vmatpush1.msra.mxu0 0.0
    %4165 = vmatprep.subr.mxu0 0.0
    %4166 = vmatpush1.msra.mxu0 0.0
    %4167 = vmatprep.subr.mxu0 0.0
    %4168 = vmatpush1.msra.mxu0 0.0
    %4169 = vmatprep.subr.mxu0 0.0
    %4170 = vmatpush1.msra.mxu0 0.0
    %4171 = vmatprep.subr.mxu0 0.0
    %4172 = vmatpush1.msra.mxu0 0.0
    %4173 = vmatprep.subr.mxu0 0.0
    %4174 = vmatpush1.msra.mxu0 0.0
    %4175 = vmatprep.subr.mxu0 0.0
    %4176 = vmatpush1.msra.mxu0 0.0
    %4177 = vmatprep.subr.mxu0 0.0
    %4178 = vmatpush1.msra.mxu0 0.0
    %4179 = vmatprep.subr.mxu0 0.0
    %4180 = vmatpush1.msra.mxu0 0.0
    %4181 = vmatprep.subr.mxu0 0.0
    %4182 = vmatpush1.msra.mxu0 0.0
    %4183 = vmatprep.subr.mxu0 0.0
    %4184 = vmatpush1.msra.mxu0 0.0
    %4185 = vmatprep.subr.mxu0 0.0
    %4186 = vmatpush1.msra.mxu0 0.0
    %4187 = vmatprep.subr.mxu0 0.0
    %4188 = vmatpush1.msra.mxu0 0.0
    %4189 = vmatprep.subr.mxu0 0.0
    %4190 = vmatpush1.msra.mxu0 0.0
    %4191 = vmatprep.subr.mxu0 0.0
    %4192 = vmatpush1.msra.mxu0 0.0
    %4193 = vmatprep.subr.mxu0 0.0
    %4194 = vmatpush1.msra.mxu0 0.0
    %4195 = vmatprep.subr.mxu0 0.0
    %4196 = vmatpush1.msra.mxu0 0.0
    %4197 = vmatprep.subr.mxu0 0.0
    %4198 = vmatpush1.msra.mxu0 0.0
    %4199 = vmatprep.subr.mxu0 0.0
    %4200 = vmatpush1.msra.mxu0 0.0
    %4201 = vmatprep.subr.mxu0 0.0
    %4202 = vmatpush1.msra.mxu0 0.0
    %4203 = vmatprep.subr.mxu0 0.0
    %4204 = vmatpush1.msra.mxu0 0.0
    %4205 = vmatprep.subr.mxu0 0.0
    %4206 = vmatpush1.msra.mxu0 0.0
    %4207 = vmatprep.subr.mxu0 0.0
    %4208 = vmatpush1.msra.mxu0 0.0
    %4209 = vmatprep.subr.mxu0 0.0
    %4210 = vmatpush1.msra.mxu0 0.0
    %4211 = vmatprep.subr.mxu0 0.0
    %4212 = vmatpush1.msra.mxu0 0.0
    %4213 = vmatprep.subr.mxu0 0.0
    %4214 = vmatpush1.msra.mxu0 0.0
    %4215 = vmatprep.subr.mxu0 0.0
    %4216 = vmatpush1.msra.mxu0 0.0
    %4217 = vmatprep.subr.mxu0 0.0
    %4218 = vmatpush1.msra.mxu0 0.0
    %4219 = vmatprep.mubr.f32.mxu0 0.0
    %v4220 = vand.u32 %v3739, 4294901760
    %4221 = vmatmul.mubr.f32.gmra.mrb[0].mxu0 %v4220
    %v4222 = vpop.f32.mrb[0].mxu0
    %v4223 = vadd.f32 %v4148, %v4222
    %v4224 = vpop.f32.mrb[0].mxu0
    %4225 = vdwg.mxu0
    %v4226 = vld [vmem:[#allocation10] sm:$0xff]
    %v4227 = vld [vmem:[#allocation10 + $0x8] sm:$0xff]
    %v4228 = vld [vmem:[#allocation10 + $0x10] sm:$0xff]
    %v4229 = vld [vmem:[#allocation10 + $0x18] sm:$0xff]
    %v4230 = vld [vmem:[#allocation2 + $0xc] ss:$0 sm:$0xff]
    %v4231 = vrot.slane %v3724, 1
    %4232 = vrot.lane.b32.xlu0 %v4231, 32
    %v4233 = vpop.permute.xlu0 %4232
    %v4234 = vsel %vm114, %v4233, 0
    %4236 = vmatprep.subr.mxu0 0.0
    %v4237 = vand.u32 %v4226, 4294901760
    %4238 = vmatpush1.msra.mxu0 %v4237
    %4239 = vmatprep.subr.mxu0 0.0
    %v4240 = vand.u32 %v4227, 4294901760
    %4241 = vmatpush1.msra.mxu0 %v4240
    %4242 = vmatprep.subr.mxu0 0.0
    %v4243 = vand.u32 %v4228, 4294901760
    %4244 = vmatpush1.msra.mxu0 %v4243
    %4245 = vmatprep.subr.mxu0 0.0
    %v4246 = vand.u32 %v4229, 4294901760
    %4247 = vmatpush1.msra.mxu0 %v4246
    %4248 = vmatprep.subr.mxu0 0.0
    %4249 = vmatpush1.msra.mxu0 0.0
    %4250 = vmatprep.subr.mxu0 0.0
    %4251 = vmatpush1.msra.mxu0 0.0
    %4252 = vmatprep.subr.mxu0 0.0
    %4253 = vmatpush1.msra.mxu0 0.0
    %4254 = vmatprep.subr.mxu0 0.0
    %4255 = vmatpush1.msra.mxu0 0.0
    %4256 = vmatprep.subr.mxu0 0.0
    %4257 = vmatpush1.msra.mxu0 0.0
    %4258 = vmatprep.subr.mxu0 0.0
    %4259 = vmatpush1.msra.mxu0 0.0
    %4260 = vmatprep.subr.mxu0 0.0
    %4261 = vmatpush1.msra.mxu0 0.0
    %4262 = vmatprep.subr.mxu0 0.0
    %4263 = vmatpush1.msra.mxu0 0.0
    %4264 = vmatprep.subr.mxu0 0.0
    %4265 = vmatpush1.msra.mxu0 0.0
    %4266 = vmatprep.subr.mxu0 0.0
    %4267 = vmatpush1.msra.mxu0 0.0
    %4268 = vmatprep.subr.mxu0 0.0
    %4269 = vmatpush1.msra.mxu0 0.0
    %4270 = vmatprep.subr.mxu0 0.0
    %4271 = vmatpush1.msra.mxu0 0.0
    %4272 = vmatprep.subr.mxu0 0.0
    %4273 = vmatpush1.msra.mxu0 0.0
    %4274 = vmatprep.subr.mxu0 0.0
    %4275 = vmatpush1.msra.mxu0 0.0
    %4276 = vmatprep.subr.mxu0 0.0
    %4277 = vmatpush1.msra.mxu0 0.0
    %4278 = vmatprep.subr.mxu0 0.0
    %4279 = vmatpush1.msra.mxu0 0.0
    %4280 = vmatprep.subr.mxu0 0.0
    %4281 = vmatpush1.msra.mxu0 0.0
    %4282 = vmatprep.subr.mxu0 0.0
    %4283 = vmatpush1.msra.mxu0 0.0
    %4284 = vmatprep.subr.mxu0 0.0
    %4285 = vmatpush1.msra.mxu0 0.0
    %4286 = vmatprep.subr.mxu0 0.0
    %4287 = vmatpush1.msra.mxu0 0.0
    %4288 = vmatprep.subr.mxu0 0.0
    %4289 = vmatpush1.msra.mxu0 0.0
    %4290 = vmatprep.subr.mxu0 0.0
    %4291 = vmatpush1.msra.mxu0 0.0
    %4292 = vmatprep.subr.mxu0 0.0
    %4293 = vmatpush1.msra.mxu0 0.0
    %4294 = vmatprep.subr.mxu0 0.0
    %4295 = vmatpush1.msra.mxu0 0.0
    %4296 = vmatprep.subr.mxu0 0.0
    %4297 = vmatpush1.msra.mxu0 0.0
    %4298 = vmatprep.subr.mxu0 0.0
    %4299 = vmatpush1.msra.mxu0 0.0
    %4300 = vmatprep.subr.mxu0 0.0
    %4301 = vmatpush1.msra.mxu0 0.0
    %4302 = vmatprep.subr.mxu0 0.0
    %4303 = vmatpush1.msra.mxu0 0.0
    %4304 = vmatprep.mubr.f32.mxu0 0.0
    %v4305 = vand.u32 %v4234, 4294901760
    %v4306 = vsub.f32 %v4234, %v4305
    %v4307 = vand.u32 %v4306, 4294901760
    %v4308 = vsub.f32 %v4306, %v4307
    %v4309 = vand.u32 %v4308, 4294901760
    %4310 = vmatmul.mubr.f32.gmra.mrb[0].mxu0 %v4309
    %v4311 = vpop.f32.mrb[0].mxu0
    %v4312 = vadd.f32 %v4230, %v4311
    %v4313 = vpop.f32.mrb[0].mxu0
    %4314 = vdwg.mxu0
    %4315 = vmatprep.subr.mxu0 0.0
    %v4316 = vand.u32 %v4226, 4294901760
    %v4317 = vsub.f32 %v4226, %v4316
    %v4318 = vand.u32 %v4317, 4294901760
    %v4319 = vsub.f32 %v4317, %v4318
    %v4320 = vand.u32 %v4319, 4294901760
    %4321 = vmatpush1.msra.mxu0 %v4320
    %4322 = vmatprep.subr.mxu0 0.0
    %v4323 = vand.u32 %v4227, 4294901760
    %v4324 = vsub.f32 %v4227, %v4323
    %v4325 = vand.u32 %v4324, 4294901760
    %v4326 = vsub.f32 %v4324, %v4325
    %v4327 = vand.u32 %v4326, 4294901760
    %4328 = vmatpush1.msra.mxu0 %v4327
    %4329 = vmatprep.subr.mxu0 0.0
    %v4330 = vand.u32 %v4228, 4294901760
    %v4331 = vsub.f32 %v4228, %v4330
    %v4332 = vand.u32 %v4331, 4294901760
    %v4333 = vsub.f32 %v4331, %v4332
    %v4334 = vand.u32 %v4333, 4294901760
    %4335 = vmatpush1.msra.mxu0 %v4334
    %4336 = vmatprep.subr.mxu0 0.0
    %v4337 = vand.u32 %v4229, 4294901760
    %v4338 = vsub.f32 %v4229, %v4337
    %v4339 = vand.u32 %v4338, 4294901760
    %v4340 = vsub.f32 %v4338, %v4339
    %v4341 = vand.u32 %v4340, 4294901760
    %4342 = vmatpush1.msra.mxu0 %v4341
    %4343 = vmatprep.subr.mxu0 0.0
    %4344 = vmatpush1.msra.mxu0 0.0
    %4345 = vmatprep.subr.mxu0 0.0
    %4346 = vmatpush1.msra.mxu0 0.0
    %4347 = vmatprep.subr.mxu0 0.0
    %4348 = vmatpush1.msra.mxu0 0.0
    %4349 = vmatprep.subr.mxu0 0.0
    %4350 = vmatpush1.msra.mxu0 0.0
    %4351 = vmatprep.subr.mxu0 0.0
    %4352 = vmatpush1.msra.mxu0 0.0
    %4353 = vmatprep.subr.mxu0 0.0
    %4354 = vmatpush1.msra.mxu0 0.0
    %4355 = vmatprep.subr.mxu0 0.0
    %4356 = vmatpush1.msra.mxu0 0.0
    %4357 = vmatprep.subr.mxu0 0.0
    %4358 = vmatpush1.msra.mxu0 0.0
    %4359 = vmatprep.subr.mxu0 0.0
    %4360 = vmatpush1.msra.mxu0 0.0
    %4361 = vmatprep.subr.mxu0 0.0
    %4362 = vmatpush1.msra.mxu0 0.0
    %4363 = vmatprep.subr.mxu0 0.0
    %4364 = vmatpush1.msra.mxu0 0.0
    %4365 = vmatprep.subr.mxu0 0.0
    %4366 = vmatpush1.msra.mxu0 0.0
    %4367 = vmatprep.subr.mxu0 0.0
    %4368 = vmatpush1.msra.mxu0 0.0
    %4369 = vmatprep.subr.mxu0 0.0
    %4370 = vmatpush1.msra.mxu0 0.0
    %4371 = vmatprep.subr.mxu0 0.0
    %4372 = vmatpush1.msra.mxu0 0.0
    %4373 = vmatprep.subr.mxu0 0.0
    %4374 = vmatpush1.msra.mxu0 0.0
    %4375 = vmatprep.subr.mxu0 0.0
    %4376 = vmatpush1.msra.mxu0 0.0
    %4377 = vmatprep.subr.mxu0 0.0
    %4378 = vmatpush1.msra.mxu0 0.0
    %4379 = vmatprep.subr.mxu0 0.0
    %4380 = vmatpush1.msra.mxu0 0.0
    %4381 = vmatprep.subr.mxu0 0.0
    %4382 = vmatpush1.msra.mxu0 0.0
    %4383 = vmatprep.subr.mxu0 0.0
    %4384 = vmatpush1.msra.mxu0 0.0
    %4385 = vmatprep.subr.mxu0 0.0
    %4386 = vmatpush1.msra.mxu0 0.0
    %4387 = vmatprep.subr.mxu0 0.0
    %4388 = vmatpush1.msra.mxu0 0.0
    %4389 = vmatprep.subr.mxu0 0.0
    %4390 = vmatpush1.msra.mxu0 0.0
    %4391 = vmatprep.subr.mxu0 0.0
    %4392 = vmatpush1.msra.mxu0 0.0
    %4393 = vmatprep.subr.mxu0 0.0
    %4394 = vmatpush1.msra.mxu0 0.0
    %4395 = vmatprep.subr.mxu0 0.0
    %4396 = vmatpush1.msra.mxu0 0.0
    %4397 = vmatprep.subr.mxu0 0.0
    %4398 = vmatpush1.msra.mxu0 0.0
    %4399 = vmatprep.mubr.f32.mxu0 0.0
    %v4400 = vand.u32 %v4234, 4294901760
    %4401 = vmatmul.mubr.f32.gmra.mrb[0].mxu0 %v4400
    %v4402 = vpop.f32.mrb[0].mxu0
    %v4403 = vadd.f32 %v4312, %v4402
    %v4404 = vpop.f32.mrb[0].mxu0
    %4405 = vdwg.mxu0
    %4406 = vmatprep.subr.mxu0 0.0
    %v4407 = vand.u32 %v4226, 4294901760
    %v4408 = vsub.f32 %v4226, %v4407
    %4409 = vmatpush1.msra.mxu0 %v4408
    %4410 = vmatprep.subr.mxu0 0.0
    %v4411 = vand.u32 %v4227, 4294901760
    %v4412 = vsub.f32 %v4227, %v4411
    %4413 = vmatpush1.msra.mxu0 %v4412
    %4414 = vmatprep.subr.mxu0 0.0
    %v4415 = vand.u32 %v4228, 4294901760
    %v4416 = vsub.f32 %v4228, %v4415
    %4417 = vmatpush1.msra.mxu0 %v4416
    %4418 = vmatprep.subr.mxu0 0.0
    %v4419 = vand.u32 %v4229, 4294901760
    %v4420 = vsub.f32 %v4229, %v4419
    %4421 = vmatpush1.msra.mxu0 %v4420
    %4422 = vmatprep.subr.mxu0 0.0
    %4423 = vmatpush1.msra.mxu0 0.0
    %4424 = vmatprep.subr.mxu0 0.0
    %4425 = vmatpush1.msra.mxu0 0.0
    %4426 = vmatprep.subr.mxu0 0.0
    %4427 = vmatpush1.msra.mxu0 0.0
    %4428 = vmatprep.subr.mxu0 0.0
    %4429 = vmatpush1.msra.mxu0 0.0
    %4430 = vmatprep.subr.mxu0 0.0
    %4431 = vmatpush1.msra.mxu0 0.0
    %4432 = vmatprep.subr.mxu0 0.0
    %4433 = vmatpush1.msra.mxu0 0.0
    %4434 = vmatprep.subr.mxu0 0.0
    %4435 = vmatpush1.msra.mxu0 0.0
    %4436 = vmatprep.subr.mxu0 0.0
    %4437 = vmatpush1.msra.mxu0 0.0
    %4438 = vmatprep.subr.mxu0 0.0
    %4439 = vmatpush1.msra.mxu0 0.0
    %4440 = vmatprep.subr.mxu0 0.0
    %4441 = vmatpush1.msra.mxu0 0.0
    %4442 = vmatprep.subr.mxu0 0.0
    %4443 = vmatpush1.msra.mxu0 0.0
    %4444 = vmatprep.subr.mxu0 0.0
    %4445 = vmatpush1.msra.mxu0 0.0
    %4446 = vmatprep.subr.mxu0 0.0
    %4447 = vmatpush1.msra.mxu0 0.0
    %4448 = vmatprep.subr.mxu0 0.0
    %4449 = vmatpush1.msra.mxu0 0.0
    %4450 = vmatprep.subr.mxu0 0.0
    %4451 = vmatpush1.msra.mxu0 0.0
    %4452 = vmatprep.subr.mxu0 0.0
    %4453 = vmatpush1.msra.mxu0 0.0
    %4454 = vmatprep.subr.mxu0 0.0
    %4455 = vmatpush1.msra.mxu0 0.0
    %4456 = vmatprep.subr.mxu0 0.0
    %4457 = vmatpush1.msra.mxu0 0.0
    %4458 = vmatprep.subr.mxu0 0.0
    %4459 = vmatpush1.msra.mxu0 0.0
    %4460 = vmatprep.subr.mxu0 0.0
    %4461 = vmatpush1.msra.mxu0 0.0
    %4462 = vmatprep.subr.mxu0 0.0
    %4463 = vmatpush1.msra.mxu0 0.0
    %4464 = vmatprep.subr.mxu0 0.0
    %4465 = vmatpush1.msra.mxu0 0.0
    %4466 = vmatprep.subr.mxu0 0.0
    %4467 = vmatpush1.msra.mxu0 0.0
    %4468 = vmatprep.subr.mxu0 0.0
    %4469 = vmatpush1.msra.mxu0 0.0
    %4470 = vmatprep.subr.mxu0 0.0
    %4471 = vmatpush1.msra.mxu0 0.0
    %4472 = vmatprep.subr.mxu0 0.0
    %4473 = vmatpush1.msra.mxu0 0.0
    %4474 = vmatprep.subr.mxu0 0.0
    %4475 = vmatpush1.msra.mxu0 0.0
    %4476 = vmatprep.subr.mxu0 0.0
    %4477 = vmatpush1.msra.mxu0 0.0
    %4478 = vmatprep.mubr.f32.mxu0 0.0
    %v4479 = vand.u32 %v4234, 4294901760
    %v4480 = vsub.f32 %v4234, %v4479
    %4481 = vmatmul.mubr.f32.gmra.mrb[0].mxu0 %v4480
    %v4482 = vpop.f32.mrb[0].mxu0
    %v4483 = vadd.f32 %v4403, %v4482
    %v4484 = vpop.f32.mrb[0].mxu0
    %4485 = vdwg.mxu0
    %4486 = vmatprep.subr.mxu0 0.0
    %v4487 = vand.u32 %v4226, 4294901760
    %4488 = vmatpush1.msra.mxu0 %v4487
    %4489 = vmatprep.subr.mxu0 0.0
    %v4490 = vand.u32 %v4227, 4294901760
    %4491 = vmatpush1.msra.mxu0 %v4490
    %4492 = vmatprep.subr.mxu0 0.0
    %v4493 = vand.u32 %v4228, 4294901760
    %4494 = vmatpush1.msra.mxu0 %v4493
    %4495 = vmatprep.subr.mxu0 0.0
    %v4496 = vand.u32 %v4229, 4294901760
    %4497 = vmatpush1.msra.mxu0 %v4496
    %4498 = vmatprep.subr.mxu0 0.0
    %4499 = vmatpush1.msra.mxu0 0.0
    %4500 = vmatprep.subr.mxu0 0.0
    %4501 = vmatpush1.msra.mxu0 0.0
    %4502 = vmatprep.subr.mxu0 0.0
    %4503 = vmatpush1.msra.mxu0 0.0
    %4504 = vmatprep.subr.mxu0 0.0
    %4505 = vmatpush1.msra.mxu0 0.0
    %4506 = vmatprep.subr.mxu0 0.0
    %4507 = vmatpush1.msra.mxu0 0.0
    %4508 = vmatprep.subr.mxu0 0.0
    %4509 = vmatpush1.msra.mxu0 0.0
    %4510 = vmatprep.subr.mxu0 0.0
    %4511 = vmatpush1.msra.mxu0 0.0
    %4512 = vmatprep.subr.mxu0 0.0
    %4513 = vmatpush1.msra.mxu0 0.0
    %4514 = vmatprep.subr.mxu0 0.0
    %4515 = vmatpush1.msra.mxu0 0.0
    %4516 = vmatprep.subr.mxu0 0.0
    %4517 = vmatpush1.msra.mxu0 0.0
    %4518 = vmatprep.subr.mxu0 0.0
    %4519 = vmatpush1.msra.mxu0 0.0
    %4520 = vmatprep.subr.mxu0 0.0
    %4521 = vmatpush1.msra.mxu0 0.0
    %4522 = vmatprep.subr.mxu0 0.0
    %4523 = vmatpush1.msra.mxu0 0.0
    %4524 = vmatprep.subr.mxu0 0.0
    %4525 = vmatpush1.msra.mxu0 0.0
    %4526 = vmatprep.subr.mxu0 0.0
    %4527 = vmatpush1.msra.mxu0 0.0
    %4528 = vmatprep.subr.mxu0 0.0
    %4529 = vmatpush1.msra.mxu0 0.0
    %4530 = vmatprep.subr.mxu0 0.0
    %4531 = vmatpush1.msra.mxu0 0.0
    %4532 = vmatprep.subr.mxu0 0.0
    %4533 = vmatpush1.msra.mxu0 0.0
    %4534 = vmatprep.subr.mxu0 0.0
    %4535 = vmatpush1.msra.mxu0 0.0
    %4536 = vmatprep.subr.mxu0 0.0
    %4537 = vmatpush1.msra.mxu0 0.0
    %4538 = vmatprep.subr.mxu0 0.0
    %4539 = vmatpush1.msra.mxu0 0.0
    %4540 = vmatprep.subr.mxu0 0.0
    %4541 = vmatpush1.msra.mxu0 0.0
    %4542 = vmatprep.subr.mxu0 0.0
    %4543 = vmatpush1.msra.mxu0 0.0
    %4544 = vmatprep.subr.mxu0 0.0
    %4545 = vmatpush1.msra.mxu0 0.0
    %4546 = vmatprep.subr.mxu0 0.0
    %4547 = vmatpush1.msra.mxu0 0.0
    %4548 = vmatprep.subr.mxu0 0.0
    %4549 = vmatpush1.msra.mxu0 0.0
    %4550 = vmatprep.subr.mxu0 0.0
    %4551 = vmatpush1.msra.mxu0 0.0
    %4552 = vmatprep.subr.mxu0 0.0
    %4553 = vmatpush1.msra.mxu0 0.0
    %4554 = vmatprep.mubr.f32.mxu0 0.0
    %v4555 = vand.u32 %v4234, 4294901760
    %v4556 = vsub.f32 %v4234, %v4555
    %v4557 = vand.u32 %v4556, 4294901760
    %4558 = vmatmul.mubr.f32.gmra.mrb[0].mxu0 %v4557
    %v4559 = vpop.f32.mrb[0].mxu0
    %v4560 = vadd.f32 %v4483, %v4559
    %v4561 = vpop.f32.mrb[0].mxu0
    %4562 = vdwg.mxu0
    %4563 = vmatprep.subr.mxu0 0.0
    %v4564 = vand.u32 %v4226, 4294901760
    %v4565 = vsub.f32 %v4226, %v4564
    %v4566 = vand.u32 %v4565, 4294901760
    %4567 = vmatpush1.msra.mxu0 %v4566
    %4568 = vmatprep.subr.mxu0 0.0
    %v4569 = vand.u32 %v4227, 4294901760
    %v4570 = vsub.f32 %v4227, %v4569
    %v4571 = vand.u32 %v4570, 4294901760
    %4572 = vmatpush1.msra.mxu0 %v4571
    %4573 = vmatprep.subr.mxu0 0.0
    %v4574 = vand.u32 %v4228, 4294901760
    %v4575 = vsub.f32 %v4228, %v4574
    %v4576 = vand.u32 %v4575, 4294901760
    %4577 = vmatpush1.msra.mxu0 %v4576
    %4578 = vmatprep.subr.mxu0 0.0
    %v4579 = vand.u32 %v4229, 4294901760
    %v4580 = vsub.f32 %v4229, %v4579
    %v4581 = vand.u32 %v4580, 4294901760
    %4582 = vmatpush1.msra.mxu0 %v4581
    %4583 = vmatprep.subr.mxu0 0.0
    %4584 = vmatpush1.msra.mxu0 0.0
    %4585 = vmatprep.subr.mxu0 0.0
    %4586 = vmatpush1.msra.mxu0 0.0
    %4587 = vmatprep.subr.mxu0 0.0
    %4588 = vmatpush1.msra.mxu0 0.0
    %4589 = vmatprep.subr.mxu0 0.0
    %4590 = vmatpush1.msra.mxu0 0.0
    %4591 = vmatprep.subr.mxu0 0.0
    %4592 = vmatpush1.msra.mxu0 0.0
    %4593 = vmatprep.subr.mxu0 0.0
    %4594 = vmatpush1.msra.mxu0 0.0
    %4595 = vmatprep.subr.mxu0 0.0
    %4596 = vmatpush1.msra.mxu0 0.0
    %4597 = vmatprep.subr.mxu0 0.0
    %4598 = vmatpush1.msra.mxu0 0.0
    %4599 = vmatprep.subr.mxu0 0.0
    %4600 = vmatpush1.msra.mxu0 0.0
    %4601 = vmatprep.subr.mxu0 0.0
    %4602 = vmatpush1.msra.mxu0 0.0
    %4603 = vmatprep.subr.mxu0 0.0
    %4604 = vmatpush1.msra.mxu0 0.0
    %4605 = vmatprep.subr.mxu0 0.0
    %4606 = vmatpush1.msra.mxu0 0.0
    %4607 = vmatprep.subr.mxu0 0.0
    %4608 = vmatpush1.msra.mxu0 0.0
    %4609 = vmatprep.subr.mxu0 0.0
    %4610 = vmatpush1.msra.mxu0 0.0
    %4611 = vmatprep.subr.mxu0 0.0
    %4612 = vmatpush1.msra.mxu0 0.0
    %4613 = vmatprep.subr.mxu0 0.0
    %4614 = vmatpush1.msra.mxu0 0.0
    %4615 = vmatprep.subr.mxu0 0.0
    %4616 = vmatpush1.msra.mxu0 0.0
    %4617 = vmatprep.subr.mxu0 0.0
    %4618 = vmatpush1.msra.mxu0 0.0
    %4619 = vmatprep.subr.mxu0 0.0
    %4620 = vmatpush1.msra.mxu0 0.0
    %4621 = vmatprep.subr.mxu0 0.0
    %4622 = vmatpush1.msra.mxu0 0.0
    %4623 = vmatprep.subr.mxu0 0.0
    %4624 = vmatpush1.msra.mxu0 0.0
    %4625 = vmatprep.subr.mxu0 0.0
    %4626 = vmatpush1.msra.mxu0 0.0
    %4627 = vmatprep.subr.mxu0 0.0
    %4628 = vmatpush1.msra.mxu0 0.0
    %4629 = vmatprep.subr.mxu0 0.0
    %4630 = vmatpush1.msra.mxu0 0.0
    %4631 = vmatprep.subr.mxu0 0.0
    %4632 = vmatpush1.msra.mxu0 0.0
    %4633 = vmatprep.subr.mxu0 0.0
    %4634 = vmatpush1.msra.mxu0 0.0
    %4635 = vmatprep.subr.mxu0 0.0
    %4636 = vmatpush1.msra.mxu0 0.0
    %4637 = vmatprep.subr.mxu0 0.0
    %4638 = vmatpush1.msra.mxu0 0.0
    %4639 = vmatprep.mubr.f32.mxu0 0.0
    %v4640 = vand.u32 %v4234, 4294901760
    %4641 = vmatmul.mubr.f32.gmra.mrb[0].mxu0 %v4640
    %v4642 = vpop.f32.mrb[0].mxu0
    %v4643 = vadd.f32 %v4560, %v4642
    %v4644 = vpop.f32.mrb[0].mxu0
    %4645 = vdwg.mxu0
    %4646 = vmatprep.subr.mxu0 0.0
    %v4647 = vand.u32 %v4226, 4294901760
    %4648 = vmatpush1.msra.mxu0 %v4647
    %4649 = vmatprep.subr.mxu0 0.0
    %v4650 = vand.u32 %v4227, 4294901760
    %4651 = vmatpush1.msra.mxu0 %v4650
    %4652 = vmatprep.subr.mxu0 0.0
    %v4653 = vand.u32 %v4228, 4294901760
    %4654 = vmatpush1.msra.mxu0 %v4653
    %4655 = vmatprep.subr.mxu0 0.0
    %v4656 = vand.u32 %v4229, 4294901760
    %4657 = vmatpush1.msra.mxu0 %v4656
    %4658 = vmatprep.subr.mxu0 0.0
    %4659 = vmatpush1.msra.mxu0 0.0
    %4660 = vmatprep.subr.mxu0 0.0
    %4661 = vmatpush1.msra.mxu0 0.0
    %4662 = vmatprep.subr.mxu0 0.0
    %4663 = vmatpush1.msra.mxu0 0.0
    %4664 = vmatprep.subr.mxu0 0.0
    %4665 = vmatpush1.msra.mxu0 0.0
    %4666 = vmatprep.subr.mxu0 0.0
    %4667 = vmatpush1.msra.mxu0 0.0
    %4668 = vmatprep.subr.mxu0 0.0
    %4669 = vmatpush1.msra.mxu0 0.0
    %4670 = vmatprep.subr.mxu0 0.0
    %4671 = vmatpush1.msra.mxu0 0.0
    %4672 = vmatprep.subr.mxu0 0.0
    %4673 = vmatpush1.msra.mxu0 0.0
    %4674 = vmatprep.subr.mxu0 0.0
    %4675 = vmatpush1.msra.mxu0 0.0
    %4676 = vmatprep.subr.mxu0 0.0
    %4677 = vmatpush1.msra.mxu0 0.0
    %4678 = vmatprep.subr.mxu0 0.0
    %4679 = vmatpush1.msra.mxu0 0.0
    %4680 = vmatprep.subr.mxu0 0.0
    %4681 = vmatpush1.msra.mxu0 0.0
    %4682 = vmatprep.subr.mxu0 0.0
    %4683 = vmatpush1.msra.mxu0 0.0
    %4684 = vmatprep.subr.mxu0 0.0
    %4685 = vmatpush1.msra.mxu0 0.0
    %4686 = vmatprep.subr.mxu0 0.0
    %4687 = vmatpush1.msra.mxu0 0.0
    %4688 = vmatprep.subr.mxu0 0.0
    %4689 = vmatpush1.msra.mxu0 0.0
    %4690 = vmatprep.subr.mxu0 0.0
    %4691 = vmatpush1.msra.mxu0 0.0
    %4692 = vmatprep.subr.mxu0 0.0
    %4693 = vmatpush1.msra.mxu0 0.0
    %4694 = vmatprep.subr.mxu0 0.0
    %4695 = vmatpush1.msra.mxu0 0.0
    %4696 = vmatprep.subr.mxu0 0.0
    %4697 = vmatpush1.msra.mxu0 0.0
    %4698 = vmatprep.subr.mxu0 0.0
    %4699 = vmatpush1.msra.mxu0 0.0
    %4700 = vmatprep.subr.mxu0 0.0
    %4701 = vmatpush1.msra.mxu0 0.0
    %4702 = vmatprep.subr.mxu0 0.0
    %4703 = vmatpush1.msra.mxu0 0.0
    %4704 = vmatprep.subr.mxu0 0.0
    %4705 = vmatpush1.msra.mxu0 0.0
    %4706 = vmatprep.subr.mxu0 0.0
    %4707 = vmatpush1.msra.mxu0 0.0
    %4708 = vmatprep.subr.mxu0 0.0
    %4709 = vmatpush1.msra.mxu0 0.0
    %4710 = vmatprep.subr.mxu0 0.0
    %4711 = vmatpush1.msra.mxu0 0.0
    %4712 = vmatprep.subr.mxu0 0.0
    %4713 = vmatpush1.msra.mxu0 0.0
    %4714 = vmatprep.mubr.f32.mxu0 0.0
    %v4715 = vand.u32 %v4234, 4294901760
    %4716 = vmatmul.mubr.f32.gmra.mrb[0].mxu0 %v4715
    %v4717 = vpop.f32.mrb[0].mxu0
    %v4718 = vadd.f32 %v4643, %v4717
    %v4719 = vpop.f32.mrb[0].mxu0
    %4720 = vdwg.mxu0
    %v4722 = vrot.slane %v4718, 7
    %v4724 = vsel %vm1649, %v4223, %v4722
    %v4725 = vxor.u32 %v4724, 2147483648
    %v4726 = vmul.f32 %v4725, 1.442695
    %v4727 = vpow.pop %v4726
    %v4728 = vadd.f32 %v4727, 1.0
    %v4729 = vrcp.pop %v4728
    %v4730 = vmul.f32 1.0, %v4729
    %v4731 = vtanh.pop %v4724
    %v4732 = vmul.f32 %v4730, %v3718
    %4734 = vrot.lane.b32.xlu0 %v4731, 64
    %v4735 = vpop.permute.xlu0 %4734
    %v4737 = vmul.f32 %v4730, %v4735
    %4739 = vrot.lane.b32.xlu0 %v4737, 32
    %v4740 = vpop.permute.xlu0 %4739
    %v4742 = vadd.f32 %v4732, %v4740
    %v4743 = vtanh.pop %v4742
    %4745 = vrot.lane.b32.xlu0 %v4743, 64
    %v4746 = vpop.permute.xlu0 %4745
    %v4748 = vmul.f32 %v4730, %v4746
    %4750 = vrot.lane.b32.xlu0 %v4748, 32
    %v4751 = vpop.permute.xlu0 %4750
    %4753 = vst.msk [vmem:[#allocation3 + $0x3] sm:$0x1] %vm1679, %v4751
    %4754 = vrot.lane.b32.xlu0 %v4748, 64
    %v4755 = vpop.permute.xlu0 %4754
    %4757 = vst.msk [vmem:[#allocation3 + $0x3] sm:$0x2] %vm1684, %v4755
    %v4758 = vld [vmem:[#allocation9] sm:$0xff]
    %v4759 = vld [vmem:[#allocation9 + $0x8] sm:$0xff]
    %v4760 = vld [vmem:[#allocation9 + $0x10] sm:$0xff]
    %v4761 = vld [vmem:[#allocation9 + $0x18] sm:$0xff]
    %v4762 = vld [vmem:[#allocation2 + $0x4] ss:$0 sm:$0xff]
    %v4763 = vsel %vm114, %v4751, 0
    %4765 = vmatprep.subr.mxu0 0.0
    %v4766 = vand.u32 %v4758, 4294901760
    %4767 = vmatpush1.msra.mxu0 %v4766
    %4768 = vmatprep.subr.mxu0 0.0
    %v4769 = vand.u32 %v4759, 4294901760
    %4770 = vmatpush1.msra.mxu0 %v4769
    %4771 = vmatprep.subr.mxu0 0.0
    %v4772 = vand.u32 %v4760, 4294901760
    %4773 = vmatpush1.msra.mxu0 %v4772
    %4774 = vmatprep.subr.mxu0 0.0
    %v4775 = vand.u32 %v4761, 4294901760
    %4776 = vmatpush1.msra.mxu0 %v4775
    %4777 = vmatprep.subr.mxu0 0.0
    %4778 = vmatpush1.msra.mxu0 0.0
    %4779 = vmatprep.subr.mxu0 0.0
    %4780 = vmatpush1.msra.mxu0 0.0
    %4781 = vmatprep.subr.mxu0 0.0
    %4782 = vmatpush1.msra.mxu0 0.0
    %4783 = vmatprep.subr.mxu0 0.0
    %4784 = vmatpush1.msra.mxu0 0.0
    %4785 = vmatprep.subr.mxu0 0.0
    %4786 = vmatpush1.msra.mxu0 0.0
    %4787 = vmatprep.subr.mxu0 0.0
    %4788 = vmatpush1.msra.mxu0 0.0
    %4789 = vmatprep.subr.mxu0 0.0
    %4790 = vmatpush1.msra.mxu0 0.0
    %4791 = vmatprep.subr.mxu0 0.0
    %4792 = vmatpush1.msra.mxu0 0.0
    %4793 = vmatprep.subr.mxu0 0.0
    %4794 = vmatpush1.msra.mxu0 0.0
    %4795 = vmatprep.subr.mxu0 0.0
    %4796 = vmatpush1.msra.mxu0 0.0
    %4797 = vmatprep.subr.mxu0 0.0
    %4798 = vmatpush1.msra.mxu0 0.0
    %4799 = vmatprep.subr.mxu0 0.0
    %4800 = vmatpush1.msra.mxu0 0.0
    %4801 = vmatprep.subr.mxu0 0.0
    %4802 = vmatpush1.msra.mxu0 0.0
    %4803 = vmatprep.subr.mxu0 0.0
    %4804 = vmatpush1.msra.mxu0 0.0
    %4805 = vmatprep.subr.mxu0 0.0
    %4806 = vmatpush1.msra.mxu0 0.0
    %4807 = vmatprep.subr.mxu0 0.0
    %4808 = vmatpush1.msra.mxu0 0.0
    %4809 = vmatprep.subr.mxu0 0.0
    %4810 = vmatpush1.msra.mxu0 0.0
    %4811 = vmatprep.subr.mxu0 0.0
    %4812 = vmatpush1.msra.mxu0 0.0
    %4813 = vmatprep.subr.mxu0 0.0
    %4814 = vmatpush1.msra.mxu0 0.0
    %4815 = vmatprep.subr.mxu0 0.0
    %4816 = vmatpush1.msra.mxu0 0.0
    %4817 = vmatprep.subr.mxu0 0.0
    %4818 = vmatpush1.msra.mxu0 0.0
    %4819 = vmatprep.subr.mxu0 0.0
    %4820 = vmatpush1.msra.mxu0 0.0
    %4821 = vmatprep.subr.mxu0 0.0
    %4822 = vmatpush1.msra.mxu0 0.0
    %4823 = vmatprep.subr.mxu0 0.0
    %4824 = vmatpush1.msra.mxu0 0.0
    %4825 = vmatprep.subr.mxu0 0.0
    %4826 = vmatpush1.msra.mxu0 0.0
    %4827 = vmatprep.subr.mxu0 0.0
    %4828 = vmatpush1.msra.mxu0 0.0
    %4829 = vmatprep.subr.mxu0 0.0
    %4830 = vmatpush1.msra.mxu0 0.0
    %4831 = vmatprep.subr.mxu0 0.0
    %4832 = vmatpush1.msra.mxu0 0.0
    %4833 = vmatprep.mubr.f32.mxu0 0.0
    %v4834 = vand.u32 %v4763, 4294901760
    %v4835 = vsub.f32 %v4763, %v4834
    %v4836 = vand.u32 %v4835, 4294901760
    %v4837 = vsub.f32 %v4835, %v4836
    %v4838 = vand.u32 %v4837, 4294901760
    %4839 = vmatmul.mubr.f32.gmra.mrb[0].mxu0 %v4838
    %v4840 = vpop.f32.mrb[0].mxu0
    %v4841 = vadd.f32 %v4762, %v4840
    %v4842 = vpop.f32.mrb[0].mxu0
    %4843 = vdwg.mxu0
    %4844 = vmatprep.subr.mxu0 0.0
    %v4845 = vand.u32 %v4758, 4294901760
    %v4846 = vsub.f32 %v4758, %v4845
    %v4847 = vand.u32 %v4846, 4294901760
    %v4848 = vsub.f32 %v4846, %v4847
    %v4849 = vand.u32 %v4848, 4294901760
    %4850 = vmatpush1.msra.mxu0 %v4849
    %4851 = vmatprep.subr.mxu0 0.0
    %v4852 = vand.u32 %v4759, 4294901760
    %v4853 = vsub.f32 %v4759, %v4852
    %v4854 = vand.u32 %v4853, 4294901760
    %v4855 = vsub.f32 %v4853, %v4854
    %v4856 = vand.u32 %v4855, 4294901760
    %4857 = vmatpush1.msra.mxu0 %v4856
    %4858 = vmatprep.subr.mxu0 0.0
    %v4859 = vand.u32 %v4760, 4294901760
    %v4860 = vsub.f32 %v4760, %v4859
    %v4861 = vand.u32 %v4860, 4294901760
    %v4862 = vsub.f32 %v4860, %v4861
    %v4863 = vand.u32 %v4862, 4294901760
    %4864 = vmatpush1.msra.mxu0 %v4863
    %4865 = vmatprep.subr.mxu0 0.0
    %v4866 = vand.u32 %v4761, 4294901760
    %v4867 = vsub.f32 %v4761, %v4866
    %v4868 = vand.u32 %v4867, 4294901760
    %v4869 = vsub.f32 %v4867, %v4868
    %v4870 = vand.u32 %v4869, 4294901760
    %4871 = vmatpush1.msra.mxu0 %v4870
    %4872 = vmatprep.subr.mxu0 0.0
    %4873 = vmatpush1.msra.mxu0 0.0
    %4874 = vmatprep.subr.mxu0 0.0
    %4875 = vmatpush1.msra.mxu0 0.0
    %4876 = vmatprep.subr.mxu0 0.0
    %4877 = vmatpush1.msra.mxu0 0.0
    %4878 = vmatprep.subr.mxu0 0.0
    %4879 = vmatpush1.msra.mxu0 0.0
    %4880 = vmatprep.subr.mxu0 0.0
    %4881 = vmatpush1.msra.mxu0 0.0
    %4882 = vmatprep.subr.mxu0 0.0
    %4883 = vmatpush1.msra.mxu0 0.0
    %4884 = vmatprep.subr.mxu0 0.0
    %4885 = vmatpush1.msra.mxu0 0.0
    %4886 = vmatprep.subr.mxu0 0.0
    %4887 = vmatpush1.msra.mxu0 0.0
    %4888 = vmatprep.subr.mxu0 0.0
    %4889 = vmatpush1.msra.mxu0 0.0
    %4890 = vmatprep.subr.mxu0 0.0
    %4891 = vmatpush1.msra.mxu0 0.0
    %4892 = vmatprep.subr.mxu0 0.0
    %4893 = vmatpush1.msra.mxu0 0.0
    %4894 = vmatprep.subr.mxu0 0.0
    %4895 = vmatpush1.msra.mxu0 0.0
    %4896 = vmatprep.subr.mxu0 0.0
    %4897 = vmatpush1.msra.mxu0 0.0
    %4898 = vmatprep.subr.mxu0 0.0
    %4899 = vmatpush1.msra.mxu0 0.0
    %4900 = vmatprep.subr.mxu0 0.0
    %4901 = vmatpush1.msra.mxu0 0.0
    %4902 = vmatprep.subr.mxu0 0.0
    %4903 = vmatpush1.msra.mxu0 0.0
    %4904 = vmatprep.subr.mxu0 0.0
    %4905 = vmatpush1.msra.mxu0 0.0
    %4906 = vmatprep.subr.mxu0 0.0
    %4907 = vmatpush1.msra.mxu0 0.0
    %4908 = vmatprep.subr.mxu0 0.0
    %4909 = vmatpush1.msra.mxu0 0.0
    %4910 = vmatprep.subr.mxu0 0.0
    %4911 = vmatpush1.msra.mxu0 0.0
    %4912 = vmatprep.subr.mxu0 0.0
    %4913 = vmatpush1.msra.mxu0 0.0
    %4914 = vmatprep.subr.mxu0 0.0
    %4915 = vmatpush1.msra.mxu0 0.0
    %4916 = vmatprep.subr.mxu0 0.0
    %4917 = vmatpush1.msra.mxu0 0.0
    %4918 = vmatprep.subr.mxu0 0.0
    %4919 = vmatpush1.msra.mxu0 0.0
    %4920 = vmatprep.subr.mxu0 0.0
    %4921 = vmatpush1.msra.mxu0 0.0
    %4922 = vmatprep.subr.mxu0 0.0
    %4923 = vmatpush1.msra.mxu0 0.0
    %4924 = vmatprep.subr.mxu0 0.0
    %4925 = vmatpush1.msra.mxu0 0.0
    %4926 = vmatprep.subr.mxu0 0.0
    %4927 = vmatpush1.msra.mxu0 0.0
    %4928 = vmatprep.mubr.f32.mxu0 0.0
    %v4929 = vand.u32 %v4763, 4294901760
    %4930 = vmatmul.mubr.f32.gmra.mrb[0].mxu0 %v4929
    %v4931 = vpop.f32.mrb[0].mxu0
    %v4932 = vadd.f32 %v4841, %v4931
    %v4933 = vpop.f32.mrb[0].mxu0
    %4934 = vdwg.mxu0
    %4935 = vmatprep.subr.mxu0 0.0
    %v4936 = vand.u32 %v4758, 4294901760
    %v4937 = vsub.f32 %v4758, %v4936
    %4938 = vmatpush1.msra.mxu0 %v4937
    %4939 = vmatprep.subr.mxu0 0.0
    %v4940 = vand.u32 %v4759, 4294901760
    %v4941 = vsub.f32 %v4759, %v4940
    %4942 = vmatpush1.msra.mxu0 %v4941
    %4943 = vmatprep.subr.mxu0 0.0
    %v4944 = vand.u32 %v4760, 4294901760
    %v4945 = vsub.f32 %v4760, %v4944
    %4946 = vmatpush1.msra.mxu0 %v4945
    %4947 = vmatprep.subr.mxu0 0.0
    %v4948 = vand.u32 %v4761, 4294901760
    %v4949 = vsub.f32 %v4761, %v4948
    %4950 = vmatpush1.msra.mxu0 %v4949
    %4951 = vmatprep.subr.mxu0 0.0
    %4952 = vmatpush1.msra.mxu0 0.0
    %4953 = vmatprep.subr.mxu0 0.0
    %4954 = vmatpush1.msra.mxu0 0.0
    %4955 = vmatprep.subr.mxu0 0.0
    %4956 = vmatpush1.msra.mxu0 0.0
    %4957 = vmatprep.subr.mxu0 0.0
    %4958 = vmatpush1.msra.mxu0 0.0
    %4959 = vmatprep.subr.mxu0 0.0
    %4960 = vmatpush1.msra.mxu0 0.0
    %4961 = vmatprep.subr.mxu0 0.0
    %4962 = vmatpush1.msra.mxu0 0.0
    %4963 = vmatprep.subr.mxu0 0.0
    %4964 = vmatpush1.msra.mxu0 0.0
    %4965 = vmatprep.subr.mxu0 0.0
    %4966 = vmatpush1.msra.mxu0 0.0
    %4967 = vmatprep.subr.mxu0 0.0
    %4968 = vmatpush1.msra.mxu0 0.0
    %4969 = vmatprep.subr.mxu0 0.0
    %4970 = vmatpush1.msra.mxu0 0.0
    %4971 = vmatprep.subr.mxu0 0.0
    %4972 = vmatpush1.msra.mxu0 0.0
    %4973 = vmatprep.subr.mxu0 0.0
    %4974 = vmatpush1.msra.mxu0 0.0
    %4975 = vmatprep.subr.mxu0 0.0
    %4976 = vmatpush1.msra.mxu0 0.0
    %4977 = vmatprep.subr.mxu0 0.0
    %4978 = vmatpush1.msra.mxu0 0.0
    %4979 = vmatprep.subr.mxu0 0.0
    %4980 = vmatpush1.msra.mxu0 0.0
    %4981 = vmatprep.subr.mxu0 0.0
    %4982 = vmatpush1.msra.mxu0 0.0
    %4983 = vmatprep.subr.mxu0 0.0
    %4984 = vmatpush1.msra.mxu0 0.0
    %4985 = vmatprep.subr.mxu0 0.0
    %4986 = vmatpush1.msra.mxu0 0.0
    %4987 = vmatprep.subr.mxu0 0.0
    %4988 = vmatpush1.msra.mxu0 0.0
    %4989 = vmatprep.subr.mxu0 0.0
    %4990 = vmatpush1.msra.mxu0 0.0
    %4991 = vmatprep.subr.mxu0 0.0
    %4992 = vmatpush1.msra.mxu0 0.0
    %4993 = vmatprep.subr.mxu0 0.0
    %4994 = vmatpush1.msra.mxu0 0.0
    %4995 = vmatprep.subr.mxu0 0.0
    %4996 = vmatpush1.msra.mxu0 0.0
    %4997 = vmatprep.subr.mxu0 0.0
    %4998 = vmatpush1.msra.mxu0 0.0
    %4999 = vmatprep.subr.mxu0 0.0
    %5000 = vmatpush1.msra.mxu0 0.0
    %5001 = vmatprep.subr.mxu0 0.0
    %5002 = vmatpush1.msra.mxu0 0.0
    %5003 = vmatprep.subr.mxu0 0.0
    %5004 = vmatpush1.msra.mxu0 0.0
    %5005 = vmatprep.subr.mxu0 0.0
    %5006 = vmatpush1.msra.mxu0 0.0
    %5007 = vmatprep.mubr.f32.mxu0 0.0
    %v5008 = vand.u32 %v4763, 4294901760
    %v5009 = vsub.f32 %v4763, %v5008
    %5010 = vmatmul.mubr.f32.gmra.mrb[0].mxu0 %v5009
    %v5011 = vpop.f32.mrb[0].mxu0
    %v5012 = vadd.f32 %v4932, %v5011
    %v5013 = vpop.f32.mrb[0].mxu0
    %5014 = vdwg.mxu0
    %5015 = vmatprep.subr.mxu0 0.0
    %v5016 = vand.u32 %v4758, 4294901760
    %5017 = vmatpush1.msra.mxu0 %v5016
    %5018 = vmatprep.subr.mxu0 0.0
    %v5019 = vand.u32 %v4759, 4294901760
    %5020 = vmatpush1.msra.mxu0 %v5019
    %5021 = vmatprep.subr.mxu0 0.0
    %v5022 = vand.u32 %v4760, 4294901760
    %5023 = vmatpush1.msra.mxu0 %v5022
    %5024 = vmatprep.subr.mxu0 0.0
    %v5025 = vand.u32 %v4761, 4294901760
    %5026 = vmatpush1.msra.mxu0 %v5025
    %5027 = vmatprep.subr.mxu0 0.0
    %5028 = vmatpush1.msra.mxu0 0.0
    %5029 = vmatprep.subr.mxu0 0.0
    %5030 = vmatpush1.msra.mxu0 0.0
    %5031 = vmatprep.subr.mxu0 0.0
    %5032 = vmatpush1.msra.mxu0 0.0
    %5033 = vmatprep.subr.mxu0 0.0
    %5034 = vmatpush1.msra.mxu0 0.0
    %5035 = vmatprep.subr.mxu0 0.0
    %5036 = vmatpush1.msra.mxu0 0.0
    %5037 = vmatprep.subr.mxu0 0.0
    %5038 = vmatpush1.msra.mxu0 0.0
    %5039 = vmatprep.subr.mxu0 0.0
    %5040 = vmatpush1.msra.mxu0 0.0
    %5041 = vmatprep.subr.mxu0 0.0
    %5042 = vmatpush1.msra.mxu0 0.0
    %5043 = vmatprep.subr.mxu0 0.0
    %5044 = vmatpush1.msra.mxu0 0.0
    %5045 = vmatprep.subr.mxu0 0.0
    %5046 = vmatpush1.msra.mxu0 0.0
    %5047 = vmatprep.subr.mxu0 0.0
    %5048 = vmatpush1.msra.mxu0 0.0
    %5049 = vmatprep.subr.mxu0 0.0
    %5050 = vmatpush1.msra.mxu0 0.0
    %5051 = vmatprep.subr.mxu0 0.0
    %5052 = vmatpush1.msra.mxu0 0.0
    %5053 = vmatprep.subr.mxu0 0.0
    %5054 = vmatpush1.msra.mxu0 0.0
    %5055 = vmatprep.subr.mxu0 0.0
    %5056 = vmatpush1.msra.mxu0 0.0
    %5057 = vmatprep.subr.mxu0 0.0
    %5058 = vmatpush1.msra.mxu0 0.0
    %5059 = vmatprep.subr.mxu0 0.0
    %5060 = vmatpush1.msra.mxu0 0.0
    %5061 = vmatprep.subr.mxu0 0.0
    %5062 = vmatpush1.msra.mxu0 0.0
    %5063 = vmatprep.subr.mxu0 0.0
    %5064 = vmatpush1.msra.mxu0 0.0
    %5065 = vmatprep.subr.mxu0 0.0
    %5066 = vmatpush1.msra.mxu0 0.0
    %5067 = vmatprep.subr.mxu0 0.0
    %5068 = vmatpush1.msra.mxu0 0.0
    %5069 = vmatprep.subr.mxu0 0.0
    %5070 = vmatpush1.msra.mxu0 0.0
    %5071 = vmatprep.subr.mxu0 0.0
    %5072 = vmatpush1.msra.mxu0 0.0
    %5073 = vmatprep.subr.mxu0 0.0
    %5074 = vmatpush1.msra.mxu0 0.0
    %5075 = vmatprep.subr.mxu0 0.0
    %5076 = vmatpush1.msra.mxu0 0.0
    %5077 = vmatprep.subr.mxu0 0.0
    %5078 = vmatpush1.msra.mxu0 0.0
    %5079 = vmatprep.subr.mxu0 0.0
    %5080 = vmatpush1.msra.mxu0 0.0
    %5081 = vmatprep.subr.mxu0 0.0
    %5082 = vmatpush1.msra.mxu0 0.0
    %5083 = vmatprep.mubr.f32.mxu0 0.0
    %v5084 = vand.u32 %v4763, 4294901760
    %v5085 = vsub.f32 %v4763, %v5084
    %v5086 = vand.u32 %v5085, 4294901760
    %5087 = vmatmul.mubr.f32.gmra.mrb[0].mxu0 %v5086
    %v5088 = vpop.f32.mrb[0].mxu0
    %v5089 = vadd.f32 %v5012, %v5088
    %v5090 = vpop.f32.mrb[0].mxu0
    %5091 = vdwg.mxu0
    %5092 = vmatprep.subr.mxu0 0.0
    %v5093 = vand.u32 %v4758, 4294901760
    %v5094 = vsub.f32 %v4758, %v5093
    %v5095 = vand.u32 %v5094, 4294901760
    %5096 = vmatpush1.msra.mxu0 %v5095
    %5097 = vmatprep.subr.mxu0 0.0
    %v5098 = vand.u32 %v4759, 4294901760
    %v5099 = vsub.f32 %v4759, %v5098
    %v5100 = vand.u32 %v5099, 4294901760
    %5101 = vmatpush1.msra.mxu0 %v5100
    %5102 = vmatprep.subr.mxu0 0.0
    %v5103 = vand.u32 %v4760, 4294901760
    %v5104 = vsub.f32 %v4760, %v5103
    %v5105 = vand.u32 %v5104, 4294901760
    %5106 = vmatpush1.msra.mxu0 %v5105
    %5107 = vmatprep.subr.mxu0 0.0
    %v5108 = vand.u32 %v4761, 4294901760
    %v5109 = vsub.f32 %v4761, %v5108
    %v5110 = vand.u32 %v5109, 4294901760
    %5111 = vmatpush1.msra.mxu0 %v5110
    %5112 = vmatprep.subr.mxu0 0.0
    %5113 = vmatpush1.msra.mxu0 0.0
    %5114 = vmatprep.subr.mxu0 0.0
    %5115 = vmatpush1.msra.mxu0 0.0
    %5116 = vmatprep.subr.mxu0 0.0
    %5117 = vmatpush1.msra.mxu0 0.0
    %5118 = vmatprep.subr.mxu0 0.0
    %5119 = vmatpush1.msra.mxu0 0.0
    %5120 = vmatprep.subr.mxu0 0.0
    %5121 = vmatpush1.msra.mxu0 0.0
    %5122 = vmatprep.subr.mxu0 0.0
    %5123 = vmatpush1.msra.mxu0 0.0
    %5124 = vmatprep.subr.mxu0 0.0
    %5125 = vmatpush1.msra.mxu0 0.0
    %5126 = vmatprep.subr.mxu0 0.0
    %5127 = vmatpush1.msra.mxu0 0.0
    %5128 = vmatprep.subr.mxu0 0.0
    %5129 = vmatpush1.msra.mxu0 0.0
    %5130 = vmatprep.subr.mxu0 0.0
    %5131 = vmatpush1.msra.mxu0 0.0
    %5132 = vmatprep.subr.mxu0 0.0
    %5133 = vmatpush1.msra.mxu0 0.0
    %5134 = vmatprep.subr.mxu0 0.0
    %5135 = vmatpush1.msra.mxu0 0.0
    %5136 = vmatprep.subr.mxu0 0.0
    %5137 = vmatpush1.msra.mxu0 0.0
    %5138 = vmatprep.subr.mxu0 0.0
    %5139 = vmatpush1.msra.mxu0 0.0
    %5140 = vmatprep.subr.mxu0 0.0
    %5141 = vmatpush1.msra.mxu0 0.0
    %5142 = vmatprep.subr.mxu0 0.0
    %5143 = vmatpush1.msra.mxu0 0.0
    %5144 = vmatprep.subr.mxu0 0.0
    %5145 = vmatpush1.msra.mxu0 0.0
    %5146 = vmatprep.subr.mxu0 0.0
    %5147 = vmatpush1.msra.mxu0 0.0
    %5148 = vmatprep.subr.mxu0 0.0
    %5149 = vmatpush1.msra.mxu0 0.0
    %5150 = vmatprep.subr.mxu0 0.0
    %5151 = vmatpush1.msra.mxu0 0.0
    %5152 = vmatprep.subr.mxu0 0.0
    %5153 = vmatpush1.msra.mxu0 0.0
    %5154 = vmatprep.subr.mxu0 0.0
    %5155 = vmatpush1.msra.mxu0 0.0
    %5156 = vmatprep.subr.mxu0 0.0
    %5157 = vmatpush1.msra.mxu0 0.0
    %5158 = vmatprep.subr.mxu0 0.0
    %5159 = vmatpush1.msra.mxu0 0.0
    %5160 = vmatprep.subr.mxu0 0.0
    %5161 = vmatpush1.msra.mxu0 0.0
    %5162 = vmatprep.subr.mxu0 0.0
    %5163 = vmatpush1.msra.mxu0 0.0
    %5164 = vmatprep.subr.mxu0 0.0
    %5165 = vmatpush1.msra.mxu0 0.0
    %5166 = vmatprep.subr.mxu0 0.0
    %5167 = vmatpush1.msra.mxu0 0.0
    %5168 = vmatprep.mubr.f32.mxu0 0.0
    %v5169 = vand.u32 %v4763, 4294901760
    %5170 = vmatmul.mubr.f32.gmra.mrb[0].mxu0 %v5169
    %v5171 = vpop.f32.mrb[0].mxu0
    %v5172 = vadd.f32 %v5089, %v5171
    %v5173 = vpop.f32.mrb[0].mxu0
    %5174 = vdwg.mxu0
    %5175 = vmatprep.subr.mxu0 0.0
    %v5176 = vand.u32 %v4758, 4294901760
    %5177 = vmatpush1.msra.mxu0 %v5176
    %5178 = vmatprep.subr.mxu0 0.0
    %v5179 = vand.u32 %v4759, 4294901760
    %5180 = vmatpush1.msra.mxu0 %v5179
    %5181 = vmatprep.subr.mxu0 0.0
    %v5182 = vand.u32 %v4760, 4294901760
    %5183 = vmatpush1.msra.mxu0 %v5182
    %5184 = vmatprep.subr.mxu0 0.0
    %v5185 = vand.u32 %v4761, 4294901760
    %5186 = vmatpush1.msra.mxu0 %v5185
    %5187 = vmatprep.subr.mxu0 0.0
    %5188 = vmatpush1.msra.mxu0 0.0
    %5189 = vmatprep.subr.mxu0 0.0
    %5190 = vmatpush1.msra.mxu0 0.0
    %5191 = vmatprep.subr.mxu0 0.0
    %5192 = vmatpush1.msra.mxu0 0.0
    %5193 = vmatprep.subr.mxu0 0.0
    %5194 = vmatpush1.msra.mxu0 0.0
    %5195 = vmatprep.subr.mxu0 0.0
    %5196 = vmatpush1.msra.mxu0 0.0
    %5197 = vmatprep.subr.mxu0 0.0
    %5198 = vmatpush1.msra.mxu0 0.0
    %5199 = vmatprep.subr.mxu0 0.0
    %5200 = vmatpush1.msra.mxu0 0.0
    %5201 = vmatprep.subr.mxu0 0.0
    %5202 = vmatpush1.msra.mxu0 0.0
    %5203 = vmatprep.subr.mxu0 0.0
    %5204 = vmatpush1.msra.mxu0 0.0
    %5205 = vmatprep.subr.mxu0 0.0
    %5206 = vmatpush1.msra.mxu0 0.0
    %5207 = vmatprep.subr.mxu0 0.0
    %5208 = vmatpush1.msra.mxu0 0.0
    %5209 = vmatprep.subr.mxu0 0.0
    %5210 = vmatpush1.msra.mxu0 0.0
    %5211 = vmatprep.subr.mxu0 0.0
    %5212 = vmatpush1.msra.mxu0 0.0
    %5213 = vmatprep.subr.mxu0 0.0
    %5214 = vmatpush1.msra.mxu0 0.0
    %5215 = vmatprep.subr.mxu0 0.0
    %5216 = vmatpush1.msra.mxu0 0.0
    %5217 = vmatprep.subr.mxu0 0.0
    %5218 = vmatpush1.msra.mxu0 0.0
    %5219 = vmatprep.subr.mxu0 0.0
    %5220 = vmatpush1.msra.mxu0 0.0
    %5221 = vmatprep.subr.mxu0 0.0
    %5222 = vmatpush1.msra.mxu0 0.0
    %5223 = vmatprep.subr.mxu0 0.0
    %5224 = vmatpush1.msra.mxu0 0.0
    %5225 = vmatprep.subr.mxu0 0.0
    %5226 = vmatpush1.msra.mxu0 0.0
    %5227 = vmatprep.subr.mxu0 0.0
    %5228 = vmatpush1.msra.mxu0 0.0
    %5229 = vmatprep.subr.mxu0 0.0
    %5230 = vmatpush1.msra.mxu0 0.0
    %5231 = vmatprep.subr.mxu0 0.0
    %5232 = vmatpush1.msra.mxu0 0.0
    %5233 = vmatprep.subr.mxu0 0.0
    %5234 = vmatpush1.msra.mxu0 0.0
    %5235 = vmatprep.subr.mxu0 0.0
    %5236 = vmatpush1.msra.mxu0 0.0
    %5237 = vmatprep.subr.mxu0 0.0
    %5238 = vmatpush1.msra.mxu0 0.0
    %5239 = vmatprep.subr.mxu0 0.0
    %5240 = vmatpush1.msra.mxu0 0.0
    %5241 = vmatprep.subr.mxu0 0.0
    %5242 = vmatpush1.msra.mxu0 0.0
    %5243 = vmatprep.mubr.f32.mxu0 0.0
    %v5244 = vand.u32 %v4763, 4294901760
    %5245 = vmatmul.mubr.f32.gmra.mrb[0].mxu0 %v5244
    %v5246 = vpop.f32.mrb[0].mxu0
    %v5247 = vadd.f32 %v5172, %v5246
    %v5248 = vpop.f32.mrb[0].mxu0
    %5249 = vdwg.mxu0
    %v5250 = vld [vmem:[#allocation10] sm:$0xff]
    %v5251 = vld [vmem:[#allocation10 + $0x8] sm:$0xff]
    %v5252 = vld [vmem:[#allocation10 + $0x10] sm:$0xff]
    %v5253 = vld [vmem:[#allocation10 + $0x18] sm:$0xff]
    %v5254 = vld [vmem:[#allocation2 + $0xb] ss:$0 sm:$0xff]
    %v5255 = vrot.slane %v4748, 1
    %5256 = vrot.lane.b32.xlu0 %v5255, 32
    %v5257 = vpop.permute.xlu0 %5256
    %v5258 = vsel %vm114, %v5257, 0
    %5260 = vmatprep.subr.mxu0 0.0
    %v5261 = vand.u32 %v5250, 4294901760
    %5262 = vmatpush1.msra.mxu0 %v5261
    %5263 = vmatprep.subr.mxu0 0.0
    %v5264 = vand.u32 %v5251, 4294901760
    %5265 = vmatpush1.msra.mxu0 %v5264
    %5266 = vmatprep.subr.mxu0 0.0
    %v5267 = vand.u32 %v5252, 4294901760
    %5268 = vmatpush1.msra.mxu0 %v5267
    %5269 = vmatprep.subr.mxu0 0.0
    %v5270 = vand.u32 %v5253, 4294901760
    %5271 = vmatpush1.msra.mxu0 %v5270
    %5272 = vmatprep.subr.mxu0 0.0
    %5273 = vmatpush1.msra.mxu0 0.0
    %5274 = vmatprep.subr.mxu0 0.0
    %5275 = vmatpush1.msra.mxu0 0.0
    %5276 = vmatprep.subr.mxu0 0.0
    %5277 = vmatpush1.msra.mxu0 0.0
    %5278 = vmatprep.subr.mxu0 0.0
    %5279 = vmatpush1.msra.mxu0 0.0
    %5280 = vmatprep.subr.mxu0 0.0
    %5281 = vmatpush1.msra.mxu0 0.0
    %5282 = vmatprep.subr.mxu0 0.0
    %5283 = vmatpush1.msra.mxu0 0.0
    %5284 = vmatprep.subr.mxu0 0.0
    %5285 = vmatpush1.msra.mxu0 0.0
    %5286 = vmatprep.subr.mxu0 0.0
    %5287 = vmatpush1.msra.mxu0 0.0
    %5288 = vmatprep.subr.mxu0 0.0
    %5289 = vmatpush1.msra.mxu0 0.0
    %5290 = vmatprep.subr.mxu0 0.0
    %5291 = vmatpush1.msra.mxu0 0.0
    %5292 = vmatprep.subr.mxu0 0.0
    %5293 = vmatpush1.msra.mxu0 0.0
    %5294 = vmatprep.subr.mxu0 0.0
    %5295 = vmatpush1.msra.mxu0 0.0
    %5296 = vmatprep.subr.mxu0 0.0
    %5297 = vmatpush1.msra.mxu0 0.0
    %5298 = vmatprep.subr.mxu0 0.0
    %5299 = vmatpush1.msra.mxu0 0.0
    %5300 = vmatprep.subr.mxu0 0.0
    %5301 = vmatpush1.msra.mxu0 0.0
    %5302 = vmatprep.subr.mxu0 0.0
    %5303 = vmatpush1.msra.mxu0 0.0
    %5304 = vmatprep.subr.mxu0 0.0
    %5305 = vmatpush1.msra.mxu0 0.0
    %5306 = vmatprep.subr.mxu0 0.0
    %5307 = vmatpush1.msra.mxu0 0.0
    %5308 = vmatprep.subr.mxu0 0.0
    %5309 = vmatpush1.msra.mxu0 0.0
    %5310 = vmatprep.subr.mxu0 0.0
    %5311 = vmatpush1.msra.mxu0 0.0
    %5312 = vmatprep.subr.mxu0 0.0
    %5313 = vmatpush1.msra.mxu0 0.0
    %5314 = vmatprep.subr.mxu0 0.0
    %5315 = vmatpush1.msra.mxu0 0.0
    %5316 = vmatprep.subr.mxu0 0.0
    %5317 = vmatpush1.msra.mxu0 0.0
    %5318 = vmatprep.subr.mxu0 0.0
    %5319 = vmatpush1.msra.mxu0 0.0
    %5320 = vmatprep.subr.mxu0 0.0
    %5321 = vmatpush1.msra.mxu0 0.0
    %5322 = vmatprep.subr.mxu0 0.0
    %5323 = vmatpush1.msra.mxu0 0.0
    %5324 = vmatprep.subr.mxu0 0.0
    %5325 = vmatpush1.msra.mxu0 0.0
    %5326 = vmatprep.subr.mxu0 0.0
    %5327 = vmatpush1.msra.mxu0 0.0
    %5328 = vmatprep.mubr.f32.mxu0 0.0
    %v5329 = vand.u32 %v5258, 4294901760
    %v5330 = vsub.f32 %v5258, %v5329
    %v5331 = vand.u32 %v5330, 4294901760
    %v5332 = vsub.f32 %v5330, %v5331
    %v5333 = vand.u32 %v5332, 4294901760
    %5334 = vmatmul.mubr.f32.gmra.mrb[0].mxu0 %v5333
    %v5335 = vpop.f32.mrb[0].mxu0
    %v5336 = vadd.f32 %v5254, %v5335
    %v5337 = vpop.f32.mrb[0].mxu0
    %5338 = vdwg.mxu0
    %5339 = vmatprep.subr.mxu0 0.0
    %v5340 = vand.u32 %v5250, 4294901760
    %v5341 = vsub.f32 %v5250, %v5340
    %v5342 = vand.u32 %v5341, 4294901760
    %v5343 = vsub.f32 %v5341, %v5342
    %v5344 = vand.u32 %v5343, 4294901760
    %5345 = vmatpush1.msra.mxu0 %v5344
    %5346 = vmatprep.subr.mxu0 0.0
    %v5347 = vand.u32 %v5251, 4294901760
    %v5348 = vsub.f32 %v5251, %v5347
    %v5349 = vand.u32 %v5348, 4294901760
    %v5350 = vsub.f32 %v5348, %v5349
    %v5351 = vand.u32 %v5350, 4294901760
    %5352 = vmatpush1.msra.mxu0 %v5351
    %5353 = vmatprep.subr.mxu0 0.0
    %v5354 = vand.u32 %v5252, 4294901760
    %v5355 = vsub.f32 %v5252, %v5354
    %v5356 = vand.u32 %v5355, 4294901760
    %v5357 = vsub.f32 %v5355, %v5356
    %v5358 = vand.u32 %v5357, 4294901760
    %5359 = vmatpush1.msra.mxu0 %v5358
    %5360 = vmatprep.subr.mxu0 0.0
    %v5361 = vand.u32 %v5253, 4294901760
    %v5362 = vsub.f32 %v5253, %v5361
    %v5363 = vand.u32 %v5362, 4294901760
    %v5364 = vsub.f32 %v5362, %v5363
    %v5365 = vand.u32 %v5364, 4294901760
    %5366 = vmatpush1.msra.mxu0 %v5365
    %5367 = vmatprep.subr.mxu0 0.0
    %5368 = vmatpush1.msra.mxu0 0.0
    %5369 = vmatprep.subr.mxu0 0.0
    %5370 = vmatpush1.msra.mxu0 0.0
    %5371 = vmatprep.subr.mxu0 0.0
    %5372 = vmatpush1.msra.mxu0 0.0
    %5373 = vmatprep.subr.mxu0 0.0
    %5374 = vmatpush1.msra.mxu0 0.0
    %5375 = vmatprep.subr.mxu0 0.0
    %5376 = vmatpush1.msra.mxu0 0.0
    %5377 = vmatprep.subr.mxu0 0.0
    %5378 = vmatpush1.msra.mxu0 0.0
    %5379 = vmatprep.subr.mxu0 0.0
    %5380 = vmatpush1.msra.mxu0 0.0
    %5381 = vmatprep.subr.mxu0 0.0
    %5382 = vmatpush1.msra.mxu0 0.0
    %5383 = vmatprep.subr.mxu0 0.0
    %5384 = vmatpush1.msra.mxu0 0.0
    %5385 = vmatprep.subr.mxu0 0.0
    %5386 = vmatpush1.msra.mxu0 0.0
    %5387 = vmatprep.subr.mxu0 0.0
    %5388 = vmatpush1.msra.mxu0 0.0
    %5389 = vmatprep.subr.mxu0 0.0
    %5390 = vmatpush1.msra.mxu0 0.0
    %5391 = vmatprep.subr.mxu0 0.0
    %5392 = vmatpush1.msra.mxu0 0.0
    %5393 = vmatprep.subr.mxu0 0.0
    %5394 = vmatpush1.msra.mxu0 0.0
    %5395 = vmatprep.subr.mxu0 0.0
    %5396 = vmatpush1.msra.mxu0 0.0
    %5397 = vmatprep.subr.mxu0 0.0
    %5398 = vmatpush1.msra.mxu0 0.0
    %5399 = vmatprep.subr.mxu0 0.0
    %5400 = vmatpush1.msra.mxu0 0.0
    %5401 = vmatprep.subr.mxu0 0.0
    %5402 = vmatpush1.msra.mxu0 0.0
    %5403 = vmatprep.subr.mxu0 0.0
    %5404 = vmatpush1.msra.mxu0 0.0
    %5405 = vmatprep.subr.mxu0 0.0
    %5406 = vmatpush1.msra.mxu0 0.0
    %5407 = vmatprep.subr.mxu0 0.0
    %5408 = vmatpush1.msra.mxu0 0.0
    %5409 = vmatprep.subr.mxu0 0.0
    %5410 = vmatpush1.msra.mxu0 0.0
    %5411 = vmatprep.subr.mxu0 0.0
    %5412 = vmatpush1.msra.mxu0 0.0
    %5413 = vmatprep.subr.mxu0 0.0
    %5414 = vmatpush1.msra.mxu0 0.0
    %5415 = vmatprep.subr.mxu0 0.0
    %5416 = vmatpush1.msra.mxu0 0.0
    %5417 = vmatprep.subr.mxu0 0.0
    %5418 = vmatpush1.msra.mxu0 0.0
    %5419 = vmatprep.subr.mxu0 0.0
    %5420 = vmatpush1.msra.mxu0 0.0
    %5421 = vmatprep.subr.mxu0 0.0
    %5422 = vmatpush1.msra.mxu0 0.0
    %5423 = vmatprep.mubr.f32.mxu0 0.0
    %v5424 = vand.u32 %v5258, 4294901760
    %5425 = vmatmul.mubr.f32.gmra.mrb[0].mxu0 %v5424
    %v5426 = vpop.f32.mrb[0].mxu0
    %v5427 = vadd.f32 %v5336, %v5426
    %v5428 = vpop.f32.mrb[0].mxu0
    %5429 = vdwg.mxu0
    %5430 = vmatprep.subr.mxu0 0.0
    %v5431 = vand.u32 %v5250, 4294901760
    %v5432 = vsub.f32 %v5250, %v5431
    %5433 = vmatpush1.msra.mxu0 %v5432
    %5434 = vmatprep.subr.mxu0 0.0
    %v5435 = vand.u32 %v5251, 4294901760
    %v5436 = vsub.f32 %v5251, %v5435
    %5437 = vmatpush1.msra.mxu0 %v5436
    %5438 = vmatprep.subr.mxu0 0.0
    %v5439 = vand.u32 %v5252, 4294901760
    %v5440 = vsub.f32 %v5252, %v5439
    %5441 = vmatpush1.msra.mxu0 %v5440
    %5442 = vmatprep.subr.mxu0 0.0
    %v5443 = vand.u32 %v5253, 4294901760
    %v5444 = vsub.f32 %v5253, %v5443
    %5445 = vmatpush1.msra.mxu0 %v5444
    %5446 = vmatprep.subr.mxu0 0.0
    %5447 = vmatpush1.msra.mxu0 0.0
    %5448 = vmatprep.subr.mxu0 0.0
    %5449 = vmatpush1.msra.mxu0 0.0
    %5450 = vmatprep.subr.mxu0 0.0
    %5451 = vmatpush1.msra.mxu0 0.0
    %5452 = vmatprep.subr.mxu0 0.0
    %5453 = vmatpush1.msra.mxu0 0.0
    %5454 = vmatprep.subr.mxu0 0.0
    %5455 = vmatpush1.msra.mxu0 0.0
    %5456 = vmatprep.subr.mxu0 0.0
    %5457 = vmatpush1.msra.mxu0 0.0
    %5458 = vmatprep.subr.mxu0 0.0
    %5459 = vmatpush1.msra.mxu0 0.0
    %5460 = vmatprep.subr.mxu0 0.0
    %5461 = vmatpush1.msra.mxu0 0.0
    %5462 = vmatprep.subr.mxu0 0.0
    %5463 = vmatpush1.msra.mxu0 0.0
    %5464 = vmatprep.subr.mxu0 0.0
    %5465 = vmatpush1.msra.mxu0 0.0
    %5466 = vmatprep.subr.mxu0 0.0
    %5467 = vmatpush1.msra.mxu0 0.0
    %5468 = vmatprep.subr.mxu0 0.0
    %5469 = vmatpush1.msra.mxu0 0.0
    %5470 = vmatprep.subr.mxu0 0.0
    %5471 = vmatpush1.msra.mxu0 0.0
    %5472 = vmatprep.subr.mxu0 0.0
    %5473 = vmatpush1.msra.mxu0 0.0
    %5474 = vmatprep.subr.mxu0 0.0
    %5475 = vmatpush1.msra.mxu0 0.0
    %5476 = vmatprep.subr.mxu0 0.0
    %5477 = vmatpush1.msra.mxu0 0.0
    %5478 = vmatprep.subr.mxu0 0.0
    %5479 = vmatpush1.msra.mxu0 0.0
    %5480 = vmatprep.subr.mxu0 0.0
    %5481 = vmatpush1.msra.mxu0 0.0
    %5482 = vmatprep.subr.mxu0 0.0
    %5483 = vmatpush1.msra.mxu0 0.0
    %5484 = vmatprep.subr.mxu0 0.0
    %5485 = vmatpush1.msra.mxu0 0.0
    %5486 = vmatprep.subr.mxu0 0.0
    %5487 = vmatpush1.msra.mxu0 0.0
    %5488 = vmatprep.subr.mxu0 0.0
    %5489 = vmatpush1.msra.mxu0 0.0
    %5490 = vmatprep.subr.mxu0 0.0
    %5491 = vmatpush1.msra.mxu0 0.0
    %5492 = vmatprep.subr.mxu0 0.0
    %5493 = vmatpush1.msra.mxu0 0.0
    %5494 = vmatprep.subr.mxu0 0.0
    %5495 = vmatpush1.msra.mxu0 0.0
    %5496 = vmatprep.subr.mxu0 0.0
    %5497 = vmatpush1.msra.mxu0 0.0
    %5498 = vmatprep.subr.mxu0 0.0
    %5499 = vmatpush1.msra.mxu0 0.0
    %5500 = vmatprep.subr.mxu0 0.0
    %5501 = vmatpush1.msra.mxu0 0.0
    %5502 = vmatprep.mubr.f32.mxu0 0.0
    %v5503 = vand.u32 %v5258, 4294901760
    %v5504 = vsub.f32 %v5258, %v5503
    %5505 = vmatmul.mubr.f32.gmra.mrb[0].mxu0 %v5504
    %v5506 = vpop.f32.mrb[0].mxu0
    %v5507 = vadd.f32 %v5427, %v5506
    %v5508 = vpop.f32.mrb[0].mxu0
    %5509 = vdwg.mxu0
    %5510 = vmatprep.subr.mxu0 0.0
    %v5511 = vand.u32 %v5250, 4294901760
    %5512 = vmatpush1.msra.mxu0 %v5511
    %5513 = vmatprep.subr.mxu0 0.0
    %v5514 = vand.u32 %v5251, 4294901760
    %5515 = vmatpush1.msra.mxu0 %v5514
    %5516 = vmatprep.subr.mxu0 0.0
    %v5517 = vand.u32 %v5252, 4294901760
    %5518 = vmatpush1.msra.mxu0 %v5517
    %5519 = vmatprep.subr.mxu0 0.0
    %v5520 = vand.u32 %v5253, 4294901760
    %5521 = vmatpush1.msra.mxu0 %v5520
    %5522 = vmatprep.subr.mxu0 0.0
    %5523 = vmatpush1.msra.mxu0 0.0
    %5524 = vmatprep.subr.mxu0 0.0
    %5525 = vmatpush1.msra.mxu0 0.0
    %5526 = vmatprep.subr.mxu0 0.0
    %5527 = vmatpush1.msra.mxu0 0.0
    %5528 = vmatprep.subr.mxu0 0.0
    %5529 = vmatpush1.msra.mxu0 0.0
    %5530 = vmatprep.subr.mxu0 0.0
    %5531 = vmatpush1.msra.mxu0 0.0
    %5532 = vmatprep.subr.mxu0 0.0
    %5533 = vmatpush1.msra.mxu0 0.0
    %5534 = vmatprep.subr.mxu0 0.0
    %5535 = vmatpush1.msra.mxu0 0.0
    %5536 = vmatprep.subr.mxu0 0.0
    %5537 = vmatpush1.msra.mxu0 0.0
    %5538 = vmatprep.subr.mxu0 0.0
    %5539 = vmatpush1.msra.mxu0 0.0
    %5540 = vmatprep.subr.mxu0 0.0
    %5541 = vmatpush1.msra.mxu0 0.0
    %5542 = vmatprep.subr.mxu0 0.0
    %5543 = vmatpush1.msra.mxu0 0.0
    %5544 = vmatprep.subr.mxu0 0.0
    %5545 = vmatpush1.msra.mxu0 0.0
    %5546 = vmatprep.subr.mxu0 0.0
    %5547 = vmatpush1.msra.mxu0 0.0
    %5548 = vmatprep.subr.mxu0 0.0
    %5549 = vmatpush1.msra.mxu0 0.0
    %5550 = vmatprep.subr.mxu0 0.0
    %5551 = vmatpush1.msra.mxu0 0.0
    %5552 = vmatprep.subr.mxu0 0.0
    %5553 = vmatpush1.msra.mxu0 0.0
    %5554 = vmatprep.subr.mxu0 0.0
    %5555 = vmatpush1.msra.mxu0 0.0
    %5556 = vmatprep.subr.mxu0 0.0
    %5557 = vmatpush1.msra.mxu0 0.0
    %5558 = vmatprep.subr.mxu0 0.0
    %5559 = vmatpush1.msra.mxu0 0.0
    %5560 = vmatprep.subr.mxu0 0.0
    %5561 = vmatpush1.msra.mxu0 0.0
    %5562 = vmatprep.subr.mxu0 0.0
    %5563 = vmatpush1.msra.mxu0 0.0
    %5564 = vmatprep.subr.mxu0 0.0
    %5565 = vmatpush1.msra.mxu0 0.0
    %5566 = vmatprep.subr.mxu0 0.0
    %5567 = vmatpush1.msra.mxu0 0.0
    %5568 = vmatprep.subr.mxu0 0.0
    %5569 = vmatpush1.msra.mxu0 0.0
    %5570 = vmatprep.subr.mxu0 0.0
    %5571 = vmatpush1.msra.mxu0 0.0
    %5572 = vmatprep.subr.mxu0 0.0
    %5573 = vmatpush1.msra.mxu0 0.0
    %5574 = vmatprep.subr.mxu0 0.0
    %5575 = vmatpush1.msra.mxu0 0.0
    %5576 = vmatprep.subr.mxu0 0.0
    %5577 = vmatpush1.msra.mxu0 0.0
    %5578 = vmatprep.mubr.f32.mxu0 0.0
    %v5579 = vand.u32 %v5258, 4294901760
    %v5580 = vsub.f32 %v5258, %v5579
    %v5581 = vand.u32 %v5580, 4294901760
    %5582 = vmatmul.mubr.f32.gmra.mrb[0].mxu0 %v5581
    %v5583 = vpop.f32.mrb[0].mxu0
    %v5584 = vadd.f32 %v5507, %v5583
    %v5585 = vpop.f32.mrb[0].mxu0
    %5586 = vdwg.mxu0
    %5587 = vmatprep.subr.mxu0 0.0
    %v5588 = vand.u32 %v5250, 4294901760
    %v5589 = vsub.f32 %v5250, %v5588
    %v5590 = vand.u32 %v5589, 4294901760
    %5591 = vmatpush1.msra.mxu0 %v5590
    %5592 = vmatprep.subr.mxu0 0.0
    %v5593 = vand.u32 %v5251, 4294901760
    %v5594 = vsub.f32 %v5251, %v5593
    %v5595 = vand.u32 %v5594, 4294901760
    %5596 = vmatpush1.msra.mxu0 %v5595
    %5597 = vmatprep.subr.mxu0 0.0
    %v5598 = vand.u32 %v5252, 4294901760
    %v5599 = vsub.f32 %v5252, %v5598
    %v5600 = vand.u32 %v5599, 4294901760
    %5601 = vmatpush1.msra.mxu0 %v5600
    %5602 = vmatprep.subr.mxu0 0.0
    %v5603 = vand.u32 %v5253, 4294901760
    %v5604 = vsub.f32 %v5253, %v5603
    %v5605 = vand.u32 %v5604, 4294901760
    %5606 = vmatpush1.msra.mxu0 %v5605
    %5607 = vmatprep.subr.mxu0 0.0
    %5608 = vmatpush1.msra.mxu0 0.0
    %5609 = vmatprep.subr.mxu0 0.0
    %5610 = vmatpush1.msra.mxu0 0.0
    %5611 = vmatprep.subr.mxu0 0.0
    %5612 = vmatpush1.msra.mxu0 0.0
    %5613 = vmatprep.subr.mxu0 0.0
    %5614 = vmatpush1.msra.mxu0 0.0
    %5615 = vmatprep.subr.mxu0 0.0
    %5616 = vmatpush1.msra.mxu0 0.0
    %5617 = vmatprep.subr.mxu0 0.0
    %5618 = vmatpush1.msra.mxu0 0.0
    %5619 = vmatprep.subr.mxu0 0.0
    %5620 = vmatpush1.msra.mxu0 0.0
    %5621 = vmatprep.subr.mxu0 0.0
    %5622 = vmatpush1.msra.mxu0 0.0
    %5623 = vmatprep.subr.mxu0 0.0
    %5624 = vmatpush1.msra.mxu0 0.0
    %5625 = vmatprep.subr.mxu0 0.0
    %5626 = vmatpush1.msra.mxu0 0.0
    %5627 = vmatprep.subr.mxu0 0.0
    %5628 = vmatpush1.msra.mxu0 0.0
    %5629 = vmatprep.subr.mxu0 0.0
    %5630 = vmatpush1.msra.mxu0 0.0
    %5631 = vmatprep.subr.mxu0 0.0
    %5632 = vmatpush1.msra.mxu0 0.0
    %5633 = vmatprep.subr.mxu0 0.0
    %5634 = vmatpush1.msra.mxu0 0.0
    %5635 = vmatprep.subr.mxu0 0.0
    %5636 = vmatpush1.msra.mxu0 0.0
    %5637 = vmatprep.subr.mxu0 0.0
    %5638 = vmatpush1.msra.mxu0 0.0
    %5639 = vmatprep.subr.mxu0 0.0
    %5640 = vmatpush1.msra.mxu0 0.0
    %5641 = vmatprep.subr.mxu0 0.0
    %5642 = vmatpush1.msra.mxu0 0.0
    %5643 = vmatprep.subr.mxu0 0.0
    %5644 = vmatpush1.msra.mxu0 0.0
    %5645 = vmatprep.subr.mxu0 0.0
    %5646 = vmatpush1.msra.mxu0 0.0
    %5647 = vmatprep.subr.mxu0 0.0
    %5648 = vmatpush1.msra.mxu0 0.0
    %5649 = vmatprep.subr.mxu0 0.0
    %5650 = vmatpush1.msra.mxu0 0.0
    %5651 = vmatprep.subr.mxu0 0.0
    %5652 = vmatpush1.msra.mxu0 0.0
    %5653 = vmatprep.subr.mxu0 0.0
    %5654 = vmatpush1.msra.mxu0 0.0
    %5655 = vmatprep.subr.mxu0 0.0
    %5656 = vmatpush1.msra.mxu0 0.0
    %5657 = vmatprep.subr.mxu0 0.0
    %5658 = vmatpush1.msra.mxu0 0.0
    %5659 = vmatprep.subr.mxu0 0.0
    %5660 = vmatpush1.msra.mxu0 0.0
    %5661 = vmatprep.subr.mxu0 0.0
    %5662 = vmatpush1.msra.mxu0 0.0
    %5663 = vmatprep.mubr.f32.mxu0 0.0
    %v5664 = vand.u32 %v5258, 4294901760
    %5665 = vmatmul.mubr.f32.gmra.mrb[0].mxu0 %v5664
    %v5666 = vpop.f32.mrb[0].mxu0
    %v5667 = vadd.f32 %v5584, %v5666
    %v5668 = vpop.f32.mrb[0].mxu0
    %5669 = vdwg.mxu0
    %5670 = vmatprep.subr.mxu0 0.0
    %v5671 = vand.u32 %v5250, 4294901760
    %5672 = vmatpush1.msra.mxu0 %v5671
    %5673 = vmatprep.subr.mxu0 0.0
    %v5674 = vand.u32 %v5251, 4294901760
    %5675 = vmatpush1.msra.mxu0 %v5674
    %5676 = vmatprep.subr.mxu0 0.0
    %v5677 = vand.u32 %v5252, 4294901760
    %5678 = vmatpush1.msra.mxu0 %v5677
    %5679 = vmatprep.subr.mxu0 0.0
    %v5680 = vand.u32 %v5253, 4294901760
    %5681 = vmatpush1.msra.mxu0 %v5680
    %5682 = vmatprep.subr.mxu0 0.0
    %5683 = vmatpush1.msra.mxu0 0.0
    %5684 = vmatprep.subr.mxu0 0.0
    %5685 = vmatpush1.msra.mxu0 0.0
    %5686 = vmatprep.subr.mxu0 0.0
    %5687 = vmatpush1.msra.mxu0 0.0
    %5688 = vmatprep.subr.mxu0 0.0
    %5689 = vmatpush1.msra.mxu0 0.0
    %5690 = vmatprep.subr.mxu0 0.0
    %5691 = vmatpush1.msra.mxu0 0.0
    %5692 = vmatprep.subr.mxu0 0.0
    %5693 = vmatpush1.msra.mxu0 0.0
    %5694 = vmatprep.subr.mxu0 0.0
    %5695 = vmatpush1.msra.mxu0 0.0
    %5696 = vmatprep.subr.mxu0 0.0
    %5697 = vmatpush1.msra.mxu0 0.0
    %5698 = vmatprep.subr.mxu0 0.0
    %5699 = vmatpush1.msra.mxu0 0.0
    %5700 = vmatprep.subr.mxu0 0.0
    %5701 = vmatpush1.msra.mxu0 0.0
    %5702 = vmatprep.subr.mxu0 0.0
    %5703 = vmatpush1.msra.mxu0 0.0
    %5704 = vmatprep.subr.mxu0 0.0
    %5705 = vmatpush1.msra.mxu0 0.0
    %5706 = vmatprep.subr.mxu0 0.0
    %5707 = vmatpush1.msra.mxu0 0.0
    %5708 = vmatprep.subr.mxu0 0.0
    %5709 = vmatpush1.msra.mxu0 0.0
    %5710 = vmatprep.subr.mxu0 0.0
    %5711 = vmatpush1.msra.mxu0 0.0
    %5712 = vmatprep.subr.mxu0 0.0
    %5713 = vmatpush1.msra.mxu0 0.0
    %5714 = vmatprep.subr.mxu0 0.0
    %5715 = vmatpush1.msra.mxu0 0.0
    %5716 = vmatprep.subr.mxu0 0.0
    %5717 = vmatpush1.msra.mxu0 0.0
    %5718 = vmatprep.subr.mxu0 0.0
    %5719 = vmatpush1.msra.mxu0 0.0
    %5720 = vmatprep.subr.mxu0 0.0
    %5721 = vmatpush1.msra.mxu0 0.0
    %5722 = vmatprep.subr.mxu0 0.0
    %5723 = vmatpush1.msra.mxu0 0.0
    %5724 = vmatprep.subr.mxu0 0.0
    %5725 = vmatpush1.msra.mxu0 0.0
    %5726 = vmatprep.subr.mxu0 0.0
    %5727 = vmatpush1.msra.mxu0 0.0
    %5728 = vmatprep.subr.mxu0 0.0
    %5729 = vmatpush1.msra.mxu0 0.0
    %5730 = vmatprep.subr.mxu0 0.0
    %5731 = vmatpush1.msra.mxu0 0.0
    %5732 = vmatprep.subr.mxu0 0.0
    %5733 = vmatpush1.msra.mxu0 0.0
    %5734 = vmatprep.subr.mxu0 0.0
    %5735 = vmatpush1.msra.mxu0 0.0
    %5736 = vmatprep.subr.mxu0 0.0
    %5737 = vmatpush1.msra.mxu0 0.0
    %5738 = vmatprep.mubr.f32.mxu0 0.0
    %v5739 = vand.u32 %v5258, 4294901760
    %5740 = vmatmul.mubr.f32.gmra.mrb[0].mxu0 %v5739
    %v5741 = vpop.f32.mrb[0].mxu0
    %v5742 = vadd.f32 %v5667, %v5741
    %v5743 = vpop.f32.mrb[0].mxu0
    %5744 = vdwg.mxu0
    %v5746 = vrot.slane %v5742, 7
    %v5748 = vsel %vm1649, %v5247, %v5746
    %v5749 = vxor.u32 %v5748, 2147483648
    %v5750 = vmul.f32 %v5749, 1.442695
    %v5751 = vpow.pop %v5750
    %v5752 = vadd.f32 %v5751, 1.0
    %v5753 = vrcp.pop %v5752
    %v5754 = vmul.f32 1.0, %v5753
    %v5755 = vtanh.pop %v5748
    %v5756 = vmul.f32 %v5754, %v4742
    %5758 = vrot.lane.b32.xlu0 %v5755, 64
    %v5759 = vpop.permute.xlu0 %5758
    %v5761 = vmul.f32 %v5754, %v5759
    %5763 = vrot.lane.b32.xlu0 %v5761, 32
    %v5764 = vpop.permute.xlu0 %5763
    %v5766 = vadd.f32 %v5756, %v5764
    %v5767 = vtanh.pop %v5766
    %5769 = vrot.lane.b32.xlu0 %v5767, 64
    %v5770 = vpop.permute.xlu0 %5769
    %v5772 = vmul.f32 %v5754, %v5770
    %5774 = vrot.lane.b32.xlu0 %v5772, 32
    %v5775 = vpop.permute.xlu0 %5774
    %5777 = vst.msk [vmem:[#allocation3 + $0x4] sm:$0x1] %vm1679, %v5775
    %5778 = vrot.lane.b32.xlu0 %v5772, 64
    %v5779 = vpop.permute.xlu0 %5778
    %5781 = vst.msk [vmem:[#allocation3 + $0x2] sm:$0x2] %vm1684, %v5779
    %v5782 = vld [vmem:[#allocation9] sm:$0xff]
    %v5783 = vld [vmem:[#allocation9 + $0x8] sm:$0xff]
    %v5784 = vld [vmem:[#allocation9 + $0x10] sm:$0xff]
    %v5785 = vld [vmem:[#allocation9 + $0x18] sm:$0xff]
    %v5786 = vld [vmem:[#allocation2 + $0x5] ss:$0 sm:$0xff]
    %v5787 = vsel %vm114, %v5775, 0
    %5789 = vmatprep.subr.mxu0 0.0
    %v5790 = vand.u32 %v5782, 4294901760
    %5791 = vmatpush1.msra.mxu0 %v5790
    %5792 = vmatprep.subr.mxu0 0.0
    %v5793 = vand.u32 %v5783, 4294901760
    %5794 = vmatpush1.msra.mxu0 %v5793
    %5795 = vmatprep.subr.mxu0 0.0
    %v5796 = vand.u32 %v5784, 4294901760
    %5797 = vmatpush1.msra.mxu0 %v5796
    %5798 = vmatprep.subr.mxu0 0.0
    %v5799 = vand.u32 %v5785, 4294901760
    %5800 = vmatpush1.msra.mxu0 %v5799
    %5801 = vmatprep.subr.mxu0 0.0
    %5802 = vmatpush1.msra.mxu0 0.0
    %5803 = vmatprep.subr.mxu0 0.0
    %5804 = vmatpush1.msra.mxu0 0.0
    %5805 = vmatprep.subr.mxu0 0.0
    %5806 = vmatpush1.msra.mxu0 0.0
    %5807 = vmatprep.subr.mxu0 0.0
    %5808 = vmatpush1.msra.mxu0 0.0
    %5809 = vmatprep.subr.mxu0 0.0
    %5810 = vmatpush1.msra.mxu0 0.0
    %5811 = vmatprep.subr.mxu0 0.0
    %5812 = vmatpush1.msra.mxu0 0.0
    %5813 = vmatprep.subr.mxu0 0.0
    %5814 = vmatpush1.msra.mxu0 0.0
    %5815 = vmatprep.subr.mxu0 0.0
    %5816 = vmatpush1.msra.mxu0 0.0
    %5817 = vmatprep.subr.mxu0 0.0
    %5818 = vmatpush1.msra.mxu0 0.0
    %5819 = vmatprep.subr.mxu0 0.0
    %5820 = vmatpush1.msra.mxu0 0.0
    %5821 = vmatprep.subr.mxu0 0.0
    %5822 = vmatpush1.msra.mxu0 0.0
    %5823 = vmatprep.subr.mxu0 0.0
    %5824 = vmatpush1.msra.mxu0 0.0
    %5825 = vmatprep.subr.mxu0 0.0
    %5826 = vmatpush1.msra.mxu0 0.0
    %5827 = vmatprep.subr.mxu0 0.0
    %5828 = vmatpush1.msra.mxu0 0.0
    %5829 = vmatprep.subr.mxu0 0.0
    %5830 = vmatpush1.msra.mxu0 0.0
    %5831 = vmatprep.subr.mxu0 0.0
    %5832 = vmatpush1.msra.mxu0 0.0
    %5833 = vmatprep.subr.mxu0 0.0
    %5834 = vmatpush1.msra.mxu0 0.0
    %5835 = vmatprep.subr.mxu0 0.0
    %5836 = vmatpush1.msra.mxu0 0.0
    %5837 = vmatprep.subr.mxu0 0.0
    %5838 = vmatpush1.msra.mxu0 0.0
    %5839 = vmatprep.subr.mxu0 0.0
    %5840 = vmatpush1.msra.mxu0 0.0
    %5841 = vmatprep.subr.mxu0 0.0
    %5842 = vmatpush1.msra.mxu0 0.0
    %5843 = vmatprep.subr.mxu0 0.0
    %5844 = vmatpush1.msra.mxu0 0.0
    %5845 = vmatprep.subr.mxu0 0.0
    %5846 = vmatpush1.msra.mxu0 0.0
    %5847 = vmatprep.subr.mxu0 0.0
    %5848 = vmatpush1.msra.mxu0 0.0
    %5849 = vmatprep.subr.mxu0 0.0
    %5850 = vmatpush1.msra.mxu0 0.0
    %5851 = vmatprep.subr.mxu0 0.0
    %5852 = vmatpush1.msra.mxu0 0.0
    %5853 = vmatprep.subr.mxu0 0.0
    %5854 = vmatpush1.msra.mxu0 0.0
    %5855 = vmatprep.subr.mxu0 0.0
    %5856 = vmatpush1.msra.mxu0 0.0
    %5857 = vmatprep.mubr.f32.mxu0 0.0
    %v5858 = vand.u32 %v5787, 4294901760
    %v5859 = vsub.f32 %v5787, %v5858
    %v5860 = vand.u32 %v5859, 4294901760
    %v5861 = vsub.f32 %v5859, %v5860
    %v5862 = vand.u32 %v5861, 4294901760
    %5863 = vmatmul.mubr.f32.gmra.mrb[0].mxu0 %v5862
    %v5864 = vpop.f32.mrb[0].mxu0
    %v5865 = vadd.f32 %v5786, %v5864
    %v5866 = vpop.f32.mrb[0].mxu0
    %5867 = vdwg.mxu0
    %5868 = vmatprep.subr.mxu0 0.0
    %v5869 = vand.u32 %v5782, 4294901760
    %v5870 = vsub.f32 %v5782, %v5869
    %v5871 = vand.u32 %v5870, 4294901760
    %v5872 = vsub.f32 %v5870, %v5871
    %v5873 = vand.u32 %v5872, 4294901760
    %5874 = vmatpush1.msra.mxu0 %v5873
    %5875 = vmatprep.subr.mxu0 0.0
    %v5876 = vand.u32 %v5783, 4294901760
    %v5877 = vsub.f32 %v5783, %v5876
    %v5878 = vand.u32 %v5877, 4294901760
    %v5879 = vsub.f32 %v5877, %v5878
    %v5880 = vand.u32 %v5879, 4294901760
    %5881 = vmatpush1.msra.mxu0 %v5880
    %5882 = vmatprep.subr.mxu0 0.0
    %v5883 = vand.u32 %v5784, 4294901760
    %v5884 = vsub.f32 %v5784, %v5883
    %v5885 = vand.u32 %v5884, 4294901760
    %v5886 = vsub.f32 %v5884, %v5885
    %v5887 = vand.u32 %v5886, 4294901760
    %5888 = vmatpush1.msra.mxu0 %v5887
    %5889 = vmatprep.subr.mxu0 0.0
    %v5890 = vand.u32 %v5785, 4294901760
    %v5891 = vsub.f32 %v5785, %v5890
    %v5892 = vand.u32 %v5891, 4294901760
    %v5893 = vsub.f32 %v5891, %v5892
    %v5894 = vand.u32 %v5893, 4294901760
    %5895 = vmatpush1.msra.mxu0 %v5894
    %5896 = vmatprep.subr.mxu0 0.0
    %5897 = vmatpush1.msra.mxu0 0.0
    %5898 = vmatprep.subr.mxu0 0.0
    %5899 = vmatpush1.msra.mxu0 0.0
    %5900 = vmatprep.subr.mxu0 0.0
    %5901 = vmatpush1.msra.mxu0 0.0
    %5902 = vmatprep.subr.mxu0 0.0
    %5903 = vmatpush1.msra.mxu0 0.0
    %5904 = vmatprep.subr.mxu0 0.0
    %5905 = vmatpush1.msra.mxu0 0.0
    %5906 = vmatprep.subr.mxu0 0.0
    %5907 = vmatpush1.msra.mxu0 0.0
    %5908 = vmatprep.subr.mxu0 0.0
    %5909 = vmatpush1.msra.mxu0 0.0
    %5910 = vmatprep.subr.mxu0 0.0
    %5911 = vmatpush1.msra.mxu0 0.0
    %5912 = vmatprep.subr.mxu0 0.0
    %5913 = vmatpush1.msra.mxu0 0.0
    %5914 = vmatprep.subr.mxu0 0.0
    %5915 = vmatpush1.msra.mxu0 0.0
    %5916 = vmatprep.subr.mxu0 0.0
    %5917 = vmatpush1.msra.mxu0 0.0
    %5918 = vmatprep.subr.mxu0 0.0
    %5919 = vmatpush1.msra.mxu0 0.0
    %5920 = vmatprep.subr.mxu0 0.0
    %5921 = vmatpush1.msra.mxu0 0.0
    %5922 = vmatprep.subr.mxu0 0.0
    %5923 = vmatpush1.msra.mxu0 0.0
    %5924 = vmatprep.subr.mxu0 0.0
    %5925 = vmatpush1.msra.mxu0 0.0
    %5926 = vmatprep.subr.mxu0 0.0
    %5927 = vmatpush1.msra.mxu0 0.0
    %5928 = vmatprep.subr.mxu0 0.0
    %5929 = vmatpush1.msra.mxu0 0.0
    %5930 = vmatprep.subr.mxu0 0.0
    %5931 = vmatpush1.msra.mxu0 0.0
    %5932 = vmatprep.subr.mxu0 0.0
    %5933 = vmatpush1.msra.mxu0 0.0
    %5934 = vmatprep.subr.mxu0 0.0
    %5935 = vmatpush1.msra.mxu0 0.0
    %5936 = vmatprep.subr.mxu0 0.0
    %5937 = vmatpush1.msra.mxu0 0.0
    %5938 = vmatprep.subr.mxu0 0.0
    %5939 = vmatpush1.msra.mxu0 0.0
    %5940 = vmatprep.subr.mxu0 0.0
    %5941 = vmatpush1.msra.mxu0 0.0
    %5942 = vmatprep.subr.mxu0 0.0
    %5943 = vmatpush1.msra.mxu0 0.0
    %5944 = vmatprep.subr.mxu0 0.0
    %5945 = vmatpush1.msra.mxu0 0.0
    %5946 = vmatprep.subr.mxu0 0.0
    %5947 = vmatpush1.msra.mxu0 0.0
    %5948 = vmatprep.subr.mxu0 0.0
    %5949 = vmatpush1.msra.mxu0 0.0
    %5950 = vmatprep.subr.mxu0 0.0
    %5951 = vmatpush1.msra.mxu0 0.0
    %5952 = vmatprep.mubr.f32.mxu0 0.0
    %v5953 = vand.u32 %v5787, 4294901760
    %5954 = vmatmul.mubr.f32.gmra.mrb[0].mxu0 %v5953
    %v5955 = vpop.f32.mrb[0].mxu0
    %v5956 = vadd.f32 %v5865, %v5955
    %v5957 = vpop.f32.mrb[0].mxu0
    %5958 = vdwg.mxu0
    %5959 = vmatprep.subr.mxu0 0.0
    %v5960 = vand.u32 %v5782, 4294901760
    %v5961 = vsub.f32 %v5782, %v5960
    %5962 = vmatpush1.msra.mxu0 %v5961
    %5963 = vmatprep.subr.mxu0 0.0
    %v5964 = vand.u32 %v5783, 4294901760
    %v5965 = vsub.f32 %v5783, %v5964
    %5966 = vmatpush1.msra.mxu0 %v5965
    %5967 = vmatprep.subr.mxu0 0.0
    %v5968 = vand.u32 %v5784, 4294901760
    %v5969 = vsub.f32 %v5784, %v5968
    %5970 = vmatpush1.msra.mxu0 %v5969
    %5971 = vmatprep.subr.mxu0 0.0
    %v5972 = vand.u32 %v5785, 4294901760
    %v5973 = vsub.f32 %v5785, %v5972
    %5974 = vmatpush1.msra.mxu0 %v5973
    %5975 = vmatprep.subr.mxu0 0.0
    %5976 = vmatpush1.msra.mxu0 0.0
    %5977 = vmatprep.subr.mxu0 0.0
    %5978 = vmatpush1.msra.mxu0 0.0
    %5979 = vmatprep.subr.mxu0 0.0
    %5980 = vmatpush1.msra.mxu0 0.0
    %5981 = vmatprep.subr.mxu0 0.0
    %5982 = vmatpush1.msra.mxu0 0.0
    %5983 = vmatprep.subr.mxu0 0.0
    %5984 = vmatpush1.msra.mxu0 0.0
    %5985 = vmatprep.subr.mxu0 0.0
    %5986 = vmatpush1.msra.mxu0 0.0
    %5987 = vmatprep.subr.mxu0 0.0
    %5988 = vmatpush1.msra.mxu0 0.0
    %5989 = vmatprep.subr.mxu0 0.0
    %5990 = vmatpush1.msra.mxu0 0.0
    %5991 = vmatprep.subr.mxu0 0.0
    %5992 = vmatpush1.msra.mxu0 0.0
    %5993 = vmatprep.subr.mxu0 0.0
    %5994 = vmatpush1.msra.mxu0 0.0
    %5995 = vmatprep.subr.mxu0 0.0
    %5996 = vmatpush1.msra.mxu0 0.0
    %5997 = vmatprep.subr.mxu0 0.0
    %5998 = vmatpush1.msra.mxu0 0.0
    %5999 = vmatprep.subr.mxu0 0.0
    %6000 = vmatpush1.msra.mxu0 0.0
    %6001 = vmatprep.subr.mxu0 0.0
    %6002 = vmatpush1.msra.mxu0 0.0
    %6003 = vmatprep.subr.mxu0 0.0
    %6004 = vmatpush1.msra.mxu0 0.0
    %6005 = vmatprep.subr.mxu0 0.0
    %6006 = vmatpush1.msra.mxu0 0.0
    %6007 = vmatprep.subr.mxu0 0.0
    %6008 = vmatpush1.msra.mxu0 0.0
    %6009 = vmatprep.subr.mxu0 0.0
    %6010 = vmatpush1.msra.mxu0 0.0
    %6011 = vmatprep.subr.mxu0 0.0
    %6012 = vmatpush1.msra.mxu0 0.0
    %6013 = vmatprep.subr.mxu0 0.0
    %6014 = vmatpush1.msra.mxu0 0.0
    %6015 = vmatprep.subr.mxu0 0.0
    %6016 = vmatpush1.msra.mxu0 0.0
    %6017 = vmatprep.subr.mxu0 0.0
    %6018 = vmatpush1.msra.mxu0 0.0
    %6019 = vmatprep.subr.mxu0 0.0
    %6020 = vmatpush1.msra.mxu0 0.0
    %6021 = vmatprep.subr.mxu0 0.0
    %6022 = vmatpush1.msra.mxu0 0.0
    %6023 = vmatprep.subr.mxu0 0.0
    %6024 = vmatpush1.msra.mxu0 0.0
    %6025 = vmatprep.subr.mxu0 0.0
    %6026 = vmatpush1.msra.mxu0 0.0
    %6027 = vmatprep.subr.mxu0 0.0
    %6028 = vmatpush1.msra.mxu0 0.0
    %6029 = vmatprep.subr.mxu0 0.0
    %6030 = vmatpush1.msra.mxu0 0.0
    %6031 = vmatprep.mubr.f32.mxu0 0.0
    %v6032 = vand.u32 %v5787, 4294901760
    %v6033 = vsub.f32 %v5787, %v6032
    %6034 = vmatmul.mubr.f32.gmra.mrb[0].mxu0 %v6033
    %v6035 = vpop.f32.mrb[0].mxu0
    %v6036 = vadd.f32 %v5956, %v6035
    %v6037 = vpop.f32.mrb[0].mxu0
    %6038 = vdwg.mxu0
    %6039 = vmatprep.subr.mxu0 0.0
    %v6040 = vand.u32 %v5782, 4294901760
    %6041 = vmatpush1.msra.mxu0 %v6040
    %6042 = vmatprep.subr.mxu0 0.0
    %v6043 = vand.u32 %v5783, 4294901760
    %6044 = vmatpush1.msra.mxu0 %v6043
    %6045 = vmatprep.subr.mxu0 0.0
    %v6046 = vand.u32 %v5784, 4294901760
    %6047 = vmatpush1.msra.mxu0 %v6046
    %6048 = vmatprep.subr.mxu0 0.0
    %v6049 = vand.u32 %v5785, 4294901760
    %6050 = vmatpush1.msra.mxu0 %v6049
    %6051 = vmatprep.subr.mxu0 0.0
    %6052 = vmatpush1.msra.mxu0 0.0
    %6053 = vmatprep.subr.mxu0 0.0
    %6054 = vmatpush1.msra.mxu0 0.0
    %6055 = vmatprep.subr.mxu0 0.0
    %6056 = vmatpush1.msra.mxu0 0.0
    %6057 = vmatprep.subr.mxu0 0.0
    %6058 = vmatpush1.msra.mxu0 0.0
    %6059 = vmatprep.subr.mxu0 0.0
    %6060 = vmatpush1.msra.mxu0 0.0
    %6061 = vmatprep.subr.mxu0 0.0
    %6062 = vmatpush1.msra.mxu0 0.0
    %6063 = vmatprep.subr.mxu0 0.0
    %6064 = vmatpush1.msra.mxu0 0.0
    %6065 = vmatprep.subr.mxu0 0.0
    %6066 = vmatpush1.msra.mxu0 0.0
    %6067 = vmatprep.subr.mxu0 0.0
    %6068 = vmatpush1.msra.mxu0 0.0
    %6069 = vmatprep.subr.mxu0 0.0
    %6070 = vmatpush1.msra.mxu0 0.0
    %6071 = vmatprep.subr.mxu0 0.0
    %6072 = vmatpush1.msra.mxu0 0.0
    %6073 = vmatprep.subr.mxu0 0.0
    %6074 = vmatpush1.msra.mxu0 0.0
    %6075 = vmatprep.subr.mxu0 0.0
    %6076 = vmatpush1.msra.mxu0 0.0
    %6077 = vmatprep.subr.mxu0 0.0
    %6078 = vmatpush1.msra.mxu0 0.0
    %6079 = vmatprep.subr.mxu0 0.0
    %6080 = vmatpush1.msra.mxu0 0.0
    %6081 = vmatprep.subr.mxu0 0.0
    %6082 = vmatpush1.msra.mxu0 0.0
    %6083 = vmatprep.subr.mxu0 0.0
    %6084 = vmatpush1.msra.mxu0 0.0
    %6085 = vmatprep.subr.mxu0 0.0
    %6086 = vmatpush1.msra.mxu0 0.0
    %6087 = vmatprep.subr.mxu0 0.0
    %6088 = vmatpush1.msra.mxu0 0.0
    %6089 = vmatprep.subr.mxu0 0.0
    %6090 = vmatpush1.msra.mxu0 0.0
    %6091 = vmatprep.subr.mxu0 0.0
    %6092 = vmatpush1.msra.mxu0 0.0
    %6093 = vmatprep.subr.mxu0 0.0
    %6094 = vmatpush1.msra.mxu0 0.0
    %6095 = vmatprep.subr.mxu0 0.0
    %6096 = vmatpush1.msra.mxu0 0.0
    %6097 = vmatprep.subr.mxu0 0.0
    %6098 = vmatpush1.msra.mxu0 0.0
    %6099 = vmatprep.subr.mxu0 0.0
    %6100 = vmatpush1.msra.mxu0 0.0
    %6101 = vmatprep.subr.mxu0 0.0
    %6102 = vmatpush1.msra.mxu0 0.0
    %6103 = vmatprep.subr.mxu0 0.0
    %6104 = vmatpush1.msra.mxu0 0.0
    %6105 = vmatprep.subr.mxu0 0.0
    %6106 = vmatpush1.msra.mxu0 0.0
    %6107 = vmatprep.mubr.f32.mxu0 0.0
    %v6108 = vand.u32 %v5787, 4294901760
    %v6109 = vsub.f32 %v5787, %v6108
    %v6110 = vand.u32 %v6109, 4294901760
    %6111 = vmatmul.mubr.f32.gmra.mrb[0].mxu0 %v6110
    %v6112 = vpop.f32.mrb[0].mxu0
    %v6113 = vadd.f32 %v6036, %v6112
    %v6114 = vpop.f32.mrb[0].mxu0
    %6115 = vdwg.mxu0
    %6116 = vmatprep.subr.mxu0 0.0
    %v6117 = vand.u32 %v5782, 4294901760
    %v6118 = vsub.f32 %v5782, %v6117
    %v6119 = vand.u32 %v6118, 4294901760
    %6120 = vmatpush1.msra.mxu0 %v6119
    %6121 = vmatprep.subr.mxu0 0.0
    %v6122 = vand.u32 %v5783, 4294901760
    %v6123 = vsub.f32 %v5783, %v6122
    %v6124 = vand.u32 %v6123, 4294901760
    %6125 = vmatpush1.msra.mxu0 %v6124
    %6126 = vmatprep.subr.mxu0 0.0
    %v6127 = vand.u32 %v5784, 4294901760
    %v6128 = vsub.f32 %v5784, %v6127
    %v6129 = vand.u32 %v6128, 4294901760
    %6130 = vmatpush1.msra.mxu0 %v6129
    %6131 = vmatprep.subr.mxu0 0.0
    %v6132 = vand.u32 %v5785, 4294901760
    %v6133 = vsub.f32 %v5785, %v6132
    %v6134 = vand.u32 %v6133, 4294901760
    %6135 = vmatpush1.msra.mxu0 %v6134
    %6136 = vmatprep.subr.mxu0 0.0
    %6137 = vmatpush1.msra.mxu0 0.0
    %6138 = vmatprep.subr.mxu0 0.0
    %6139 = vmatpush1.msra.mxu0 0.0
    %6140 = vmatprep.subr.mxu0 0.0
    %6141 = vmatpush1.msra.mxu0 0.0
    %6142 = vmatprep.subr.mxu0 0.0
    %6143 = vmatpush1.msra.mxu0 0.0
    %6144 = vmatprep.subr.mxu0 0.0
    %6145 = vmatpush1.msra.mxu0 0.0
    %6146 = vmatprep.subr.mxu0 0.0
    %6147 = vmatpush1.msra.mxu0 0.0
    %6148 = vmatprep.subr.mxu0 0.0
    %6149 = vmatpush1.msra.mxu0 0.0
    %6150 = vmatprep.subr.mxu0 0.0
    %6151 = vmatpush1.msra.mxu0 0.0
    %6152 = vmatprep.subr.mxu0 0.0
    %6153 = vmatpush1.msra.mxu0 0.0
    %6154 = vmatprep.subr.mxu0 0.0
    %6155 = vmatpush1.msra.mxu0 0.0
    %6156 = vmatprep.subr.mxu0 0.0
    %6157 = vmatpush1.msra.mxu0 0.0
    %6158 = vmatprep.subr.mxu0 0.0
    %6159 = vmatpush1.msra.mxu0 0.0
    %6160 = vmatprep.subr.mxu0 0.0
    %6161 = vmatpush1.msra.mxu0 0.0
    %6162 = vmatprep.subr.mxu0 0.0
    %6163 = vmatpush1.msra.mxu0 0.0
    %6164 = vmatprep.subr.mxu0 0.0
    %6165 = vmatpush1.msra.mxu0 0.0
    %6166 = vmatprep.subr.mxu0 0.0
    %6167 = vmatpush1.msra.mxu0 0.0
    %6168 = vmatprep.subr.mxu0 0.0
    %6169 = vmatpush1.msra.mxu0 0.0
    %6170 = vmatprep.subr.mxu0 0.0
    %6171 = vmatpush1.msra.mxu0 0.0
    %6172 = vmatprep.subr.mxu0 0.0
    %6173 = vmatpush1.msra.mxu0 0.0
    %6174 = vmatprep.subr.mxu0 0.0
    %6175 = vmatpush1.msra.mxu0 0.0
    %6176 = vmatprep.subr.mxu0 0.0
    %6177 = vmatpush1.msra.mxu0 0.0
    %6178 = vmatprep.subr.mxu0 0.0
    %6179 = vmatpush1.msra.mxu0 0.0
    %6180 = vmatprep.subr.mxu0 0.0
    %6181 = vmatpush1.msra.mxu0 0.0
    %6182 = vmatprep.subr.mxu0 0.0
    %6183 = vmatpush1.msra.mxu0 0.0
    %6184 = vmatprep.subr.mxu0 0.0
    %6185 = vmatpush1.msra.mxu0 0.0
    %6186 = vmatprep.subr.mxu0 0.0
    %6187 = vmatpush1.msra.mxu0 0.0
    %6188 = vmatprep.subr.mxu0 0.0
    %6189 = vmatpush1.msra.mxu0 0.0
    %6190 = vmatprep.subr.mxu0 0.0
    %6191 = vmatpush1.msra.mxu0 0.0
    %6192 = vmatprep.mubr.f32.mxu0 0.0
    %v6193 = vand.u32 %v5787, 4294901760
    %6194 = vmatmul.mubr.f32.gmra.mrb[0].mxu0 %v6193
    %v6195 = vpop.f32.mrb[0].mxu0
    %v6196 = vadd.f32 %v6113, %v6195
    %v6197 = vpop.f32.mrb[0].mxu0
    %6198 = vdwg.mxu0
    %6199 = vmatprep.subr.mxu0 0.0
    %v6200 = vand.u32 %v5782, 4294901760
    %6201 = vmatpush1.msra.mxu0 %v6200
    %6202 = vmatprep.subr.mxu0 0.0
    %v6203 = vand.u32 %v5783, 4294901760
    %6204 = vmatpush1.msra.mxu0 %v6203
    %6205 = vmatprep.subr.mxu0 0.0
    %v6206 = vand.u32 %v5784, 4294901760
    %6207 = vmatpush1.msra.mxu0 %v6206
    %6208 = vmatprep.subr.mxu0 0.0
    %v6209 = vand.u32 %v5785, 4294901760
    %6210 = vmatpush1.msra.mxu0 %v6209
    %6211 = vmatprep.subr.mxu0 0.0
    %6212 = vmatpush1.msra.mxu0 0.0
    %6213 = vmatprep.subr.mxu0 0.0
    %6214 = vmatpush1.msra.mxu0 0.0
    %6215 = vmatprep.subr.mxu0 0.0
    %6216 = vmatpush1.msra.mxu0 0.0
    %6217 = vmatprep.subr.mxu0 0.0
    %6218 = vmatpush1.msra.mxu0 0.0
    %6219 = vmatprep.subr.mxu0 0.0
    %6220 = vmatpush1.msra.mxu0 0.0
    %6221 = vmatprep.subr.mxu0 0.0
    %6222 = vmatpush1.msra.mxu0 0.0
    %6223 = vmatprep.subr.mxu0 0.0
    %6224 = vmatpush1.msra.mxu0 0.0
    %6225 = vmatprep.subr.mxu0 0.0
    %6226 = vmatpush1.msra.mxu0 0.0
    %6227 = vmatprep.subr.mxu0 0.0
    %6228 = vmatpush1.msra.mxu0 0.0
    %6229 = vmatprep.subr.mxu0 0.0
    %6230 = vmatpush1.msra.mxu0 0.0
    %6231 = vmatprep.subr.mxu0 0.0
    %6232 = vmatpush1.msra.mxu0 0.0
    %6233 = vmatprep.subr.mxu0 0.0
    %6234 = vmatpush1.msra.mxu0 0.0
    %6235 = vmatprep.subr.mxu0 0.0
    %6236 = vmatpush1.msra.mxu0 0.0
    %6237 = vmatprep.subr.mxu0 0.0
    %6238 = vmatpush1.msra.mxu0 0.0
    %6239 = vmatprep.subr.mxu0 0.0
    %6240 = vmatpush1.msra.mxu0 0.0
    %6241 = vmatprep.subr.mxu0 0.0
    %6242 = vmatpush1.msra.mxu0 0.0
    %6243 = vmatprep.subr.mxu0 0.0
    %6244 = vmatpush1.msra.mxu0 0.0
    %6245 = vmatprep.subr.mxu0 0.0
    %6246 = vmatpush1.msra.mxu0 0.0
    %6247 = vmatprep.subr.mxu0 0.0
    %6248 = vmatpush1.msra.mxu0 0.0
    %6249 = vmatprep.subr.mxu0 0.0
    %6250 = vmatpush1.msra.mxu0 0.0
    %6251 = vmatprep.subr.mxu0 0.0
    %6252 = vmatpush1.msra.mxu0 0.0
    %6253 = vmatprep.subr.mxu0 0.0
    %6254 = vmatpush1.msra.mxu0 0.0
    %6255 = vmatprep.subr.mxu0 0.0
    %6256 = vmatpush1.msra.mxu0 0.0
    %6257 = vmatprep.subr.mxu0 0.0
    %6258 = vmatpush1.msra.mxu0 0.0
    %6259 = vmatprep.subr.mxu0 0.0
    %6260 = vmatpush1.msra.mxu0 0.0
    %6261 = vmatprep.subr.mxu0 0.0
    %6262 = vmatpush1.msra.mxu0 0.0
    %6263 = vmatprep.subr.mxu0 0.0
    %6264 = vmatpush1.msra.mxu0 0.0
    %6265 = vmatprep.subr.mxu0 0.0
    %6266 = vmatpush1.msra.mxu0 0.0
    %6267 = vmatprep.mubr.f32.mxu0 0.0
    %v6268 = vand.u32 %v5787, 4294901760
    %6269 = vmatmul.mubr.f32.gmra.mrb[0].mxu0 %v6268
    %v6270 = vpop.f32.mrb[0].mxu0
    %v6271 = vadd.f32 %v6196, %v6270
    %v6272 = vpop.f32.mrb[0].mxu0
    %6273 = vdwg.mxu0
    %v6274 = vld [vmem:[#allocation10] sm:$0xff]
    %v6275 = vld [vmem:[#allocation10 + $0x8] sm:$0xff]
    %v6276 = vld [vmem:[#allocation10 + $0x10] sm:$0xff]
    %v6277 = vld [vmem:[#allocation10 + $0x18] sm:$0xff]
    %v6278 = vld [vmem:[#allocation2 + $0xa] ss:$0 sm:$0xff]
    %v6279 = vrot.slane %v5772, 1
    %6280 = vrot.lane.b32.xlu0 %v6279, 32
    %v6281 = vpop.permute.xlu0 %6280
    %v6282 = vsel %vm114, %v6281, 0
    %6284 = vmatprep.subr.mxu0 0.0
    %v6285 = vand.u32 %v6274, 4294901760
    %6286 = vmatpush1.msra.mxu0 %v6285
    %6287 = vmatprep.subr.mxu0 0.0
    %v6288 = vand.u32 %v6275, 4294901760
    %6289 = vmatpush1.msra.mxu0 %v6288
    %6290 = vmatprep.subr.mxu0 0.0
    %v6291 = vand.u32 %v6276, 4294901760
    %6292 = vmatpush1.msra.mxu0 %v6291
    %6293 = vmatprep.subr.mxu0 0.0
    %v6294 = vand.u32 %v6277, 4294901760
    %6295 = vmatpush1.msra.mxu0 %v6294
    %6296 = vmatprep.subr.mxu0 0.0
    %6297 = vmatpush1.msra.mxu0 0.0
    %6298 = vmatprep.subr.mxu0 0.0
    %6299 = vmatpush1.msra.mxu0 0.0
    %6300 = vmatprep.subr.mxu0 0.0
    %6301 = vmatpush1.msra.mxu0 0.0
    %6302 = vmatprep.subr.mxu0 0.0
    %6303 = vmatpush1.msra.mxu0 0.0
    %6304 = vmatprep.subr.mxu0 0.0
    %6305 = vmatpush1.msra.mxu0 0.0
    %6306 = vmatprep.subr.mxu0 0.0
    %6307 = vmatpush1.msra.mxu0 0.0
    %6308 = vmatprep.subr.mxu0 0.0
    %6309 = vmatpush1.msra.mxu0 0.0
    %6310 = vmatprep.subr.mxu0 0.0
    %6311 = vmatpush1.msra.mxu0 0.0
    %6312 = vmatprep.subr.mxu0 0.0
    %6313 = vmatpush1.msra.mxu0 0.0
    %6314 = vmatprep.subr.mxu0 0.0
    %6315 = vmatpush1.msra.mxu0 0.0
    %6316 = vmatprep.subr.mxu0 0.0
    %6317 = vmatpush1.msra.mxu0 0.0
    %6318 = vmatprep.subr.mxu0 0.0
    %6319 = vmatpush1.msra.mxu0 0.0
    %6320 = vmatprep.subr.mxu0 0.0
    %6321 = vmatpush1.msra.mxu0 0.0
    %6322 = vmatprep.subr.mxu0 0.0
    %6323 = vmatpush1.msra.mxu0 0.0
    %6324 = vmatprep.subr.mxu0 0.0
    %6325 = vmatpush1.msra.mxu0 0.0
    %6326 = vmatprep.subr.mxu0 0.0
    %6327 = vmatpush1.msra.mxu0 0.0
    %6328 = vmatprep.subr.mxu0 0.0
    %6329 = vmatpush1.msra.mxu0 0.0
    %6330 = vmatprep.subr.mxu0 0.0
    %6331 = vmatpush1.msra.mxu0 0.0
    %6332 = vmatprep.subr.mxu0 0.0
    %6333 = vmatpush1.msra.mxu0 0.0
    %6334 = vmatprep.subr.mxu0 0.0
    %6335 = vmatpush1.msra.mxu0 0.0
    %6336 = vmatprep.subr.mxu0 0.0
    %6337 = vmatpush1.msra.mxu0 0.0
    %6338 = vmatprep.subr.mxu0 0.0
    %6339 = vmatpush1.msra.mxu0 0.0
    %6340 = vmatprep.subr.mxu0 0.0
    %6341 = vmatpush1.msra.mxu0 0.0
    %6342 = vmatprep.subr.mxu0 0.0
    %6343 = vmatpush1.msra.mxu0 0.0
    %6344 = vmatprep.subr.mxu0 0.0
    %6345 = vmatpush1.msra.mxu0 0.0
    %6346 = vmatprep.subr.mxu0 0.0
    %6347 = vmatpush1.msra.mxu0 0.0
    %6348 = vmatprep.subr.mxu0 0.0
    %6349 = vmatpush1.msra.mxu0 0.0
    %6350 = vmatprep.subr.mxu0 0.0
    %6351 = vmatpush1.msra.mxu0 0.0
    %6352 = vmatprep.mubr.f32.mxu0 0.0
    %v6353 = vand.u32 %v6282, 4294901760
    %v6354 = vsub.f32 %v6282, %v6353
    %v6355 = vand.u32 %v6354, 4294901760
    %v6356 = vsub.f32 %v6354, %v6355
    %v6357 = vand.u32 %v6356, 4294901760
    %6358 = vmatmul.mubr.f32.gmra.mrb[0].mxu0 %v6357
    %v6359 = vpop.f32.mrb[0].mxu0
    %v6360 = vadd.f32 %v6278, %v6359
    %v6361 = vpop.f32.mrb[0].mxu0
    %6362 = vdwg.mxu0
    %6363 = vmatprep.subr.mxu0 0.0
    %v6364 = vand.u32 %v6274, 4294901760
    %v6365 = vsub.f32 %v6274, %v6364
    %v6366 = vand.u32 %v6365, 4294901760
    %v6367 = vsub.f32 %v6365, %v6366
    %v6368 = vand.u32 %v6367, 4294901760
    %6369 = vmatpush1.msra.mxu0 %v6368
    %6370 = vmatprep.subr.mxu0 0.0
    %v6371 = vand.u32 %v6275, 4294901760
    %v6372 = vsub.f32 %v6275, %v6371
    %v6373 = vand.u32 %v6372, 4294901760
    %v6374 = vsub.f32 %v6372, %v6373
    %v6375 = vand.u32 %v6374, 4294901760
    %6376 = vmatpush1.msra.mxu0 %v6375
    %6377 = vmatprep.subr.mxu0 0.0
    %v6378 = vand.u32 %v6276, 4294901760
    %v6379 = vsub.f32 %v6276, %v6378
    %v6380 = vand.u32 %v6379, 4294901760
    %v6381 = vsub.f32 %v6379, %v6380
    %v6382 = vand.u32 %v6381, 4294901760
    %6383 = vmatpush1.msra.mxu0 %v6382
    %6384 = vmatprep.subr.mxu0 0.0
    %v6385 = vand.u32 %v6277, 4294901760
    %v6386 = vsub.f32 %v6277, %v6385
    %v6387 = vand.u32 %v6386, 4294901760
    %v6388 = vsub.f32 %v6386, %v6387
    %v6389 = vand.u32 %v6388, 4294901760
    %6390 = vmatpush1.msra.mxu0 %v6389
    %6391 = vmatprep.subr.mxu0 0.0
    %6392 = vmatpush1.msra.mxu0 0.0
    %6393 = vmatprep.subr.mxu0 0.0
    %6394 = vmatpush1.msra.mxu0 0.0
    %6395 = vmatprep.subr.mxu0 0.0
    %6396 = vmatpush1.msra.mxu0 0.0
    %6397 = vmatprep.subr.mxu0 0.0
    %6398 = vmatpush1.msra.mxu0 0.0
    %6399 = vmatprep.subr.mxu0 0.0
    %6400 = vmatpush1.msra.mxu0 0.0
    %6401 = vmatprep.subr.mxu0 0.0
    %6402 = vmatpush1.msra.mxu0 0.0
    %6403 = vmatprep.subr.mxu0 0.0
    %6404 = vmatpush1.msra.mxu0 0.0
    %6405 = vmatprep.subr.mxu0 0.0
    %6406 = vmatpush1.msra.mxu0 0.0
    %6407 = vmatprep.subr.mxu0 0.0
    %6408 = vmatpush1.msra.mxu0 0.0
    %6409 = vmatprep.subr.mxu0 0.0
    %6410 = vmatpush1.msra.mxu0 0.0
    %6411 = vmatprep.subr.mxu0 0.0
    %6412 = vmatpush1.msra.mxu0 0.0
    %6413 = vmatprep.subr.mxu0 0.0
    %6414 = vmatpush1.msra.mxu0 0.0
    %6415 = vmatprep.subr.mxu0 0.0
    %6416 = vmatpush1.msra.mxu0 0.0
    %6417 = vmatprep.subr.mxu0 0.0
    %6418 = vmatpush1.msra.mxu0 0.0
    %6419 = vmatprep.subr.mxu0 0.0
    %6420 = vmatpush1.msra.mxu0 0.0
    %6421 = vmatprep.subr.mxu0 0.0
    %6422 = vmatpush1.msra.mxu0 0.0
    %6423 = vmatprep.subr.mxu0 0.0
    %6424 = vmatpush1.msra.mxu0 0.0
    %6425 = vmatprep.subr.mxu0 0.0
    %6426 = vmatpush1.msra.mxu0 0.0
    %6427 = vmatprep.subr.mxu0 0.0
    %6428 = vmatpush1.msra.mxu0 0.0
    %6429 = vmatprep.subr.mxu0 0.0
    %6430 = vmatpush1.msra.mxu0 0.0
    %6431 = vmatprep.subr.mxu0 0.0
    %6432 = vmatpush1.msra.mxu0 0.0
    %6433 = vmatprep.subr.mxu0 0.0
    %6434 = vmatpush1.msra.mxu0 0.0
    %6435 = vmatprep.subr.mxu0 0.0
    %6436 = vmatpush1.msra.mxu0 0.0
    %6437 = vmatprep.subr.mxu0 0.0
    %6438 = vmatpush1.msra.mxu0 0.0
    %6439 = vmatprep.subr.mxu0 0.0
    %6440 = vmatpush1.msra.mxu0 0.0
    %6441 = vmatprep.subr.mxu0 0.0
    %6442 = vmatpush1.msra.mxu0 0.0
    %6443 = vmatprep.subr.mxu0 0.0
    %6444 = vmatpush1.msra.mxu0 0.0
    %6445 = vmatprep.subr.mxu0 0.0
    %6446 = vmatpush1.msra.mxu0 0.0
    %6447 = vmatprep.mubr.f32.mxu0 0.0
    %v6448 = vand.u32 %v6282, 4294901760
    %6449 = vmatmul.mubr.f32.gmra.mrb[0].mxu0 %v6448
    %v6450 = vpop.f32.mrb[0].mxu0
    %v6451 = vadd.f32 %v6360, %v6450
    %v6452 = vpop.f32.mrb[0].mxu0
    %6453 = vdwg.mxu0
    %6454 = vmatprep.subr.mxu0 0.0
    %v6455 = vand.u32 %v6274, 4294901760
    %v6456 = vsub.f32 %v6274, %v6455
    %6457 = vmatpush1.msra.mxu0 %v6456
    %6458 = vmatprep.subr.mxu0 0.0
    %v6459 = vand.u32 %v6275, 4294901760
    %v6460 = vsub.f32 %v6275, %v6459
    %6461 = vmatpush1.msra.mxu0 %v6460
    %6462 = vmatprep.subr.mxu0 0.0
    %v6463 = vand.u32 %v6276, 4294901760
    %v6464 = vsub.f32 %v6276, %v6463
    %6465 = vmatpush1.msra.mxu0 %v6464
    %6466 = vmatprep.subr.mxu0 0.0
    %v6467 = vand.u32 %v6277, 4294901760
    %v6468 = vsub.f32 %v6277, %v6467
    %6469 = vmatpush1.msra.mxu0 %v6468
    %6470 = vmatprep.subr.mxu0 0.0
    %6471 = vmatpush1.msra.mxu0 0.0
    %6472 = vmatprep.subr.mxu0 0.0
    %6473 = vmatpush1.msra.mxu0 0.0
    %6474 = vmatprep.subr.mxu0 0.0
    %6475 = vmatpush1.msra.mxu0 0.0
    %6476 = vmatprep.subr.mxu0 0.0
    %6477 = vmatpush1.msra.mxu0 0.0
    %6478 = vmatprep.subr.mxu0 0.0
    %6479 = vmatpush1.msra.mxu0 0.0
    %6480 = vmatprep.subr.mxu0 0.0
    %6481 = vmatpush1.msra.mxu0 0.0
    %6482 = vmatprep.subr.mxu0 0.0
    %6483 = vmatpush1.msra.mxu0 0.0
    %6484 = vmatprep.subr.mxu0 0.0
    %6485 = vmatpush1.msra.mxu0 0.0
    %6486 = vmatprep.subr.mxu0 0.0
    %6487 = vmatpush1.msra.mxu0 0.0
    %6488 = vmatprep.subr.mxu0 0.0
    %6489 = vmatpush1.msra.mxu0 0.0
    %6490 = vmatprep.subr.mxu0 0.0
    %6491 = vmatpush1.msra.mxu0 0.0
    %6492 = vmatprep.subr.mxu0 0.0
    %6493 = vmatpush1.msra.mxu0 0.0
    %6494 = vmatprep.subr.mxu0 0.0
    %6495 = vmatpush1.msra.mxu0 0.0
    %6496 = vmatprep.subr.mxu0 0.0
    %6497 = vmatpush1.msra.mxu0 0.0
    %6498 = vmatprep.subr.mxu0 0.0
    %6499 = vmatpush1.msra.mxu0 0.0
    %6500 = vmatprep.subr.mxu0 0.0
    %6501 = vmatpush1.msra.mxu0 0.0
    %6502 = vmatprep.subr.mxu0 0.0
    %6503 = vmatpush1.msra.mxu0 0.0
    %6504 = vmatprep.subr.mxu0 0.0
    %6505 = vmatpush1.msra.mxu0 0.0
    %6506 = vmatprep.subr.mxu0 0.0
    %6507 = vmatpush1.msra.mxu0 0.0
    %6508 = vmatprep.subr.mxu0 0.0
    %6509 = vmatpush1.msra.mxu0 0.0
    %6510 = vmatprep.subr.mxu0 0.0
    %6511 = vmatpush1.msra.mxu0 0.0
    %6512 = vmatprep.subr.mxu0 0.0
    %6513 = vmatpush1.msra.mxu0 0.0
    %6514 = vmatprep.subr.mxu0 0.0
    %6515 = vmatpush1.msra.mxu0 0.0
    %6516 = vmatprep.subr.mxu0 0.0
    %6517 = vmatpush1.msra.mxu0 0.0
    %6518 = vmatprep.subr.mxu0 0.0
    %6519 = vmatpush1.msra.mxu0 0.0
    %6520 = vmatprep.subr.mxu0 0.0
    %6521 = vmatpush1.msra.mxu0 0.0
    %6522 = vmatprep.subr.mxu0 0.0
    %6523 = vmatpush1.msra.mxu0 0.0
    %6524 = vmatprep.subr.mxu0 0.0
    %6525 = vmatpush1.msra.mxu0 0.0
    %6526 = vmatprep.mubr.f32.mxu0 0.0
    %v6527 = vand.u32 %v6282, 4294901760
    %v6528 = vsub.f32 %v6282, %v6527
    %6529 = vmatmul.mubr.f32.gmra.mrb[0].mxu0 %v6528
    %v6530 = vpop.f32.mrb[0].mxu0
    %v6531 = vadd.f32 %v6451, %v6530
    %v6532 = vpop.f32.mrb[0].mxu0
    %6533 = vdwg.mxu0
    %6534 = vmatprep.subr.mxu0 0.0
    %v6535 = vand.u32 %v6274, 4294901760
    %6536 = vmatpush1.msra.mxu0 %v6535
    %6537 = vmatprep.subr.mxu0 0.0
    %v6538 = vand.u32 %v6275, 4294901760
    %6539 = vmatpush1.msra.mxu0 %v6538
    %6540 = vmatprep.subr.mxu0 0.0
    %v6541 = vand.u32 %v6276, 4294901760
    %6542 = vmatpush1.msra.mxu0 %v6541
    %6543 = vmatprep.subr.mxu0 0.0
    %v6544 = vand.u32 %v6277, 4294901760
    %6545 = vmatpush1.msra.mxu0 %v6544
    %6546 = vmatprep.subr.mxu0 0.0
    %6547 = vmatpush1.msra.mxu0 0.0
    %6548 = vmatprep.subr.mxu0 0.0
    %6549 = vmatpush1.msra.mxu0 0.0
    %6550 = vmatprep.subr.mxu0 0.0
    %6551 = vmatpush1.msra.mxu0 0.0
    %6552 = vmatprep.subr.mxu0 0.0
    %6553 = vmatpush1.msra.mxu0 0.0
    %6554 = vmatprep.subr.mxu0 0.0
    %6555 = vmatpush1.msra.mxu0 0.0
    %6556 = vmatprep.subr.mxu0 0.0
    %6557 = vmatpush1.msra.mxu0 0.0
    %6558 = vmatprep.subr.mxu0 0.0
    %6559 = vmatpush1.msra.mxu0 0.0
    %6560 = vmatprep.subr.mxu0 0.0
    %6561 = vmatpush1.msra.mxu0 0.0
    %6562 = vmatprep.subr.mxu0 0.0
    %6563 = vmatpush1.msra.mxu0 0.0
    %6564 = vmatprep.subr.mxu0 0.0
    %6565 = vmatpush1.msra.mxu0 0.0
    %6566 = vmatprep.subr.mxu0 0.0
    %6567 = vmatpush1.msra.mxu0 0.0
    %6568 = vmatprep.subr.mxu0 0.0
    %6569 = vmatpush1.msra.mxu0 0.0
    %6570 = vmatprep.subr.mxu0 0.0
    %6571 = vmatpush1.msra.mxu0 0.0
    %6572 = vmatprep.subr.mxu0 0.0
    %6573 = vmatpush1.msra.mxu0 0.0
    %6574 = vmatprep.subr.mxu0 0.0
    %6575 = vmatpush1.msra.mxu0 0.0
    %6576 = vmatprep.subr.mxu0 0.0
    %6577 = vmatpush1.msra.mxu0 0.0
    %6578 = vmatprep.subr.mxu0 0.0
    %6579 = vmatpush1.msra.mxu0 0.0
    %6580 = vmatprep.subr.mxu0 0.0
    %6581 = vmatpush1.msra.mxu0 0.0
    %6582 = vmatprep.subr.mxu0 0.0
    %6583 = vmatpush1.msra.mxu0 0.0
    %6584 = vmatprep.subr.mxu0 0.0
    %6585 = vmatpush1.msra.mxu0 0.0
    %6586 = vmatprep.subr.mxu0 0.0
    %6587 = vmatpush1.msra.mxu0 0.0
    %6588 = vmatprep.subr.mxu0 0.0
    %6589 = vmatpush1.msra.mxu0 0.0
    %6590 = vmatprep.subr.mxu0 0.0
    %6591 = vmatpush1.msra.mxu0 0.0
    %6592 = vmatprep.subr.mxu0 0.0
    %6593 = vmatpush1.msra.mxu0 0.0
    %6594 = vmatprep.subr.mxu0 0.0
    %6595 = vmatpush1.msra.mxu0 0.0
    %6596 = vmatprep.subr.mxu0 0.0
    %6597 = vmatpush1.msra.mxu0 0.0
    %6598 = vmatprep.subr.mxu0 0.0
    %6599 = vmatpush1.msra.mxu0 0.0
    %6600 = vmatprep.subr.mxu0 0.0
    %6601 = vmatpush1.msra.mxu0 0.0
    %6602 = vmatprep.mubr.f32.mxu0 0.0
    %v6603 = vand.u32 %v6282, 4294901760
    %v6604 = vsub.f32 %v6282, %v6603
    %v6605 = vand.u32 %v6604, 4294901760
    %6606 = vmatmul.mubr.f32.gmra.mrb[0].mxu0 %v6605
    %v6607 = vpop.f32.mrb[0].mxu0
    %v6608 = vadd.f32 %v6531, %v6607
    %v6609 = vpop.f32.mrb[0].mxu0
    %6610 = vdwg.mxu0
    %6611 = vmatprep.subr.mxu0 0.0
    %v6612 = vand.u32 %v6274, 4294901760
    %v6613 = vsub.f32 %v6274, %v6612
    %v6614 = vand.u32 %v6613, 4294901760
    %6615 = vmatpush1.msra.mxu0 %v6614
    %6616 = vmatprep.subr.mxu0 0.0
    %v6617 = vand.u32 %v6275, 4294901760
    %v6618 = vsub.f32 %v6275, %v6617
    %v6619 = vand.u32 %v6618, 4294901760
    %6620 = vmatpush1.msra.mxu0 %v6619
    %6621 = vmatprep.subr.mxu0 0.0
    %v6622 = vand.u32 %v6276, 4294901760
    %v6623 = vsub.f32 %v6276, %v6622
    %v6624 = vand.u32 %v6623, 4294901760
    %6625 = vmatpush1.msra.mxu0 %v6624
    %6626 = vmatprep.subr.mxu0 0.0
    %v6627 = vand.u32 %v6277, 4294901760
    %v6628 = vsub.f32 %v6277, %v6627
    %v6629 = vand.u32 %v6628, 4294901760
    %6630 = vmatpush1.msra.mxu0 %v6629
    %6631 = vmatprep.subr.mxu0 0.0
    %6632 = vmatpush1.msra.mxu0 0.0
    %6633 = vmatprep.subr.mxu0 0.0
    %6634 = vmatpush1.msra.mxu0 0.0
    %6635 = vmatprep.subr.mxu0 0.0
    %6636 = vmatpush1.msra.mxu0 0.0
    %6637 = vmatprep.subr.mxu0 0.0
    %6638 = vmatpush1.msra.mxu0 0.0
    %6639 = vmatprep.subr.mxu0 0.0
    %6640 = vmatpush1.msra.mxu0 0.0
    %6641 = vmatprep.subr.mxu0 0.0
    %6642 = vmatpush1.msra.mxu0 0.0
    %6643 = vmatprep.subr.mxu0 0.0
    %6644 = vmatpush1.msra.mxu0 0.0
    %6645 = vmatprep.subr.mxu0 0.0
    %6646 = vmatpush1.msra.mxu0 0.0
    %6647 = vmatprep.subr.mxu0 0.0
    %6648 = vmatpush1.msra.mxu0 0.0
    %6649 = vmatprep.subr.mxu0 0.0
    %6650 = vmatpush1.msra.mxu0 0.0
    %6651 = vmatprep.subr.mxu0 0.0
    %6652 = vmatpush1.msra.mxu0 0.0
    %6653 = vmatprep.subr.mxu0 0.0
    %6654 = vmatpush1.msra.mxu0 0.0
    %6655 = vmatprep.subr.mxu0 0.0
    %6656 = vmatpush1.msra.mxu0 0.0
    %6657 = vmatprep.subr.mxu0 0.0
    %6658 = vmatpush1.msra.mxu0 0.0
    %6659 = vmatprep.subr.mxu0 0.0
    %6660 = vmatpush1.msra.mxu0 0.0
    %6661 = vmatprep.subr.mxu0 0.0
    %6662 = vmatpush1.msra.mxu0 0.0
    %6663 = vmatprep.subr.mxu0 0.0
    %6664 = vmatpush1.msra.mxu0 0.0
    %6665 = vmatprep.subr.mxu0 0.0
    %6666 = vmatpush1.msra.mxu0 0.0
    %6667 = vmatprep.subr.mxu0 0.0
    %6668 = vmatpush1.msra.mxu0 0.0
    %6669 = vmatprep.subr.mxu0 0.0
    %6670 = vmatpush1.msra.mxu0 0.0
    %6671 = vmatprep.subr.mxu0 0.0
    %6672 = vmatpush1.msra.mxu0 0.0
    %6673 = vmatprep.subr.mxu0 0.0
    %6674 = vmatpush1.msra.mxu0 0.0
    %6675 = vmatprep.subr.mxu0 0.0
    %6676 = vmatpush1.msra.mxu0 0.0
    %6677 = vmatprep.subr.mxu0 0.0
    %6678 = vmatpush1.msra.mxu0 0.0
    %6679 = vmatprep.subr.mxu0 0.0
    %6680 = vmatpush1.msra.mxu0 0.0
    %6681 = vmatprep.subr.mxu0 0.0
    %6682 = vmatpush1.msra.mxu0 0.0
    %6683 = vmatprep.subr.mxu0 0.0
    %6684 = vmatpush1.msra.mxu0 0.0
    %6685 = vmatprep.subr.mxu0 0.0
    %6686 = vmatpush1.msra.mxu0 0.0
    %6687 = vmatprep.mubr.f32.mxu0 0.0
    %v6688 = vand.u32 %v6282, 4294901760
    %6689 = vmatmul.mubr.f32.gmra.mrb[0].mxu0 %v6688
    %v6690 = vpop.f32.mrb[0].mxu0
    %v6691 = vadd.f32 %v6608, %v6690
    %v6692 = vpop.f32.mrb[0].mxu0
    %6693 = vdwg.mxu0
    %6694 = vmatprep.subr.mxu0 0.0
    %v6695 = vand.u32 %v6274, 4294901760
    %6696 = vmatpush1.msra.mxu0 %v6695
    %6697 = vmatprep.subr.mxu0 0.0
    %v6698 = vand.u32 %v6275, 4294901760
    %6699 = vmatpush1.msra.mxu0 %v6698
    %6700 = vmatprep.subr.mxu0 0.0
    %v6701 = vand.u32 %v6276, 4294901760
    %6702 = vmatpush1.msra.mxu0 %v6701
    %6703 = vmatprep.subr.mxu0 0.0
    %v6704 = vand.u32 %v6277, 4294901760
    %6705 = vmatpush1.msra.mxu0 %v6704
    %6706 = vmatprep.subr.mxu0 0.0
    %6707 = vmatpush1.msra.mxu0 0.0
    %6708 = vmatprep.subr.mxu0 0.0
    %6709 = vmatpush1.msra.mxu0 0.0
    %6710 = vmatprep.subr.mxu0 0.0
    %6711 = vmatpush1.msra.mxu0 0.0
    %6712 = vmatprep.subr.mxu0 0.0
    %6713 = vmatpush1.msra.mxu0 0.0
    %6714 = vmatprep.subr.mxu0 0.0
    %6715 = vmatpush1.msra.mxu0 0.0
    %6716 = vmatprep.subr.mxu0 0.0
    %6717 = vmatpush1.msra.mxu0 0.0
    %6718 = vmatprep.subr.mxu0 0.0
    %6719 = vmatpush1.msra.mxu0 0.0
    %6720 = vmatprep.subr.mxu0 0.0
    %6721 = vmatpush1.msra.mxu0 0.0
    %6722 = vmatprep.subr.mxu0 0.0
    %6723 = vmatpush1.msra.mxu0 0.0
    %6724 = vmatprep.subr.mxu0 0.0
    %6725 = vmatpush1.msra.mxu0 0.0
    %6726 = vmatprep.subr.mxu0 0.0
    %6727 = vmatpush1.msra.mxu0 0.0
    %6728 = vmatprep.subr.mxu0 0.0
    %6729 = vmatpush1.msra.mxu0 0.0
    %6730 = vmatprep.subr.mxu0 0.0
    %6731 = vmatpush1.msra.mxu0 0.0
    %6732 = vmatprep.subr.mxu0 0.0
    %6733 = vmatpush1.msra.mxu0 0.0
    %6734 = vmatprep.subr.mxu0 0.0
    %6735 = vmatpush1.msra.mxu0 0.0
    %6736 = vmatprep.subr.mxu0 0.0
    %6737 = vmatpush1.msra.mxu0 0.0
    %6738 = vmatprep.subr.mxu0 0.0
    %6739 = vmatpush1.msra.mxu0 0.0
    %6740 = vmatprep.subr.mxu0 0.0
    %6741 = vmatpush1.msra.mxu0 0.0
    %6742 = vmatprep.subr.mxu0 0.0
    %6743 = vmatpush1.msra.mxu0 0.0
    %6744 = vmatprep.subr.mxu0 0.0
    %6745 = vmatpush1.msra.mxu0 0.0
    %6746 = vmatprep.subr.mxu0 0.0
    %6747 = vmatpush1.msra.mxu0 0.0
    %6748 = vmatprep.subr.mxu0 0.0
    %6749 = vmatpush1.msra.mxu0 0.0
    %6750 = vmatprep.subr.mxu0 0.0
    %6751 = vmatpush1.msra.mxu0 0.0
    %6752 = vmatprep.subr.mxu0 0.0
    %6753 = vmatpush1.msra.mxu0 0.0
    %6754 = vmatprep.subr.mxu0 0.0
    %6755 = vmatpush1.msra.mxu0 0.0
    %6756 = vmatprep.subr.mxu0 0.0
    %6757 = vmatpush1.msra.mxu0 0.0
    %6758 = vmatprep.subr.mxu0 0.0
    %6759 = vmatpush1.msra.mxu0 0.0
    %6760 = vmatprep.subr.mxu0 0.0
    %6761 = vmatpush1.msra.mxu0 0.0
    %6762 = vmatprep.mubr.f32.mxu0 0.0
    %v6763 = vand.u32 %v6282, 4294901760
    %6764 = vmatmul.mubr.f32.gmra.mrb[0].mxu0 %v6763
    %v6765 = vpop.f32.mrb[0].mxu0
    %v6766 = vadd.f32 %v6691, %v6765
    %v6767 = vpop.f32.mrb[0].mxu0
    %6768 = vdwg.mxu0
    %v6770 = vrot.slane %v6766, 7
    %v6772 = vsel %vm1649, %v6271, %v6770
    %v6773 = vxor.u32 %v6772, 2147483648
    %v6774 = vmul.f32 %v6773, 1.442695
    %v6775 = vpow.pop %v6774
    %v6776 = vadd.f32 %v6775, 1.0
    %v6777 = vrcp.pop %v6776
    %v6778 = vmul.f32 1.0, %v6777
    %v6779 = vtanh.pop %v6772
    %v6780 = vmul.f32 %v6778, %v5766
    %6782 = vrot.lane.b32.xlu0 %v6779, 64
    %v6783 = vpop.permute.xlu0 %6782
    %v6785 = vmul.f32 %v6778, %v6783
    %6787 = vrot.lane.b32.xlu0 %v6785, 32
    %v6788 = vpop.permute.xlu0 %6787
    %v6790 = vadd.f32 %v6780, %v6788
    %v6791 = vtanh.pop %v6790
    %6793 = vrot.lane.b32.xlu0 %v6791, 64
    %v6794 = vpop.permute.xlu0 %6793
    %v6796 = vmul.f32 %v6778, %v6794
    %6798 = vrot.lane.b32.xlu0 %v6796, 32
    %v6799 = vpop.permute.xlu0 %6798
    %6801 = vst.msk [vmem:[#allocation3 + $0x5] sm:$0x1] %vm1679, %v6799
    %6802 = vrot.lane.b32.xlu0 %v6796, 64
    %v6803 = vpop.permute.xlu0 %6802
    %6805 = vst.msk [vmem:[#allocation3 + $0x1] sm:$0x2] %vm1684, %v6803
    %v6806 = vld [vmem:[#allocation9] sm:$0xff]
    %v6807 = vld [vmem:[#allocation9 + $0x8] sm:$0xff]
    %v6808 = vld [vmem:[#allocation9 + $0x10] sm:$0xff]
    %v6809 = vld [vmem:[#allocation9 + $0x18] sm:$0xff]
    %v6810 = vld [vmem:[#allocation2 + $0x6] ss:$0 sm:$0xff]
    %v6811 = vsel %vm114, %v6799, 0
    %6813 = vmatprep.subr.mxu0 0.0
    %v6814 = vand.u32 %v6806, 4294901760
    %6815 = vmatpush1.msra.mxu0 %v6814
    %6816 = vmatprep.subr.mxu0 0.0
    %v6817 = vand.u32 %v6807, 4294901760
    %6818 = vmatpush1.msra.mxu0 %v6817
    %6819 = vmatprep.subr.mxu0 0.0
    %v6820 = vand.u32 %v6808, 4294901760
    %6821 = vmatpush1.msra.mxu0 %v6820
    %6822 = vmatprep.subr.mxu0 0.0
    %v6823 = vand.u32 %v6809, 4294901760
    %6824 = vmatpush1.msra.mxu0 %v6823
    %6825 = vmatprep.subr.mxu0 0.0
    %6826 = vmatpush1.msra.mxu0 0.0
    %6827 = vmatprep.subr.mxu0 0.0
    %6828 = vmatpush1.msra.mxu0 0.0
    %6829 = vmatprep.subr.mxu0 0.0
    %6830 = vmatpush1.msra.mxu0 0.0
    %6831 = vmatprep.subr.mxu0 0.0
    %6832 = vmatpush1.msra.mxu0 0.0
    %6833 = vmatprep.subr.mxu0 0.0
    %6834 = vmatpush1.msra.mxu0 0.0
    %6835 = vmatprep.subr.mxu0 0.0
    %6836 = vmatpush1.msra.mxu0 0.0
    %6837 = vmatprep.subr.mxu0 0.0
    %6838 = vmatpush1.msra.mxu0 0.0
    %6839 = vmatprep.subr.mxu0 0.0
    %6840 = vmatpush1.msra.mxu0 0.0
    %6841 = vmatprep.subr.mxu0 0.0
    %6842 = vmatpush1.msra.mxu0 0.0
    %6843 = vmatprep.subr.mxu0 0.0
    %6844 = vmatpush1.msra.mxu0 0.0
    %6845 = vmatprep.subr.mxu0 0.0
    %6846 = vmatpush1.msra.mxu0 0.0
    %6847 = vmatprep.subr.mxu0 0.0
    %6848 = vmatpush1.msra.mxu0 0.0
    %6849 = vmatprep.subr.mxu0 0.0
    %6850 = vmatpush1.msra.mxu0 0.0
    %6851 = vmatprep.subr.mxu0 0.0
    %6852 = vmatpush1.msra.mxu0 0.0
    %6853 = vmatprep.subr.mxu0 0.0
    %6854 = vmatpush1.msra.mxu0 0.0
    %6855 = vmatprep.subr.mxu0 0.0
    %6856 = vmatpush1.msra.mxu0 0.0
    %6857 = vmatprep.subr.mxu0 0.0
    %6858 = vmatpush1.msra.mxu0 0.0
    %6859 = vmatprep.subr.mxu0 0.0
    %6860 = vmatpush1.msra.mxu0 0.0
    %6861 = vmatprep.subr.mxu0 0.0
    %6862 = vmatpush1.msra.mxu0 0.0
    %6863 = vmatprep.subr.mxu0 0.0
    %6864 = vmatpush1.msra.mxu0 0.0
    %6865 = vmatprep.subr.mxu0 0.0
    %6866 = vmatpush1.msra.mxu0 0.0
    %6867 = vmatprep.subr.mxu0 0.0
    %6868 = vmatpush1.msra.mxu0 0.0
    %6869 = vmatprep.subr.mxu0 0.0
    %6870 = vmatpush1.msra.mxu0 0.0
    %6871 = vmatprep.subr.mxu0 0.0
    %6872 = vmatpush1.msra.mxu0 0.0
    %6873 = vmatprep.subr.mxu0 0.0
    %6874 = vmatpush1.msra.mxu0 0.0
    %6875 = vmatprep.subr.mxu0 0.0
    %6876 = vmatpush1.msra.mxu0 0.0
    %6877 = vmatprep.subr.mxu0 0.0
    %6878 = vmatpush1.msra.mxu0 0.0
    %6879 = vmatprep.subr.mxu0 0.0
    %6880 = vmatpush1.msra.mxu0 0.0
    %6881 = vmatprep.mubr.f32.mxu0 0.0
    %v6882 = vand.u32 %v6811, 4294901760
    %v6883 = vsub.f32 %v6811, %v6882
    %v6884 = vand.u32 %v6883, 4294901760
    %v6885 = vsub.f32 %v6883, %v6884
    %v6886 = vand.u32 %v6885, 4294901760
    %6887 = vmatmul.mubr.f32.gmra.mrb[0].mxu0 %v6886
    %v6888 = vpop.f32.mrb[0].mxu0
    %v6889 = vadd.f32 %v6810, %v6888
    %v6890 = vpop.f32.mrb[0].mxu0
    %6891 = vdwg.mxu0
    %6892 = vmatprep.subr.mxu0 0.0
    %v6893 = vand.u32 %v6806, 4294901760
    %v6894 = vsub.f32 %v6806, %v6893
    %v6895 = vand.u32 %v6894, 4294901760
    %v6896 = vsub.f32 %v6894, %v6895
    %v6897 = vand.u32 %v6896, 4294901760
    %6898 = vmatpush1.msra.mxu0 %v6897
    %6899 = vmatprep.subr.mxu0 0.0
    %v6900 = vand.u32 %v6807, 4294901760
    %v6901 = vsub.f32 %v6807, %v6900
    %v6902 = vand.u32 %v6901, 4294901760
    %v6903 = vsub.f32 %v6901, %v6902
    %v6904 = vand.u32 %v6903, 4294901760
    %6905 = vmatpush1.msra.mxu0 %v6904
    %6906 = vmatprep.subr.mxu0 0.0
    %v6907 = vand.u32 %v6808, 4294901760
    %v6908 = vsub.f32 %v6808, %v6907
    %v6909 = vand.u32 %v6908, 4294901760
    %v6910 = vsub.f32 %v6908, %v6909
    %v6911 = vand.u32 %v6910, 4294901760
    %6912 = vmatpush1.msra.mxu0 %v6911
    %6913 = vmatprep.subr.mxu0 0.0
    %v6914 = vand.u32 %v6809, 4294901760
    %v6915 = vsub.f32 %v6809, %v6914
    %v6916 = vand.u32 %v6915, 4294901760
    %v6917 = vsub.f32 %v6915, %v6916
    %v6918 = vand.u32 %v6917, 4294901760
    %6919 = vmatpush1.msra.mxu0 %v6918
    %6920 = vmatprep.subr.mxu0 0.0
    %6921 = vmatpush1.msra.mxu0 0.0
    %6922 = vmatprep.subr.mxu0 0.0
    %6923 = vmatpush1.msra.mxu0 0.0
    %6924 = vmatprep.subr.mxu0 0.0
    %6925 = vmatpush1.msra.mxu0 0.0
    %6926 = vmatprep.subr.mxu0 0.0
    %6927 = vmatpush1.msra.mxu0 0.0
    %6928 = vmatprep.subr.mxu0 0.0
    %6929 = vmatpush1.msra.mxu0 0.0
    %6930 = vmatprep.subr.mxu0 0.0
    %6931 = vmatpush1.msra.mxu0 0.0
    %6932 = vmatprep.subr.mxu0 0.0
    %6933 = vmatpush1.msra.mxu0 0.0
    %6934 = vmatprep.subr.mxu0 0.0
    %6935 = vmatpush1.msra.mxu0 0.0
    %6936 = vmatprep.subr.mxu0 0.0
    %6937 = vmatpush1.msra.mxu0 0.0
    %6938 = vmatprep.subr.mxu0 0.0
    %6939 = vmatpush1.msra.mxu0 0.0
    %6940 = vmatprep.subr.mxu0 0.0
    %6941 = vmatpush1.msra.mxu0 0.0
    %6942 = vmatprep.subr.mxu0 0.0
    %6943 = vmatpush1.msra.mxu0 0.0
    %6944 = vmatprep.subr.mxu0 0.0
    %6945 = vmatpush1.msra.mxu0 0.0
    %6946 = vmatprep.subr.mxu0 0.0
    %6947 = vmatpush1.msra.mxu0 0.0
    %6948 = vmatprep.subr.mxu0 0.0
    %6949 = vmatpush1.msra.mxu0 0.0
    %6950 = vmatprep.subr.mxu0 0.0
    %6951 = vmatpush1.msra.mxu0 0.0
    %6952 = vmatprep.subr.mxu0 0.0
    %6953 = vmatpush1.msra.mxu0 0.0
    %6954 = vmatprep.subr.mxu0 0.0
    %6955 = vmatpush1.msra.mxu0 0.0
    %6956 = vmatprep.subr.mxu0 0.0
    %6957 = vmatpush1.msra.mxu0 0.0
    %6958 = vmatprep.subr.mxu0 0.0
    %6959 = vmatpush1.msra.mxu0 0.0
    %6960 = vmatprep.subr.mxu0 0.0
    %6961 = vmatpush1.msra.mxu0 0.0
    %6962 = vmatprep.subr.mxu0 0.0
    %6963 = vmatpush1.msra.mxu0 0.0
    %6964 = vmatprep.subr.mxu0 0.0
    %6965 = vmatpush1.msra.mxu0 0.0
    %6966 = vmatprep.subr.mxu0 0.0
    %6967 = vmatpush1.msra.mxu0 0.0
    %6968 = vmatprep.subr.mxu0 0.0
    %6969 = vmatpush1.msra.mxu0 0.0
    %6970 = vmatprep.subr.mxu0 0.0
    %6971 = vmatpush1.msra.mxu0 0.0
    %6972 = vmatprep.subr.mxu0 0.0
    %6973 = vmatpush1.msra.mxu0 0.0
    %6974 = vmatprep.subr.mxu0 0.0
    %6975 = vmatpush1.msra.mxu0 0.0
    %6976 = vmatprep.mubr.f32.mxu0 0.0
    %v6977 = vand.u32 %v6811, 4294901760
    %6978 = vmatmul.mubr.f32.gmra.mrb[0].mxu0 %v6977
    %v6979 = vpop.f32.mrb[0].mxu0
    %v6980 = vadd.f32 %v6889, %v6979
    %v6981 = vpop.f32.mrb[0].mxu0
    %6982 = vdwg.mxu0
    %6983 = vmatprep.subr.mxu0 0.0
    %v6984 = vand.u32 %v6806, 4294901760
    %v6985 = vsub.f32 %v6806, %v6984
    %6986 = vmatpush1.msra.mxu0 %v6985
    %6987 = vmatprep.subr.mxu0 0.0
    %v6988 = vand.u32 %v6807, 4294901760
    %v6989 = vsub.f32 %v6807, %v6988
    %6990 = vmatpush1.msra.mxu0 %v6989
    %6991 = vmatprep.subr.mxu0 0.0
    %v6992 = vand.u32 %v6808, 4294901760
    %v6993 = vsub.f32 %v6808, %v6992
    %6994 = vmatpush1.msra.mxu0 %v6993
    %6995 = vmatprep.subr.mxu0 0.0
    %v6996 = vand.u32 %v6809, 4294901760
    %v6997 = vsub.f32 %v6809, %v6996
    %6998 = vmatpush1.msra.mxu0 %v6997
    %6999 = vmatprep.subr.mxu0 0.0
    %7000 = vmatpush1.msra.mxu0 0.0
    %7001 = vmatprep.subr.mxu0 0.0
    %7002 = vmatpush1.msra.mxu0 0.0
    %7003 = vmatprep.subr.mxu0 0.0
    %7004 = vmatpush1.msra.mxu0 0.0
    %7005 = vmatprep.subr.mxu0 0.0
    %7006 = vmatpush1.msra.mxu0 0.0
    %7007 = vmatprep.subr.mxu0 0.0
    %7008 = vmatpush1.msra.mxu0 0.0
    %7009 = vmatprep.subr.mxu0 0.0
    %7010 = vmatpush1.msra.mxu0 0.0
    %7011 = vmatprep.subr.mxu0 0.0
    %7012 = vmatpush1.msra.mxu0 0.0
    %7013 = vmatprep.subr.mxu0 0.0
    %7014 = vmatpush1.msra.mxu0 0.0
    %7015 = vmatprep.subr.mxu0 0.0
    %7016 = vmatpush1.msra.mxu0 0.0
    %7017 = vmatprep.subr.mxu0 0.0
    %7018 = vmatpush1.msra.mxu0 0.0
    %7019 = vmatprep.subr.mxu0 0.0
    %7020 = vmatpush1.msra.mxu0 0.0
    %7021 = vmatprep.subr.mxu0 0.0
    %7022 = vmatpush1.msra.mxu0 0.0
    %7023 = vmatprep.subr.mxu0 0.0
    %7024 = vmatpush1.msra.mxu0 0.0
    %7025 = vmatprep.subr.mxu0 0.0
    %7026 = vmatpush1.msra.mxu0 0.0
    %7027 = vmatprep.subr.mxu0 0.0
    %7028 = vmatpush1.msra.mxu0 0.0
    %7029 = vmatprep.subr.mxu0 0.0
    %7030 = vmatpush1.msra.mxu0 0.0
    %7031 = vmatprep.subr.mxu0 0.0
    %7032 = vmatpush1.msra.mxu0 0.0
    %7033 = vmatprep.subr.mxu0 0.0
    %7034 = vmatpush1.msra.mxu0 0.0
    %7035 = vmatprep.subr.mxu0 0.0
    %7036 = vmatpush1.msra.mxu0 0.0
    %7037 = vmatprep.subr.mxu0 0.0
    %7038 = vmatpush1.msra.mxu0 0.0
    %7039 = vmatprep.subr.mxu0 0.0
    %7040 = vmatpush1.msra.mxu0 0.0
    %7041 = vmatprep.subr.mxu0 0.0
    %7042 = vmatpush1.msra.mxu0 0.0
    %7043 = vmatprep.subr.mxu0 0.0
    %7044 = vmatpush1.msra.mxu0 0.0
    %7045 = vmatprep.subr.mxu0 0.0
    %7046 = vmatpush1.msra.mxu0 0.0
    %7047 = vmatprep.subr.mxu0 0.0
    %7048 = vmatpush1.msra.mxu0 0.0
    %7049 = vmatprep.subr.mxu0 0.0
    %7050 = vmatpush1.msra.mxu0 0.0
    %7051 = vmatprep.subr.mxu0 0.0
    %7052 = vmatpush1.msra.mxu0 0.0
    %7053 = vmatprep.subr.mxu0 0.0
    %7054 = vmatpush1.msra.mxu0 0.0
    %7055 = vmatprep.mubr.f32.mxu0 0.0
    %v7056 = vand.u32 %v6811, 4294901760
    %v7057 = vsub.f32 %v6811, %v7056
    %7058 = vmatmul.mubr.f32.gmra.mrb[0].mxu0 %v7057
    %v7059 = vpop.f32.mrb[0].mxu0
    %v7060 = vadd.f32 %v6980, %v7059
    %v7061 = vpop.f32.mrb[0].mxu0
    %7062 = vdwg.mxu0
    %7063 = vmatprep.subr.mxu0 0.0
    %v7064 = vand.u32 %v6806, 4294901760
    %7065 = vmatpush1.msra.mxu0 %v7064
    %7066 = vmatprep.subr.mxu0 0.0
    %v7067 = vand.u32 %v6807, 4294901760
    %7068 = vmatpush1.msra.mxu0 %v7067
    %7069 = vmatprep.subr.mxu0 0.0
    %v7070 = vand.u32 %v6808, 4294901760
    %7071 = vmatpush1.msra.mxu0 %v7070
    %7072 = vmatprep.subr.mxu0 0.0
    %v7073 = vand.u32 %v6809, 4294901760
    %7074 = vmatpush1.msra.mxu0 %v7073
    %7075 = vmatprep.subr.mxu0 0.0
    %7076 = vmatpush1.msra.mxu0 0.0
    %7077 = vmatprep.subr.mxu0 0.0
    %7078 = vmatpush1.msra.mxu0 0.0
    %7079 = vmatprep.subr.mxu0 0.0
    %7080 = vmatpush1.msra.mxu0 0.0
    %7081 = vmatprep.subr.mxu0 0.0
    %7082 = vmatpush1.msra.mxu0 0.0
    %7083 = vmatprep.subr.mxu0 0.0
    %7084 = vmatpush1.msra.mxu0 0.0
    %7085 = vmatprep.subr.mxu0 0.0
    %7086 = vmatpush1.msra.mxu0 0.0
    %7087 = vmatprep.subr.mxu0 0.0
    %7088 = vmatpush1.msra.mxu0 0.0
    %7089 = vmatprep.subr.mxu0 0.0
    %7090 = vmatpush1.msra.mxu0 0.0
    %7091 = vmatprep.subr.mxu0 0.0
    %7092 = vmatpush1.msra.mxu0 0.0
    %7093 = vmatprep.subr.mxu0 0.0
    %7094 = vmatpush1.msra.mxu0 0.0
    %7095 = vmatprep.subr.mxu0 0.0
    %7096 = vmatpush1.msra.mxu0 0.0
    %7097 = vmatprep.subr.mxu0 0.0
    %7098 = vmatpush1.msra.mxu0 0.0
    %7099 = vmatprep.subr.mxu0 0.0
    %7100 = vmatpush1.msra.mxu0 0.0
    %7101 = vmatprep.subr.mxu0 0.0
    %7102 = vmatpush1.msra.mxu0 0.0
    %7103 = vmatprep.subr.mxu0 0.0
    %7104 = vmatpush1.msra.mxu0 0.0
    %7105 = vmatprep.subr.mxu0 0.0
    %7106 = vmatpush1.msra.mxu0 0.0
    %7107 = vmatprep.subr.mxu0 0.0
    %7108 = vmatpush1.msra.mxu0 0.0
    %7109 = vmatprep.subr.mxu0 0.0
    %7110 = vmatpush1.msra.mxu0 0.0
    %7111 = vmatprep.subr.mxu0 0.0
    %7112 = vmatpush1.msra.mxu0 0.0
    %7113 = vmatprep.subr.mxu0 0.0
    %7114 = vmatpush1.msra.mxu0 0.0
    %7115 = vmatprep.subr.mxu0 0.0
    %7116 = vmatpush1.msra.mxu0 0.0
    %7117 = vmatprep.subr.mxu0 0.0
    %7118 = vmatpush1.msra.mxu0 0.0
    %7119 = vmatprep.subr.mxu0 0.0
    %7120 = vmatpush1.msra.mxu0 0.0
    %7121 = vmatprep.subr.mxu0 0.0
    %7122 = vmatpush1.msra.mxu0 0.0
    %7123 = vmatprep.subr.mxu0 0.0
    %7124 = vmatpush1.msra.mxu0 0.0
    %7125 = vmatprep.subr.mxu0 0.0
    %7126 = vmatpush1.msra.mxu0 0.0
    %7127 = vmatprep.subr.mxu0 0.0
    %7128 = vmatpush1.msra.mxu0 0.0
    %7129 = vmatprep.subr.mxu0 0.0
    %7130 = vmatpush1.msra.mxu0 0.0
    %7131 = vmatprep.mubr.f32.mxu0 0.0
    %v7132 = vand.u32 %v6811, 4294901760
    %v7133 = vsub.f32 %v6811, %v7132
    %v7134 = vand.u32 %v7133, 4294901760
    %7135 = vmatmul.mubr.f32.gmra.mrb[0].mxu0 %v7134
    %v7136 = vpop.f32.mrb[0].mxu0
    %v7137 = vadd.f32 %v7060, %v7136
    %v7138 = vpop.f32.mrb[0].mxu0
    %7139 = vdwg.mxu0
    %7140 = vmatprep.subr.mxu0 0.0
    %v7141 = vand.u32 %v6806, 4294901760
    %v7142 = vsub.f32 %v6806, %v7141
    %v7143 = vand.u32 %v7142, 4294901760
    %7144 = vmatpush1.msra.mxu0 %v7143
    %7145 = vmatprep.subr.mxu0 0.0
    %v7146 = vand.u32 %v6807, 4294901760
    %v7147 = vsub.f32 %v6807, %v7146
    %v7148 = vand.u32 %v7147, 4294901760
    %7149 = vmatpush1.msra.mxu0 %v7148
    %7150 = vmatprep.subr.mxu0 0.0
    %v7151 = vand.u32 %v6808, 4294901760
    %v7152 = vsub.f32 %v6808, %v7151
    %v7153 = vand.u32 %v7152, 4294901760
    %7154 = vmatpush1.msra.mxu0 %v7153
    %7155 = vmatprep.subr.mxu0 0.0
    %v7156 = vand.u32 %v6809, 4294901760
    %v7157 = vsub.f32 %v6809, %v7156
    %v7158 = vand.u32 %v7157, 4294901760
    %7159 = vmatpush1.msra.mxu0 %v7158
    %7160 = vmatprep.subr.mxu0 0.0
    %7161 = vmatpush1.msra.mxu0 0.0
    %7162 = vmatprep.subr.mxu0 0.0
    %7163 = vmatpush1.msra.mxu0 0.0
    %7164 = vmatprep.subr.mxu0 0.0
    %7165 = vmatpush1.msra.mxu0 0.0
    %7166 = vmatprep.subr.mxu0 0.0
    %7167 = vmatpush1.msra.mxu0 0.0
    %7168 = vmatprep.subr.mxu0 0.0
    %7169 = vmatpush1.msra.mxu0 0.0
    %7170 = vmatprep.subr.mxu0 0.0
    %7171 = vmatpush1.msra.mxu0 0.0
    %7172 = vmatprep.subr.mxu0 0.0
    %7173 = vmatpush1.msra.mxu0 0.0
    %7174 = vmatprep.subr.mxu0 0.0
    %7175 = vmatpush1.msra.mxu0 0.0
    %7176 = vmatprep.subr.mxu0 0.0
    %7177 = vmatpush1.msra.mxu0 0.0
    %7178 = vmatprep.subr.mxu0 0.0
    %7179 = vmatpush1.msra.mxu0 0.0
    %7180 = vmatprep.subr.mxu0 0.0
    %7181 = vmatpush1.msra.mxu0 0.0
    %7182 = vmatprep.subr.mxu0 0.0
    %7183 = vmatpush1.msra.mxu0 0.0
    %7184 = vmatprep.subr.mxu0 0.0
    %7185 = vmatpush1.msra.mxu0 0.0
    %7186 = vmatprep.subr.mxu0 0.0
    %7187 = vmatpush1.msra.mxu0 0.0
    %7188 = vmatprep.subr.mxu0 0.0
    %7189 = vmatpush1.msra.mxu0 0.0
    %7190 = vmatprep.subr.mxu0 0.0
    %7191 = vmatpush1.msra.mxu0 0.0
    %7192 = vmatprep.subr.mxu0 0.0
    %7193 = vmatpush1.msra.mxu0 0.0
    %7194 = vmatprep.subr.mxu0 0.0
    %7195 = vmatpush1.msra.mxu0 0.0
    %7196 = vmatprep.subr.mxu0 0.0
    %7197 = vmatpush1.msra.mxu0 0.0
    %7198 = vmatprep.subr.mxu0 0.0
    %7199 = vmatpush1.msra.mxu0 0.0
    %7200 = vmatprep.subr.mxu0 0.0
    %7201 = vmatpush1.msra.mxu0 0.0
    %7202 = vmatprep.subr.mxu0 0.0
    %7203 = vmatpush1.msra.mxu0 0.0
    %7204 = vmatprep.subr.mxu0 0.0
    %7205 = vmatpush1.msra.mxu0 0.0
    %7206 = vmatprep.subr.mxu0 0.0
    %7207 = vmatpush1.msra.mxu0 0.0
    %7208 = vmatprep.subr.mxu0 0.0
    %7209 = vmatpush1.msra.mxu0 0.0
    %7210 = vmatprep.subr.mxu0 0.0
    %7211 = vmatpush1.msra.mxu0 0.0
    %7212 = vmatprep.subr.mxu0 0.0
    %7213 = vmatpush1.msra.mxu0 0.0
    %7214 = vmatprep.subr.mxu0 0.0
    %7215 = vmatpush1.msra.mxu0 0.0
    %7216 = vmatprep.mubr.f32.mxu0 0.0
    %v7217 = vand.u32 %v6811, 4294901760
    %7218 = vmatmul.mubr.f32.gmra.mrb[0].mxu0 %v7217
    %v7219 = vpop.f32.mrb[0].mxu0
    %v7220 = vadd.f32 %v7137, %v7219
    %v7221 = vpop.f32.mrb[0].mxu0
    %7222 = vdwg.mxu0
    %7223 = vmatprep.subr.mxu0 0.0
    %v7224 = vand.u32 %v6806, 4294901760
    %7225 = vmatpush1.msra.mxu0 %v7224
    %7226 = vmatprep.subr.mxu0 0.0
    %v7227 = vand.u32 %v6807, 4294901760
    %7228 = vmatpush1.msra.mxu0 %v7227
    %7229 = vmatprep.subr.mxu0 0.0
    %v7230 = vand.u32 %v6808, 4294901760
    %7231 = vmatpush1.msra.mxu0 %v7230
    %7232 = vmatprep.subr.mxu0 0.0
    %v7233 = vand.u32 %v6809, 4294901760
    %7234 = vmatpush1.msra.mxu0 %v7233
    %7235 = vmatprep.subr.mxu0 0.0
    %7236 = vmatpush1.msra.mxu0 0.0
    %7237 = vmatprep.subr.mxu0 0.0
    %7238 = vmatpush1.msra.mxu0 0.0
    %7239 = vmatprep.subr.mxu0 0.0
    %7240 = vmatpush1.msra.mxu0 0.0
    %7241 = vmatprep.subr.mxu0 0.0
    %7242 = vmatpush1.msra.mxu0 0.0
    %7243 = vmatprep.subr.mxu0 0.0
    %7244 = vmatpush1.msra.mxu0 0.0
    %7245 = vmatprep.subr.mxu0 0.0
    %7246 = vmatpush1.msra.mxu0 0.0
    %7247 = vmatprep.subr.mxu0 0.0
    %7248 = vmatpush1.msra.mxu0 0.0
    %7249 = vmatprep.subr.mxu0 0.0
    %7250 = vmatpush1.msra.mxu0 0.0
    %7251 = vmatprep.subr.mxu0 0.0
    %7252 = vmatpush1.msra.mxu0 0.0
    %7253 = vmatprep.subr.mxu0 0.0
    %7254 = vmatpush1.msra.mxu0 0.0
    %7255 = vmatprep.subr.mxu0 0.0
    %7256 = vmatpush1.msra.mxu0 0.0
    %7257 = vmatprep.subr.mxu0 0.0
    %7258 = vmatpush1.msra.mxu0 0.0
    %7259 = vmatprep.subr.mxu0 0.0
    %7260 = vmatpush1.msra.mxu0 0.0
    %7261 = vmatprep.subr.mxu0 0.0
    %7262 = vmatpush1.msra.mxu0 0.0
    %7263 = vmatprep.subr.mxu0 0.0
    %7264 = vmatpush1.msra.mxu0 0.0
    %7265 = vmatprep.subr.mxu0 0.0
    %7266 = vmatpush1.msra.mxu0 0.0
    %7267 = vmatprep.subr.mxu0 0.0
    %7268 = vmatpush1.msra.mxu0 0.0
    %7269 = vmatprep.subr.mxu0 0.0
    %7270 = vmatpush1.msra.mxu0 0.0
    %7271 = vmatprep.subr.mxu0 0.0
    %7272 = vmatpush1.msra.mxu0 0.0
    %7273 = vmatprep.subr.mxu0 0.0
    %7274 = vmatpush1.msra.mxu0 0.0
    %7275 = vmatprep.subr.mxu0 0.0
    %7276 = vmatpush1.msra.mxu0 0.0
    %7277 = vmatprep.subr.mxu0 0.0
    %7278 = vmatpush1.msra.mxu0 0.0
    %7279 = vmatprep.subr.mxu0 0.0
    %7280 = vmatpush1.msra.mxu0 0.0
    %7281 = vmatprep.subr.mxu0 0.0
    %7282 = vmatpush1.msra.mxu0 0.0
    %7283 = vmatprep.subr.mxu0 0.0
    %7284 = vmatpush1.msra.mxu0 0.0
    %7285 = vmatprep.subr.mxu0 0.0
    %7286 = vmatpush1.msra.mxu0 0.0
    %7287 = vmatprep.subr.mxu0 0.0
    %7288 = vmatpush1.msra.mxu0 0.0
    %7289 = vmatprep.subr.mxu0 0.0
    %7290 = vmatpush1.msra.mxu0 0.0
    %7291 = vmatprep.mubr.f32.mxu0 0.0
    %v7292 = vand.u32 %v6811, 4294901760
    %7293 = vmatmul.mubr.f32.gmra.mrb[0].mxu0 %v7292
    %v7294 = vpop.f32.mrb[0].mxu0
    %v7295 = vadd.f32 %v7220, %v7294
    %v7296 = vpop.f32.mrb[0].mxu0
    %7297 = vdwg.mxu0
    %v7298 = vld [vmem:[#allocation10] sm:$0xff]
    %v7299 = vld [vmem:[#allocation10 + $0x8] sm:$0xff]
    %v7300 = vld [vmem:[#allocation10 + $0x10] sm:$0xff]
    %v7301 = vld [vmem:[#allocation10 + $0x18] sm:$0xff]
    %v7302 = vld [vmem:[#allocation2 + $0x9] ss:$0 sm:$0xff]
    %v7303 = vrot.slane %v6796, 1
    %7304 = vrot.lane.b32.xlu0 %v7303, 32
    %v7305 = vpop.permute.xlu0 %7304
    %v7306 = vsel %vm114, %v7305, 0
    %7308 = vmatprep.subr.mxu0 0.0
    %v7309 = vand.u32 %v7298, 4294901760
    %7310 = vmatpush1.msra.mxu0 %v7309
    %7311 = vmatprep.subr.mxu0 0.0
    %v7312 = vand.u32 %v7299, 4294901760
    %7313 = vmatpush1.msra.mxu0 %v7312
    %7314 = vmatprep.subr.mxu0 0.0
    %v7315 = vand.u32 %v7300, 4294901760
    %7316 = vmatpush1.msra.mxu0 %v7315
    %7317 = vmatprep.subr.mxu0 0.0
    %v7318 = vand.u32 %v7301, 4294901760
    %7319 = vmatpush1.msra.mxu0 %v7318
    %7320 = vmatprep.subr.mxu0 0.0
    %7321 = vmatpush1.msra.mxu0 0.0
    %7322 = vmatprep.subr.mxu0 0.0
    %7323 = vmatpush1.msra.mxu0 0.0
    %7324 = vmatprep.subr.mxu0 0.0
    %7325 = vmatpush1.msra.mxu0 0.0
    %7326 = vmatprep.subr.mxu0 0.0
    %7327 = vmatpush1.msra.mxu0 0.0
    %7328 = vmatprep.subr.mxu0 0.0
    %7329 = vmatpush1.msra.mxu0 0.0
    %7330 = vmatprep.subr.mxu0 0.0
    %7331 = vmatpush1.msra.mxu0 0.0
    %7332 = vmatprep.subr.mxu0 0.0
    %7333 = vmatpush1.msra.mxu0 0.0
    %7334 = vmatprep.subr.mxu0 0.0
    %7335 = vmatpush1.msra.mxu0 0.0
    %7336 = vmatprep.subr.mxu0 0.0
    %7337 = vmatpush1.msra.mxu0 0.0
    %7338 = vmatprep.subr.mxu0 0.0
    %7339 = vmatpush1.msra.mxu0 0.0
    %7340 = vmatprep.subr.mxu0 0.0
    %7341 = vmatpush1.msra.mxu0 0.0
    %7342 = vmatprep.subr.mxu0 0.0
    %7343 = vmatpush1.msra.mxu0 0.0
    %7344 = vmatprep.subr.mxu0 0.0
    %7345 = vmatpush1.msra.mxu0 0.0
    %7346 = vmatprep.subr.mxu0 0.0
    %7347 = vmatpush1.msra.mxu0 0.0
    %7348 = vmatprep.subr.mxu0 0.0
    %7349 = vmatpush1.msra.mxu0 0.0
    %7350 = vmatprep.subr.mxu0 0.0
    %7351 = vmatpush1.msra.mxu0 0.0
    %7352 = vmatprep.subr.mxu0 0.0
    %7353 = vmatpush1.msra.mxu0 0.0
    %7354 = vmatprep.subr.mxu0 0.0
    %7355 = vmatpush1.msra.mxu0 0.0
    %7356 = vmatprep.subr.mxu0 0.0
    %7357 = vmatpush1.msra.mxu0 0.0
    %7358 = vmatprep.subr.mxu0 0.0
    %7359 = vmatpush1.msra.mxu0 0.0
    %7360 = vmatprep.subr.mxu0 0.0
    %7361 = vmatpush1.msra.mxu0 0.0
    %7362 = vmatprep.subr.mxu0 0.0
    %7363 = vmatpush1.msra.mxu0 0.0
    %7364 = vmatprep.subr.mxu0 0.0
    %7365 = vmatpush1.msra.mxu0 0.0
    %7366 = vmatprep.subr.mxu0 0.0
    %7367 = vmatpush1.msra.mxu0 0.0
    %7368 = vmatprep.subr.mxu0 0.0
    %7369 = vmatpush1.msra.mxu0 0.0
    %7370 = vmatprep.subr.mxu0 0.0
    %7371 = vmatpush1.msra.mxu0 0.0
    %7372 = vmatprep.subr.mxu0 0.0
    %7373 = vmatpush1.msra.mxu0 0.0
    %7374 = vmatprep.subr.mxu0 0.0
    %7375 = vmatpush1.msra.mxu0 0.0
    %7376 = vmatprep.mubr.f32.mxu0 0.0
    %v7377 = vand.u32 %v7306, 4294901760
    %v7378 = vsub.f32 %v7306, %v7377
    %v7379 = vand.u32 %v7378, 4294901760
    %v7380 = vsub.f32 %v7378, %v7379
    %v7381 = vand.u32 %v7380, 4294901760
    %7382 = vmatmul.mubr.f32.gmra.mrb[0].mxu0 %v7381
    %v7383 = vpop.f32.mrb[0].mxu0
    %v7384 = vadd.f32 %v7302, %v7383
    %v7385 = vpop.f32.mrb[0].mxu0
    %7386 = vdwg.mxu0
    %7387 = vmatprep.subr.mxu0 0.0
    %v7388 = vand.u32 %v7298, 4294901760
    %v7389 = vsub.f32 %v7298, %v7388
    %v7390 = vand.u32 %v7389, 4294901760
    %v7391 = vsub.f32 %v7389, %v7390
    %v7392 = vand.u32 %v7391, 4294901760
    %7393 = vmatpush1.msra.mxu0 %v7392
    %7394 = vmatprep.subr.mxu0 0.0
    %v7395 = vand.u32 %v7299, 4294901760
    %v7396 = vsub.f32 %v7299, %v7395
    %v7397 = vand.u32 %v7396, 4294901760
    %v7398 = vsub.f32 %v7396, %v7397
    %v7399 = vand.u32 %v7398, 4294901760
    %7400 = vmatpush1.msra.mxu0 %v7399
    %7401 = vmatprep.subr.mxu0 0.0
    %v7402 = vand.u32 %v7300, 4294901760
    %v7403 = vsub.f32 %v7300, %v7402
    %v7404 = vand.u32 %v7403, 4294901760
    %v7405 = vsub.f32 %v7403, %v7404
    %v7406 = vand.u32 %v7405, 4294901760
    %7407 = vmatpush1.msra.mxu0 %v7406
    %7408 = vmatprep.subr.mxu0 0.0
    %v7409 = vand.u32 %v7301, 4294901760
    %v7410 = vsub.f32 %v7301, %v7409
    %v7411 = vand.u32 %v7410, 4294901760
    %v7412 = vsub.f32 %v7410, %v7411
    %v7413 = vand.u32 %v7412, 4294901760
    %7414 = vmatpush1.msra.mxu0 %v7413
    %7415 = vmatprep.subr.mxu0 0.0
    %7416 = vmatpush1.msra.mxu0 0.0
    %7417 = vmatprep.subr.mxu0 0.0
    %7418 = vmatpush1.msra.mxu0 0.0
    %7419 = vmatprep.subr.mxu0 0.0
    %7420 = vmatpush1.msra.mxu0 0.0
    %7421 = vmatprep.subr.mxu0 0.0
    %7422 = vmatpush1.msra.mxu0 0.0
    %7423 = vmatprep.subr.mxu0 0.0
    %7424 = vmatpush1.msra.mxu0 0.0
    %7425 = vmatprep.subr.mxu0 0.0
    %7426 = vmatpush1.msra.mxu0 0.0
    %7427 = vmatprep.subr.mxu0 0.0
    %7428 = vmatpush1.msra.mxu0 0.0
    %7429 = vmatprep.subr.mxu0 0.0
    %7430 = vmatpush1.msra.mxu0 0.0
    %7431 = vmatprep.subr.mxu0 0.0
    %7432 = vmatpush1.msra.mxu0 0.0
    %7433 = vmatprep.subr.mxu0 0.0
    %7434 = vmatpush1.msra.mxu0 0.0
    %7435 = vmatprep.subr.mxu0 0.0
    %7436 = vmatpush1.msra.mxu0 0.0
    %7437 = vmatprep.subr.mxu0 0.0
    %7438 = vmatpush1.msra.mxu0 0.0
    %7439 = vmatprep.subr.mxu0 0.0
    %7440 = vmatpush1.msra.mxu0 0.0
    %7441 = vmatprep.subr.mxu0 0.0
    %7442 = vmatpush1.msra.mxu0 0.0
    %7443 = vmatprep.subr.mxu0 0.0
    %7444 = vmatpush1.msra.mxu0 0.0
    %7445 = vmatprep.subr.mxu0 0.0
    %7446 = vmatpush1.msra.mxu0 0.0
    %7447 = vmatprep.subr.mxu0 0.0
    %7448 = vmatpush1.msra.mxu0 0.0
    %7449 = vmatprep.subr.mxu0 0.0
    %7450 = vmatpush1.msra.mxu0 0.0
    %7451 = vmatprep.subr.mxu0 0.0
    %7452 = vmatpush1.msra.mxu0 0.0
    %7453 = vmatprep.subr.mxu0 0.0
    %7454 = vmatpush1.msra.mxu0 0.0
    %7455 = vmatprep.subr.mxu0 0.0
    %7456 = vmatpush1.msra.mxu0 0.0
    %7457 = vmatprep.subr.mxu0 0.0
    %7458 = vmatpush1.msra.mxu0 0.0
    %7459 = vmatprep.subr.mxu0 0.0
    %7460 = vmatpush1.msra.mxu0 0.0
    %7461 = vmatprep.subr.mxu0 0.0
    %7462 = vmatpush1.msra.mxu0 0.0
    %7463 = vmatprep.subr.mxu0 0.0
    %7464 = vmatpush1.msra.mxu0 0.0
    %7465 = vmatprep.subr.mxu0 0.0
    %7466 = vmatpush1.msra.mxu0 0.0
    %7467 = vmatprep.subr.mxu0 0.0
    %7468 = vmatpush1.msra.mxu0 0.0
    %7469 = vmatprep.subr.mxu0 0.0
    %7470 = vmatpush1.msra.mxu0 0.0
    %7471 = vmatprep.mubr.f32.mxu0 0.0
    %v7472 = vand.u32 %v7306, 4294901760
    %7473 = vmatmul.mubr.f32.gmra.mrb[0].mxu0 %v7472
    %v7474 = vpop.f32.mrb[0].mxu0
    %v7475 = vadd.f32 %v7384, %v7474
    %v7476 = vpop.f32.mrb[0].mxu0
    %7477 = vdwg.mxu0
    %7478 = vmatprep.subr.mxu0 0.0
    %v7479 = vand.u32 %v7298, 4294901760
    %v7480 = vsub.f32 %v7298, %v7479
    %7481 = vmatpush1.msra.mxu0 %v7480
    %7482 = vmatprep.subr.mxu0 0.0
    %v7483 = vand.u32 %v7299, 4294901760
    %v7484 = vsub.f32 %v7299, %v7483
    %7485 = vmatpush1.msra.mxu0 %v7484
    %7486 = vmatprep.subr.mxu0 0.0
    %v7487 = vand.u32 %v7300, 4294901760
    %v7488 = vsub.f32 %v7300, %v7487
    %7489 = vmatpush1.msra.mxu0 %v7488
    %7490 = vmatprep.subr.mxu0 0.0
    %v7491 = vand.u32 %v7301, 4294901760
    %v7492 = vsub.f32 %v7301, %v7491
    %7493 = vmatpush1.msra.mxu0 %v7492
    %7494 = vmatprep.subr.mxu0 0.0
    %7495 = vmatpush1.msra.mxu0 0.0
    %7496 = vmatprep.subr.mxu0 0.0
    %7497 = vmatpush1.msra.mxu0 0.0
    %7498 = vmatprep.subr.mxu0 0.0
    %7499 = vmatpush1.msra.mxu0 0.0
    %7500 = vmatprep.subr.mxu0 0.0
    %7501 = vmatpush1.msra.mxu0 0.0
    %7502 = vmatprep.subr.mxu0 0.0
    %7503 = vmatpush1.msra.mxu0 0.0
    %7504 = vmatprep.subr.mxu0 0.0
    %7505 = vmatpush1.msra.mxu0 0.0
    %7506 = vmatprep.subr.mxu0 0.0
    %7507 = vmatpush1.msra.mxu0 0.0
    %7508 = vmatprep.subr.mxu0 0.0
    %7509 = vmatpush1.msra.mxu0 0.0
    %7510 = vmatprep.subr.mxu0 0.0
    %7511 = vmatpush1.msra.mxu0 0.0
    %7512 = vmatprep.subr.mxu0 0.0
    %7513 = vmatpush1.msra.mxu0 0.0
    %7514 = vmatprep.subr.mxu0 0.0
    %7515 = vmatpush1.msra.mxu0 0.0
    %7516 = vmatprep.subr.mxu0 0.0
    %7517 = vmatpush1.msra.mxu0 0.0
    %7518 = vmatprep.subr.mxu0 0.0
    %7519 = vmatpush1.msra.mxu0 0.0
    %7520 = vmatprep.subr.mxu0 0.0
    %7521 = vmatpush1.msra.mxu0 0.0
    %7522 = vmatprep.subr.mxu0 0.0
    %7523 = vmatpush1.msra.mxu0 0.0
    %7524 = vmatprep.subr.mxu0 0.0
    %7525 = vmatpush1.msra.mxu0 0.0
    %7526 = vmatprep.subr.mxu0 0.0
    %7527 = vmatpush1.msra.mxu0 0.0
    %7528 = vmatprep.subr.mxu0 0.0
    %7529 = vmatpush1.msra.mxu0 0.0
    %7530 = vmatprep.subr.mxu0 0.0
    %7531 = vmatpush1.msra.mxu0 0.0
    %7532 = vmatprep.subr.mxu0 0.0
    %7533 = vmatpush1.msra.mxu0 0.0
    %7534 = vmatprep.subr.mxu0 0.0
    %7535 = vmatpush1.msra.mxu0 0.0
    %7536 = vmatprep.subr.mxu0 0.0
    %7537 = vmatpush1.msra.mxu0 0.0
    %7538 = vmatprep.subr.mxu0 0.0
    %7539 = vmatpush1.msra.mxu0 0.0
    %7540 = vmatprep.subr.mxu0 0.0
    %7541 = vmatpush1.msra.mxu0 0.0
    %7542 = vmatprep.subr.mxu0 0.0
    %7543 = vmatpush1.msra.mxu0 0.0
    %7544 = vmatprep.subr.mxu0 0.0
    %7545 = vmatpush1.msra.mxu0 0.0
    %7546 = vmatprep.subr.mxu0 0.0
    %7547 = vmatpush1.msra.mxu0 0.0
    %7548 = vmatprep.subr.mxu0 0.0
    %7549 = vmatpush1.msra.mxu0 0.0
    %7550 = vmatprep.mubr.f32.mxu0 0.0
    %v7551 = vand.u32 %v7306, 4294901760
    %v7552 = vsub.f32 %v7306, %v7551
    %7553 = vmatmul.mubr.f32.gmra.mrb[0].mxu0 %v7552
    %v7554 = vpop.f32.mrb[0].mxu0
    %v7555 = vadd.f32 %v7475, %v7554
    %v7556 = vpop.f32.mrb[0].mxu0
    %7557 = vdwg.mxu0
    %7558 = vmatprep.subr.mxu0 0.0
    %v7559 = vand.u32 %v7298, 4294901760
    %7560 = vmatpush1.msra.mxu0 %v7559
    %7561 = vmatprep.subr.mxu0 0.0
    %v7562 = vand.u32 %v7299, 4294901760
    %7563 = vmatpush1.msra.mxu0 %v7562
    %7564 = vmatprep.subr.mxu0 0.0
    %v7565 = vand.u32 %v7300, 4294901760
    %7566 = vmatpush1.msra.mxu0 %v7565
    %7567 = vmatprep.subr.mxu0 0.0
    %v7568 = vand.u32 %v7301, 4294901760
    %7569 = vmatpush1.msra.mxu0 %v7568
    %7570 = vmatprep.subr.mxu0 0.0
    %7571 = vmatpush1.msra.mxu0 0.0
    %7572 = vmatprep.subr.mxu0 0.0
    %7573 = vmatpush1.msra.mxu0 0.0
    %7574 = vmatprep.subr.mxu0 0.0
    %7575 = vmatpush1.msra.mxu0 0.0
    %7576 = vmatprep.subr.mxu0 0.0
    %7577 = vmatpush1.msra.mxu0 0.0
    %7578 = vmatprep.subr.mxu0 0.0
    %7579 = vmatpush1.msra.mxu0 0.0
    %7580 = vmatprep.subr.mxu0 0.0
    %7581 = vmatpush1.msra.mxu0 0.0
    %7582 = vmatprep.subr.mxu0 0.0
    %7583 = vmatpush1.msra.mxu0 0.0
    %7584 = vmatprep.subr.mxu0 0.0
    %7585 = vmatpush1.msra.mxu0 0.0
    %7586 = vmatprep.subr.mxu0 0.0
    %7587 = vmatpush1.msra.mxu0 0.0
    %7588 = vmatprep.subr.mxu0 0.0
    %7589 = vmatpush1.msra.mxu0 0.0
    %7590 = vmatprep.subr.mxu0 0.0
    %7591 = vmatpush1.msra.mxu0 0.0
    %7592 = vmatprep.subr.mxu0 0.0
    %7593 = vmatpush1.msra.mxu0 0.0
    %7594 = vmatprep.subr.mxu0 0.0
    %7595 = vmatpush1.msra.mxu0 0.0
    %7596 = vmatprep.subr.mxu0 0.0
    %7597 = vmatpush1.msra.mxu0 0.0
    %7598 = vmatprep.subr.mxu0 0.0
    %7599 = vmatpush1.msra.mxu0 0.0
    %7600 = vmatprep.subr.mxu0 0.0
    %7601 = vmatpush1.msra.mxu0 0.0
    %7602 = vmatprep.subr.mxu0 0.0
    %7603 = vmatpush1.msra.mxu0 0.0
    %7604 = vmatprep.subr.mxu0 0.0
    %7605 = vmatpush1.msra.mxu0 0.0
    %7606 = vmatprep.subr.mxu0 0.0
    %7607 = vmatpush1.msra.mxu0 0.0
    %7608 = vmatprep.subr.mxu0 0.0
    %7609 = vmatpush1.msra.mxu0 0.0
    %7610 = vmatprep.subr.mxu0 0.0
    %7611 = vmatpush1.msra.mxu0 0.0
    %7612 = vmatprep.subr.mxu0 0.0
    %7613 = vmatpush1.msra.mxu0 0.0
    %7614 = vmatprep.subr.mxu0 0.0
    %7615 = vmatpush1.msra.mxu0 0.0
    %7616 = vmatprep.subr.mxu0 0.0
    %7617 = vmatpush1.msra.mxu0 0.0
    %7618 = vmatprep.subr.mxu0 0.0
    %7619 = vmatpush1.msra.mxu0 0.0
    %7620 = vmatprep.subr.mxu0 0.0
    %7621 = vmatpush1.msra.mxu0 0.0
    %7622 = vmatprep.subr.mxu0 0.0
    %7623 = vmatpush1.msra.mxu0 0.0
    %7624 = vmatprep.subr.mxu0 0.0
    %7625 = vmatpush1.msra.mxu0 0.0
    %7626 = vmatprep.mubr.f32.mxu0 0.0
    %v7627 = vand.u32 %v7306, 4294901760
    %v7628 = vsub.f32 %v7306, %v7627
    %v7629 = vand.u32 %v7628, 4294901760
    %7630 = vmatmul.mubr.f32.gmra.mrb[0].mxu0 %v7629
    %v7631 = vpop.f32.mrb[0].mxu0
    %v7632 = vadd.f32 %v7555, %v7631
    %v7633 = vpop.f32.mrb[0].mxu0
    %7634 = vdwg.mxu0
    %7635 = vmatprep.subr.mxu0 0.0
    %v7636 = vand.u32 %v7298, 4294901760
    %v7637 = vsub.f32 %v7298, %v7636
    %v7638 = vand.u32 %v7637, 4294901760
    %7639 = vmatpush1.msra.mxu0 %v7638
    %7640 = vmatprep.subr.mxu0 0.0
    %v7641 = vand.u32 %v7299, 4294901760
    %v7642 = vsub.f32 %v7299, %v7641
    %v7643 = vand.u32 %v7642, 4294901760
    %7644 = vmatpush1.msra.mxu0 %v7643
    %7645 = vmatprep.subr.mxu0 0.0
    %v7646 = vand.u32 %v7300, 4294901760
    %v7647 = vsub.f32 %v7300, %v7646
    %v7648 = vand.u32 %v7647, 4294901760
    %7649 = vmatpush1.msra.mxu0 %v7648
    %7650 = vmatprep.subr.mxu0 0.0
    %v7651 = vand.u32 %v7301, 4294901760
    %v7652 = vsub.f32 %v7301, %v7651
    %v7653 = vand.u32 %v7652, 4294901760
    %7654 = vmatpush1.msra.mxu0 %v7653
    %7655 = vmatprep.subr.mxu0 0.0
    %7656 = vmatpush1.msra.mxu0 0.0
    %7657 = vmatprep.subr.mxu0 0.0
    %7658 = vmatpush1.msra.mxu0 0.0
    %7659 = vmatprep.subr.mxu0 0.0
    %7660 = vmatpush1.msra.mxu0 0.0
    %7661 = vmatprep.subr.mxu0 0.0
    %7662 = vmatpush1.msra.mxu0 0.0
    %7663 = vmatprep.subr.mxu0 0.0
    %7664 = vmatpush1.msra.mxu0 0.0
    %7665 = vmatprep.subr.mxu0 0.0
    %7666 = vmatpush1.msra.mxu0 0.0
    %7667 = vmatprep.subr.mxu0 0.0
    %7668 = vmatpush1.msra.mxu0 0.0
    %7669 = vmatprep.subr.mxu0 0.0
    %7670 = vmatpush1.msra.mxu0 0.0
    %7671 = vmatprep.subr.mxu0 0.0
    %7672 = vmatpush1.msra.mxu0 0.0
    %7673 = vmatprep.subr.mxu0 0.0
    %7674 = vmatpush1.msra.mxu0 0.0
    %7675 = vmatprep.subr.mxu0 0.0
    %7676 = vmatpush1.msra.mxu0 0.0
    %7677 = vmatprep.subr.mxu0 0.0
    %7678 = vmatpush1.msra.mxu0 0.0
    %7679 = vmatprep.subr.mxu0 0.0
    %7680 = vmatpush1.msra.mxu0 0.0
    %7681 = vmatprep.subr.mxu0 0.0
    %7682 = vmatpush1.msra.mxu0 0.0
    %7683 = vmatprep.subr.mxu0 0.0
    %7684 = vmatpush1.msra.mxu0 0.0
    %7685 = vmatprep.subr.mxu0 0.0
    %7686 = vmatpush1.msra.mxu0 0.0
    %7687 = vmatprep.subr.mxu0 0.0
    %7688 = vmatpush1.msra.mxu0 0.0
    %7689 = vmatprep.subr.mxu0 0.0
    %7690 = vmatpush1.msra.mxu0 0.0
    %7691 = vmatprep.subr.mxu0 0.0
    %7692 = vmatpush1.msra.mxu0 0.0
    %7693 = vmatprep.subr.mxu0 0.0
    %7694 = vmatpush1.msra.mxu0 0.0
    %7695 = vmatprep.subr.mxu0 0.0
    %7696 = vmatpush1.msra.mxu0 0.0
    %7697 = vmatprep.subr.mxu0 0.0
    %7698 = vmatpush1.msra.mxu0 0.0
    %7699 = vmatprep.subr.mxu0 0.0
    %7700 = vmatpush1.msra.mxu0 0.0
    %7701 = vmatprep.subr.mxu0 0.0
    %7702 = vmatpush1.msra.mxu0 0.0
    %7703 = vmatprep.subr.mxu0 0.0
    %7704 = vmatpush1.msra.mxu0 0.0
    %7705 = vmatprep.subr.mxu0 0.0
    %7706 = vmatpush1.msra.mxu0 0.0
    %7707 = vmatprep.subr.mxu0 0.0
    %7708 = vmatpush1.msra.mxu0 0.0
    %7709 = vmatprep.subr.mxu0 0.0
    %7710 = vmatpush1.msra.mxu0 0.0
    %7711 = vmatprep.mubr.f32.mxu0 0.0
    %v7712 = vand.u32 %v7306, 4294901760
    %7713 = vmatmul.mubr.f32.gmra.mrb[0].mxu0 %v7712
    %v7714 = vpop.f32.mrb[0].mxu0
    %v7715 = vadd.f32 %v7632, %v7714
    %v7716 = vpop.f32.mrb[0].mxu0
    %7717 = vdwg.mxu0
    %7718 = vmatprep.subr.mxu0 0.0
    %v7719 = vand.u32 %v7298, 4294901760
    %7720 = vmatpush1.msra.mxu0 %v7719
    %7721 = vmatprep.subr.mxu0 0.0
    %v7722 = vand.u32 %v7299, 4294901760
    %7723 = vmatpush1.msra.mxu0 %v7722
    %7724 = vmatprep.subr.mxu0 0.0
    %v7725 = vand.u32 %v7300, 4294901760
    %7726 = vmatpush1.msra.mxu0 %v7725
    %7727 = vmatprep.subr.mxu0 0.0
    %v7728 = vand.u32 %v7301, 4294901760
    %7729 = vmatpush1.msra.mxu0 %v7728
    %7730 = vmatprep.subr.mxu0 0.0
    %7731 = vmatpush1.msra.mxu0 0.0
    %7732 = vmatprep.subr.mxu0 0.0
    %7733 = vmatpush1.msra.mxu0 0.0
    %7734 = vmatprep.subr.mxu0 0.0
    %7735 = vmatpush1.msra.mxu0 0.0
    %7736 = vmatprep.subr.mxu0 0.0
    %7737 = vmatpush1.msra.mxu0 0.0
    %7738 = vmatprep.subr.mxu0 0.0
    %7739 = vmatpush1.msra.mxu0 0.0
    %7740 = vmatprep.subr.mxu0 0.0
    %7741 = vmatpush1.msra.mxu0 0.0
    %7742 = vmatprep.subr.mxu0 0.0
    %7743 = vmatpush1.msra.mxu0 0.0
    %7744 = vmatprep.subr.mxu0 0.0
    %7745 = vmatpush1.msra.mxu0 0.0
    %7746 = vmatprep.subr.mxu0 0.0
    %7747 = vmatpush1.msra.mxu0 0.0
    %7748 = vmatprep.subr.mxu0 0.0
    %7749 = vmatpush1.msra.mxu0 0.0
    %7750 = vmatprep.subr.mxu0 0.0
    %7751 = vmatpush1.msra.mxu0 0.0
    %7752 = vmatprep.subr.mxu0 0.0
    %7753 = vmatpush1.msra.mxu0 0.0
    %7754 = vmatprep.subr.mxu0 0.0
    %7755 = vmatpush1.msra.mxu0 0.0
    %7756 = vmatprep.subr.mxu0 0.0
    %7757 = vmatpush1.msra.mxu0 0.0
    %7758 = vmatprep.subr.mxu0 0.0
    %7759 = vmatpush1.msra.mxu0 0.0
    %7760 = vmatprep.subr.mxu0 0.0
    %7761 = vmatpush1.msra.mxu0 0.0
    %7762 = vmatprep.subr.mxu0 0.0
    %7763 = vmatpush1.msra.mxu0 0.0
    %7764 = vmatprep.subr.mxu0 0.0
    %7765 = vmatpush1.msra.mxu0 0.0
    %7766 = vmatprep.subr.mxu0 0.0
    %7767 = vmatpush1.msra.mxu0 0.0
    %7768 = vmatprep.subr.mxu0 0.0
    %7769 = vmatpush1.msra.mxu0 0.0
    %7770 = vmatprep.subr.mxu0 0.0
    %7771 = vmatpush1.msra.mxu0 0.0
    %7772 = vmatprep.subr.mxu0 0.0
    %7773 = vmatpush1.msra.mxu0 0.0
    %7774 = vmatprep.subr.mxu0 0.0
    %7775 = vmatpush1.msra.mxu0 0.0
    %7776 = vmatprep.subr.mxu0 0.0
    %7777 = vmatpush1.msra.mxu0 0.0
    %7778 = vmatprep.subr.mxu0 0.0
    %7779 = vmatpush1.msra.mxu0 0.0
    %7780 = vmatprep.subr.mxu0 0.0
    %7781 = vmatpush1.msra.mxu0 0.0
    %7782 = vmatprep.subr.mxu0 0.0
    %7783 = vmatpush1.msra.mxu0 0.0
    %7784 = vmatprep.subr.mxu0 0.0
    %7785 = vmatpush1.msra.mxu0 0.0
    %7786 = vmatprep.mubr.f32.mxu0 0.0
    %v7787 = vand.u32 %v7306, 4294901760
    %7788 = vmatmul.mubr.f32.gmra.mrb[0].mxu0 %v7787
    %v7789 = vpop.f32.mrb[0].mxu0
    %v7790 = vadd.f32 %v7715, %v7789
    %v7791 = vpop.f32.mrb[0].mxu0
    %7792 = vdwg.mxu0
    %v7794 = vrot.slane %v7790, 7
    %v7796 = vsel %vm1649, %v7295, %v7794
    %v7797 = vxor.u32 %v7796, 2147483648
    %v7798 = vmul.f32 %v7797, 1.442695
    %v7799 = vpow.pop %v7798
    %v7800 = vadd.f32 %v7799, 1.0
    %v7801 = vrcp.pop %v7800
    %v7802 = vmul.f32 1.0, %v7801
    %v7803 = vtanh.pop %v7796
    %v7804 = vmul.f32 %v7802, %v6790
    %7806 = vrot.lane.b32.xlu0 %v7803, 64
    %v7807 = vpop.permute.xlu0 %7806
    %v7809 = vmul.f32 %v7802, %v7807
    %7811 = vrot.lane.b32.xlu0 %v7809, 32
    %v7812 = vpop.permute.xlu0 %7811
    %v7814 = vadd.f32 %v7804, %v7812
    %v7815 = vtanh.pop %v7814
    %7817 = vrot.lane.b32.xlu0 %v7815, 64
    %v7818 = vpop.permute.xlu0 %7817
    %v7820 = vmul.f32 %v7802, %v7818
    %7822 = vrot.lane.b32.xlu0 %v7820, 32
    %v7823 = vpop.permute.xlu0 %7822
    %7825 = vst.msk [vmem:[#allocation3 + $0x6] sm:$0x1] %vm1679, %v7823
    %7826 = vrot.lane.b32.xlu0 %v7820, 64
    %v7827 = vpop.permute.xlu0 %7826
    %7829 = vst.msk [vmem:[#allocation3] sm:$0x2] %vm1684, %v7827
    %v7830 = vld [vmem:[#allocation9] sm:$0xff]
    %v7831 = vld [vmem:[#allocation9 + $0x8] sm:$0xff]
    %v7832 = vld [vmem:[#allocation9 + $0x10] sm:$0xff]
    %v7833 = vld [vmem:[#allocation9 + $0x18] sm:$0xff]
    %v7834 = vld [vmem:[#allocation2 + $0x7] ss:$0 sm:$0xff]
    %v7835 = vsel %vm114, %v7823, 0
    %7837 = vmatprep.subr.mxu0 0.0
    %v7838 = vand.u32 %v7830, 4294901760
    %7839 = vmatpush1.msra.mxu0 %v7838
    %7840 = vmatprep.subr.mxu0 0.0
    %v7841 = vand.u32 %v7831, 4294901760
    %7842 = vmatpush1.msra.mxu0 %v7841
    %7843 = vmatprep.subr.mxu0 0.0
    %v7844 = vand.u32 %v7832, 4294901760
    %7845 = vmatpush1.msra.mxu0 %v7844
    %7846 = vmatprep.subr.mxu0 0.0
    %v7847 = vand.u32 %v7833, 4294901760
    %7848 = vmatpush1.msra.mxu0 %v7847
    %7849 = vmatprep.subr.mxu0 0.0
    %7850 = vmatpush1.msra.mxu0 0.0
    %7851 = vmatprep.subr.mxu0 0.0
    %7852 = vmatpush1.msra.mxu0 0.0
    %7853 = vmatprep.subr.mxu0 0.0
    %7854 = vmatpush1.msra.mxu0 0.0
    %7855 = vmatprep.subr.mxu0 0.0
    %7856 = vmatpush1.msra.mxu0 0.0
    %7857 = vmatprep.subr.mxu0 0.0
    %7858 = vmatpush1.msra.mxu0 0.0
    %7859 = vmatprep.subr.mxu0 0.0
    %7860 = vmatpush1.msra.mxu0 0.0
    %7861 = vmatprep.subr.mxu0 0.0
    %7862 = vmatpush1.msra.mxu0 0.0
    %7863 = vmatprep.subr.mxu0 0.0
    %7864 = vmatpush1.msra.mxu0 0.0
    %7865 = vmatprep.subr.mxu0 0.0
    %7866 = vmatpush1.msra.mxu0 0.0
    %7867 = vmatprep.subr.mxu0 0.0
    %7868 = vmatpush1.msra.mxu0 0.0
    %7869 = vmatprep.subr.mxu0 0.0
    %7870 = vmatpush1.msra.mxu0 0.0
    %7871 = vmatprep.subr.mxu0 0.0
    %7872 = vmatpush1.msra.mxu0 0.0
    %7873 = vmatprep.subr.mxu0 0.0
    %7874 = vmatpush1.msra.mxu0 0.0
    %7875 = vmatprep.subr.mxu0 0.0
    %7876 = vmatpush1.msra.mxu0 0.0
    %7877 = vmatprep.subr.mxu0 0.0
    %7878 = vmatpush1.msra.mxu0 0.0
    %7879 = vmatprep.subr.mxu0 0.0
    %7880 = vmatpush1.msra.mxu0 0.0
    %7881 = vmatprep.subr.mxu0 0.0
    %7882 = vmatpush1.msra.mxu0 0.0
    %7883 = vmatprep.subr.mxu0 0.0
    %7884 = vmatpush1.msra.mxu0 0.0
    %7885 = vmatprep.subr.mxu0 0.0
    %7886 = vmatpush1.msra.mxu0 0.0
    %7887 = vmatprep.subr.mxu0 0.0
    %7888 = vmatpush1.msra.mxu0 0.0
    %7889 = vmatprep.subr.mxu0 0.0
    %7890 = vmatpush1.msra.mxu0 0.0
    %7891 = vmatprep.subr.mxu0 0.0
    %7892 = vmatpush1.msra.mxu0 0.0
    %7893 = vmatprep.subr.mxu0 0.0
    %7894 = vmatpush1.msra.mxu0 0.0
    %7895 = vmatprep.subr.mxu0 0.0
    %7896 = vmatpush1.msra.mxu0 0.0
    %7897 = vmatprep.subr.mxu0 0.0
    %7898 = vmatpush1.msra.mxu0 0.0
    %7899 = vmatprep.subr.mxu0 0.0
    %7900 = vmatpush1.msra.mxu0 0.0
    %7901 = vmatprep.subr.mxu0 0.0
    %7902 = vmatpush1.msra.mxu0 0.0
    %7903 = vmatprep.subr.mxu0 0.0
    %7904 = vmatpush1.msra.mxu0 0.0
    %7905 = vmatprep.mubr.f32.mxu0 0.0
    %v7906 = vand.u32 %v7835, 4294901760
    %v7907 = vsub.f32 %v7835, %v7906
    %v7908 = vand.u32 %v7907, 4294901760
    %v7909 = vsub.f32 %v7907, %v7908
    %v7910 = vand.u32 %v7909, 4294901760
    %7911 = vmatmul.mubr.f32.gmra.mrb[0].mxu0 %v7910
    %v7912 = vpop.f32.mrb[0].mxu0
    %v7913 = vadd.f32 %v7834, %v7912
    %v7914 = vpop.f32.mrb[0].mxu0
    %7915 = vdwg.mxu0
    %7916 = vmatprep.subr.mxu0 0.0
    %v7917 = vand.u32 %v7830, 4294901760
    %v7918 = vsub.f32 %v7830, %v7917
    %v7919 = vand.u32 %v7918, 4294901760
    %v7920 = vsub.f32 %v7918, %v7919
    %v7921 = vand.u32 %v7920, 4294901760
    %7922 = vmatpush1.msra.mxu0 %v7921
    %7923 = vmatprep.subr.mxu0 0.0
    %v7924 = vand.u32 %v7831, 4294901760
    %v7925 = vsub.f32 %v7831, %v7924
    %v7926 = vand.u32 %v7925, 4294901760
    %v7927 = vsub.f32 %v7925, %v7926
    %v7928 = vand.u32 %v7927, 4294901760
    %7929 = vmatpush1.msra.mxu0 %v7928
    %7930 = vmatprep.subr.mxu0 0.0
    %v7931 = vand.u32 %v7832, 4294901760
    %v7932 = vsub.f32 %v7832, %v7931
    %v7933 = vand.u32 %v7932, 4294901760
    %v7934 = vsub.f32 %v7932, %v7933
    %v7935 = vand.u32 %v7934, 4294901760
    %7936 = vmatpush1.msra.mxu0 %v7935
    %7937 = vmatprep.subr.mxu0 0.0
    %v7938 = vand.u32 %v7833, 4294901760
    %v7939 = vsub.f32 %v7833, %v7938
    %v7940 = vand.u32 %v7939, 4294901760
    %v7941 = vsub.f32 %v7939, %v7940
    %v7942 = vand.u32 %v7941, 4294901760
    %7943 = vmatpush1.msra.mxu0 %v7942
    %7944 = vmatprep.subr.mxu0 0.0
    %7945 = vmatpush1.msra.mxu0 0.0
    %7946 = vmatprep.subr.mxu0 0.0
    %7947 = vmatpush1.msra.mxu0 0.0
    %7948 = vmatprep.subr.mxu0 0.0
    %7949 = vmatpush1.msra.mxu0 0.0
    %7950 = vmatprep.subr.mxu0 0.0
    %7951 = vmatpush1.msra.mxu0 0.0
    %7952 = vmatprep.subr.mxu0 0.0
    %7953 = vmatpush1.msra.mxu0 0.0
    %7954 = vmatprep.subr.mxu0 0.0
    %7955 = vmatpush1.msra.mxu0 0.0
    %7956 = vmatprep.subr.mxu0 0.0
    %7957 = vmatpush1.msra.mxu0 0.0
    %7958 = vmatprep.subr.mxu0 0.0
    %7959 = vmatpush1.msra.mxu0 0.0
    %7960 = vmatprep.subr.mxu0 0.0
    %7961 = vmatpush1.msra.mxu0 0.0
    %7962 = vmatprep.subr.mxu0 0.0
    %7963 = vmatpush1.msra.mxu0 0.0
    %7964 = vmatprep.subr.mxu0 0.0
    %7965 = vmatpush1.msra.mxu0 0.0
    %7966 = vmatprep.subr.mxu0 0.0
    %7967 = vmatpush1.msra.mxu0 0.0
    %7968 = vmatprep.subr.mxu0 0.0
    %7969 = vmatpush1.msra.mxu0 0.0
    %7970 = vmatprep.subr.mxu0 0.0
    %7971 = vmatpush1.msra.mxu0 0.0
    %7972 = vmatprep.subr.mxu0 0.0
    %7973 = vmatpush1.msra.mxu0 0.0
    %7974 = vmatprep.subr.mxu0 0.0
    %7975 = vmatpush1.msra.mxu0 0.0
    %7976 = vmatprep.subr.mxu0 0.0
    %7977 = vmatpush1.msra.mxu0 0.0
    %7978 = vmatprep.subr.mxu0 0.0
    %7979 = vmatpush1.msra.mxu0 0.0
    %7980 = vmatprep.subr.mxu0 0.0
    %7981 = vmatpush1.msra.mxu0 0.0
    %7982 = vmatprep.subr.mxu0 0.0
    %7983 = vmatpush1.msra.mxu0 0.0
    %7984 = vmatprep.subr.mxu0 0.0
    %7985 = vmatpush1.msra.mxu0 0.0
    %7986 = vmatprep.subr.mxu0 0.0
    %7987 = vmatpush1.msra.mxu0 0.0
    %7988 = vmatprep.subr.mxu0 0.0
    %7989 = vmatpush1.msra.mxu0 0.0
    %7990 = vmatprep.subr.mxu0 0.0
    %7991 = vmatpush1.msra.mxu0 0.0
    %7992 = vmatprep.subr.mxu0 0.0
    %7993 = vmatpush1.msra.mxu0 0.0
    %7994 = vmatprep.subr.mxu0 0.0
    %7995 = vmatpush1.msra.mxu0 0.0
    %7996 = vmatprep.subr.mxu0 0.0
    %7997 = vmatpush1.msra.mxu0 0.0
    %7998 = vmatprep.subr.mxu0 0.0
    %7999 = vmatpush1.msra.mxu0 0.0
    %8000 = vmatprep.mubr.f32.mxu0 0.0
    %v8001 = vand.u32 %v7835, 4294901760
    %8002 = vmatmul.mubr.f32.gmra.mrb[0].mxu0 %v8001
    %v8003 = vpop.f32.mrb[0].mxu0
    %v8004 = vadd.f32 %v7913, %v8003
    %v8005 = vpop.f32.mrb[0].mxu0
    %8006 = vdwg.mxu0
    %8007 = vmatprep.subr.mxu0 0.0
    %v8008 = vand.u32 %v7830, 4294901760
    %v8009 = vsub.f32 %v7830, %v8008
    %8010 = vmatpush1.msra.mxu0 %v8009
    %8011 = vmatprep.subr.mxu0 0.0
    %v8012 = vand.u32 %v7831, 4294901760
    %v8013 = vsub.f32 %v7831, %v8012
    %8014 = vmatpush1.msra.mxu0 %v8013
    %8015 = vmatprep.subr.mxu0 0.0
    %v8016 = vand.u32 %v7832, 4294901760
    %v8017 = vsub.f32 %v7832, %v8016
    %8018 = vmatpush1.msra.mxu0 %v8017
    %8019 = vmatprep.subr.mxu0 0.0
    %v8020 = vand.u32 %v7833, 4294901760
    %v8021 = vsub.f32 %v7833, %v8020
    %8022 = vmatpush1.msra.mxu0 %v8021
    %8023 = vmatprep.subr.mxu0 0.0
    %8024 = vmatpush1.msra.mxu0 0.0
    %8025 = vmatprep.subr.mxu0 0.0
    %8026 = vmatpush1.msra.mxu0 0.0
    %8027 = vmatprep.subr.mxu0 0.0
    %8028 = vmatpush1.msra.mxu0 0.0
    %8029 = vmatprep.subr.mxu0 0.0
    %8030 = vmatpush1.msra.mxu0 0.0
    %8031 = vmatprep.subr.mxu0 0.0
    %8032 = vmatpush1.msra.mxu0 0.0
    %8033 = vmatprep.subr.mxu0 0.0
    %8034 = vmatpush1.msra.mxu0 0.0
    %8035 = vmatprep.subr.mxu0 0.0
    %8036 = vmatpush1.msra.mxu0 0.0
    %8037 = vmatprep.subr.mxu0 0.0
    %8038 = vmatpush1.msra.mxu0 0.0
    %8039 = vmatprep.subr.mxu0 0.0
    %8040 = vmatpush1.msra.mxu0 0.0
    %8041 = vmatprep.subr.mxu0 0.0
    %8042 = vmatpush1.msra.mxu0 0.0
    %8043 = vmatprep.subr.mxu0 0.0
    %8044 = vmatpush1.msra.mxu0 0.0
    %8045 = vmatprep.subr.mxu0 0.0
    %8046 = vmatpush1.msra.mxu0 0.0
    %8047 = vmatprep.subr.mxu0 0.0
    %8048 = vmatpush1.msra.mxu0 0.0
    %8049 = vmatprep.subr.mxu0 0.0
    %8050 = vmatpush1.msra.mxu0 0.0
    %8051 = vmatprep.subr.mxu0 0.0
    %8052 = vmatpush1.msra.mxu0 0.0
    %8053 = vmatprep.subr.mxu0 0.0
    %8054 = vmatpush1.msra.mxu0 0.0
    %8055 = vmatprep.subr.mxu0 0.0
    %8056 = vmatpush1.msra.mxu0 0.0
    %8057 = vmatprep.subr.mxu0 0.0
    %8058 = vmatpush1.msra.mxu0 0.0
    %8059 = vmatprep.subr.mxu0 0.0
    %8060 = vmatpush1.msra.mxu0 0.0
    %8061 = vmatprep.subr.mxu0 0.0
    %8062 = vmatpush1.msra.mxu0 0.0
    %8063 = vmatprep.subr.mxu0 0.0
    %8064 = vmatpush1.msra.mxu0 0.0
    %8065 = vmatprep.subr.mxu0 0.0
    %8066 = vmatpush1.msra.mxu0 0.0
    %8067 = vmatprep.subr.mxu0 0.0
    %8068 = vmatpush1.msra.mxu0 0.0
    %8069 = vmatprep.subr.mxu0 0.0
    %8070 = vmatpush1.msra.mxu0 0.0
    %8071 = vmatprep.subr.mxu0 0.0
    %8072 = vmatpush1.msra.mxu0 0.0
    %8073 = vmatprep.subr.mxu0 0.0
    %8074 = vmatpush1.msra.mxu0 0.0
    %8075 = vmatprep.subr.mxu0 0.0
    %8076 = vmatpush1.msra.mxu0 0.0
    %8077 = vmatprep.subr.mxu0 0.0
    %8078 = vmatpush1.msra.mxu0 0.0
    %8079 = vmatprep.mubr.f32.mxu0 0.0
    %v8080 = vand.u32 %v7835, 4294901760
    %v8081 = vsub.f32 %v7835, %v8080
    %8082 = vmatmul.mubr.f32.gmra.mrb[0].mxu0 %v8081
    %v8083 = vpop.f32.mrb[0].mxu0
    %v8084 = vadd.f32 %v8004, %v8083
    %v8085 = vpop.f32.mrb[0].mxu0
    %8086 = vdwg.mxu0
    %8087 = vmatprep.subr.mxu0 0.0
    %v8088 = vand.u32 %v7830, 4294901760
    %8089 = vmatpush1.msra.mxu0 %v8088
    %8090 = vmatprep.subr.mxu0 0.0
    %v8091 = vand.u32 %v7831, 4294901760
    %8092 = vmatpush1.msra.mxu0 %v8091
    %8093 = vmatprep.subr.mxu0 0.0
    %v8094 = vand.u32 %v7832, 4294901760
    %8095 = vmatpush1.msra.mxu0 %v8094
    %8096 = vmatprep.subr.mxu0 0.0
    %v8097 = vand.u32 %v7833, 4294901760
    %8098 = vmatpush1.msra.mxu0 %v8097
    %8099 = vmatprep.subr.mxu0 0.0
    %8100 = vmatpush1.msra.mxu0 0.0
    %8101 = vmatprep.subr.mxu0 0.0
    %8102 = vmatpush1.msra.mxu0 0.0
    %8103 = vmatprep.subr.mxu0 0.0
    %8104 = vmatpush1.msra.mxu0 0.0
    %8105 = vmatprep.subr.mxu0 0.0
    %8106 = vmatpush1.msra.mxu0 0.0
    %8107 = vmatprep.subr.mxu0 0.0
    %8108 = vmatpush1.msra.mxu0 0.0
    %8109 = vmatprep.subr.mxu0 0.0
    %8110 = vmatpush1.msra.mxu0 0.0
    %8111 = vmatprep.subr.mxu0 0.0
    %8112 = vmatpush1.msra.mxu0 0.0
    %8113 = vmatprep.subr.mxu0 0.0
    %8114 = vmatpush1.msra.mxu0 0.0
    %8115 = vmatprep.subr.mxu0 0.0
    %8116 = vmatpush1.msra.mxu0 0.0
    %8117 = vmatprep.subr.mxu0 0.0
    %8118 = vmatpush1.msra.mxu0 0.0
    %8119 = vmatprep.subr.mxu0 0.0
    %8120 = vmatpush1.msra.mxu0 0.0
    %8121 = vmatprep.subr.mxu0 0.0
    %8122 = vmatpush1.msra.mxu0 0.0
    %8123 = vmatprep.subr.mxu0 0.0
    %8124 = vmatpush1.msra.mxu0 0.0
    %8125 = vmatprep.subr.mxu0 0.0
    %8126 = vmatpush1.msra.mxu0 0.0
    %8127 = vmatprep.subr.mxu0 0.0
    %8128 = vmatpush1.msra.mxu0 0.0
    %8129 = vmatprep.subr.mxu0 0.0
    %8130 = vmatpush1.msra.mxu0 0.0
    %8131 = vmatprep.subr.mxu0 0.0
    %8132 = vmatpush1.msra.mxu0 0.0
    %8133 = vmatprep.subr.mxu0 0.0
    %8134 = vmatpush1.msra.mxu0 0.0
    %8135 = vmatprep.subr.mxu0 0.0
    %8136 = vmatpush1.msra.mxu0 0.0
    %8137 = vmatprep.subr.mxu0 0.0
    %8138 = vmatpush1.msra.mxu0 0.0
    %8139 = vmatprep.subr.mxu0 0.0
    %8140 = vmatpush1.msra.mxu0 0.0
    %8141 = vmatprep.subr.mxu0 0.0
    %8142 = vmatpush1.msra.mxu0 0.0
    %8143 = vmatprep.subr.mxu0 0.0
    %8144 = vmatpush1.msra.mxu0 0.0
    %8145 = vmatprep.subr.mxu0 0.0
    %8146 = vmatpush1.msra.mxu0 0.0
    %8147 = vmatprep.subr.mxu0 0.0
    %8148 = vmatpush1.msra.mxu0 0.0
    %8149 = vmatprep.subr.mxu0 0.0
    %8150 = vmatpush1.msra.mxu0 0.0
    %8151 = vmatprep.subr.mxu0 0.0
    %8152 = vmatpush1.msra.mxu0 0.0
    %8153 = vmatprep.subr.mxu0 0.0
    %8154 = vmatpush1.msra.mxu0 0.0
    %8155 = vmatprep.mubr.f32.mxu0 0.0
    %v8156 = vand.u32 %v7835, 4294901760
    %v8157 = vsub.f32 %v7835, %v8156
    %v8158 = vand.u32 %v8157, 4294901760
    %8159 = vmatmul.mubr.f32.gmra.mrb[0].mxu0 %v8158
    %v8160 = vpop.f32.mrb[0].mxu0
    %v8161 = vadd.f32 %v8084, %v8160
    %v8162 = vpop.f32.mrb[0].mxu0
    %8163 = vdwg.mxu0
    %8164 = vmatprep.subr.mxu0 0.0
    %v8165 = vand.u32 %v7830, 4294901760
    %v8166 = vsub.f32 %v7830, %v8165
    %v8167 = vand.u32 %v8166, 4294901760
    %8168 = vmatpush1.msra.mxu0 %v8167
    %8169 = vmatprep.subr.mxu0 0.0
    %v8170 = vand.u32 %v7831, 4294901760
    %v8171 = vsub.f32 %v7831, %v8170
    %v8172 = vand.u32 %v8171, 4294901760
    %8173 = vmatpush1.msra.mxu0 %v8172
    %8174 = vmatprep.subr.mxu0 0.0
    %v8175 = vand.u32 %v7832, 4294901760
    %v8176 = vsub.f32 %v7832, %v8175
    %v8177 = vand.u32 %v8176, 4294901760
    %8178 = vmatpush1.msra.mxu0 %v8177
    %8179 = vmatprep.subr.mxu0 0.0
    %v8180 = vand.u32 %v7833, 4294901760
    %v8181 = vsub.f32 %v7833, %v8180
    %v8182 = vand.u32 %v8181, 4294901760
    %8183 = vmatpush1.msra.mxu0 %v8182
    %8184 = vmatprep.subr.mxu0 0.0
    %8185 = vmatpush1.msra.mxu0 0.0
    %8186 = vmatprep.subr.mxu0 0.0
    %8187 = vmatpush1.msra.mxu0 0.0
    %8188 = vmatprep.subr.mxu0 0.0
    %8189 = vmatpush1.msra.mxu0 0.0
    %8190 = vmatprep.subr.mxu0 0.0
    %8191 = vmatpush1.msra.mxu0 0.0
    %8192 = vmatprep.subr.mxu0 0.0
    %8193 = vmatpush1.msra.mxu0 0.0
    %8194 = vmatprep.subr.mxu0 0.0
    %8195 = vmatpush1.msra.mxu0 0.0
    %8196 = vmatprep.subr.mxu0 0.0
    %8197 = vmatpush1.msra.mxu0 0.0
    %8198 = vmatprep.subr.mxu0 0.0
    %8199 = vmatpush1.msra.mxu0 0.0
    %8200 = vmatprep.subr.mxu0 0.0
    %8201 = vmatpush1.msra.mxu0 0.0
    %8202 = vmatprep.subr.mxu0 0.0
    %8203 = vmatpush1.msra.mxu0 0.0
    %8204 = vmatprep.subr.mxu0 0.0
    %8205 = vmatpush1.msra.mxu0 0.0
    %8206 = vmatprep.subr.mxu0 0.0
    %8207 = vmatpush1.msra.mxu0 0.0
    %8208 = vmatprep.subr.mxu0 0.0
    %8209 = vmatpush1.msra.mxu0 0.0
    %8210 = vmatprep.subr.mxu0 0.0
    %8211 = vmatpush1.msra.mxu0 0.0
    %8212 = vmatprep.subr.mxu0 0.0
    %8213 = vmatpush1.msra.mxu0 0.0
    %8214 = vmatprep.subr.mxu0 0.0
    %8215 = vmatpush1.msra.mxu0 0.0
    %8216 = vmatprep.subr.mxu0 0.0
    %8217 = vmatpush1.msra.mxu0 0.0
    %8218 = vmatprep.subr.mxu0 0.0
    %8219 = vmatpush1.msra.mxu0 0.0
    %8220 = vmatprep.subr.mxu0 0.0
    %8221 = vmatpush1.msra.mxu0 0.0
    %8222 = vmatprep.subr.mxu0 0.0
    %8223 = vmatpush1.msra.mxu0 0.0
    %8224 = vmatprep.subr.mxu0 0.0
    %8225 = vmatpush1.msra.mxu0 0.0
    %8226 = vmatprep.subr.mxu0 0.0
    %8227 = vmatpush1.msra.mxu0 0.0
    %8228 = vmatprep.subr.mxu0 0.0
    %8229 = vmatpush1.msra.mxu0 0.0
    %8230 = vmatprep.subr.mxu0 0.0
    %8231 = vmatpush1.msra.mxu0 0.0
    %8232 = vmatprep.subr.mxu0 0.0
    %8233 = vmatpush1.msra.mxu0 0.0
    %8234 = vmatprep.subr.mxu0 0.0
    %8235 = vmatpush1.msra.mxu0 0.0
    %8236 = vmatprep.subr.mxu0 0.0
    %8237 = vmatpush1.msra.mxu0 0.0
    %8238 = vmatprep.subr.mxu0 0.0
    %8239 = vmatpush1.msra.mxu0 0.0
    %8240 = vmatprep.mubr.f32.mxu0 0.0
    %v8241 = vand.u32 %v7835, 4294901760
    %8242 = vmatmul.mubr.f32.gmra.mrb[0].mxu0 %v8241
    %v8243 = vpop.f32.mrb[0].mxu0
    %v8244 = vadd.f32 %v8161, %v8243
    %v8245 = vpop.f32.mrb[0].mxu0
    %8246 = vdwg.mxu0
    %8247 = vmatprep.subr.mxu0 0.0
    %v8248 = vand.u32 %v7830, 4294901760
    %8249 = vmatpush1.msra.mxu0 %v8248
    %8250 = vmatprep.subr.mxu0 0.0
    %v8251 = vand.u32 %v7831, 4294901760
    %8252 = vmatpush1.msra.mxu0 %v8251
    %8253 = vmatprep.subr.mxu0 0.0
    %v8254 = vand.u32 %v7832, 4294901760
    %8255 = vmatpush1.msra.mxu0 %v8254
    %8256 = vmatprep.subr.mxu0 0.0
    %v8257 = vand.u32 %v7833, 4294901760
    %8258 = vmatpush1.msra.mxu0 %v8257
    %8259 = vmatprep.subr.mxu0 0.0
    %8260 = vmatpush1.msra.mxu0 0.0
    %8261 = vmatprep.subr.mxu0 0.0
    %8262 = vmatpush1.msra.mxu0 0.0
    %8263 = vmatprep.subr.mxu0 0.0
    %8264 = vmatpush1.msra.mxu0 0.0
    %8265 = vmatprep.subr.mxu0 0.0
    %8266 = vmatpush1.msra.mxu0 0.0
    %8267 = vmatprep.subr.mxu0 0.0
    %8268 = vmatpush1.msra.mxu0 0.0
    %8269 = vmatprep.subr.mxu0 0.0
    %8270 = vmatpush1.msra.mxu0 0.0
    %8271 = vmatprep.subr.mxu0 0.0
    %8272 = vmatpush1.msra.mxu0 0.0
    %8273 = vmatprep.subr.mxu0 0.0
    %8274 = vmatpush1.msra.mxu0 0.0
    %8275 = vmatprep.subr.mxu0 0.0
    %8276 = vmatpush1.msra.mxu0 0.0
    %8277 = vmatprep.subr.mxu0 0.0
    %8278 = vmatpush1.msra.mxu0 0.0
    %8279 = vmatprep.subr.mxu0 0.0
    %8280 = vmatpush1.msra.mxu0 0.0
    %8281 = vmatprep.subr.mxu0 0.0
    %8282 = vmatpush1.msra.mxu0 0.0
    %8283 = vmatprep.subr.mxu0 0.0
    %8284 = vmatpush1.msra.mxu0 0.0
    %8285 = vmatprep.subr.mxu0 0.0
    %8286 = vmatpush1.msra.mxu0 0.0
    %8287 = vmatprep.subr.mxu0 0.0
    %8288 = vmatpush1.msra.mxu0 0.0
    %8289 = vmatprep.subr.mxu0 0.0
    %8290 = vmatpush1.msra.mxu0 0.0
    %8291 = vmatprep.subr.mxu0 0.0
    %8292 = vmatpush1.msra.mxu0 0.0
    %8293 = vmatprep.subr.mxu0 0.0
    %8294 = vmatpush1.msra.mxu0 0.0
    %8295 = vmatprep.subr.mxu0 0.0
    %8296 = vmatpush1.msra.mxu0 0.0
    %8297 = vmatprep.subr.mxu0 0.0
    %8298 = vmatpush1.msra.mxu0 0.0
    %8299 = vmatprep.subr.mxu0 0.0
    %8300 = vmatpush1.msra.mxu0 0.0
    %8301 = vmatprep.subr.mxu0 0.0
    %8302 = vmatpush1.msra.mxu0 0.0
    %8303 = vmatprep.subr.mxu0 0.0
    %8304 = vmatpush1.msra.mxu0 0.0
    %8305 = vmatprep.subr.mxu0 0.0
    %8306 = vmatpush1.msra.mxu0 0.0
    %8307 = vmatprep.subr.mxu0 0.0
    %8308 = vmatpush1.msra.mxu0 0.0
    %8309 = vmatprep.subr.mxu0 0.0
    %8310 = vmatpush1.msra.mxu0 0.0
    %8311 = vmatprep.subr.mxu0 0.0
    %8312 = vmatpush1.msra.mxu0 0.0
    %8313 = vmatprep.subr.mxu0 0.0
    %8314 = vmatpush1.msra.mxu0 0.0
    %8315 = vmatprep.mubr.f32.mxu0 0.0
    %v8316 = vand.u32 %v7835, 4294901760
    %8317 = vmatmul.mubr.f32.gmra.mrb[0].mxu0 %v8316
    %v8318 = vpop.f32.mrb[0].mxu0
    %v8319 = vadd.f32 %v8244, %v8318
    %v8320 = vpop.f32.mrb[0].mxu0
    %8321 = vdwg.mxu0
    %v8322 = vld [vmem:[#allocation10] sm:$0xff]
    %v8323 = vld [vmem:[#allocation10 + $0x8] sm:$0xff]
    %v8324 = vld [vmem:[#allocation10 + $0x10] sm:$0xff]
    %v8325 = vld [vmem:[#allocation10 + $0x18] sm:$0xff]
    %v8326 = vld [vmem:[#allocation2 + $0x8] ss:$0 sm:$0xff]
    %v8327 = vrot.slane %v7820, 1
    %8328 = vrot.lane.b32.xlu0 %v8327, 32
    %v8329 = vpop.permute.xlu0 %8328
    %v8330 = vsel %vm114, %v8329, 0
    %8332 = vmatprep.subr.mxu0 0.0
    %v8333 = vand.u32 %v8322, 4294901760
    %8334 = vmatpush1.msra.mxu0 %v8333
    %8335 = vmatprep.subr.mxu0 0.0
    %v8336 = vand.u32 %v8323, 4294901760
    %8337 = vmatpush1.msra.mxu0 %v8336
    %8338 = vmatprep.subr.mxu0 0.0
    %v8339 = vand.u32 %v8324, 4294901760
    %8340 = vmatpush1.msra.mxu0 %v8339
    %8341 = vmatprep.subr.mxu0 0.0
    %v8342 = vand.u32 %v8325, 4294901760
    %8343 = vmatpush1.msra.mxu0 %v8342
    %8344 = vmatprep.subr.mxu0 0.0
    %8345 = vmatpush1.msra.mxu0 0.0
    %8346 = vmatprep.subr.mxu0 0.0
    %8347 = vmatpush1.msra.mxu0 0.0
    %8348 = vmatprep.subr.mxu0 0.0
    %8349 = vmatpush1.msra.mxu0 0.0
    %8350 = vmatprep.subr.mxu0 0.0
    %8351 = vmatpush1.msra.mxu0 0.0
    %8352 = vmatprep.subr.mxu0 0.0
    %8353 = vmatpush1.msra.mxu0 0.0
    %8354 = vmatprep.subr.mxu0 0.0
    %8355 = vmatpush1.msra.mxu0 0.0
    %8356 = vmatprep.subr.mxu0 0.0
    %8357 = vmatpush1.msra.mxu0 0.0
    %8358 = vmatprep.subr.mxu0 0.0
    %8359 = vmatpush1.msra.mxu0 0.0
    %8360 = vmatprep.subr.mxu0 0.0
    %8361 = vmatpush1.msra.mxu0 0.0
    %8362 = vmatprep.subr.mxu0 0.0
    %8363 = vmatpush1.msra.mxu0 0.0
    %8364 = vmatprep.subr.mxu0 0.0
    %8365 = vmatpush1.msra.mxu0 0.0
    %8366 = vmatprep.subr.mxu0 0.0
    %8367 = vmatpush1.msra.mxu0 0.0
    %8368 = vmatprep.subr.mxu0 0.0
    %8369 = vmatpush1.msra.mxu0 0.0
    %8370 = vmatprep.subr.mxu0 0.0
    %8371 = vmatpush1.msra.mxu0 0.0
    %8372 = vmatprep.subr.mxu0 0.0
    %8373 = vmatpush1.msra.mxu0 0.0
    %8374 = vmatprep.subr.mxu0 0.0
    %8375 = vmatpush1.msra.mxu0 0.0
    %8376 = vmatprep.subr.mxu0 0.0
    %8377 = vmatpush1.msra.mxu0 0.0
    %8378 = vmatprep.subr.mxu0 0.0
    %8379 = vmatpush1.msra.mxu0 0.0
    %8380 = vmatprep.subr.mxu0 0.0
    %8381 = vmatpush1.msra.mxu0 0.0
    %8382 = vmatprep.subr.mxu0 0.0
    %8383 = vmatpush1.msra.mxu0 0.0
    %8384 = vmatprep.subr.mxu0 0.0
    %8385 = vmatpush1.msra.mxu0 0.0
    %8386 = vmatprep.subr.mxu0 0.0
    %8387 = vmatpush1.msra.mxu0 0.0
    %8388 = vmatprep.subr.mxu0 0.0
    %8389 = vmatpush1.msra.mxu0 0.0
    %8390 = vmatprep.subr.mxu0 0.0
    %8391 = vmatpush1.msra.mxu0 0.0
    %8392 = vmatprep.subr.mxu0 0.0
    %8393 = vmatpush1.msra.mxu0 0.0
    %8394 = vmatprep.subr.mxu0 0.0
    %8395 = vmatpush1.msra.mxu0 0.0
    %8396 = vmatprep.subr.mxu0 0.0
    %8397 = vmatpush1.msra.mxu0 0.0
    %8398 = vmatprep.subr.mxu0 0.0
    %8399 = vmatpush1.msra.mxu0 0.0
    %8400 = vmatprep.mubr.f32.mxu0 0.0
    %v8401 = vand.u32 %v8330, 4294901760
    %v8402 = vsub.f32 %v8330, %v8401
    %v8403 = vand.u32 %v8402, 4294901760
    %v8404 = vsub.f32 %v8402, %v8403
    %v8405 = vand.u32 %v8404, 4294901760
    %8406 = vmatmul.mubr.f32.gmra.mrb[0].mxu0 %v8405
    %v8407 = vpop.f32.mrb[0].mxu0
    %v8408 = vadd.f32 %v8326, %v8407
    %v8409 = vpop.f32.mrb[0].mxu0
    %8410 = vdwg.mxu0
    %8411 = vmatprep.subr.mxu0 0.0
    %v8412 = vand.u32 %v8322, 4294901760
    %v8413 = vsub.f32 %v8322, %v8412
    %v8414 = vand.u32 %v8413, 4294901760
    %v8415 = vsub.f32 %v8413, %v8414
    %v8416 = vand.u32 %v8415, 4294901760
    %8417 = vmatpush1.msra.mxu0 %v8416
    %8418 = vmatprep.subr.mxu0 0.0
    %v8419 = vand.u32 %v8323, 4294901760
    %v8420 = vsub.f32 %v8323, %v8419
    %v8421 = vand.u32 %v8420, 4294901760
    %v8422 = vsub.f32 %v8420, %v8421
    %v8423 = vand.u32 %v8422, 4294901760
    %8424 = vmatpush1.msra.mxu0 %v8423
    %8425 = vmatprep.subr.mxu0 0.0
    %v8426 = vand.u32 %v8324, 4294901760
    %v8427 = vsub.f32 %v8324, %v8426
    %v8428 = vand.u32 %v8427, 4294901760
    %v8429 = vsub.f32 %v8427, %v8428
    %v8430 = vand.u32 %v8429, 4294901760
    %8431 = vmatpush1.msra.mxu0 %v8430
    %8432 = vmatprep.subr.mxu0 0.0
    %v8433 = vand.u32 %v8325, 4294901760
    %v8434 = vsub.f32 %v8325, %v8433
    %v8435 = vand.u32 %v8434, 4294901760
    %v8436 = vsub.f32 %v8434, %v8435
    %v8437 = vand.u32 %v8436, 4294901760
    %8438 = vmatpush1.msra.mxu0 %v8437
    %8439 = vmatprep.subr.mxu0 0.0
    %8440 = vmatpush1.msra.mxu0 0.0
    %8441 = vmatprep.subr.mxu0 0.0
    %8442 = vmatpush1.msra.mxu0 0.0
    %8443 = vmatprep.subr.mxu0 0.0
    %8444 = vmatpush1.msra.mxu0 0.0
    %8445 = vmatprep.subr.mxu0 0.0
    %8446 = vmatpush1.msra.mxu0 0.0
    %8447 = vmatprep.subr.mxu0 0.0
    %8448 = vmatpush1.msra.mxu0 0.0
    %8449 = vmatprep.subr.mxu0 0.0
    %8450 = vmatpush1.msra.mxu0 0.0
    %8451 = vmatprep.subr.mxu0 0.0
    %8452 = vmatpush1.msra.mxu0 0.0
    %8453 = vmatprep.subr.mxu0 0.0
    %8454 = vmatpush1.msra.mxu0 0.0
    %8455 = vmatprep.subr.mxu0 0.0
    %8456 = vmatpush1.msra.mxu0 0.0
    %8457 = vmatprep.subr.mxu0 0.0
    %8458 = vmatpush1.msra.mxu0 0.0
    %8459 = vmatprep.subr.mxu0 0.0
    %8460 = vmatpush1.msra.mxu0 0.0
    %8461 = vmatprep.subr.mxu0 0.0
    %8462 = vmatpush1.msra.mxu0 0.0
    %8463 = vmatprep.subr.mxu0 0.0
    %8464 = vmatpush1.msra.mxu0 0.0
    %8465 = vmatprep.subr.mxu0 0.0
    %8466 = vmatpush1.msra.mxu0 0.0
    %8467 = vmatprep.subr.mxu0 0.0
    %8468 = vmatpush1.msra.mxu0 0.0
    %8469 = vmatprep.subr.mxu0 0.0
    %8470 = vmatpush1.msra.mxu0 0.0
    %8471 = vmatprep.subr.mxu0 0.0
    %8472 = vmatpush1.msra.mxu0 0.0
    %8473 = vmatprep.subr.mxu0 0.0
    %8474 = vmatpush1.msra.mxu0 0.0
    %8475 = vmatprep.subr.mxu0 0.0
    %8476 = vmatpush1.msra.mxu0 0.0
    %8477 = vmatprep.subr.mxu0 0.0
    %8478 = vmatpush1.msra.mxu0 0.0
    %8479 = vmatprep.subr.mxu0 0.0
    %8480 = vmatpush1.msra.mxu0 0.0
    %8481 = vmatprep.subr.mxu0 0.0
    %8482 = vmatpush1.msra.mxu0 0.0
    %8483 = vmatprep.subr.mxu0 0.0
    %8484 = vmatpush1.msra.mxu0 0.0
    %8485 = vmatprep.subr.mxu0 0.0
    %8486 = vmatpush1.msra.mxu0 0.0
    %8487 = vmatprep.subr.mxu0 0.0
    %8488 = vmatpush1.msra.mxu0 0.0
    %8489 = vmatprep.subr.mxu0 0.0
    %8490 = vmatpush1.msra.mxu0 0.0
    %8491 = vmatprep.subr.mxu0 0.0
    %8492 = vmatpush1.msra.mxu0 0.0
    %8493 = vmatprep.subr.mxu0 0.0
    %8494 = vmatpush1.msra.mxu0 0.0
    %8495 = vmatprep.mubr.f32.mxu0 0.0
    %v8496 = vand.u32 %v8330, 4294901760
    %8497 = vmatmul.mubr.f32.gmra.mrb[0].mxu0 %v8496
    %v8498 = vpop.f32.mrb[0].mxu0
    %v8499 = vadd.f32 %v8408, %v8498
    %v8500 = vpop.f32.mrb[0].mxu0
    %8501 = vdwg.mxu0
    %8502 = vmatprep.subr.mxu0 0.0
    %v8503 = vand.u32 %v8322, 4294901760
    %v8504 = vsub.f32 %v8322, %v8503
    %8505 = vmatpush1.msra.mxu0 %v8504
    %8506 = vmatprep.subr.mxu0 0.0
    %v8507 = vand.u32 %v8323, 4294901760
    %v8508 = vsub.f32 %v8323, %v8507
    %8509 = vmatpush1.msra.mxu0 %v8508
    %8510 = vmatprep.subr.mxu0 0.0
    %v8511 = vand.u32 %v8324, 4294901760
    %v8512 = vsub.f32 %v8324, %v8511
    %8513 = vmatpush1.msra.mxu0 %v8512
    %8514 = vmatprep.subr.mxu0 0.0
    %v8515 = vand.u32 %v8325, 4294901760
    %v8516 = vsub.f32 %v8325, %v8515
    %8517 = vmatpush1.msra.mxu0 %v8516
    %8518 = vmatprep.subr.mxu0 0.0
    %8519 = vmatpush1.msra.mxu0 0.0
    %8520 = vmatprep.subr.mxu0 0.0
    %8521 = vmatpush1.msra.mxu0 0.0
    %8522 = vmatprep.subr.mxu0 0.0
    %8523 = vmatpush1.msra.mxu0 0.0
    %8524 = vmatprep.subr.mxu0 0.0
    %8525 = vmatpush1.msra.mxu0 0.0
    %8526 = vmatprep.subr.mxu0 0.0
    %8527 = vmatpush1.msra.mxu0 0.0
    %8528 = vmatprep.subr.mxu0 0.0
    %8529 = vmatpush1.msra.mxu0 0.0
    %8530 = vmatprep.subr.mxu0 0.0
    %8531 = vmatpush1.msra.mxu0 0.0
    %8532 = vmatprep.subr.mxu0 0.0
    %8533 = vmatpush1.msra.mxu0 0.0
    %8534 = vmatprep.subr.mxu0 0.0
    %8535 = vmatpush1.msra.mxu0 0.0
    %8536 = vmatprep.subr.mxu0 0.0
    %8537 = vmatpush1.msra.mxu0 0.0
    %8538 = vmatprep.subr.mxu0 0.0
    %8539 = vmatpush1.msra.mxu0 0.0
    %8540 = vmatprep.subr.mxu0 0.0
    %8541 = vmatpush1.msra.mxu0 0.0
    %8542 = vmatprep.subr.mxu0 0.0
    %8543 = vmatpush1.msra.mxu0 0.0
    %8544 = vmatprep.subr.mxu0 0.0
    %8545 = vmatpush1.msra.mxu0 0.0
    %8546 = vmatprep.subr.mxu0 0.0
    %8547 = vmatpush1.msra.mxu0 0.0
    %8548 = vmatprep.subr.mxu0 0.0
    %8549 = vmatpush1.msra.mxu0 0.0
    %8550 = vmatprep.subr.mxu0 0.0
    %8551 = vmatpush1.msra.mxu0 0.0
    %8552 = vmatprep.subr.mxu0 0.0
    %8553 = vmatpush1.msra.mxu0 0.0
    %8554 = vmatprep.subr.mxu0 0.0
    %8555 = vmatpush1.msra.mxu0 0.0
    %8556 = vmatprep.subr.mxu0 0.0
    %8557 = vmatpush1.msra.mxu0 0.0
    %8558 = vmatprep.subr.mxu0 0.0
    %8559 = vmatpush1.msra.mxu0 0.0
    %8560 = vmatprep.subr.mxu0 0.0
    %8561 = vmatpush1.msra.mxu0 0.0
    %8562 = vmatprep.subr.mxu0 0.0
    %8563 = vmatpush1.msra.mxu0 0.0
    %8564 = vmatprep.subr.mxu0 0.0
    %8565 = vmatpush1.msra.mxu0 0.0
    %8566 = vmatprep.subr.mxu0 0.0
    %8567 = vmatpush1.msra.mxu0 0.0
    %8568 = vmatprep.subr.mxu0 0.0
    %8569 = vmatpush1.msra.mxu0 0.0
    %8570 = vmatprep.subr.mxu0 0.0
    %8571 = vmatpush1.msra.mxu0 0.0
    %8572 = vmatprep.subr.mxu0 0.0
    %8573 = vmatpush1.msra.mxu0 0.0
    %8574 = vmatprep.mubr.f32.mxu0 0.0
    %v8575 = vand.u32 %v8330, 4294901760
    %v8576 = vsub.f32 %v8330, %v8575
    %8577 = vmatmul.mubr.f32.gmra.mrb[0].mxu0 %v8576
    %v8578 = vpop.f32.mrb[0].mxu0
    %v8579 = vadd.f32 %v8499, %v8578
    %v8580 = vpop.f32.mrb[0].mxu0
    %8581 = vdwg.mxu0
    %8582 = vmatprep.subr.mxu0 0.0
    %v8583 = vand.u32 %v8322, 4294901760
    %8584 = vmatpush1.msra.mxu0 %v8583
    %8585 = vmatprep.subr.mxu0 0.0
    %v8586 = vand.u32 %v8323, 4294901760
    %8587 = vmatpush1.msra.mxu0 %v8586
    %8588 = vmatprep.subr.mxu0 0.0
    %v8589 = vand.u32 %v8324, 4294901760
    %8590 = vmatpush1.msra.mxu0 %v8589
    %8591 = vmatprep.subr.mxu0 0.0
    %v8592 = vand.u32 %v8325, 4294901760
    %8593 = vmatpush1.msra.mxu0 %v8592
    %8594 = vmatprep.subr.mxu0 0.0
    %8595 = vmatpush1.msra.mxu0 0.0
    %8596 = vmatprep.subr.mxu0 0.0
    %8597 = vmatpush1.msra.mxu0 0.0
    %8598 = vmatprep.subr.mxu0 0.0
    %8599 = vmatpush1.msra.mxu0 0.0
    %8600 = vmatprep.subr.mxu0 0.0
    %8601 = vmatpush1.msra.mxu0 0.0
    %8602 = vmatprep.subr.mxu0 0.0
    %8603 = vmatpush1.msra.mxu0 0.0
    %8604 = vmatprep.subr.mxu0 0.0
    %8605 = vmatpush1.msra.mxu0 0.0
    %8606 = vmatprep.subr.mxu0 0.0
    %8607 = vmatpush1.msra.mxu0 0.0
    %8608 = vmatprep.subr.mxu0 0.0
    %8609 = vmatpush1.msra.mxu0 0.0
    %8610 = vmatprep.subr.mxu0 0.0
    %8611 = vmatpush1.msra.mxu0 0.0
    %8612 = vmatprep.subr.mxu0 0.0
    %8613 = vmatpush1.msra.mxu0 0.0
    %8614 = vmatprep.subr.mxu0 0.0
    %8615 = vmatpush1.msra.mxu0 0.0
    %8616 = vmatprep.subr.mxu0 0.0
    %8617 = vmatpush1.msra.mxu0 0.0
    %8618 = vmatprep.subr.mxu0 0.0
    %8619 = vmatpush1.msra.mxu0 0.0
    %8620 = vmatprep.subr.mxu0 0.0
    %8621 = vmatpush1.msra.mxu0 0.0
    %8622 = vmatprep.subr.mxu0 0.0
    %8623 = vmatpush1.msra.mxu0 0.0
    %8624 = vmatprep.subr.mxu0 0.0
    %8625 = vmatpush1.msra.mxu0 0.0
    %8626 = vmatprep.subr.mxu0 0.0
    %8627 = vmatpush1.msra.mxu0 0.0
    %8628 = vmatprep.subr.mxu0 0.0
    %8629 = vmatpush1.msra.mxu0 0.0
    %8630 = vmatprep.subr.mxu0 0.0
    %8631 = vmatpush1.msra.mxu0 0.0
    %8632 = vmatprep.subr.mxu0 0.0
    %8633 = vmatpush1.msra.mxu0 0.0
    %8634 = vmatprep.subr.mxu0 0.0
    %8635 = vmatpush1.msra.mxu0 0.0
    %8636 = vmatprep.subr.mxu0 0.0
    %8637 = vmatpush1.msra.mxu0 0.0
    %8638 = vmatprep.subr.mxu0 0.0
    %8639 = vmatpush1.msra.mxu0 0.0
    %8640 = vmatprep.subr.mxu0 0.0
    %8641 = vmatpush1.msra.mxu0 0.0
    %8642 = vmatprep.subr.mxu0 0.0
    %8643 = vmatpush1.msra.mxu0 0.0
    %8644 = vmatprep.subr.mxu0 0.0
    %8645 = vmatpush1.msra.mxu0 0.0
    %8646 = vmatprep.subr.mxu0 0.0
    %8647 = vmatpush1.msra.mxu0 0.0
    %8648 = vmatprep.subr.mxu0 0.0
    %8649 = vmatpush1.msra.mxu0 0.0
    %8650 = vmatprep.mubr.f32.mxu0 0.0
    %v8651 = vand.u32 %v8330, 4294901760
    %v8652 = vsub.f32 %v8330, %v8651
    %v8653 = vand.u32 %v8652, 4294901760
    %8654 = vmatmul.mubr.f32.gmra.mrb[0].mxu0 %v8653
    %v8655 = vpop.f32.mrb[0].mxu0
    %v8656 = vadd.f32 %v8579, %v8655
    %v8657 = vpop.f32.mrb[0].mxu0
    %8658 = vdwg.mxu0
    %8659 = vmatprep.subr.mxu0 0.0
    %v8660 = vand.u32 %v8322, 4294901760
    %v8661 = vsub.f32 %v8322, %v8660
    %v8662 = vand.u32 %v8661, 4294901760
    %8663 = vmatpush1.msra.mxu0 %v8662
    %8664 = vmatprep.subr.mxu0 0.0
    %v8665 = vand.u32 %v8323, 4294901760
    %v8666 = vsub.f32 %v8323, %v8665
    %v8667 = vand.u32 %v8666, 4294901760
    %8668 = vmatpush1.msra.mxu0 %v8667
    %8669 = vmatprep.subr.mxu0 0.0
    %v8670 = vand.u32 %v8324, 4294901760
    %v8671 = vsub.f32 %v8324, %v8670
    %v8672 = vand.u32 %v8671, 4294901760
    %8673 = vmatpush1.msra.mxu0 %v8672
    %8674 = vmatprep.subr.mxu0 0.0
    %v8675 = vand.u32 %v8325, 4294901760
    %v8676 = vsub.f32 %v8325, %v8675
    %v8677 = vand.u32 %v8676, 4294901760
    %8678 = vmatpush1.msra.mxu0 %v8677
    %8679 = vmatprep.subr.mxu0 0.0
    %8680 = vmatpush1.msra.mxu0 0.0
    %8681 = vmatprep.subr.mxu0 0.0
    %8682 = vmatpush1.msra.mxu0 0.0
    %8683 = vmatprep.subr.mxu0 0.0
    %8684 = vmatpush1.msra.mxu0 0.0
    %8685 = vmatprep.subr.mxu0 0.0
    %8686 = vmatpush1.msra.mxu0 0.0
    %8687 = vmatprep.subr.mxu0 0.0
    %8688 = vmatpush1.msra.mxu0 0.0
    %8689 = vmatprep.subr.mxu0 0.0
    %8690 = vmatpush1.msra.mxu0 0.0
    %8691 = vmatprep.subr.mxu0 0.0
    %8692 = vmatpush1.msra.mxu0 0.0
    %8693 = vmatprep.subr.mxu0 0.0
    %8694 = vmatpush1.msra.mxu0 0.0
    %8695 = vmatprep.subr.mxu0 0.0
    %8696 = vmatpush1.msra.mxu0 0.0
    %8697 = vmatprep.subr.mxu0 0.0
    %8698 = vmatpush1.msra.mxu0 0.0
    %8699 = vmatprep.subr.mxu0 0.0
    %8700 = vmatpush1.msra.mxu0 0.0
    %8701 = vmatprep.subr.mxu0 0.0
    %8702 = vmatpush1.msra.mxu0 0.0
    %8703 = vmatprep.subr.mxu0 0.0
    %8704 = vmatpush1.msra.mxu0 0.0
    %8705 = vmatprep.subr.mxu0 0.0
    %8706 = vmatpush1.msra.mxu0 0.0
    %8707 = vmatprep.subr.mxu0 0.0
    %8708 = vmatpush1.msra.mxu0 0.0
    %8709 = vmatprep.subr.mxu0 0.0
    %8710 = vmatpush1.msra.mxu0 0.0
    %8711 = vmatprep.subr.mxu0 0.0
    %8712 = vmatpush1.msra.mxu0 0.0
    %8713 = vmatprep.subr.mxu0 0.0
    %8714 = vmatpush1.msra.mxu0 0.0
    %8715 = vmatprep.subr.mxu0 0.0
    %8716 = vmatpush1.msra.mxu0 0.0
    %8717 = vmatprep.subr.mxu0 0.0
    %8718 = vmatpush1.msra.mxu0 0.0
    %8719 = vmatprep.subr.mxu0 0.0
    %8720 = vmatpush1.msra.mxu0 0.0
    %8721 = vmatprep.subr.mxu0 0.0
    %8722 = vmatpush1.msra.mxu0 0.0
    %8723 = vmatprep.subr.mxu0 0.0
    %8724 = vmatpush1.msra.mxu0 0.0
    %8725 = vmatprep.subr.mxu0 0.0
    %8726 = vmatpush1.msra.mxu0 0.0
    %8727 = vmatprep.subr.mxu0 0.0
    %8728 = vmatpush1.msra.mxu0 0.0
    %8729 = vmatprep.subr.mxu0 0.0
    %8730 = vmatpush1.msra.mxu0 0.0
    %8731 = vmatprep.subr.mxu0 0.0
    %8732 = vmatpush1.msra.mxu0 0.0
    %8733 = vmatprep.subr.mxu0 0.0
    %8734 = vmatpush1.msra.mxu0 0.0
    %8735 = vmatprep.mubr.f32.mxu0 0.0
    %v8736 = vand.u32 %v8330, 4294901760
    %8737 = vmatmul.mubr.f32.gmra.mrb[0].mxu0 %v8736
    %v8738 = vpop.f32.mrb[0].mxu0
    %v8739 = vadd.f32 %v8656, %v8738
    %v8740 = vpop.f32.mrb[0].mxu0
    %8741 = vdwg.mxu0
    %8742 = vmatprep.subr.mxu0 0.0
    %v8743 = vand.u32 %v8322, 4294901760
    %8744 = vmatpush1.msra.mxu0 %v8743
    %8745 = vmatprep.subr.mxu0 0.0
    %v8746 = vand.u32 %v8323, 4294901760
    %8747 = vmatpush1.msra.mxu0 %v8746
    %8748 = vmatprep.subr.mxu0 0.0
    %v8749 = vand.u32 %v8324, 4294901760
    %8750 = vmatpush1.msra.mxu0 %v8749
    %8751 = vmatprep.subr.mxu0 0.0
    %v8752 = vand.u32 %v8325, 4294901760
    %8753 = vmatpush1.msra.mxu0 %v8752
    %8754 = vmatprep.subr.mxu0 0.0
    %8755 = vmatpush1.msra.mxu0 0.0
    %8756 = vmatprep.subr.mxu0 0.0
    %8757 = vmatpush1.msra.mxu0 0.0
    %8758 = vmatprep.subr.mxu0 0.0
    %8759 = vmatpush1.msra.mxu0 0.0
    %8760 = vmatprep.subr.mxu0 0.0
    %8761 = vmatpush1.msra.mxu0 0.0
    %8762 = vmatprep.subr.mxu0 0.0
    %8763 = vmatpush1.msra.mxu0 0.0
    %8764 = vmatprep.subr.mxu0 0.0
    %8765 = vmatpush1.msra.mxu0 0.0
    %8766 = vmatprep.subr.mxu0 0.0
    %8767 = vmatpush1.msra.mxu0 0.0
    %8768 = vmatprep.subr.mxu0 0.0
    %8769 = vmatpush1.msra.mxu0 0.0
    %8770 = vmatprep.subr.mxu0 0.0
    %8771 = vmatpush1.msra.mxu0 0.0
    %8772 = vmatprep.subr.mxu0 0.0
    %8773 = vmatpush1.msra.mxu0 0.0
    %8774 = vmatprep.subr.mxu0 0.0
    %8775 = vmatpush1.msra.mxu0 0.0
    %8776 = vmatprep.subr.mxu0 0.0
    %8777 = vmatpush1.msra.mxu0 0.0
    %8778 = vmatprep.subr.mxu0 0.0
    %8779 = vmatpush1.msra.mxu0 0.0
    %8780 = vmatprep.subr.mxu0 0.0
    %8781 = vmatpush1.msra.mxu0 0.0
    %8782 = vmatprep.subr.mxu0 0.0
    %8783 = vmatpush1.msra.mxu0 0.0
    %8784 = vmatprep.subr.mxu0 0.0
    %8785 = vmatpush1.msra.mxu0 0.0
    %8786 = vmatprep.subr.mxu0 0.0
    %8787 = vmatpush1.msra.mxu0 0.0
    %8788 = vmatprep.subr.mxu0 0.0
    %8789 = vmatpush1.msra.mxu0 0.0
    %8790 = vmatprep.subr.mxu0 0.0
    %8791 = vmatpush1.msra.mxu0 0.0
    %8792 = vmatprep.subr.mxu0 0.0
    %8793 = vmatpush1.msra.mxu0 0.0
    %8794 = vmatprep.subr.mxu0 0.0
    %8795 = vmatpush1.msra.mxu0 0.0
    %8796 = vmatprep.subr.mxu0 0.0
    %8797 = vmatpush1.msra.mxu0 0.0
    %8798 = vmatprep.subr.mxu0 0.0
    %8799 = vmatpush1.msra.mxu0 0.0
    %8800 = vmatprep.subr.mxu0 0.0
    %8801 = vmatpush1.msra.mxu0 0.0
    %8802 = vmatprep.subr.mxu0 0.0
    %8803 = vmatpush1.msra.mxu0 0.0
    %8804 = vmatprep.subr.mxu0 0.0
    %8805 = vmatpush1.msra.mxu0 0.0
    %8806 = vmatprep.subr.mxu0 0.0
    %8807 = vmatpush1.msra.mxu0 0.0
    %8808 = vmatprep.subr.mxu0 0.0
    %8809 = vmatpush1.msra.mxu0 0.0
    %8810 = vmatprep.mubr.f32.mxu0 0.0
    %v8811 = vand.u32 %v8330, 4294901760
    %8812 = vmatmul.mubr.f32.gmra.mrb[0].mxu0 %v8811
    %v8813 = vpop.f32.mrb[0].mxu0
    %v8814 = vadd.f32 %v8739, %v8813
    %v8815 = vpop.f32.mrb[0].mxu0
    %8816 = vdwg.mxu0
    %v8818 = vrot.slane %v8814, 7
    %v8820 = vsel %vm1649, %v8319, %v8818
    %v8821 = vxor.u32 %v8820, 2147483648
    %v8822 = vmul.f32 %v8821, 1.442695
    %v8823 = vpow.pop %v8822
    %v8824 = vadd.f32 %v8823, 1.0
    %v8825 = vrcp.pop %v8824
    %v8826 = vmul.f32 1.0, %v8825
    %v8827 = vtanh.pop %v8820
    %v8828 = vmul.f32 %v8826, %v7814
    %8830 = vrot.lane.b32.xlu0 %v8827, 64
    %v8831 = vpop.permute.xlu0 %8830
    %v8833 = vmul.f32 %v8826, %v8831
    %8835 = vrot.lane.b32.xlu0 %v8833, 32
    %v8836 = vpop.permute.xlu0 %8835
    %v8838 = vadd.f32 %v8828, %v8836
    %v8839 = vtanh.pop %v8838
    %8841 = vrot.lane.b32.xlu0 %v8839, 64
    %v8842 = vpop.permute.xlu0 %8841
    %v8844 = vmul.f32 %v8826, %v8842
    %8846 = vrot.lane.b32.xlu0 %v8844, 32
    %v8847 = vpop.permute.xlu0 %8846
    %8849 = vst.msk [vmem:[#allocation3 + $0x7] sm:$0x1] %vm1679, %v8847
    %8850 = vrot.lane.b32.xlu0 %v8844, 64
    %v8851 = vpop.permute.xlu0 %8850
    %8853 = vst.msk [vmem:[#allocation3 - $0x1] sm:$0x2] %vm1684, %v8851
    %v8854 = vld [vmem:[#allocation3] sm:$0xff]
    %v8855 = vld [vmem:[#allocation12] sm:$0xff]
    %v8856 = vld [vmem:[#allocation12 + $0x8] sm:$0xff]
    %v8857 = vld [vmem:[#allocation12 + $0x10] sm:$0xff]
    %v8858 = vld [vmem:[#allocation12 + $0x18] sm:$0xff]
    %v8859 = vld [vmem:[#allocation12 + $0x20] sm:$0xff]
    %v8860 = vld [vmem:[#allocation12 + $0x28] sm:$0xff]
    %v8861 = vld [vmem:[#allocation12 + $0x30] sm:$0xff]
    %v8862 = vld [vmem:[#allocation12 + $0x38] sm:$0xff]
    %v8863 = vld [vmem:[%s6] sm:$0x1]
    %v8865 = vlaneseq
    %v8866 = vshrl.u32 %v8865, 7
    %v8867 = vsub.s32 0, %v8866
    %v8868 = vrot.slane %v8863, %v8867
    %vm8870 = vcmask 523264
    %v8872 = vsel %vm8870, %v8854, 0
    %8874 = vmatprep.subr.mxu0 0.0
    %v8875 = vand.u32 %v8855, 4294901760
    %8876 = vmatpush1.msra.mxu0 %v8875
    %8877 = vmatprep.subr.mxu0 0.0
    %v8878 = vand.u32 %v8856, 4294901760
    %8879 = vmatpush1.msra.mxu0 %v8878
    %8880 = vmatprep.subr.mxu0 0.0
    %v8881 = vand.u32 %v8857, 4294901760
    %8882 = vmatpush1.msra.mxu0 %v8881
    %8883 = vmatprep.subr.mxu0 0.0
    %v8884 = vand.u32 %v8858, 4294901760
    %8885 = vmatpush1.msra.mxu0 %v8884
    %8886 = vmatprep.subr.mxu0 0.0
    %v8887 = vand.u32 %v8859, 4294901760
    %8888 = vmatpush1.msra.mxu0 %v8887
    %8889 = vmatprep.subr.mxu0 0.0
    %v8890 = vand.u32 %v8860, 4294901760
    %8891 = vmatpush1.msra.mxu0 %v8890
    %8892 = vmatprep.subr.mxu0 0.0
    %v8893 = vand.u32 %v8861, 4294901760
    %8894 = vmatpush1.msra.mxu0 %v8893
    %8895 = vmatprep.subr.mxu0 0.0
    %v8896 = vand.u32 %v8862, 4294901760
    %8897 = vmatpush1.msra.mxu0 %v8896
    %8898 = vmatprep.subr.mxu0 0.0
    %8899 = vmatpush1.msra.mxu0 0.0
    %8900 = vmatprep.subr.mxu0 0.0
    %8901 = vmatpush1.msra.mxu0 0.0
    %8902 = vmatprep.subr.mxu0 0.0
    %8903 = vmatpush1.msra.mxu0 0.0
    %8904 = vmatprep.subr.mxu0 0.0
    %8905 = vmatpush1.msra.mxu0 0.0
    %8906 = vmatprep.subr.mxu0 0.0
    %8907 = vmatpush1.msra.mxu0 0.0
    %8908 = vmatprep.subr.mxu0 0.0
    %8909 = vmatpush1.msra.mxu0 0.0
    %8910 = vmatprep.subr.mxu0 0.0
    %8911 = vmatpush1.msra.mxu0 0.0
    %8912 = vmatprep.subr.mxu0 0.0
    %8913 = vmatpush1.msra.mxu0 0.0
    %8914 = vmatprep.subr.mxu0 0.0
    %8915 = vmatpush1.msra.mxu0 0.0
    %8916 = vmatprep.subr.mxu0 0.0
    %8917 = vmatpush1.msra.mxu0 0.0
    %8918 = vmatprep.subr.mxu0 0.0
    %8919 = vmatpush1.msra.mxu0 0.0
    %8920 = vmatprep.subr.mxu0 0.0
    %8921 = vmatpush1.msra.mxu0 0.0
    %8922 = vmatprep.subr.mxu0 0.0
    %8923 = vmatpush1.msra.mxu0 0.0
    %8924 = vmatprep.subr.mxu0 0.0
    %8925 = vmatpush1.msra.mxu0 0.0
    %8926 = vmatprep.subr.mxu0 0.0
    %8927 = vmatpush1.msra.mxu0 0.0
    %8928 = vmatprep.subr.mxu0 0.0
    %8929 = vmatpush1.msra.mxu0 0.0
    %8930 = vmatprep.subr.mxu0 0.0
    %8931 = vmatpush1.msra.mxu0 0.0
    %8932 = vmatprep.subr.mxu0 0.0
    %8933 = vmatpush1.msra.mxu0 0.0
    %8934 = vmatprep.subr.mxu0 0.0
    %8935 = vmatpush1.msra.mxu0 0.0
    %8936 = vmatprep.subr.mxu0 0.0
    %8937 = vmatpush1.msra.mxu0 0.0
    %8938 = vmatprep.subr.mxu0 0.0
    %8939 = vmatpush1.msra.mxu0 0.0
    %8940 = vmatprep.subr.mxu0 0.0
    %8941 = vmatpush1.msra.mxu0 0.0
    %8942 = vmatprep.subr.mxu0 0.0
    %8943 = vmatpush1.msra.mxu0 0.0
    %8944 = vmatprep.subr.mxu0 0.0
    %8945 = vmatpush1.msra.mxu0 0.0
    %8946 = vmatprep.mubr.f32.mxu0 0.0
    %v8947 = vand.u32 %v8872, 4294901760
    %v8948 = vsub.f32 %v8872, %v8947
    %v8949 = vand.u32 %v8948, 4294901760
    %v8950 = vsub.f32 %v8948, %v8949
    %v8951 = vand.u32 %v8950, 4294901760
    %8952 = vmatmul.mubr.f32.gmra.mrb[0].mxu0 %v8951
    %v8953 = vpop.f32.mrb[0].mxu0
    %v8954 = vadd.f32 %v8868, %v8953
    %v8955 = vpop.f32.mrb[0].mxu0
    %8956 = vdwg.mxu0
    %8957 = vmatprep.subr.mxu0 0.0
    %v8958 = vand.u32 %v8855, 4294901760
    %v8959 = vsub.f32 %v8855, %v8958
    %v8960 = vand.u32 %v8959, 4294901760
    %v8961 = vsub.f32 %v8959, %v8960
    %v8962 = vand.u32 %v8961, 4294901760
    %8963 = vmatpush1.msra.mxu0 %v8962
    %8964 = vmatprep.subr.mxu0 0.0
    %v8965 = vand.u32 %v8856, 4294901760
    %v8966 = vsub.f32 %v8856, %v8965
    %v8967 = vand.u32 %v8966, 4294901760
    %v8968 = vsub.f32 %v8966, %v8967
    %v8969 = vand.u32 %v8968, 4294901760
    %8970 = vmatpush1.msra.mxu0 %v8969
    %8971 = vmatprep.subr.mxu0 0.0
    %v8972 = vand.u32 %v8857, 4294901760
    %v8973 = vsub.f32 %v8857, %v8972
    %v8974 = vand.u32 %v8973, 4294901760
    %v8975 = vsub.f32 %v8973, %v8974
    %v8976 = vand.u32 %v8975, 4294901760
    %8977 = vmatpush1.msra.mxu0 %v8976
    %8978 = vmatprep.subr.mxu0 0.0
    %v8979 = vand.u32 %v8858, 4294901760
    %v8980 = vsub.f32 %v8858, %v8979
    %v8981 = vand.u32 %v8980, 4294901760
    %v8982 = vsub.f32 %v8980, %v8981
    %v8983 = vand.u32 %v8982, 4294901760
    %8984 = vmatpush1.msra.mxu0 %v8983
    %8985 = vmatprep.subr.mxu0 0.0
    %v8986 = vand.u32 %v8859, 4294901760
    %v8987 = vsub.f32 %v8859, %v8986
    %v8988 = vand.u32 %v8987, 4294901760
    %v8989 = vsub.f32 %v8987, %v8988
    %v8990 = vand.u32 %v8989, 4294901760
    %8991 = vmatpush1.msra.mxu0 %v8990
    %8992 = vmatprep.subr.mxu0 0.0
    %v8993 = vand.u32 %v8860, 4294901760
    %v8994 = vsub.f32 %v8860, %v8993
    %v8995 = vand.u32 %v8994, 4294901760
    %v8996 = vsub.f32 %v8994, %v8995
    %v8997 = vand.u32 %v8996, 4294901760
    %8998 = vmatpush1.msra.mxu0 %v8997
    %8999 = vmatprep.subr.mxu0 0.0
    %v9000 = vand.u32 %v8861, 4294901760
    %v9001 = vsub.f32 %v8861, %v9000
    %v9002 = vand.u32 %v9001, 4294901760
    %v9003 = vsub.f32 %v9001, %v9002
    %v9004 = vand.u32 %v9003, 4294901760
    %9005 = vmatpush1.msra.mxu0 %v9004
    %9006 = vmatprep.subr.mxu0 0.0
    %v9007 = vand.u32 %v8862, 4294901760
    %v9008 = vsub.f32 %v8862, %v9007
    %v9009 = vand.u32 %v9008, 4294901760
    %v9010 = vsub.f32 %v9008, %v9009
    %v9011 = vand.u32 %v9010, 4294901760
    %9012 = vmatpush1.msra.mxu0 %v9011
    %9013 = vmatprep.subr.mxu0 0.0
    %9014 = vmatpush1.msra.mxu0 0.0
    %9015 = vmatprep.subr.mxu0 0.0
    %9016 = vmatpush1.msra.mxu0 0.0
    %9017 = vmatprep.subr.mxu0 0.0
    %9018 = vmatpush1.msra.mxu0 0.0
    %9019 = vmatprep.subr.mxu0 0.0
    %9020 = vmatpush1.msra.mxu0 0.0
    %9021 = vmatprep.subr.mxu0 0.0
    %9022 = vmatpush1.msra.mxu0 0.0
    %9023 = vmatprep.subr.mxu0 0.0
    %9024 = vmatpush1.msra.mxu0 0.0
    %9025 = vmatprep.subr.mxu0 0.0
    %9026 = vmatpush1.msra.mxu0 0.0
    %9027 = vmatprep.subr.mxu0 0.0
    %9028 = vmatpush1.msra.mxu0 0.0
    %9029 = vmatprep.subr.mxu0 0.0
    %9030 = vmatpush1.msra.mxu0 0.0
    %9031 = vmatprep.subr.mxu0 0.0
    %9032 = vmatpush1.msra.mxu0 0.0
    %9033 = vmatprep.subr.mxu0 0.0
    %9034 = vmatpush1.msra.mxu0 0.0
    %9035 = vmatprep.subr.mxu0 0.0
    %9036 = vmatpush1.msra.mxu0 0.0
    %9037 = vmatprep.subr.mxu0 0.0
    %9038 = vmatpush1.msra.mxu0 0.0
    %9039 = vmatprep.subr.mxu0 0.0
    %9040 = vmatpush1.msra.mxu0 0.0
    %9041 = vmatprep.subr.mxu0 0.0
    %9042 = vmatpush1.msra.mxu0 0.0
    %9043 = vmatprep.subr.mxu0 0.0
    %9044 = vmatpush1.msra.mxu0 0.0
    %9045 = vmatprep.subr.mxu0 0.0
    %9046 = vmatpush1.msra.mxu0 0.0
    %9047 = vmatprep.subr.mxu0 0.0
    %9048 = vmatpush1.msra.mxu0 0.0
    %9049 = vmatprep.subr.mxu0 0.0
    %9050 = vmatpush1.msra.mxu0 0.0
    %9051 = vmatprep.subr.mxu0 0.0
    %9052 = vmatpush1.msra.mxu0 0.0
    %9053 = vmatprep.subr.mxu0 0.0
    %9054 = vmatpush1.msra.mxu0 0.0
    %9055 = vmatprep.subr.mxu0 0.0
    %9056 = vmatpush1.msra.mxu0 0.0
    %9057 = vmatprep.subr.mxu0 0.0
    %9058 = vmatpush1.msra.mxu0 0.0
    %9059 = vmatprep.subr.mxu0 0.0
    %9060 = vmatpush1.msra.mxu0 0.0
    %9061 = vmatprep.mubr.f32.mxu0 0.0
    %v9062 = vand.u32 %v8872, 4294901760
    %9063 = vmatmul.mubr.f32.gmra.mrb[0].mxu0 %v9062
    %v9064 = vpop.f32.mrb[0].mxu0
    %v9065 = vadd.f32 %v8954, %v9064
    %v9066 = vpop.f32.mrb[0].mxu0
    %9067 = vdwg.mxu0
    %9068 = vmatprep.subr.mxu0 0.0
    %v9069 = vand.u32 %v8855, 4294901760
    %v9070 = vsub.f32 %v8855, %v9069
    %9071 = vmatpush1.msra.mxu0 %v9070
    %9072 = vmatprep.subr.mxu0 0.0
    %v9073 = vand.u32 %v8856, 4294901760
    %v9074 = vsub.f32 %v8856, %v9073
    %9075 = vmatpush1.msra.mxu0 %v9074
    %9076 = vmatprep.subr.mxu0 0.0
    %v9077 = vand.u32 %v8857, 4294901760
    %v9078 = vsub.f32 %v8857, %v9077
    %9079 = vmatpush1.msra.mxu0 %v9078
    %9080 = vmatprep.subr.mxu0 0.0
    %v9081 = vand.u32 %v8858, 4294901760
    %v9082 = vsub.f32 %v8858, %v9081
    %9083 = vmatpush1.msra.mxu0 %v9082
    %9084 = vmatprep.subr.mxu0 0.0
    %v9085 = vand.u32 %v8859, 4294901760
    %v9086 = vsub.f32 %v8859, %v9085
    %9087 = vmatpush1.msra.mxu0 %v9086
    %9088 = vmatprep.subr.mxu0 0.0
    %v9089 = vand.u32 %v8860, 4294901760
    %v9090 = vsub.f32 %v8860, %v9089
    %9091 = vmatpush1.msra.mxu0 %v9090
    %9092 = vmatprep.subr.mxu0 0.0
    %v9093 = vand.u32 %v8861, 4294901760
    %v9094 = vsub.f32 %v8861, %v9093
    %9095 = vmatpush1.msra.mxu0 %v9094
    %9096 = vmatprep.subr.mxu0 0.0
    %v9097 = vand.u32 %v8862, 4294901760
    %v9098 = vsub.f32 %v8862, %v9097
    %9099 = vmatpush1.msra.mxu0 %v9098
    %9100 = vmatprep.subr.mxu0 0.0
    %9101 = vmatpush1.msra.mxu0 0.0
    %9102 = vmatprep.subr.mxu0 0.0
    %9103 = vmatpush1.msra.mxu0 0.0
    %9104 = vmatprep.subr.mxu0 0.0
    %9105 = vmatpush1.msra.mxu0 0.0
    %9106 = vmatprep.subr.mxu0 0.0
    %9107 = vmatpush1.msra.mxu0 0.0
    %9108 = vmatprep.subr.mxu0 0.0
    %9109 = vmatpush1.msra.mxu0 0.0
    %9110 = vmatprep.subr.mxu0 0.0
    %9111 = vmatpush1.msra.mxu0 0.0
    %9112 = vmatprep.subr.mxu0 0.0
    %9113 = vmatpush1.msra.mxu0 0.0
    %9114 = vmatprep.subr.mxu0 0.0
    %9115 = vmatpush1.msra.mxu0 0.0
    %9116 = vmatprep.subr.mxu0 0.0
    %9117 = vmatpush1.msra.mxu0 0.0
    %9118 = vmatprep.subr.mxu0 0.0
    %9119 = vmatpush1.msra.mxu0 0.0
    %9120 = vmatprep.subr.mxu0 0.0
    %9121 = vmatpush1.msra.mxu0 0.0
    %9122 = vmatprep.subr.mxu0 0.0
    %9123 = vmatpush1.msra.mxu0 0.0
    %9124 = vmatprep.subr.mxu0 0.0
    %9125 = vmatpush1.msra.mxu0 0.0
    %9126 = vmatprep.subr.mxu0 0.0
    %9127 = vmatpush1.msra.mxu0 0.0
    %9128 = vmatprep.subr.mxu0 0.0
    %9129 = vmatpush1.msra.mxu0 0.0
    %9130 = vmatprep.subr.mxu0 0.0
    %9131 = vmatpush1.msra.mxu0 0.0
    %9132 = vmatprep.subr.mxu0 0.0
    %9133 = vmatpush1.msra.mxu0 0.0
    %9134 = vmatprep.subr.mxu0 0.0
    %9135 = vmatpush1.msra.mxu0 0.0
    %9136 = vmatprep.subr.mxu0 0.0
    %9137 = vmatpush1.msra.mxu0 0.0
    %9138 = vmatprep.subr.mxu0 0.0
    %9139 = vmatpush1.msra.mxu0 0.0
    %9140 = vmatprep.subr.mxu0 0.0
    %9141 = vmatpush1.msra.mxu0 0.0
    %9142 = vmatprep.subr.mxu0 0.0
    %9143 = vmatpush1.msra.mxu0 0.0
    %9144 = vmatprep.subr.mxu0 0.0
    %9145 = vmatpush1.msra.mxu0 0.0
    %9146 = vmatprep.subr.mxu0 0.0
    %9147 = vmatpush1.msra.mxu0 0.0
    %9148 = vmatprep.mubr.f32.mxu0 0.0
    %v9149 = vand.u32 %v8872, 4294901760
    %v9150 = vsub.f32 %v8872, %v9149
    %9151 = vmatmul.mubr.f32.gmra.mrb[0].mxu0 %v9150
    %v9152 = vpop.f32.mrb[0].mxu0
    %v9153 = vadd.f32 %v9065, %v9152
    %v9154 = vpop.f32.mrb[0].mxu0
    %9155 = vdwg.mxu0
    %9156 = vmatprep.subr.mxu0 0.0
    %v9157 = vand.u32 %v8855, 4294901760
    %9158 = vmatpush1.msra.mxu0 %v9157
    %9159 = vmatprep.subr.mxu0 0.0
    %v9160 = vand.u32 %v8856, 4294901760
    %9161 = vmatpush1.msra.mxu0 %v9160
    %9162 = vmatprep.subr.mxu0 0.0
    %v9163 = vand.u32 %v8857, 4294901760
    %9164 = vmatpush1.msra.mxu0 %v9163
    %9165 = vmatprep.subr.mxu0 0.0
    %v9166 = vand.u32 %v8858, 4294901760
    %9167 = vmatpush1.msra.mxu0 %v9166
    %9168 = vmatprep.subr.mxu0 0.0
    %v9169 = vand.u32 %v8859, 4294901760
    %9170 = vmatpush1.msra.mxu0 %v9169
    %9171 = vmatprep.subr.mxu0 0.0
    %v9172 = vand.u32 %v8860, 4294901760
    %9173 = vmatpush1.msra.mxu0 %v9172
    %9174 = vmatprep.subr.mxu0 0.0
    %v9175 = vand.u32 %v8861, 4294901760
    %9176 = vmatpush1.msra.mxu0 %v9175
    %9177 = vmatprep.subr.mxu0 0.0
    %v9178 = vand.u32 %v8862, 4294901760
    %9179 = vmatpush1.msra.mxu0 %v9178
    %9180 = vmatprep.subr.mxu0 0.0
    %9181 = vmatpush1.msra.mxu0 0.0
    %9182 = vmatprep.subr.mxu0 0.0
    %9183 = vmatpush1.msra.mxu0 0.0
    %9184 = vmatprep.subr.mxu0 0.0
    %9185 = vmatpush1.msra.mxu0 0.0
    %9186 = vmatprep.subr.mxu0 0.0
    %9187 = vmatpush1.msra.mxu0 0.0
    %9188 = vmatprep.subr.mxu0 0.0
    %9189 = vmatpush1.msra.mxu0 0.0
    %9190 = vmatprep.subr.mxu0 0.0
    %9191 = vmatpush1.msra.mxu0 0.0
    %9192 = vmatprep.subr.mxu0 0.0
    %9193 = vmatpush1.msra.mxu0 0.0
    %9194 = vmatprep.subr.mxu0 0.0
    %9195 = vmatpush1.msra.mxu0 0.0
    %9196 = vmatprep.subr.mxu0 0.0
    %9197 = vmatpush1.msra.mxu0 0.0
    %9198 = vmatprep.subr.mxu0 0.0
    %9199 = vmatpush1.msra.mxu0 0.0
    %9200 = vmatprep.subr.mxu0 0.0
    %9201 = vmatpush1.msra.mxu0 0.0
    %9202 = vmatprep.subr.mxu0 0.0
    %9203 = vmatpush1.msra.mxu0 0.0
    %9204 = vmatprep.subr.mxu0 0.0
    %9205 = vmatpush1.msra.mxu0 0.0
    %9206 = vmatprep.subr.mxu0 0.0
    %9207 = vmatpush1.msra.mxu0 0.0
    %9208 = vmatprep.subr.mxu0 0.0
    %9209 = vmatpush1.msra.mxu0 0.0
    %9210 = vmatprep.subr.mxu0 0.0
    %9211 = vmatpush1.msra.mxu0 0.0
    %9212 = vmatprep.subr.mxu0 0.0
    %9213 = vmatpush1.msra.mxu0 0.0
    %9214 = vmatprep.subr.mxu0 0.0
    %9215 = vmatpush1.msra.mxu0 0.0
    %9216 = vmatprep.subr.mxu0 0.0
    %9217 = vmatpush1.msra.mxu0 0.0
    %9218 = vmatprep.subr.mxu0 0.0
    %9219 = vmatpush1.msra.mxu0 0.0
    %9220 = vmatprep.subr.mxu0 0.0
    %9221 = vmatpush1.msra.mxu0 0.0
    %9222 = vmatprep.subr.mxu0 0.0
    %9223 = vmatpush1.msra.mxu0 0.0
    %9224 = vmatprep.subr.mxu0 0.0
    %9225 = vmatpush1.msra.mxu0 0.0
    %9226 = vmatprep.subr.mxu0 0.0
    %9227 = vmatpush1.msra.mxu0 0.0
    %9228 = vmatprep.mubr.f32.mxu0 0.0
    %v9229 = vand.u32 %v8872, 4294901760
    %v9230 = vsub.f32 %v8872, %v9229
    %v9231 = vand.u32 %v9230, 4294901760
    %9232 = vmatmul.mubr.f32.gmra.mrb[0].mxu0 %v9231
    %v9233 = vpop.f32.mrb[0].mxu0
    %v9234 = vadd.f32 %v9153, %v9233
    %v9235 = vpop.f32.mrb[0].mxu0
    %9236 = vdwg.mxu0
    %9237 = vmatprep.subr.mxu0 0.0
    %v9238 = vand.u32 %v8855, 4294901760
    %v9239 = vsub.f32 %v8855, %v9238
    %v9240 = vand.u32 %v9239, 4294901760
    %9241 = vmatpush1.msra.mxu0 %v9240
    %9242 = vmatprep.subr.mxu0 0.0
    %v9243 = vand.u32 %v8856, 4294901760
    %v9244 = vsub.f32 %v8856, %v9243
    %v9245 = vand.u32 %v9244, 4294901760
    %9246 = vmatpush1.msra.mxu0 %v9245
    %9247 = vmatprep.subr.mxu0 0.0
    %v9248 = vand.u32 %v8857, 4294901760
    %v9249 = vsub.f32 %v8857, %v9248
    %v9250 = vand.u32 %v9249, 4294901760
    %9251 = vmatpush1.msra.mxu0 %v9250
    %9252 = vmatprep.subr.mxu0 0.0
    %v9253 = vand.u32 %v8858, 4294901760
    %v9254 = vsub.f32 %v8858, %v9253
    %v9255 = vand.u32 %v9254, 4294901760
    %9256 = vmatpush1.msra.mxu0 %v9255
    %9257 = vmatprep.subr.mxu0 0.0
    %v9258 = vand.u32 %v8859, 4294901760
    %v9259 = vsub.f32 %v8859, %v9258
    %v9260 = vand.u32 %v9259, 4294901760
    %9261 = vmatpush1.msra.mxu0 %v9260
    %9262 = vmatprep.subr.mxu0 0.0
    %v9263 = vand.u32 %v8860, 4294901760
    %v9264 = vsub.f32 %v8860, %v9263
    %v9265 = vand.u32 %v9264, 4294901760
    %9266 = vmatpush1.msra.mxu0 %v9265
    %9267 = vmatprep.subr.mxu0 0.0
    %v9268 = vand.u32 %v8861, 4294901760
    %v9269 = vsub.f32 %v8861, %v9268
    %v9270 = vand.u32 %v9269, 4294901760
    %9271 = vmatpush1.msra.mxu0 %v9270
    %9272 = vmatprep.subr.mxu0 0.0
    %v9273 = vand.u32 %v8862, 4294901760
    %v9274 = vsub.f32 %v8862, %v9273
    %v9275 = vand.u32 %v9274, 4294901760
    %9276 = vmatpush1.msra.mxu0 %v9275
    %9277 = vmatprep.subr.mxu0 0.0
    %9278 = vmatpush1.msra.mxu0 0.0
    %9279 = vmatprep.subr.mxu0 0.0
    %9280 = vmatpush1.msra.mxu0 0.0
    %9281 = vmatprep.subr.mxu0 0.0
    %9282 = vmatpush1.msra.mxu0 0.0
    %9283 = vmatprep.subr.mxu0 0.0
    %9284 = vmatpush1.msra.mxu0 0.0
    %9285 = vmatprep.subr.mxu0 0.0
    %9286 = vmatpush1.msra.mxu0 0.0
    %9287 = vmatprep.subr.mxu0 0.0
    %9288 = vmatpush1.msra.mxu0 0.0
    %9289 = vmatprep.subr.mxu0 0.0
    %9290 = vmatpush1.msra.mxu0 0.0
    %9291 = vmatprep.subr.mxu0 0.0
    %9292 = vmatpush1.msra.mxu0 0.0
    %9293 = vmatprep.subr.mxu0 0.0
    %9294 = vmatpush1.msra.mxu0 0.0
    %9295 = vmatprep.subr.mxu0 0.0
    %9296 = vmatpush1.msra.mxu0 0.0
    %9297 = vmatprep.subr.mxu0 0.0
    %9298 = vmatpush1.msra.mxu0 0.0
    %9299 = vmatprep.subr.mxu0 0.0
    %9300 = vmatpush1.msra.mxu0 0.0
    %9301 = vmatprep.subr.mxu0 0.0
    %9302 = vmatpush1.msra.mxu0 0.0
    %9303 = vmatprep.subr.mxu0 0.0
    %9304 = vmatpush1.msra.mxu0 0.0
    %9305 = vmatprep.subr.mxu0 0.0
    %9306 = vmatpush1.msra.mxu0 0.0
    %9307 = vmatprep.subr.mxu0 0.0
    %9308 = vmatpush1.msra.mxu0 0.0
    %9309 = vmatprep.subr.mxu0 0.0
    %9310 = vmatpush1.msra.mxu0 0.0
    %9311 = vmatprep.subr.mxu0 0.0
    %9312 = vmatpush1.msra.mxu0 0.0
    %9313 = vmatprep.subr.mxu0 0.0
    %9314 = vmatpush1.msra.mxu0 0.0
    %9315 = vmatprep.subr.mxu0 0.0
    %9316 = vmatpush1.msra.mxu0 0.0
    %9317 = vmatprep.subr.mxu0 0.0
    %9318 = vmatpush1.msra.mxu0 0.0
    %9319 = vmatprep.subr.mxu0 0.0
    %9320 = vmatpush1.msra.mxu0 0.0
    %9321 = vmatprep.subr.mxu0 0.0
    %9322 = vmatpush1.msra.mxu0 0.0
    %9323 = vmatprep.subr.mxu0 0.0
    %9324 = vmatpush1.msra.mxu0 0.0
    %9325 = vmatprep.mubr.f32.mxu0 0.0
    %v9326 = vand.u32 %v8872, 4294901760
    %9327 = vmatmul.mubr.f32.gmra.mrb[0].mxu0 %v9326
    %v9328 = vpop.f32.mrb[0].mxu0
    %v9329 = vadd.f32 %v9234, %v9328
    %v9330 = vpop.f32.mrb[0].mxu0
    %9331 = vdwg.mxu0
    %9332 = vmatprep.subr.mxu0 0.0
    %v9333 = vand.u32 %v8855, 4294901760
    %9334 = vmatpush1.msra.mxu0 %v9333
    %9335 = vmatprep.subr.mxu0 0.0
    %v9336 = vand.u32 %v8856, 4294901760
    %9337 = vmatpush1.msra.mxu0 %v9336
    %9338 = vmatprep.subr.mxu0 0.0
    %v9339 = vand.u32 %v8857, 4294901760
    %9340 = vmatpush1.msra.mxu0 %v9339
    %9341 = vmatprep.subr.mxu0 0.0
    %v9342 = vand.u32 %v8858, 4294901760
    %9343 = vmatpush1.msra.mxu0 %v9342
    %9344 = vmatprep.subr.mxu0 0.0
    %v9345 = vand.u32 %v8859, 4294901760
    %9346 = vmatpush1.msra.mxu0 %v9345
    %9347 = vmatprep.subr.mxu0 0.0
    %v9348 = vand.u32 %v8860, 4294901760
    %9349 = vmatpush1.msra.mxu0 %v9348
    %9350 = vmatprep.subr.mxu0 0.0
    %v9351 = vand.u32 %v8861, 4294901760
    %9352 = vmatpush1.msra.mxu0 %v9351
    %9353 = vmatprep.subr.mxu0 0.0
    %v9354 = vand.u32 %v8862, 4294901760
    %9355 = vmatpush1.msra.mxu0 %v9354
    %9356 = vmatprep.subr.mxu0 0.0
    %9357 = vmatpush1.msra.mxu0 0.0
    %9358 = vmatprep.subr.mxu0 0.0
    %9359 = vmatpush1.msra.mxu0 0.0
    %9360 = vmatprep.subr.mxu0 0.0
    %9361 = vmatpush1.msra.mxu0 0.0
    %9362 = vmatprep.subr.mxu0 0.0
    %9363 = vmatpush1.msra.mxu0 0.0
    %9364 = vmatprep.subr.mxu0 0.0
    %9365 = vmatpush1.msra.mxu0 0.0
    %9366 = vmatprep.subr.mxu0 0.0
    %9367 = vmatpush1.msra.mxu0 0.0
    %9368 = vmatprep.subr.mxu0 0.0
    %9369 = vmatpush1.msra.mxu0 0.0
    %9370 = vmatprep.subr.mxu0 0.0
    %9371 = vmatpush1.msra.mxu0 0.0
    %9372 = vmatprep.subr.mxu0 0.0
    %9373 = vmatpush1.msra.mxu0 0.0
    %9374 = vmatprep.subr.mxu0 0.0
    %9375 = vmatpush1.msra.mxu0 0.0
    %9376 = vmatprep.subr.mxu0 0.0
    %9377 = vmatpush1.msra.mxu0 0.0
    %9378 = vmatprep.subr.mxu0 0.0
    %9379 = vmatpush1.msra.mxu0 0.0
    %9380 = vmatprep.subr.mxu0 0.0
    %9381 = vmatpush1.msra.mxu0 0.0
    %9382 = vmatprep.subr.mxu0 0.0
    %9383 = vmatpush1.msra.mxu0 0.0
    %9384 = vmatprep.subr.mxu0 0.0
    %9385 = vmatpush1.msra.mxu0 0.0
    %9386 = vmatprep.subr.mxu0 0.0
    %9387 = vmatpush1.msra.mxu0 0.0
    %9388 = vmatprep.subr.mxu0 0.0
    %9389 = vmatpush1.msra.mxu0 0.0
    %9390 = vmatprep.subr.mxu0 0.0
    %9391 = vmatpush1.msra.mxu0 0.0
    %9392 = vmatprep.subr.mxu0 0.0
    %9393 = vmatpush1.msra.mxu0 0.0
    %9394 = vmatprep.subr.mxu0 0.0
    %9395 = vmatpush1.msra.mxu0 0.0
    %9396 = vmatprep.subr.mxu0 0.0
    %9397 = vmatpush1.msra.mxu0 0.0
    %9398 = vmatprep.subr.mxu0 0.0
    %9399 = vmatpush1.msra.mxu0 0.0
    %9400 = vmatprep.subr.mxu0 0.0
    %9401 = vmatpush1.msra.mxu0 0.0
    %9402 = vmatprep.subr.mxu0 0.0
    %9403 = vmatpush1.msra.mxu0 0.0
    %9404 = vmatprep.mubr.f32.mxu0 0.0
    %v9405 = vand.u32 %v8872, 4294901760
    %9406 = vmatmul.mubr.f32.gmra.mrb[0].mxu0 %v9405
    %v9407 = vpop.f32.mrb[0].mxu0
    %v9408 = vadd.f32 %v9329, %v9407
    %v9409 = vpop.f32.mrb[0].mxu0
    %9410 = vdwg.mxu0
    %9411 = vst [vmem:[#allocation13] sm:$0xff] %v9408
    // Predicated region
    $region50: #{tpu_custom_call.1} parent=1 // pred_check
      _
    $region51: #{tpu_custom_call.1} parent=1 // pred_check_branch
      %9413 = sbr.rel (0) target = $region53
    $region52: #{tpu_custom_call.1} parent=1 // pred_region
      %s9415 = ssub.s32 128, 128
      %9416 = vsyncadd [#allocation6], %s9415
      %s9418 = sshll.u32 [#allocation13], 4
      %s9419 = int_to_ptr.vmem [resolvable:$true] %s9418
      %9421 = dma.vmem_to_hbm [thread:$0]  %s9419, 128, %s7, [#allocation6]
    $region53: #{tpu_custom_call.1} parent=1 // pred_fallthru
      _
    // Predicated region
    $region54: #{tpu_custom_call.1} parent=1 // pred_check
      _
    $region55: #{tpu_custom_call.1} parent=1 // pred_check_branch
      %9423 = sbr.rel (0) target = $region57
    $region56: #{tpu_custom_call.1} parent=1 // pred_region
      %9424 = dma.done [#allocation6], 128
    $region57: #{tpu_custom_call.1} parent=1 // pred_fallthru
      _
    %9425 = vsyncpa [#allocation5], 1
    %9426 = vsyncpa [#allocation8], 1
    %9427 = vsyncpa [#allocation11], 1
    %9428 = vsyncpa [#allocation6], 1

</llo_original>
